<compile_context>
chip_gen: v7x
topology: tpu7x:2x2x1
jax: 0.10.0
libtpu: 0.0.40
codegen_flags: <defaults>
</compile_context>

<pallas_src>
import functools

import jax
import jax.numpy as jnp
from jax.experimental import pallas as pl
from jax.experimental.pallas import tpu as pltpu


# ----------------------------- model config ---------------------------------
D_MODEL = 32
N_HEADS = 4
D_KV = 8                 # per-head dim; inner dim = N_HEADS * D_KV = 32
D_FF = 64
VOCAB = 128
NUM_BUCKETS = 32
MAX_DISTANCE = 128
LN_EPS = 1e-6
PAD_ID = 0               # decoder_start_token_id == pad_token_id == 0 in T5
NEG_INF = -1e9


# ----------------------------- fused Pallas kernel --------------------------
def _fused_t5_kernel(
    # token ids / labels
    enc_ids_ref, dec_ids_ref, labels_ref,
    # shared embedding (and its transpose for the tied LM head)
    emb_ref, emb_t_ref,
    # encoder block
    enc_ln1_ref, enc_qkv_ref, enc_o_ref, enc_bias_ref,
    enc_ln2_ref, enc_wi_ref, enc_wo_ref, enc_lnf_ref,
    # decoder block
    dec_ln1_ref, dec_sa_qkv_ref, dec_sa_o_ref, dec_sa_bias_ref,
    dec_ln2_ref, dec_ca_qkv_ref, dec_ca_o_ref, cross_bias_ref,
    dec_ln3_ref, dec_wi_ref, dec_wo_ref, dec_lnf_ref,
    # outputs
    logits_ref, loss_ref,
    *, batch, t_src, t_tgt,
):
    f32 = jnp.float32
    inner = N_HEADS * D_KV

    # ---- helpers (all operate on values living in vregs/VMEM) ----
    def embed(ids_2d, n_tok):
        # one-hot(id) @ emb  == emb[id]  (exact; MXU-friendly, 128 lanes)
        iota = jax.lax.broadcasted_iota(jnp.int32, (n_tok, VOCAB), 1)
        onehot = (iota == ids_2d).astype(f32)
        return jnp.dot(onehot, emb_ref[...], preferred_element_type=f32)

    def rmsnorm(x, w_ref):
        var = jnp.mean(x * x, axis=-1, keepdims=True)
        return x * jax.lax.rsqrt(var + LN_EPS) * w_ref[...]

    def softmax_last(s):
        m = jnp.max(s, axis=-1, keepdims=True)
        p = jnp.exp(s - m)
        denom = jnp.sum(p, axis=-1, keepdims=True)
        return p * pl.reciprocal(denom, approx=True)

    def attention(q, k, v, wo, t_q, t_k, bias_fn):
        # q: (batch*t_q, inner); k, v: (batch*t_k, inner); wo: (inner, D_MODEL)
        # Heads are fully unrolled; the output projection is folded into the
        # head loop:  o @ Wo == sum_h o_h @ Wo_h, so the narrow per-head
        # outputs never need to be re-assembled along the lane axis.
        out_rows = []
        for b in range(batch):
            acc = jnp.zeros((t_q, D_MODEL), f32)
            for h in range(N_HEADS):
                c0, c1 = h * D_KV, (h + 1) * D_KV
                q_bh = q[b * t_q:(b + 1) * t_q, c0:c1]        # (t_q, dk)
                k_bh = k[b * t_k:(b + 1) * t_k, c0:c1]        # (t_k, dk)
                v_bh = v[b * t_k:(b + 1) * t_k, c0:c1]        # (t_k, dk)
                # q @ k^T (T5 does NOT scale by 1/sqrt(dk)); no explicit .T
                s = jax.lax.dot_general(
                    q_bh, k_bh, (((1,), (1,)), ((), ())),
                    preferred_element_type=f32)               # (t_q, t_k)
                p = softmax_last(s + bias_fn(b, h))
                o_bh = jnp.dot(p, v_bh, preferred_element_type=f32)  # (t_q, dk)
                acc = acc + jnp.dot(o_bh, wo[c0:c1, :],
                                    preferred_element_type=f32)      # (t_q, D)
            out_rows.append(acc)
        return jnp.concatenate(out_rows, axis=0)              # (batch*t_q, D)

    def ffn(x, wi_ref, wo_ref):
        hmid = jnp.dot(x, wi_ref[...], preferred_element_type=f32)
        hmid = jnp.maximum(hmid, 0.0)                          # ReLU
        return jnp.dot(hmid, wo_ref[...], preferred_element_type=f32)

    # -------------------- encoder (1 block) --------------------
    x = embed(enc_ids_ref[...], batch * t_src)                 # (B*Ts, D)
    hn = rmsnorm(x, enc_ln1_ref)
    qkv = jnp.dot(hn, enc_qkv_ref[...], preferred_element_type=f32)
    enc_bias = enc_bias_ref[...]                               # (B*H*Ts, Ts)
    x = x + attention(
        qkv[:, :inner], qkv[:, inner:2 * inner], qkv[:, 2 * inner:],
        enc_o_ref[...], t_src, t_src,
        lambda b, h: enc_bias[(b * N_HEADS + h) * t_src:
                              (b * N_HEADS + h + 1) * t_src, :])
    hn = rmsnorm(x, enc_ln2_ref)
    x = x + ffn(hn, enc_wi_ref, enc_wo_ref)
    enc_out = rmsnorm(x, enc_lnf_ref)                          # (B*Ts, D)

    # -------------------- decoder (1 block) --------------------
    y = embed(dec_ids_ref[...], batch * t_tgt)                 # (B*Tt, D)

    # self-attention (causal + relative position bias, batch-independent)
    hn = rmsnorm(y, dec_ln1_ref)
    qkv = jnp.dot(hn, dec_sa_qkv_ref[...], preferred_element_type=f32)
    dec_sa_bias = dec_sa_bias_ref[...]                         # (H*Tt, Tt)
    y = y + attention(
        qkv[:, :inner], qkv[:, inner:2 * inner], qkv[:, 2 * inner:],
        dec_sa_o_ref[...], t_tgt, t_tgt,
        lambda b, h: dec_sa_bias[h * t_tgt:(h + 1) * t_tgt, :])

    # cross-attention (q from decoder, k/v from encoder output; mask-only bias)
    hn = rmsnorm(y, dec_ln2_ref)
    ca_w = dec_ca_qkv_ref[...]                                 # (D, 3*inner)
    q = jnp.dot(hn, ca_w[:, :inner], preferred_element_type=f32)
    kv = jnp.dot(enc_out, ca_w[:, inner:], preferred_element_type=f32)
    cross_bias = cross_bias_ref[...]                           # (B*Tt, Ts)
    y = y + attention(
        q, kv[:, :inner], kv[:, inner:],
        dec_ca_o_ref[...], t_tgt, t_src,
        lambda b, h: cross_bias[b * t_tgt:(b + 1) * t_tgt, :])

    hn = rmsnorm(y, dec_ln3_ref)
    y = y + ffn(hn, dec_wi_ref, dec_wo_ref)
    y = rmsnorm(y, dec_lnf_ref)

    # ------------- tied LM head + cross-entropy (fused) -------------
    y = y * (D_MODEL ** -0.5)                                  # tied-emb rescale
    logits = jnp.dot(y, emb_t_ref[...], preferred_element_type=f32)  # (N, 128)
    logits_ref[...] = logits                                   # lane-dense store

    lbl = labels_ref[...]                                      # (N, 1) int32
    iota_v = jax.lax.broadcasted_iota(jnp.int32, (batch * t_tgt, VOCAB), 1)
    onehot = (iota_v == lbl).astype(f32)
    m = jnp.max(logits, axis=-1, keepdims=True)
    lse = m + jnp.log(jnp.sum(jnp.exp(logits - m), axis=-1, keepdims=True))
    lbl_logit = jnp.sum(onehot * logits, axis=-1, keepdims=True)
    valid = (lbl != -100).astype(f32)                          # (N, 1)
    loss_sum = jnp.sum((lse - lbl_logit) * valid, axis=0, keepdims=True)  # (1,1)
    count = jnp.sum(valid, axis=0, keepdims=True)                          # (1,1)
    loss_ref[...] = loss_sum / jnp.maximum(count, 1.0)


# ----------------------------- T5 glue (plain JAX, tiny) ---------------------
def _relative_position_bucket(rel_pos, bidirectional, num_buckets=NUM_BUCKETS,
                              max_distance=MAX_DISTANCE):
    rel_buckets = jnp.zeros_like(rel_pos)
    if bidirectional:
        num_buckets //= 2
        rel_buckets = rel_buckets + (rel_pos > 0).astype(jnp.int32) * num_buckets
        rel_pos = jnp.abs(rel_pos)
    else:
        rel_pos = -jnp.minimum(rel_pos, 0)
    max_exact = num_buckets // 2
    is_small = rel_pos < max_exact
    rp_f = jnp.maximum(rel_pos, 1).astype(jnp.float32)
    rp_large = max_exact + (
        jnp.log(rp_f / max_exact) / jnp.log(max_distance / max_exact)
        * (num_buckets - max_exact)
    ).astype(jnp.int32)
    rp_large = jnp.minimum(rp_large, num_buckets - 1)
    return rel_buckets + jnp.where(is_small, rel_pos, rp_large)


def compute_position_bias(rel_bias_emb, tq, tk, bidirectional):
    ctx = jnp.arange(tq)[:, None]
    mem = jnp.arange(tk)[None, :]
    buckets = _relative_position_bucket(mem - ctx, bidirectional)
    bias = rel_bias_emb[buckets]                 # (tq, tk, H)
    return jnp.transpose(bias, (2, 0, 1))[None]  # (1, H, tq, tk)


def shift_right(labels):
    shifted = jnp.concatenate(
        [jnp.full((labels.shape[0], 1), PAD_ID, labels.dtype), labels[:, :-1]],
        axis=-1)
    return jnp.where(shifted == -100, PAD_ID, shifted)


def t5_rag_forward(params, input_ids, attention_mask, labels):
    """Returns (loss, logits) exactly like T5RAGWithLocalFiles.forward."""
    B, Ts = input_ids.shape
    Tt = labels.shape[1]
    neg = jnp.float32(NEG_INF)

    dec_ids = shift_right(labels)

    # --- tiny data-independent prep (a few KB) stays in plain JAX ---
    mask_f = attention_mask.astype(jnp.float32)
    enc_pos = compute_position_bias(params["enc_rel_bias"], Ts, Ts, True)   # (1,H,Ts,Ts)
    enc_bias2d = (enc_pos + (1.0 - mask_f)[:, None, None, :] * neg
                  ).reshape(B * N_HEADS * Ts, Ts)                           # (B*H*Ts, Ts)

    dec_pos = compute_position_bias(params["dec_rel_bias"], Tt, Tt, False)[0]  # (H,Tt,Tt)
    causal = jnp.tril(jnp.ones((Tt, Tt), jnp.float32))
    dec_sa_bias2d = (dec_pos + (1.0 - causal)[None] * neg
                     ).reshape(N_HEADS * Tt, Tt)                            # (H*Tt, Tt)

    cross_bias2d = jnp.broadcast_to(
        (1.0 - mask_f)[:, None, :] * neg, (B, Tt, Ts)).reshape(B * Tt, Ts)  # (B*Tt, Ts)

    enc_qkv = jnp.concatenate(
        [params["enc_q"], params["enc_k"], params["enc_v"]], axis=1)
    dec_sa_qkv = jnp.concatenate(
        [params["dec_sa_q"], params["dec_sa_k"], params["dec_sa_v"]], axis=1)
    dec_ca_qkv = jnp.concatenate(
        [params["dec_ca_q"], params["dec_ca_k"], params["dec_ca_v"]], axis=1)

    emb = params["shared_emb"].astype(jnp.float32)
    emb_t = emb.T

    def ln(name):
        return params[name].reshape(1, D_MODEL)

    kernel = functools.partial(_fused_t5_kernel, batch=B, t_src=Ts, t_tgt=Tt)
    vmem = pl.BlockSpec(memory_space=pltpu.MemorySpace.VMEM)

    logits_flat, loss = pl.pallas_call(
        kernel,
        in_specs=[vmem] * 25,
        out_specs=(vmem, vmem),
        out_shape=(
            jax.ShapeDtypeStruct((B * Tt, VOCAB), jnp.float32),
            jax.ShapeDtypeStruct((1, 1), jnp.float32),
        ),
    )(
        input_ids.reshape(B * Ts, 1).astype(jnp.int32),
        dec_ids.reshape(B * Tt, 1).astype(jnp.int32),
        labels.reshape(B * Tt, 1).astype(jnp.int32),
        emb, emb_t,
        ln("enc_ln1"), enc_qkv, params["enc_o"], enc_bias2d,
        ln("enc_ln2"), params["enc_wi"], params["enc_wo"], ln("enc_lnf"),
        ln("dec_ln1"), dec_sa_qkv, params["dec_sa_o"], dec_sa_bias2d,
        ln("dec_ln2"), dec_ca_qkv, params["dec_ca_o"], cross_bias2d,
        ln("dec_ln3"), params["dec_wi"], params["dec_wo"], ln("dec_lnf"),
    )
    return loss[0, 0], logits_flat.reshape(B, Tt, VOCAB)


# ----------------------------- params ---------------------------------------
def init_params(key):
    def nrm(k, shape, scale=0.02):
        return jax.random.normal(k, shape, jnp.float32) * scale

    ks = jax.random.split(key, 32)
    inner = N_HEADS * D_KV
    p = {
        "shared_emb": nrm(ks[0], (VOCAB, D_MODEL)),
        # encoder
        "enc_ln1": jnp.ones((D_MODEL,), jnp.float32),
        "enc_q": nrm(ks[1], (D_MODEL, inner)),
        "enc_k": nrm(ks[2], (D_MODEL, inner)),
        "enc_v": nrm(ks[3], (D_MODEL, inner)),
        "enc_o": nrm(ks[4], (inner, D_MODEL)),
        "enc_rel_bias": nrm(ks[5], (NUM_BUCKETS, N_HEADS)),
        "enc_ln2": jnp.ones((D_MODEL,), jnp.float32),
        "enc_wi": nrm(ks[6], (D_MODEL, D_FF)),
        "enc_wo": nrm(ks[7], (D_FF, D_MODEL)),
        "enc_lnf": jnp.ones((D_MODEL,), jnp.float32),
        # decoder
        "dec_ln1": jnp.ones((D_MODEL,), jnp.float32),
        "dec_sa_q": nrm(ks[8], (D_MODEL, inner)),
        "dec_sa_k": nrm(ks[9], (D_MODEL, inner)),
        "dec_sa_v": nrm(ks[10], (D_MODEL, inner)),
        "dec_sa_o": nrm(ks[11], (inner, D_MODEL)),
        "dec_rel_bias": nrm(ks[12], (NUM_BUCKETS, N_HEADS)),
        "dec_ln2": jnp.ones((D_MODEL,), jnp.float32),
        "dec_ca_q": nrm(ks[13], (D_MODEL, inner)),
        "dec_ca_k": nrm(ks[14], (D_MODEL, inner)),
        "dec_ca_v": nrm(ks[15], (D_MODEL, inner)),
        "dec_ca_o": nrm(ks[16], (inner, D_MODEL)),
        "dec_ln3": jnp.ones((D_MODEL,), jnp.float32),
        "dec_wi": nrm(ks[17], (D_MODEL, D_FF)),
        "dec_wo": nrm(ks[18], (D_FF, D_MODEL)),
        "dec_lnf": jnp.ones((D_MODEL,), jnp.float32),
    }
    return p


# ----------------------------- main ------------------------------------------
if __name__ == "__main__":
    key = jax.random.PRNGKey(0)
    pkey, ikey, lkey = jax.random.split(key, 3)

    B, Ts, Tt = 2, 8, 8
    params = init_params(pkey)

    input_ids = jax.random.randint(ikey, (B, Ts), 1, VOCAB, dtype=jnp.int32)
    attention_mask = jnp.ones((B, Ts), jnp.int32).at[:, -2:].set(
        jnp.array([[1, 1], [0, 0]], jnp.int32))          # some padding in row 1
    labels = jax.random.randint(lkey, (B, Tt), 1, VOCAB, dtype=jnp.int32)
    labels = labels.at[:, -1].set(-100)                  # exercise ignore_index

    fwd = jax.jit(functools.partial(t5_rag_forward, params))
    loss, logits = fwd(input_ids, attention_mask, labels)
    jax.block_until_ready((loss, logits))

    assert logits.shape == (B, Tt, VOCAB)
    assert loss.shape == ()
    assert bool(jnp.isfinite(loss))
    assert bool(jnp.all(jnp.isfinite(logits)))
    print("KERNEL_OK")
</pallas_src>

<mosaic_0001>
module attributes {stable_mosaic.version = 11 : i64} {
  func.func @_fused_t5_kernel(%arg0: memref<16x1xi32, #tpu.memory_space<vmem>>, %arg1: memref<16x1xi32, #tpu.memory_space<vmem>>, %arg2: memref<16x1xi32, #tpu.memory_space<vmem>>, %arg3: memref<128x32xf32, #tpu.memory_space<vmem>>, %arg4: memref<32x128xf32, #tpu.memory_space<vmem>>, %arg5: memref<1x32xf32, #tpu.memory_space<vmem>>, %arg6: memref<32x96xf32, #tpu.memory_space<vmem>>, %arg7: memref<32x32xf32, #tpu.memory_space<vmem>>, %arg8: memref<64x8xf32, #tpu.memory_space<vmem>>, %arg9: memref<1x32xf32, #tpu.memory_space<vmem>>, %arg10: memref<32x64xf32, #tpu.memory_space<vmem>>, %arg11: memref<64x32xf32, #tpu.memory_space<vmem>>, %arg12: memref<1x32xf32, #tpu.memory_space<vmem>>, %arg13: memref<1x32xf32, #tpu.memory_space<vmem>>, %arg14: memref<32x96xf32, #tpu.memory_space<vmem>>, %arg15: memref<32x32xf32, #tpu.memory_space<vmem>>, %arg16: memref<32x8xf32, #tpu.memory_space<vmem>>, %arg17: memref<1x32xf32, #tpu.memory_space<vmem>>, %arg18: memref<32x96xf32, #tpu.memory_space<vmem>>, %arg19: memref<32x32xf32, #tpu.memory_space<vmem>>, %arg20: memref<16x8xf32, #tpu.memory_space<vmem>>, %arg21: memref<1x32xf32, #tpu.memory_space<vmem>>, %arg22: memref<32x64xf32, #tpu.memory_space<vmem>>, %arg23: memref<64x32xf32, #tpu.memory_space<vmem>>, %arg24: memref<1x32xf32, #tpu.memory_space<vmem>>, %arg25: memref<16x128xf32, #tpu.memory_space<vmem>>, %arg26: memref<1x1xf32, #tpu.memory_space<vmem>>) attributes {dimension_semantics = [], scalar_prefetch = 0 : i64, scratch_operands = 0 : i64, tpu.core_type = #tpu.core_type<tc>} {
    %c0 = arith.constant 0 : index
    %c0_0 = arith.constant 0 : index
    %0 = vector.load %arg0[%c0, %c0_0] : memref<16x1xi32, #tpu.memory_space<vmem>>, vector<16x1xi32>
    %1 = tpu.iota {dimensions = array<i32: 1>} : vector<16x128xi32>
    %2 = vector.broadcast %0 : vector<16x1xi32> to vector<16x128xi32>
    %3 = arith.cmpi eq, %1, %2 : vector<16x128xi32>
    %4 = arith.extui %3 : vector<16x128xi1> to vector<16x128xi32>
    %5 = arith.sitofp %4 : vector<16x128xi32> to vector<16x128xf32>
    %c0_1 = arith.constant 0 : index
    %c0_2 = arith.constant 0 : index
    %6 = vector.load %arg3[%c0_1, %c0_2] : memref<128x32xf32, #tpu.memory_space<vmem>>, vector<128x32xf32>
    %cst = arith.constant dense<0.000000e+00> : vector<16x32xf32>
    %7 = tpu.matmul %5, %6, %cst {dimension_numbers = #tpu.dot_dimension_numbers<[1], [0], [0], [1], [0, 0, 1, 1], [], []>} : vector<16x128xf32>, vector<128x32xf32>, vector<16x32xf32> -> vector<16x32xf32>
    %8 = arith.mulf %7, %7 : vector<16x32xf32>
    %cst_3 = arith.constant dense<0.000000e+00> : vector<16xf32>
    %9 = vector.multi_reduction <add>, %8, %cst_3 [1] : vector<16x32xf32> to vector<16xf32>
    %10 = vector.shape_cast %9 : vector<16xf32> to vector<16x1xf32>
    %cst_4 = arith.constant 3.200000e+01 : f32
    %11 = vector.broadcast %cst_4 : f32 to vector<16x1xf32>
    %12 = arith.divf %10, %11 : vector<16x1xf32>
    %cst_5 = arith.constant 9.99999997E-7 : f32
    %13 = vector.broadcast %cst_5 : f32 to vector<16x1xf32>
    %14 = arith.addf %12, %13 : vector<16x1xf32>
    %15 = math.rsqrt %14 : vector<16x1xf32>
    %16 = vector.broadcast %15 : vector<16x1xf32> to vector<16x32xf32>
    %17 = arith.mulf %7, %16 : vector<16x32xf32>
    %c0_6 = arith.constant 0 : index
    %c0_7 = arith.constant 0 : index
    %18 = vector.load %arg5[%c0_6, %c0_7] : memref<1x32xf32, #tpu.memory_space<vmem>>, vector<1x32xf32>
    %19 = vector.broadcast %18 : vector<1x32xf32> to vector<16x32xf32>
    %20 = arith.mulf %17, %19 : vector<16x32xf32>
    %c0_8 = arith.constant 0 : index
    %c0_9 = arith.constant 0 : index
    %21 = vector.load %arg6[%c0_8, %c0_9] : memref<32x96xf32, #tpu.memory_space<vmem>>, vector<32x96xf32>
    %cst_10 = arith.constant dense<0.000000e+00> : vector<16x96xf32>
    %22 = tpu.matmul %20, %21, %cst_10 {dimension_numbers = #tpu.dot_dimension_numbers<[1], [0], [0], [1], [0, 0, 1, 1], [], []>} : vector<16x32xf32>, vector<32x96xf32>, vector<16x96xf32> -> vector<16x96xf32>
    %c0_11 = arith.constant 0 : index
    %c0_12 = arith.constant 0 : index
    %23 = vector.load %arg8[%c0_11, %c0_12] : memref<64x8xf32, #tpu.memory_space<vmem>>, vector<64x8xf32>
    %24 = vector.extract_strided_slice %22 {offsets = [0, 0], sizes = [16, 32], strides = [1, 1]} : vector<16x96xf32> to vector<16x32xf32>
    %25 = vector.extract_strided_slice %22 {offsets = [0, 32], sizes = [16, 32], strides = [1, 1]} : vector<16x96xf32> to vector<16x32xf32>
    %26 = vector.extract_strided_slice %22 {offsets = [0, 64], sizes = [16, 32], strides = [1, 1]} : vector<16x96xf32> to vector<16x32xf32>
    %c0_13 = arith.constant 0 : index
    %c0_14 = arith.constant 0 : index
    %27 = vector.load %arg7[%c0_13, %c0_14] : memref<32x32xf32, #tpu.memory_space<vmem>>, vector<32x32xf32>
    %cst_15 = arith.constant 0.000000e+00 : f32
    %28 = vector.broadcast %cst_15 : f32 to vector<8x32xf32>
    %29 = vector.extract_strided_slice %24 {offsets = [0, 0], sizes = [8, 8], strides = [1, 1]} : vector<16x32xf32> to vector<8x8xf32>
    %30 = vector.extract_strided_slice %25 {offsets = [0, 0], sizes = [8, 8], strides = [1, 1]} : vector<16x32xf32> to vector<8x8xf32>
    %31 = vector.extract_strided_slice %26 {offsets = [0, 0], sizes = [8, 8], strides = [1, 1]} : vector<16x32xf32> to vector<8x8xf32>
    %cst_16 = arith.constant dense<0.000000e+00> : vector<8x8xf32>
    %32 = tpu.matmul %29, %30, %cst_16 {dimension_numbers = #tpu.dot_dimension_numbers<[1], [1], [0], [0], [0, 0, 1, 0], [], []>} : vector<8x8xf32>, vector<8x8xf32>, vector<8x8xf32> -> vector<8x8xf32>
    %33 = vector.extract_strided_slice %23 {offsets = [0, 0], sizes = [8, 8], strides = [1, 1]} : vector<64x8xf32> to vector<8x8xf32>
    %34 = arith.addf %32, %33 : vector<8x8xf32>
    %cst_17 = arith.constant dense<0xFF800000> : vector<8xf32>
    %35 = vector.multi_reduction <maximumf>, %34, %cst_17 [1] : vector<8x8xf32> to vector<8xf32>
    %36 = vector.shape_cast %35 : vector<8xf32> to vector<8x1xf32>
    %37 = vector.broadcast %36 : vector<8x1xf32> to vector<8x8xf32>
    %38 = arith.subf %34, %37 : vector<8x8xf32>
    %39 = math.exp %38 : vector<8x8xf32>
    %cst_18 = arith.constant dense<0.000000e+00> : vector<8xf32>
    %40 = vector.multi_reduction <add>, %39, %cst_18 [1] : vector<8x8xf32> to vector<8xf32>
    %41 = vector.shape_cast %40 : vector<8xf32> to vector<8x1xf32>
    %42 = tpu.reciprocal %41 {approx = true} : vector<8x1xf32> -> vector<8x1xf32>
    %43 = vector.broadcast %42 : vector<8x1xf32> to vector<8x8xf32>
    %44 = arith.mulf %39, %43 : vector<8x8xf32>
    %cst_19 = arith.constant dense<0.000000e+00> : vector<8x8xf32>
    %45 = tpu.matmul %44, %31, %cst_19 {dimension_numbers = #tpu.dot_dimension_numbers<[1], [0], [0], [1], [0, 0, 1, 1], [], []>} : vector<8x8xf32>, vector<8x8xf32>, vector<8x8xf32> -> vector<8x8xf32>
    %46 = vector.extract_strided_slice %27 {offsets = [0, 0], sizes = [8, 32], strides = [1, 1]} : vector<32x32xf32> to vector<8x32xf32>
    %cst_20 = arith.constant dense<0.000000e+00> : vector<8x32xf32>
    %47 = tpu.matmul %45, %46, %cst_20 {dimension_numbers = #tpu.dot_dimension_numbers<[1], [0], [0], [1], [0, 0, 1, 1], [], []>} : vector<8x8xf32>, vector<8x32xf32>, vector<8x32xf32> -> vector<8x32xf32>
    %48 = arith.addf %28, %47 : vector<8x32xf32>
    %49 = vector.extract_strided_slice %24 {offsets = [0, 8], sizes = [8, 8], strides = [1, 1]} : vector<16x32xf32> to vector<8x8xf32>
    %50 = vector.extract_strided_slice %25 {offsets = [0, 8], sizes = [8, 8], strides = [1, 1]} : vector<16x32xf32> to vector<8x8xf32>
    %51 = vector.extract_strided_slice %26 {offsets = [0, 8], sizes = [8, 8], strides = [1, 1]} : vector<16x32xf32> to vector<8x8xf32>
    %cst_21 = arith.constant dense<0.000000e+00> : vector<8x8xf32>
    %52 = tpu.matmul %49, %50, %cst_21 {dimension_numbers = #tpu.dot_dimension_numbers<[1], [1], [0], [0], [0, 0, 1, 0], [], []>} : vector<8x8xf32>, vector<8x8xf32>, vector<8x8xf32> -> vector<8x8xf32>
    %53 = vector.extract_strided_slice %23 {offsets = [8, 0], sizes = [8, 8], strides = [1, 1]} : vector<64x8xf32> to vector<8x8xf32>
    %54 = arith.addf %52, %53 : vector<8x8xf32>
    %cst_22 = arith.constant dense<0xFF800000> : vector<8xf32>
    %55 = vector.multi_reduction <maximumf>, %54, %cst_22 [1] : vector<8x8xf32> to vector<8xf32>
    %56 = vector.shape_cast %55 : vector<8xf32> to vector<8x1xf32>
    %57 = vector.broadcast %56 : vector<8x1xf32> to vector<8x8xf32>
    %58 = arith.subf %54, %57 : vector<8x8xf32>
    %59 = math.exp %58 : vector<8x8xf32>
    %cst_23 = arith.constant dense<0.000000e+00> : vector<8xf32>
    %60 = vector.multi_reduction <add>, %59, %cst_23 [1] : vector<8x8xf32> to vector<8xf32>
    %61 = vector.shape_cast %60 : vector<8xf32> to vector<8x1xf32>
    %62 = tpu.reciprocal %61 {approx = true} : vector<8x1xf32> -> vector<8x1xf32>
    %63 = vector.broadcast %62 : vector<8x1xf32> to vector<8x8xf32>
    %64 = arith.mulf %59, %63 : vector<8x8xf32>
    %cst_24 = arith.constant dense<0.000000e+00> : vector<8x8xf32>
    %65 = tpu.matmul %64, %51, %cst_24 {dimension_numbers = #tpu.dot_dimension_numbers<[1], [0], [0], [1], [0, 0, 1, 1], [], []>} : vector<8x8xf32>, vector<8x8xf32>, vector<8x8xf32> -> vector<8x8xf32>
    %66 = vector.extract_strided_slice %27 {offsets = [8, 0], sizes = [8, 32], strides = [1, 1]} : vector<32x32xf32> to vector<8x32xf32>
    %cst_25 = arith.constant dense<0.000000e+00> : vector<8x32xf32>
    %67 = tpu.matmul %65, %66, %cst_25 {dimension_numbers = #tpu.dot_dimension_numbers<[1], [0], [0], [1], [0, 0, 1, 1], [], []>} : vector<8x8xf32>, vector<8x32xf32>, vector<8x32xf32> -> vector<8x32xf32>
    %68 = arith.addf %48, %67 : vector<8x32xf32>
    %69 = vector.extract_strided_slice %24 {offsets = [0, 16], sizes = [8, 8], strides = [1, 1]} : vector<16x32xf32> to vector<8x8xf32>
    %70 = vector.extract_strided_slice %25 {offsets = [0, 16], sizes = [8, 8], strides = [1, 1]} : vector<16x32xf32> to vector<8x8xf32>
    %71 = vector.extract_strided_slice %26 {offsets = [0, 16], sizes = [8, 8], strides = [1, 1]} : vector<16x32xf32> to vector<8x8xf32>
    %cst_26 = arith.constant dense<0.000000e+00> : vector<8x8xf32>
    %72 = tpu.matmul %69, %70, %cst_26 {dimension_numbers = #tpu.dot_dimension_numbers<[1], [1], [0], [0], [0, 0, 1, 0], [], []>} : vector<8x8xf32>, vector<8x8xf32>, vector<8x8xf32> -> vector<8x8xf32>
    %73 = vector.extract_strided_slice %23 {offsets = [16, 0], sizes = [8, 8], strides = [1, 1]} : vector<64x8xf32> to vector<8x8xf32>
    %74 = arith.addf %72, %73 : vector<8x8xf32>
    %cst_27 = arith.constant dense<0xFF800000> : vector<8xf32>
    %75 = vector.multi_reduction <maximumf>, %74, %cst_27 [1] : vector<8x8xf32> to vector<8xf32>
    %76 = vector.shape_cast %75 : vector<8xf32> to vector<8x1xf32>
    %77 = vector.broadcast %76 : vector<8x1xf32> to vector<8x8xf32>
    %78 = arith.subf %74, %77 : vector<8x8xf32>
    %79 = math.exp %78 : vector<8x8xf32>
    %cst_28 = arith.constant dense<0.000000e+00> : vector<8xf32>
    %80 = vector.multi_reduction <add>, %79, %cst_28 [1] : vector<8x8xf32> to vector<8xf32>
    %81 = vector.shape_cast %80 : vector<8xf32> to vector<8x1xf32>
    %82 = tpu.reciprocal %81 {approx = true} : vector<8x1xf32> -> vector<8x1xf32>
    %83 = vector.broadcast %82 : vector<8x1xf32> to vector<8x8xf32>
    %84 = arith.mulf %79, %83 : vector<8x8xf32>
    %cst_29 = arith.constant dense<0.000000e+00> : vector<8x8xf32>
    %85 = tpu.matmul %84, %71, %cst_29 {dimension_numbers = #tpu.dot_dimension_numbers<[1], [0], [0], [1], [0, 0, 1, 1], [], []>} : vector<8x8xf32>, vector<8x8xf32>, vector<8x8xf32> -> vector<8x8xf32>
    %86 = vector.extract_strided_slice %27 {offsets = [16, 0], sizes = [8, 32], strides = [1, 1]} : vector<32x32xf32> to vector<8x32xf32>
    %cst_30 = arith.constant dense<0.000000e+00> : vector<8x32xf32>
    %87 = tpu.matmul %85, %86, %cst_30 {dimension_numbers = #tpu.dot_dimension_numbers<[1], [0], [0], [1], [0, 0, 1, 1], [], []>} : vector<8x8xf32>, vector<8x32xf32>, vector<8x32xf32> -> vector<8x32xf32>
    %88 = arith.addf %68, %87 : vector<8x32xf32>
    %89 = vector.extract_strided_slice %24 {offsets = [0, 24], sizes = [8, 8], strides = [1, 1]} : vector<16x32xf32> to vector<8x8xf32>
    %90 = vector.extract_strided_slice %25 {offsets = [0, 24], sizes = [8, 8], strides = [1, 1]} : vector<16x32xf32> to vector<8x8xf32>
    %91 = vector.extract_strided_slice %26 {offsets = [0, 24], sizes = [8, 8], strides = [1, 1]} : vector<16x32xf32> to vector<8x8xf32>
    %cst_31 = arith.constant dense<0.000000e+00> : vector<8x8xf32>
    %92 = tpu.matmul %89, %90, %cst_31 {dimension_numbers = #tpu.dot_dimension_numbers<[1], [1], [0], [0], [0, 0, 1, 0], [], []>} : vector<8x8xf32>, vector<8x8xf32>, vector<8x8xf32> -> vector<8x8xf32>
    %93 = vector.extract_strided_slice %23 {offsets = [24, 0], sizes = [8, 8], strides = [1, 1]} : vector<64x8xf32> to vector<8x8xf32>
    %94 = arith.addf %92, %93 : vector<8x8xf32>
    %cst_32 = arith.constant dense<0xFF800000> : vector<8xf32>
    %95 = vector.multi_reduction <maximumf>, %94, %cst_32 [1] : vector<8x8xf32> to vector<8xf32>
    %96 = vector.shape_cast %95 : vector<8xf32> to vector<8x1xf32>
    %97 = vector.broadcast %96 : vector<8x1xf32> to vector<8x8xf32>
    %98 = arith.subf %94, %97 : vector<8x8xf32>
    %99 = math.exp %98 : vector<8x8xf32>
    %cst_33 = arith.constant dense<0.000000e+00> : vector<8xf32>
    %100 = vector.multi_reduction <add>, %99, %cst_33 [1] : vector<8x8xf32> to vector<8xf32>
    %101 = vector.shape_cast %100 : vector<8xf32> to vector<8x1xf32>
    %102 = tpu.reciprocal %101 {approx = true} : vector<8x1xf32> -> vector<8x1xf32>
    %103 = vector.broadcast %102 : vector<8x1xf32> to vector<8x8xf32>
    %104 = arith.mulf %99, %103 : vector<8x8xf32>
    %cst_34 = arith.constant dense<0.000000e+00> : vector<8x8xf32>
    %105 = tpu.matmul %104, %91, %cst_34 {dimension_numbers = #tpu.dot_dimension_numbers<[1], [0], [0], [1], [0, 0, 1, 1], [], []>} : vector<8x8xf32>, vector<8x8xf32>, vector<8x8xf32> -> vector<8x8xf32>
    %106 = vector.extract_strided_slice %27 {offsets = [24, 0], sizes = [8, 32], strides = [1, 1]} : vector<32x32xf32> to vector<8x32xf32>
    %cst_35 = arith.constant dense<0.000000e+00> : vector<8x32xf32>
    %107 = tpu.matmul %105, %106, %cst_35 {dimension_numbers = #tpu.dot_dimension_numbers<[1], [0], [0], [1], [0, 0, 1, 1], [], []>} : vector<8x8xf32>, vector<8x32xf32>, vector<8x32xf32> -> vector<8x32xf32>
    %108 = arith.addf %88, %107 : vector<8x32xf32>
    %cst_36 = arith.constant 0.000000e+00 : f32
    %109 = vector.broadcast %cst_36 : f32 to vector<8x32xf32>
    %110 = vector.extract_strided_slice %24 {offsets = [8, 0], sizes = [8, 8], strides = [1, 1]} : vector<16x32xf32> to vector<8x8xf32>
    %111 = vector.extract_strided_slice %25 {offsets = [8, 0], sizes = [8, 8], strides = [1, 1]} : vector<16x32xf32> to vector<8x8xf32>
    %112 = vector.extract_strided_slice %26 {offsets = [8, 0], sizes = [8, 8], strides = [1, 1]} : vector<16x32xf32> to vector<8x8xf32>
    %cst_37 = arith.constant dense<0.000000e+00> : vector<8x8xf32>
    %113 = tpu.matmul %110, %111, %cst_37 {dimension_numbers = #tpu.dot_dimension_numbers<[1], [1], [0], [0], [0, 0, 1, 0], [], []>} : vector<8x8xf32>, vector<8x8xf32>, vector<8x8xf32> -> vector<8x8xf32>
    %114 = vector.extract_strided_slice %23 {offsets = [32, 0], sizes = [8, 8], strides = [1, 1]} : vector<64x8xf32> to vector<8x8xf32>
    %115 = arith.addf %113, %114 : vector<8x8xf32>
    %cst_38 = arith.constant dense<0xFF800000> : vector<8xf32>
    %116 = vector.multi_reduction <maximumf>, %115, %cst_38 [1] : vector<8x8xf32> to vector<8xf32>
    %117 = vector.shape_cast %116 : vector<8xf32> to vector<8x1xf32>
    %118 = vector.broadcast %117 : vector<8x1xf32> to vector<8x8xf32>
    %119 = arith.subf %115, %118 : vector<8x8xf32>
    %120 = math.exp %119 : vector<8x8xf32>
    %cst_39 = arith.constant dense<0.000000e+00> : vector<8xf32>
    %121 = vector.multi_reduction <add>, %120, %cst_39 [1] : vector<8x8xf32> to vector<8xf32>
    %122 = vector.shape_cast %121 : vector<8xf32> to vector<8x1xf32>
    %123 = tpu.reciprocal %122 {approx = true} : vector<8x1xf32> -> vector<8x1xf32>
    %124 = vector.broadcast %123 : vector<8x1xf32> to vector<8x8xf32>
    %125 = arith.mulf %120, %124 : vector<8x8xf32>
    %cst_40 = arith.constant dense<0.000000e+00> : vector<8x8xf32>
    %126 = tpu.matmul %125, %112, %cst_40 {dimension_numbers = #tpu.dot_dimension_numbers<[1], [0], [0], [1], [0, 0, 1, 1], [], []>} : vector<8x8xf32>, vector<8x8xf32>, vector<8x8xf32> -> vector<8x8xf32>
    %127 = vector.extract_strided_slice %27 {offsets = [0, 0], sizes = [8, 32], strides = [1, 1]} : vector<32x32xf32> to vector<8x32xf32>
    %cst_41 = arith.constant dense<0.000000e+00> : vector<8x32xf32>
    %128 = tpu.matmul %126, %127, %cst_41 {dimension_numbers = #tpu.dot_dimension_numbers<[1], [0], [0], [1], [0, 0, 1, 1], [], []>} : vector<8x8xf32>, vector<8x32xf32>, vector<8x32xf32> -> vector<8x32xf32>
    %129 = arith.addf %109, %128 : vector<8x32xf32>
    %130 = vector.extract_strided_slice %24 {offsets = [8, 8], sizes = [8, 8], strides = [1, 1]} : vector<16x32xf32> to vector<8x8xf32>
    %131 = vector.extract_strided_slice %25 {offsets = [8, 8], sizes = [8, 8], strides = [1, 1]} : vector<16x32xf32> to vector<8x8xf32>
    %132 = vector.extract_strided_slice %26 {offsets = [8, 8], sizes = [8, 8], strides = [1, 1]} : vector<16x32xf32> to vector<8x8xf32>
    %cst_42 = arith.constant dense<0.000000e+00> : vector<8x8xf32>
    %133 = tpu.matmul %130, %131, %cst_42 {dimension_numbers = #tpu.dot_dimension_numbers<[1], [1], [0], [0], [0, 0, 1, 0], [], []>} : vector<8x8xf32>, vector<8x8xf32>, vector<8x8xf32> -> vector<8x8xf32>
    %134 = vector.extract_strided_slice %23 {offsets = [40, 0], sizes = [8, 8], strides = [1, 1]} : vector<64x8xf32> to vector<8x8xf32>
    %135 = arith.addf %133, %134 : vector<8x8xf32>
    %cst_43 = arith.constant dense<0xFF800000> : vector<8xf32>
    %136 = vector.multi_reduction <maximumf>, %135, %cst_43 [1] : vector<8x8xf32> to vector<8xf32>
    %137 = vector.shape_cast %136 : vector<8xf32> to vector<8x1xf32>
    %138 = vector.broadcast %137 : vector<8x1xf32> to vector<8x8xf32>
    %139 = arith.subf %135, %138 : vector<8x8xf32>
    %140 = math.exp %139 : vector<8x8xf32>
    %cst_44 = arith.constant dense<0.000000e+00> : vector<8xf32>
    %141 = vector.multi_reduction <add>, %140, %cst_44 [1] : vector<8x8xf32> to vector<8xf32>
    %142 = vector.shape_cast %141 : vector<8xf32> to vector<8x1xf32>
    %143 = tpu.reciprocal %142 {approx = true} : vector<8x1xf32> -> vector<8x1xf32>
    %144 = vector.broadcast %143 : vector<8x1xf32> to vector<8x8xf32>
    %145 = arith.mulf %140, %144 : vector<8x8xf32>
    %cst_45 = arith.constant dense<0.000000e+00> : vector<8x8xf32>
    %146 = tpu.matmul %145, %132, %cst_45 {dimension_numbers = #tpu.dot_dimension_numbers<[1], [0], [0], [1], [0, 0, 1, 1], [], []>} : vector<8x8xf32>, vector<8x8xf32>, vector<8x8xf32> -> vector<8x8xf32>
    %147 = vector.extract_strided_slice %27 {offsets = [8, 0], sizes = [8, 32], strides = [1, 1]} : vector<32x32xf32> to vector<8x32xf32>
    %cst_46 = arith.constant dense<0.000000e+00> : vector<8x32xf32>
    %148 = tpu.matmul %146, %147, %cst_46 {dimension_numbers = #tpu.dot_dimension_numbers<[1], [0], [0], [1], [0, 0, 1, 1], [], []>} : vector<8x8xf32>, vector<8x32xf32>, vector<8x32xf32> -> vector<8x32xf32>
    %149 = arith.addf %129, %148 : vector<8x32xf32>
    %150 = vector.extract_strided_slice %24 {offsets = [8, 16], sizes = [8, 8], strides = [1, 1]} : vector<16x32xf32> to vector<8x8xf32>
    %151 = vector.extract_strided_slice %25 {offsets = [8, 16], sizes = [8, 8], strides = [1, 1]} : vector<16x32xf32> to vector<8x8xf32>
    %152 = vector.extract_strided_slice %26 {offsets = [8, 16], sizes = [8, 8], strides = [1, 1]} : vector<16x32xf32> to vector<8x8xf32>
    %cst_47 = arith.constant dense<0.000000e+00> : vector<8x8xf32>
    %153 = tpu.matmul %150, %151, %cst_47 {dimension_numbers = #tpu.dot_dimension_numbers<[1], [1], [0], [0], [0, 0, 1, 0], [], []>} : vector<8x8xf32>, vector<8x8xf32>, vector<8x8xf32> -> vector<8x8xf32>
    %154 = vector.extract_strided_slice %23 {offsets = [48, 0], sizes = [8, 8], strides = [1, 1]} : vector<64x8xf32> to vector<8x8xf32>
    %155 = arith.addf %153, %154 : vector<8x8xf32>
    %cst_48 = arith.constant dense<0xFF800000> : vector<8xf32>
    %156 = vector.multi_reduction <maximumf>, %155, %cst_48 [1] : vector<8x8xf32> to vector<8xf32>
    %157 = vector.shape_cast %156 : vector<8xf32> to vector<8x1xf32>
    %158 = vector.broadcast %157 : vector<8x1xf32> to vector<8x8xf32>
    %159 = arith.subf %155, %158 : vector<8x8xf32>
    %160 = math.exp %159 : vector<8x8xf32>
    %cst_49 = arith.constant dense<0.000000e+00> : vector<8xf32>
    %161 = vector.multi_reduction <add>, %160, %cst_49 [1] : vector<8x8xf32> to vector<8xf32>
    %162 = vector.shape_cast %161 : vector<8xf32> to vector<8x1xf32>
    %163 = tpu.reciprocal %162 {approx = true} : vector<8x1xf32> -> vector<8x1xf32>
    %164 = vector.broadcast %163 : vector<8x1xf32> to vector<8x8xf32>
    %165 = arith.mulf %160, %164 : vector<8x8xf32>
    %cst_50 = arith.constant dense<0.000000e+00> : vector<8x8xf32>
    %166 = tpu.matmul %165, %152, %cst_50 {dimension_numbers = #tpu.dot_dimension_numbers<[1], [0], [0], [1], [0, 0, 1, 1], [], []>} : vector<8x8xf32>, vector<8x8xf32>, vector<8x8xf32> -> vector<8x8xf32>
    %167 = vector.extract_strided_slice %27 {offsets = [16, 0], sizes = [8, 32], strides = [1, 1]} : vector<32x32xf32> to vector<8x32xf32>
    %cst_51 = arith.constant dense<0.000000e+00> : vector<8x32xf32>
    %168 = tpu.matmul %166, %167, %cst_51 {dimension_numbers = #tpu.dot_dimension_numbers<[1], [0], [0], [1], [0, 0, 1, 1], [], []>} : vector<8x8xf32>, vector<8x32xf32>, vector<8x32xf32> -> vector<8x32xf32>
    %169 = arith.addf %149, %168 : vector<8x32xf32>
    %170 = vector.extract_strided_slice %24 {offsets = [8, 24], sizes = [8, 8], strides = [1, 1]} : vector<16x32xf32> to vector<8x8xf32>
    %171 = vector.extract_strided_slice %25 {offsets = [8, 24], sizes = [8, 8], strides = [1, 1]} : vector<16x32xf32> to vector<8x8xf32>
    %172 = vector.extract_strided_slice %26 {offsets = [8, 24], sizes = [8, 8], strides = [1, 1]} : vector<16x32xf32> to vector<8x8xf32>
    %cst_52 = arith.constant dense<0.000000e+00> : vector<8x8xf32>
    %173 = tpu.matmul %170, %171, %cst_52 {dimension_numbers = #tpu.dot_dimension_numbers<[1], [1], [0], [0], [0, 0, 1, 0], [], []>} : vector<8x8xf32>, vector<8x8xf32>, vector<8x8xf32> -> vector<8x8xf32>
    %174 = vector.extract_strided_slice %23 {offsets = [56, 0], sizes = [8, 8], strides = [1, 1]} : vector<64x8xf32> to vector<8x8xf32>
    %175 = arith.addf %173, %174 : vector<8x8xf32>
    %cst_53 = arith.constant dense<0xFF800000> : vector<8xf32>
    %176 = vector.multi_reduction <maximumf>, %175, %cst_53 [1] : vector<8x8xf32> to vector<8xf32>
    %177 = vector.shape_cast %176 : vector<8xf32> to vector<8x1xf32>
    %178 = vector.broadcast %177 : vector<8x1xf32> to vector<8x8xf32>
    %179 = arith.subf %175, %178 : vector<8x8xf32>
    %180 = math.exp %179 : vector<8x8xf32>
    %cst_54 = arith.constant dense<0.000000e+00> : vector<8xf32>
    %181 = vector.multi_reduction <add>, %180, %cst_54 [1] : vector<8x8xf32> to vector<8xf32>
    %182 = vector.shape_cast %181 : vector<8xf32> to vector<8x1xf32>
    %183 = tpu.reciprocal %182 {approx = true} : vector<8x1xf32> -> vector<8x1xf32>
    %184 = vector.broadcast %183 : vector<8x1xf32> to vector<8x8xf32>
    %185 = arith.mulf %180, %184 : vector<8x8xf32>
    %cst_55 = arith.constant dense<0.000000e+00> : vector<8x8xf32>
    %186 = tpu.matmul %185, %172, %cst_55 {dimension_numbers = #tpu.dot_dimension_numbers<[1], [0], [0], [1], [0, 0, 1, 1], [], []>} : vector<8x8xf32>, vector<8x8xf32>, vector<8x8xf32> -> vector<8x8xf32>
    %187 = vector.extract_strided_slice %27 {offsets = [24, 0], sizes = [8, 32], strides = [1, 1]} : vector<32x32xf32> to vector<8x32xf32>
    %cst_56 = arith.constant dense<0.000000e+00> : vector<8x32xf32>
    %188 = tpu.matmul %186, %187, %cst_56 {dimension_numbers = #tpu.dot_dimension_numbers<[1], [0], [0], [1], [0, 0, 1, 1], [], []>} : vector<8x8xf32>, vector<8x32xf32>, vector<8x32xf32> -> vector<8x32xf32>
    %189 = arith.addf %169, %188 : vector<8x32xf32>
    %190 = tpu.concatenate %108, %189 in 0 : vector<8x32xf32>, vector<8x32xf32> -> vector<16x32xf32>
    %191 = arith.addf %7, %190 : vector<16x32xf32>
    %192 = arith.mulf %191, %191 : vector<16x32xf32>
    %cst_57 = arith.constant dense<0.000000e+00> : vector<16xf32>
    %193 = vector.multi_reduction <add>, %192, %cst_57 [1] : vector<16x32xf32> to vector<16xf32>
    %194 = vector.shape_cast %193 : vector<16xf32> to vector<16x1xf32>
    %cst_58 = arith.constant 3.200000e+01 : f32
    %195 = vector.broadcast %cst_58 : f32 to vector<16x1xf32>
    %196 = arith.divf %194, %195 : vector<16x1xf32>
    %cst_59 = arith.constant 9.99999997E-7 : f32
    %197 = vector.broadcast %cst_59 : f32 to vector<16x1xf32>
    %198 = arith.addf %196, %197 : vector<16x1xf32>
    %199 = math.rsqrt %198 : vector<16x1xf32>
    %200 = vector.broadcast %199 : vector<16x1xf32> to vector<16x32xf32>
    %201 = arith.mulf %191, %200 : vector<16x32xf32>
    %c0_60 = arith.constant 0 : index
    %c0_61 = arith.constant 0 : index
    %202 = vector.load %arg9[%c0_60, %c0_61] : memref<1x32xf32, #tpu.memory_space<vmem>>, vector<1x32xf32>
    %203 = vector.broadcast %202 : vector<1x32xf32> to vector<16x32xf32>
    %204 = arith.mulf %201, %203 : vector<16x32xf32>
    %c0_62 = arith.constant 0 : index
    %c0_63 = arith.constant 0 : index
    %205 = vector.load %arg10[%c0_62, %c0_63] : memref<32x64xf32, #tpu.memory_space<vmem>>, vector<32x64xf32>
    %cst_64 = arith.constant dense<0.000000e+00> : vector<16x64xf32>
    %206 = tpu.matmul %204, %205, %cst_64 {dimension_numbers = #tpu.dot_dimension_numbers<[1], [0], [0], [1], [0, 0, 1, 1], [], []>} : vector<16x32xf32>, vector<32x64xf32>, vector<16x64xf32> -> vector<16x64xf32>
    %cst_65 = arith.constant 0.000000e+00 : f32
    %207 = vector.broadcast %cst_65 : f32 to vector<16x64xf32>
    %208 = arith.maximumf %206, %207 : vector<16x64xf32>
    %c0_66 = arith.constant 0 : index
    %c0_67 = arith.constant 0 : index
    %209 = vector.load %arg11[%c0_66, %c0_67] : memref<64x32xf32, #tpu.memory_space<vmem>>, vector<64x32xf32>
    %cst_68 = arith.constant dense<0.000000e+00> : vector<16x32xf32>
    %210 = tpu.matmul %208, %209, %cst_68 {dimension_numbers = #tpu.dot_dimension_numbers<[1], [0], [0], [1], [0, 0, 1, 1], [], []>} : vector<16x64xf32>, vector<64x32xf32>, vector<16x32xf32> -> vector<16x32xf32>
    %211 = arith.addf %191, %210 : vector<16x32xf32>
    %212 = arith.mulf %211, %211 : vector<16x32xf32>
    %cst_69 = arith.constant dense<0.000000e+00> : vector<16xf32>
    %213 = vector.multi_reduction <add>, %212, %cst_69 [1] : vector<16x32xf32> to vector<16xf32>
    %214 = vector.shape_cast %213 : vector<16xf32> to vector<16x1xf32>
    %cst_70 = arith.constant 3.200000e+01 : f32
    %215 = vector.broadcast %cst_70 : f32 to vector<16x1xf32>
    %216 = arith.divf %214, %215 : vector<16x1xf32>
    %cst_71 = arith.constant 9.99999997E-7 : f32
    %217 = vector.broadcast %cst_71 : f32 to vector<16x1xf32>
    %218 = arith.addf %216, %217 : vector<16x1xf32>
    %219 = math.rsqrt %218 : vector<16x1xf32>
    %220 = vector.broadcast %219 : vector<16x1xf32> to vector<16x32xf32>
    %221 = arith.mulf %211, %220 : vector<16x32xf32>
    %c0_72 = arith.constant 0 : index
    %c0_73 = arith.constant 0 : index
    %222 = vector.load %arg12[%c0_72, %c0_73] : memref<1x32xf32, #tpu.memory_space<vmem>>, vector<1x32xf32>
    %223 = vector.broadcast %222 : vector<1x32xf32> to vector<16x32xf32>
    %224 = arith.mulf %221, %223 : vector<16x32xf32>
    %c0_74 = arith.constant 0 : index
    %c0_75 = arith.constant 0 : index
    %225 = vector.load %arg1[%c0_74, %c0_75] : memref<16x1xi32, #tpu.memory_space<vmem>>, vector<16x1xi32>
    %226 = tpu.iota {dimensions = array<i32: 1>} : vector<16x128xi32>
    %227 = vector.broadcast %225 : vector<16x1xi32> to vector<16x128xi32>
    %228 = arith.cmpi eq, %226, %227 : vector<16x128xi32>
    %229 = arith.extui %228 : vector<16x128xi1> to vector<16x128xi32>
    %230 = arith.sitofp %229 : vector<16x128xi32> to vector<16x128xf32>
    %c0_76 = arith.constant 0 : index
    %c0_77 = arith.constant 0 : index
    %231 = vector.load %arg3[%c0_76, %c0_77] : memref<128x32xf32, #tpu.memory_space<vmem>>, vector<128x32xf32>
    %cst_78 = arith.constant dense<0.000000e+00> : vector<16x32xf32>
    %232 = tpu.matmul %230, %231, %cst_78 {dimension_numbers = #tpu.dot_dimension_numbers<[1], [0], [0], [1], [0, 0, 1, 1], [], []>} : vector<16x128xf32>, vector<128x32xf32>, vector<16x32xf32> -> vector<16x32xf32>
    %233 = arith.mulf %232, %232 : vector<16x32xf32>
    %cst_79 = arith.constant dense<0.000000e+00> : vector<16xf32>
    %234 = vector.multi_reduction <add>, %233, %cst_79 [1] : vector<16x32xf32> to vector<16xf32>
    %235 = vector.shape_cast %234 : vector<16xf32> to vector<16x1xf32>
    %cst_80 = arith.constant 3.200000e+01 : f32
    %236 = vector.broadcast %cst_80 : f32 to vector<16x1xf32>
    %237 = arith.divf %235, %236 : vector<16x1xf32>
    %cst_81 = arith.constant 9.99999997E-7 : f32
    %238 = vector.broadcast %cst_81 : f32 to vector<16x1xf32>
    %239 = arith.addf %237, %238 : vector<16x1xf32>
    %240 = math.rsqrt %239 : vector<16x1xf32>
    %241 = vector.broadcast %240 : vector<16x1xf32> to vector<16x32xf32>
    %242 = arith.mulf %232, %241 : vector<16x32xf32>
    %c0_82 = arith.constant 0 : index
    %c0_83 = arith.constant 0 : index
    %243 = vector.load %arg13[%c0_82, %c0_83] : memref<1x32xf32, #tpu.memory_space<vmem>>, vector<1x32xf32>
    %244 = vector.broadcast %243 : vector<1x32xf32> to vector<16x32xf32>
    %245 = arith.mulf %242, %244 : vector<16x32xf32>
    %c0_84 = arith.constant 0 : index
    %c0_85 = arith.constant 0 : index
    %246 = vector.load %arg14[%c0_84, %c0_85] : memref<32x96xf32, #tpu.memory_space<vmem>>, vector<32x96xf32>
    %cst_86 = arith.constant dense<0.000000e+00> : vector<16x96xf32>
    %247 = tpu.matmul %245, %246, %cst_86 {dimension_numbers = #tpu.dot_dimension_numbers<[1], [0], [0], [1], [0, 0, 1, 1], [], []>} : vector<16x32xf32>, vector<32x96xf32>, vector<16x96xf32> -> vector<16x96xf32>
    %c0_87 = arith.constant 0 : index
    %c0_88 = arith.constant 0 : index
    %248 = vector.load %arg16[%c0_87, %c0_88] : memref<32x8xf32, #tpu.memory_space<vmem>>, vector<32x8xf32>
    %249 = vector.extract_strided_slice %247 {offsets = [0, 0], sizes = [16, 32], strides = [1, 1]} : vector<16x96xf32> to vector<16x32xf32>
    %250 = vector.extract_strided_slice %247 {offsets = [0, 32], sizes = [16, 32], strides = [1, 1]} : vector<16x96xf32> to vector<16x32xf32>
    %251 = vector.extract_strided_slice %247 {offsets = [0, 64], sizes = [16, 32], strides = [1, 1]} : vector<16x96xf32> to vector<16x32xf32>
    %c0_89 = arith.constant 0 : index
    %c0_90 = arith.constant 0 : index
    %252 = vector.load %arg15[%c0_89, %c0_90] : memref<32x32xf32, #tpu.memory_space<vmem>>, vector<32x32xf32>
    %cst_91 = arith.constant 0.000000e+00 : f32
    %253 = vector.broadcast %cst_91 : f32 to vector<8x32xf32>
    %254 = vector.extract_strided_slice %249 {offsets = [0, 0], sizes = [8, 8], strides = [1, 1]} : vector<16x32xf32> to vector<8x8xf32>
    %255 = vector.extract_strided_slice %250 {offsets = [0, 0], sizes = [8, 8], strides = [1, 1]} : vector<16x32xf32> to vector<8x8xf32>
    %256 = vector.extract_strided_slice %251 {offsets = [0, 0], sizes = [8, 8], strides = [1, 1]} : vector<16x32xf32> to vector<8x8xf32>
    %cst_92 = arith.constant dense<0.000000e+00> : vector<8x8xf32>
    %257 = tpu.matmul %254, %255, %cst_92 {dimension_numbers = #tpu.dot_dimension_numbers<[1], [1], [0], [0], [0, 0, 1, 0], [], []>} : vector<8x8xf32>, vector<8x8xf32>, vector<8x8xf32> -> vector<8x8xf32>
    %258 = vector.extract_strided_slice %248 {offsets = [0, 0], sizes = [8, 8], strides = [1, 1]} : vector<32x8xf32> to vector<8x8xf32>
    %259 = arith.addf %257, %258 : vector<8x8xf32>
    %cst_93 = arith.constant dense<0xFF800000> : vector<8xf32>
    %260 = vector.multi_reduction <maximumf>, %259, %cst_93 [1] : vector<8x8xf32> to vector<8xf32>
    %261 = vector.shape_cast %260 : vector<8xf32> to vector<8x1xf32>
    %262 = vector.broadcast %261 : vector<8x1xf32> to vector<8x8xf32>
    %263 = arith.subf %259, %262 : vector<8x8xf32>
    %264 = math.exp %263 : vector<8x8xf32>
    %cst_94 = arith.constant dense<0.000000e+00> : vector<8xf32>
    %265 = vector.multi_reduction <add>, %264, %cst_94 [1] : vector<8x8xf32> to vector<8xf32>
    %266 = vector.shape_cast %265 : vector<8xf32> to vector<8x1xf32>
    %267 = tpu.reciprocal %266 {approx = true} : vector<8x1xf32> -> vector<8x1xf32>
    %268 = vector.broadcast %267 : vector<8x1xf32> to vector<8x8xf32>
    %269 = arith.mulf %264, %268 : vector<8x8xf32>
    %cst_95 = arith.constant dense<0.000000e+00> : vector<8x8xf32>
    %270 = tpu.matmul %269, %256, %cst_95 {dimension_numbers = #tpu.dot_dimension_numbers<[1], [0], [0], [1], [0, 0, 1, 1], [], []>} : vector<8x8xf32>, vector<8x8xf32>, vector<8x8xf32> -> vector<8x8xf32>
    %271 = vector.extract_strided_slice %252 {offsets = [0, 0], sizes = [8, 32], strides = [1, 1]} : vector<32x32xf32> to vector<8x32xf32>
    %cst_96 = arith.constant dense<0.000000e+00> : vector<8x32xf32>
    %272 = tpu.matmul %270, %271, %cst_96 {dimension_numbers = #tpu.dot_dimension_numbers<[1], [0], [0], [1], [0, 0, 1, 1], [], []>} : vector<8x8xf32>, vector<8x32xf32>, vector<8x32xf32> -> vector<8x32xf32>
    %273 = arith.addf %253, %272 : vector<8x32xf32>
    %274 = vector.extract_strided_slice %249 {offsets = [0, 8], sizes = [8, 8], strides = [1, 1]} : vector<16x32xf32> to vector<8x8xf32>
    %275 = vector.extract_strided_slice %250 {offsets = [0, 8], sizes = [8, 8], strides = [1, 1]} : vector<16x32xf32> to vector<8x8xf32>
    %276 = vector.extract_strided_slice %251 {offsets = [0, 8], sizes = [8, 8], strides = [1, 1]} : vector<16x32xf32> to vector<8x8xf32>
    %cst_97 = arith.constant dense<0.000000e+00> : vector<8x8xf32>
    %277 = tpu.matmul %274, %275, %cst_97 {dimension_numbers = #tpu.dot_dimension_numbers<[1], [1], [0], [0], [0, 0, 1, 0], [], []>} : vector<8x8xf32>, vector<8x8xf32>, vector<8x8xf32> -> vector<8x8xf32>
    %278 = vector.extract_strided_slice %248 {offsets = [8, 0], sizes = [8, 8], strides = [1, 1]} : vector<32x8xf32> to vector<8x8xf32>
    %279 = arith.addf %277, %278 : vector<8x8xf32>
    %cst_98 = arith.constant dense<0xFF800000> : vector<8xf32>
    %280 = vector.multi_reduction <maximumf>, %279, %cst_98 [1] : vector<8x8xf32> to vector<8xf32>
    %281 = vector.shape_cast %280 : vector<8xf32> to vector<8x1xf32>
    %282 = vector.broadcast %281 : vector<8x1xf32> to vector<8x8xf32>
    %283 = arith.subf %279, %282 : vector<8x8xf32>
    %284 = math.exp %283 : vector<8x8xf32>
    %cst_99 = arith.constant dense<0.000000e+00> : vector<8xf32>
    %285 = vector.multi_reduction <add>, %284, %cst_99 [1] : vector<8x8xf32> to vector<8xf32>
    %286 = vector.shape_cast %285 : vector<8xf32> to vector<8x1xf32>
    %287 = tpu.reciprocal %286 {approx = true} : vector<8x1xf32> -> vector<8x1xf32>
    %288 = vector.broadcast %287 : vector<8x1xf32> to vector<8x8xf32>
    %289 = arith.mulf %284, %288 : vector<8x8xf32>
    %cst_100 = arith.constant dense<0.000000e+00> : vector<8x8xf32>
    %290 = tpu.matmul %289, %276, %cst_100 {dimension_numbers = #tpu.dot_dimension_numbers<[1], [0], [0], [1], [0, 0, 1, 1], [], []>} : vector<8x8xf32>, vector<8x8xf32>, vector<8x8xf32> -> vector<8x8xf32>
    %291 = vector.extract_strided_slice %252 {offsets = [8, 0], sizes = [8, 32], strides = [1, 1]} : vector<32x32xf32> to vector<8x32xf32>
    %cst_101 = arith.constant dense<0.000000e+00> : vector<8x32xf32>
    %292 = tpu.matmul %290, %291, %cst_101 {dimension_numbers = #tpu.dot_dimension_numbers<[1], [0], [0], [1], [0, 0, 1, 1], [], []>} : vector<8x8xf32>, vector<8x32xf32>, vector<8x32xf32> -> vector<8x32xf32>
    %293 = arith.addf %273, %292 : vector<8x32xf32>
    %294 = vector.extract_strided_slice %249 {offsets = [0, 16], sizes = [8, 8], strides = [1, 1]} : vector<16x32xf32> to vector<8x8xf32>
    %295 = vector.extract_strided_slice %250 {offsets = [0, 16], sizes = [8, 8], strides = [1, 1]} : vector<16x32xf32> to vector<8x8xf32>
    %296 = vector.extract_strided_slice %251 {offsets = [0, 16], sizes = [8, 8], strides = [1, 1]} : vector<16x32xf32> to vector<8x8xf32>
    %cst_102 = arith.constant dense<0.000000e+00> : vector<8x8xf32>
    %297 = tpu.matmul %294, %295, %cst_102 {dimension_numbers = #tpu.dot_dimension_numbers<[1], [1], [0], [0], [0, 0, 1, 0], [], []>} : vector<8x8xf32>, vector<8x8xf32>, vector<8x8xf32> -> vector<8x8xf32>
    %298 = vector.extract_strided_slice %248 {offsets = [16, 0], sizes = [8, 8], strides = [1, 1]} : vector<32x8xf32> to vector<8x8xf32>
    %299 = arith.addf %297, %298 : vector<8x8xf32>
    %cst_103 = arith.constant dense<0xFF800000> : vector<8xf32>
    %300 = vector.multi_reduction <maximumf>, %299, %cst_103 [1] : vector<8x8xf32> to vector<8xf32>
    %301 = vector.shape_cast %300 : vector<8xf32> to vector<8x1xf32>
    %302 = vector.broadcast %301 : vector<8x1xf32> to vector<8x8xf32>
    %303 = arith.subf %299, %302 : vector<8x8xf32>
    %304 = math.exp %303 : vector<8x8xf32>
    %cst_104 = arith.constant dense<0.000000e+00> : vector<8xf32>
    %305 = vector.multi_reduction <add>, %304, %cst_104 [1] : vector<8x8xf32> to vector<8xf32>
    %306 = vector.shape_cast %305 : vector<8xf32> to vector<8x1xf32>
    %307 = tpu.reciprocal %306 {approx = true} : vector<8x1xf32> -> vector<8x1xf32>
    %308 = vector.broadcast %307 : vector<8x1xf32> to vector<8x8xf32>
    %309 = arith.mulf %304, %308 : vector<8x8xf32>
    %cst_105 = arith.constant dense<0.000000e+00> : vector<8x8xf32>
    %310 = tpu.matmul %309, %296, %cst_105 {dimension_numbers = #tpu.dot_dimension_numbers<[1], [0], [0], [1], [0, 0, 1, 1], [], []>} : vector<8x8xf32>, vector<8x8xf32>, vector<8x8xf32> -> vector<8x8xf32>
    %311 = vector.extract_strided_slice %252 {offsets = [16, 0], sizes = [8, 32], strides = [1, 1]} : vector<32x32xf32> to vector<8x32xf32>
    %cst_106 = arith.constant dense<0.000000e+00> : vector<8x32xf32>
    %312 = tpu.matmul %310, %311, %cst_106 {dimension_numbers = #tpu.dot_dimension_numbers<[1], [0], [0], [1], [0, 0, 1, 1], [], []>} : vector<8x8xf32>, vector<8x32xf32>, vector<8x32xf32> -> vector<8x32xf32>
    %313 = arith.addf %293, %312 : vector<8x32xf32>
    %314 = vector.extract_strided_slice %249 {offsets = [0, 24], sizes = [8, 8], strides = [1, 1]} : vector<16x32xf32> to vector<8x8xf32>
    %315 = vector.extract_strided_slice %250 {offsets = [0, 24], sizes = [8, 8], strides = [1, 1]} : vector<16x32xf32> to vector<8x8xf32>
    %316 = vector.extract_strided_slice %251 {offsets = [0, 24], sizes = [8, 8], strides = [1, 1]} : vector<16x32xf32> to vector<8x8xf32>
    %cst_107 = arith.constant dense<0.000000e+00> : vector<8x8xf32>
    %317 = tpu.matmul %314, %315, %cst_107 {dimension_numbers = #tpu.dot_dimension_numbers<[1], [1], [0], [0], [0, 0, 1, 0], [], []>} : vector<8x8xf32>, vector<8x8xf32>, vector<8x8xf32> -> vector<8x8xf32>
    %318 = vector.extract_strided_slice %248 {offsets = [24, 0], sizes = [8, 8], strides = [1, 1]} : vector<32x8xf32> to vector<8x8xf32>
    %319 = arith.addf %317, %318 : vector<8x8xf32>
    %cst_108 = arith.constant dense<0xFF800000> : vector<8xf32>
    %320 = vector.multi_reduction <maximumf>, %319, %cst_108 [1] : vector<8x8xf32> to vector<8xf32>
    %321 = vector.shape_cast %320 : vector<8xf32> to vector<8x1xf32>
    %322 = vector.broadcast %321 : vector<8x1xf32> to vector<8x8xf32>
    %323 = arith.subf %319, %322 : vector<8x8xf32>
    %324 = math.exp %323 : vector<8x8xf32>
    %cst_109 = arith.constant dense<0.000000e+00> : vector<8xf32>
    %325 = vector.multi_reduction <add>, %324, %cst_109 [1] : vector<8x8xf32> to vector<8xf32>
    %326 = vector.shape_cast %325 : vector<8xf32> to vector<8x1xf32>
    %327 = tpu.reciprocal %326 {approx = true} : vector<8x1xf32> -> vector<8x1xf32>
    %328 = vector.broadcast %327 : vector<8x1xf32> to vector<8x8xf32>
    %329 = arith.mulf %324, %328 : vector<8x8xf32>
    %cst_110 = arith.constant dense<0.000000e+00> : vector<8x8xf32>
    %330 = tpu.matmul %329, %316, %cst_110 {dimension_numbers = #tpu.dot_dimension_numbers<[1], [0], [0], [1], [0, 0, 1, 1], [], []>} : vector<8x8xf32>, vector<8x8xf32>, vector<8x8xf32> -> vector<8x8xf32>
    %331 = vector.extract_strided_slice %252 {offsets = [24, 0], sizes = [8, 32], strides = [1, 1]} : vector<32x32xf32> to vector<8x32xf32>
    %cst_111 = arith.constant dense<0.000000e+00> : vector<8x32xf32>
    %332 = tpu.matmul %330, %331, %cst_111 {dimension_numbers = #tpu.dot_dimension_numbers<[1], [0], [0], [1], [0, 0, 1, 1], [], []>} : vector<8x8xf32>, vector<8x32xf32>, vector<8x32xf32> -> vector<8x32xf32>
    %333 = arith.addf %313, %332 : vector<8x32xf32>
    %cst_112 = arith.constant 0.000000e+00 : f32
    %334 = vector.broadcast %cst_112 : f32 to vector<8x32xf32>
    %335 = vector.extract_strided_slice %249 {offsets = [8, 0], sizes = [8, 8], strides = [1, 1]} : vector<16x32xf32> to vector<8x8xf32>
    %336 = vector.extract_strided_slice %250 {offsets = [8, 0], sizes = [8, 8], strides = [1, 1]} : vector<16x32xf32> to vector<8x8xf32>
    %337 = vector.extract_strided_slice %251 {offsets = [8, 0], sizes = [8, 8], strides = [1, 1]} : vector<16x32xf32> to vector<8x8xf32>
    %cst_113 = arith.constant dense<0.000000e+00> : vector<8x8xf32>
    %338 = tpu.matmul %335, %336, %cst_113 {dimension_numbers = #tpu.dot_dimension_numbers<[1], [1], [0], [0], [0, 0, 1, 0], [], []>} : vector<8x8xf32>, vector<8x8xf32>, vector<8x8xf32> -> vector<8x8xf32>
    %339 = vector.extract_strided_slice %248 {offsets = [0, 0], sizes = [8, 8], strides = [1, 1]} : vector<32x8xf32> to vector<8x8xf32>
    %340 = arith.addf %338, %339 : vector<8x8xf32>
    %cst_114 = arith.constant dense<0xFF800000> : vector<8xf32>
    %341 = vector.multi_reduction <maximumf>, %340, %cst_114 [1] : vector<8x8xf32> to vector<8xf32>
    %342 = vector.shape_cast %341 : vector<8xf32> to vector<8x1xf32>
    %343 = vector.broadcast %342 : vector<8x1xf32> to vector<8x8xf32>
    %344 = arith.subf %340, %343 : vector<8x8xf32>
    %345 = math.exp %344 : vector<8x8xf32>
    %cst_115 = arith.constant dense<0.000000e+00> : vector<8xf32>
    %346 = vector.multi_reduction <add>, %345, %cst_115 [1] : vector<8x8xf32> to vector<8xf32>
    %347 = vector.shape_cast %346 : vector<8xf32> to vector<8x1xf32>
    %348 = tpu.reciprocal %347 {approx = true} : vector<8x1xf32> -> vector<8x1xf32>
    %349 = vector.broadcast %348 : vector<8x1xf32> to vector<8x8xf32>
    %350 = arith.mulf %345, %349 : vector<8x8xf32>
    %cst_116 = arith.constant dense<0.000000e+00> : vector<8x8xf32>
    %351 = tpu.matmul %350, %337, %cst_116 {dimension_numbers = #tpu.dot_dimension_numbers<[1], [0], [0], [1], [0, 0, 1, 1], [], []>} : vector<8x8xf32>, vector<8x8xf32>, vector<8x8xf32> -> vector<8x8xf32>
    %352 = vector.extract_strided_slice %252 {offsets = [0, 0], sizes = [8, 32], strides = [1, 1]} : vector<32x32xf32> to vector<8x32xf32>
    %cst_117 = arith.constant dense<0.000000e+00> : vector<8x32xf32>
    %353 = tpu.matmul %351, %352, %cst_117 {dimension_numbers = #tpu.dot_dimension_numbers<[1], [0], [0], [1], [0, 0, 1, 1], [], []>} : vector<8x8xf32>, vector<8x32xf32>, vector<8x32xf32> -> vector<8x32xf32>
    %354 = arith.addf %334, %353 : vector<8x32xf32>
    %355 = vector.extract_strided_slice %249 {offsets = [8, 8], sizes = [8, 8], strides = [1, 1]} : vector<16x32xf32> to vector<8x8xf32>
    %356 = vector.extract_strided_slice %250 {offsets = [8, 8], sizes = [8, 8], strides = [1, 1]} : vector<16x32xf32> to vector<8x8xf32>
    %357 = vector.extract_strided_slice %251 {offsets = [8, 8], sizes = [8, 8], strides = [1, 1]} : vector<16x32xf32> to vector<8x8xf32>
    %cst_118 = arith.constant dense<0.000000e+00> : vector<8x8xf32>
    %358 = tpu.matmul %355, %356, %cst_118 {dimension_numbers = #tpu.dot_dimension_numbers<[1], [1], [0], [0], [0, 0, 1, 0], [], []>} : vector<8x8xf32>, vector<8x8xf32>, vector<8x8xf32> -> vector<8x8xf32>
    %359 = vector.extract_strided_slice %248 {offsets = [8, 0], sizes = [8, 8], strides = [1, 1]} : vector<32x8xf32> to vector<8x8xf32>
    %360 = arith.addf %358, %359 : vector<8x8xf32>
    %cst_119 = arith.constant dense<0xFF800000> : vector<8xf32>
    %361 = vector.multi_reduction <maximumf>, %360, %cst_119 [1] : vector<8x8xf32> to vector<8xf32>
    %362 = vector.shape_cast %361 : vector<8xf32> to vector<8x1xf32>
    %363 = vector.broadcast %362 : vector<8x1xf32> to vector<8x8xf32>
    %364 = arith.subf %360, %363 : vector<8x8xf32>
    %365 = math.exp %364 : vector<8x8xf32>
    %cst_120 = arith.constant dense<0.000000e+00> : vector<8xf32>
    %366 = vector.multi_reduction <add>, %365, %cst_120 [1] : vector<8x8xf32> to vector<8xf32>
    %367 = vector.shape_cast %366 : vector<8xf32> to vector<8x1xf32>
    %368 = tpu.reciprocal %367 {approx = true} : vector<8x1xf32> -> vector<8x1xf32>
    %369 = vector.broadcast %368 : vector<8x1xf32> to vector<8x8xf32>
    %370 = arith.mulf %365, %369 : vector<8x8xf32>
    %cst_121 = arith.constant dense<0.000000e+00> : vector<8x8xf32>
    %371 = tpu.matmul %370, %357, %cst_121 {dimension_numbers = #tpu.dot_dimension_numbers<[1], [0], [0], [1], [0, 0, 1, 1], [], []>} : vector<8x8xf32>, vector<8x8xf32>, vector<8x8xf32> -> vector<8x8xf32>
    %372 = vector.extract_strided_slice %252 {offsets = [8, 0], sizes = [8, 32], strides = [1, 1]} : vector<32x32xf32> to vector<8x32xf32>
    %cst_122 = arith.constant dense<0.000000e+00> : vector<8x32xf32>
    %373 = tpu.matmul %371, %372, %cst_122 {dimension_numbers = #tpu.dot_dimension_numbers<[1], [0], [0], [1], [0, 0, 1, 1], [], []>} : vector<8x8xf32>, vector<8x32xf32>, vector<8x32xf32> -> vector<8x32xf32>
    %374 = arith.addf %354, %373 : vector<8x32xf32>
    %375 = vector.extract_strided_slice %249 {offsets = [8, 16], sizes = [8, 8], strides = [1, 1]} : vector<16x32xf32> to vector<8x8xf32>
    %376 = vector.extract_strided_slice %250 {offsets = [8, 16], sizes = [8, 8], strides = [1, 1]} : vector<16x32xf32> to vector<8x8xf32>
    %377 = vector.extract_strided_slice %251 {offsets = [8, 16], sizes = [8, 8], strides = [1, 1]} : vector<16x32xf32> to vector<8x8xf32>
    %cst_123 = arith.constant dense<0.000000e+00> : vector<8x8xf32>
    %378 = tpu.matmul %375, %376, %cst_123 {dimension_numbers = #tpu.dot_dimension_numbers<[1], [1], [0], [0], [0, 0, 1, 0], [], []>} : vector<8x8xf32>, vector<8x8xf32>, vector<8x8xf32> -> vector<8x8xf32>
    %379 = vector.extract_strided_slice %248 {offsets = [16, 0], sizes = [8, 8], strides = [1, 1]} : vector<32x8xf32> to vector<8x8xf32>
    %380 = arith.addf %378, %379 : vector<8x8xf32>
    %cst_124 = arith.constant dense<0xFF800000> : vector<8xf32>
    %381 = vector.multi_reduction <maximumf>, %380, %cst_124 [1] : vector<8x8xf32> to vector<8xf32>
    %382 = vector.shape_cast %381 : vector<8xf32> to vector<8x1xf32>
    %383 = vector.broadcast %382 : vector<8x1xf32> to vector<8x8xf32>
    %384 = arith.subf %380, %383 : vector<8x8xf32>
    %385 = math.exp %384 : vector<8x8xf32>
    %cst_125 = arith.constant dense<0.000000e+00> : vector<8xf32>
    %386 = vector.multi_reduction <add>, %385, %cst_125 [1] : vector<8x8xf32> to vector<8xf32>
    %387 = vector.shape_cast %386 : vector<8xf32> to vector<8x1xf32>
    %388 = tpu.reciprocal %387 {approx = true} : vector<8x1xf32> -> vector<8x1xf32>
    %389 = vector.broadcast %388 : vector<8x1xf32> to vector<8x8xf32>
    %390 = arith.mulf %385, %389 : vector<8x8xf32>
    %cst_126 = arith.constant dense<0.000000e+00> : vector<8x8xf32>
    %391 = tpu.matmul %390, %377, %cst_126 {dimension_numbers = #tpu.dot_dimension_numbers<[1], [0], [0], [1], [0, 0, 1, 1], [], []>} : vector<8x8xf32>, vector<8x8xf32>, vector<8x8xf32> -> vector<8x8xf32>
    %392 = vector.extract_strided_slice %252 {offsets = [16, 0], sizes = [8, 32], strides = [1, 1]} : vector<32x32xf32> to vector<8x32xf32>
    %cst_127 = arith.constant dense<0.000000e+00> : vector<8x32xf32>
    %393 = tpu.matmul %391, %392, %cst_127 {dimension_numbers = #tpu.dot_dimension_numbers<[1], [0], [0], [1], [0, 0, 1, 1], [], []>} : vector<8x8xf32>, vector<8x32xf32>, vector<8x32xf32> -> vector<8x32xf32>
    %394 = arith.addf %374, %393 : vector<8x32xf32>
    %395 = vector.extract_strided_slice %249 {offsets = [8, 24], sizes = [8, 8], strides = [1, 1]} : vector<16x32xf32> to vector<8x8xf32>
    %396 = vector.extract_strided_slice %250 {offsets = [8, 24], sizes = [8, 8], strides = [1, 1]} : vector<16x32xf32> to vector<8x8xf32>
    %397 = vector.extract_strided_slice %251 {offsets = [8, 24], sizes = [8, 8], strides = [1, 1]} : vector<16x32xf32> to vector<8x8xf32>
    %cst_128 = arith.constant dense<0.000000e+00> : vector<8x8xf32>
    %398 = tpu.matmul %395, %396, %cst_128 {dimension_numbers = #tpu.dot_dimension_numbers<[1], [1], [0], [0], [0, 0, 1, 0], [], []>} : vector<8x8xf32>, vector<8x8xf32>, vector<8x8xf32> -> vector<8x8xf32>
    %399 = vector.extract_strided_slice %248 {offsets = [24, 0], sizes = [8, 8], strides = [1, 1]} : vector<32x8xf32> to vector<8x8xf32>
    %400 = arith.addf %398, %399 : vector<8x8xf32>
    %cst_129 = arith.constant dense<0xFF800000> : vector<8xf32>
    %401 = vector.multi_reduction <maximumf>, %400, %cst_129 [1] : vector<8x8xf32> to vector<8xf32>
    %402 = vector.shape_cast %401 : vector<8xf32> to vector<8x1xf32>
    %403 = vector.broadcast %402 : vector<8x1xf32> to vector<8x8xf32>
    %404 = arith.subf %400, %403 : vector<8x8xf32>
    %405 = math.exp %404 : vector<8x8xf32>
    %cst_130 = arith.constant dense<0.000000e+00> : vector<8xf32>
    %406 = vector.multi_reduction <add>, %405, %cst_130 [1] : vector<8x8xf32> to vector<8xf32>
    %407 = vector.shape_cast %406 : vector<8xf32> to vector<8x1xf32>
    %408 = tpu.reciprocal %407 {approx = true} : vector<8x1xf32> -> vector<8x1xf32>
    %409 = vector.broadcast %408 : vector<8x1xf32> to vector<8x8xf32>
    %410 = arith.mulf %405, %409 : vector<8x8xf32>
    %cst_131 = arith.constant dense<0.000000e+00> : vector<8x8xf32>
    %411 = tpu.matmul %410, %397, %cst_131 {dimension_numbers = #tpu.dot_dimension_numbers<[1], [0], [0], [1], [0, 0, 1, 1], [], []>} : vector<8x8xf32>, vector<8x8xf32>, vector<8x8xf32> -> vector<8x8xf32>
    %412 = vector.extract_strided_slice %252 {offsets = [24, 0], sizes = [8, 32], strides = [1, 1]} : vector<32x32xf32> to vector<8x32xf32>
    %cst_132 = arith.constant dense<0.000000e+00> : vector<8x32xf32>
    %413 = tpu.matmul %411, %412, %cst_132 {dimension_numbers = #tpu.dot_dimension_numbers<[1], [0], [0], [1], [0, 0, 1, 1], [], []>} : vector<8x8xf32>, vector<8x32xf32>, vector<8x32xf32> -> vector<8x32xf32>
    %414 = arith.addf %394, %413 : vector<8x32xf32>
    %415 = tpu.concatenate %333, %414 in 0 : vector<8x32xf32>, vector<8x32xf32> -> vector<16x32xf32>
    %416 = arith.addf %232, %415 : vector<16x32xf32>
    %417 = arith.mulf %416, %416 : vector<16x32xf32>
    %cst_133 = arith.constant dense<0.000000e+00> : vector<16xf32>
    %418 = vector.multi_reduction <add>, %417, %cst_133 [1] : vector<16x32xf32> to vector<16xf32>
    %419 = vector.shape_cast %418 : vector<16xf32> to vector<16x1xf32>
    %cst_134 = arith.constant 3.200000e+01 : f32
    %420 = vector.broadcast %cst_134 : f32 to vector<16x1xf32>
    %421 = arith.divf %419, %420 : vector<16x1xf32>
    %cst_135 = arith.constant 9.99999997E-7 : f32
    %422 = vector.broadcast %cst_135 : f32 to vector<16x1xf32>
    %423 = arith.addf %421, %422 : vector<16x1xf32>
    %424 = math.rsqrt %423 : vector<16x1xf32>
    %425 = vector.broadcast %424 : vector<16x1xf32> to vector<16x32xf32>
    %426 = arith.mulf %416, %425 : vector<16x32xf32>
    %c0_136 = arith.constant 0 : index
    %c0_137 = arith.constant 0 : index
    %427 = vector.load %arg17[%c0_136, %c0_137] : memref<1x32xf32, #tpu.memory_space<vmem>>, vector<1x32xf32>
    %428 = vector.broadcast %427 : vector<1x32xf32> to vector<16x32xf32>
    %429 = arith.mulf %426, %428 : vector<16x32xf32>
    %c0_138 = arith.constant 0 : index
    %c0_139 = arith.constant 0 : index
    %430 = vector.load %arg18[%c0_138, %c0_139] : memref<32x96xf32, #tpu.memory_space<vmem>>, vector<32x96xf32>
    %431 = vector.extract_strided_slice %430 {offsets = [0, 0], sizes = [32, 32], strides = [1, 1]} : vector<32x96xf32> to vector<32x32xf32>
    %cst_140 = arith.constant dense<0.000000e+00> : vector<16x32xf32>
    %432 = tpu.matmul %429, %431, %cst_140 {dimension_numbers = #tpu.dot_dimension_numbers<[1], [0], [0], [1], [0, 0, 1, 1], [], []>} : vector<16x32xf32>, vector<32x32xf32>, vector<16x32xf32> -> vector<16x32xf32>
    %433 = vector.extract_strided_slice %430 {offsets = [0, 32], sizes = [32, 64], strides = [1, 1]} : vector<32x96xf32> to vector<32x64xf32>
    %cst_141 = arith.constant dense<0.000000e+00> : vector<16x64xf32>
    %434 = tpu.matmul %224, %433, %cst_141 {dimension_numbers = #tpu.dot_dimension_numbers<[1], [0], [0], [1], [0, 0, 1, 1], [], []>} : vector<16x32xf32>, vector<32x64xf32>, vector<16x64xf32> -> vector<16x64xf32>
    %c0_142 = arith.constant 0 : index
    %c0_143 = arith.constant 0 : index
    %435 = vector.load %arg20[%c0_142, %c0_143] : memref<16x8xf32, #tpu.memory_space<vmem>>, vector<16x8xf32>
    %436 = vector.extract_strided_slice %434 {offsets = [0, 0], sizes = [16, 32], strides = [1, 1]} : vector<16x64xf32> to vector<16x32xf32>
    %437 = vector.extract_strided_slice %434 {offsets = [0, 32], sizes = [16, 32], strides = [1, 1]} : vector<16x64xf32> to vector<16x32xf32>
    %c0_144 = arith.constant 0 : index
    %c0_145 = arith.constant 0 : index
    %438 = vector.load %arg19[%c0_144, %c0_145] : memref<32x32xf32, #tpu.memory_space<vmem>>, vector<32x32xf32>
    %cst_146 = arith.constant 0.000000e+00 : f32
    %439 = vector.broadcast %cst_146 : f32 to vector<8x32xf32>
    %440 = vector.extract_strided_slice %432 {offsets = [0, 0], sizes = [8, 8], strides = [1, 1]} : vector<16x32xf32> to vector<8x8xf32>
    %441 = vector.extract_strided_slice %436 {offsets = [0, 0], sizes = [8, 8], strides = [1, 1]} : vector<16x32xf32> to vector<8x8xf32>
    %442 = vector.extract_strided_slice %437 {offsets = [0, 0], sizes = [8, 8], strides = [1, 1]} : vector<16x32xf32> to vector<8x8xf32>
    %cst_147 = arith.constant dense<0.000000e+00> : vector<8x8xf32>
    %443 = tpu.matmul %440, %441, %cst_147 {dimension_numbers = #tpu.dot_dimension_numbers<[1], [1], [0], [0], [0, 0, 1, 0], [], []>} : vector<8x8xf32>, vector<8x8xf32>, vector<8x8xf32> -> vector<8x8xf32>
    %444 = vector.extract_strided_slice %435 {offsets = [0, 0], sizes = [8, 8], strides = [1, 1]} : vector<16x8xf32> to vector<8x8xf32>
    %445 = arith.addf %443, %444 : vector<8x8xf32>
    %cst_148 = arith.constant dense<0xFF800000> : vector<8xf32>
    %446 = vector.multi_reduction <maximumf>, %445, %cst_148 [1] : vector<8x8xf32> to vector<8xf32>
    %447 = vector.shape_cast %446 : vector<8xf32> to vector<8x1xf32>
    %448 = vector.broadcast %447 : vector<8x1xf32> to vector<8x8xf32>
    %449 = arith.subf %445, %448 : vector<8x8xf32>
    %450 = math.exp %449 : vector<8x8xf32>
    %cst_149 = arith.constant dense<0.000000e+00> : vector<8xf32>
    %451 = vector.multi_reduction <add>, %450, %cst_149 [1] : vector<8x8xf32> to vector<8xf32>
    %452 = vector.shape_cast %451 : vector<8xf32> to vector<8x1xf32>
    %453 = tpu.reciprocal %452 {approx = true} : vector<8x1xf32> -> vector<8x1xf32>
    %454 = vector.broadcast %453 : vector<8x1xf32> to vector<8x8xf32>
    %455 = arith.mulf %450, %454 : vector<8x8xf32>
    %cst_150 = arith.constant dense<0.000000e+00> : vector<8x8xf32>
    %456 = tpu.matmul %455, %442, %cst_150 {dimension_numbers = #tpu.dot_dimension_numbers<[1], [0], [0], [1], [0, 0, 1, 1], [], []>} : vector<8x8xf32>, vector<8x8xf32>, vector<8x8xf32> -> vector<8x8xf32>
    %457 = vector.extract_strided_slice %438 {offsets = [0, 0], sizes = [8, 32], strides = [1, 1]} : vector<32x32xf32> to vector<8x32xf32>
    %cst_151 = arith.constant dense<0.000000e+00> : vector<8x32xf32>
    %458 = tpu.matmul %456, %457, %cst_151 {dimension_numbers = #tpu.dot_dimension_numbers<[1], [0], [0], [1], [0, 0, 1, 1], [], []>} : vector<8x8xf32>, vector<8x32xf32>, vector<8x32xf32> -> vector<8x32xf32>
    %459 = arith.addf %439, %458 : vector<8x32xf32>
    %460 = vector.extract_strided_slice %432 {offsets = [0, 8], sizes = [8, 8], strides = [1, 1]} : vector<16x32xf32> to vector<8x8xf32>
    %461 = vector.extract_strided_slice %436 {offsets = [0, 8], sizes = [8, 8], strides = [1, 1]} : vector<16x32xf32> to vector<8x8xf32>
    %462 = vector.extract_strided_slice %437 {offsets = [0, 8], sizes = [8, 8], strides = [1, 1]} : vector<16x32xf32> to vector<8x8xf32>
    %cst_152 = arith.constant dense<0.000000e+00> : vector<8x8xf32>
    %463 = tpu.matmul %460, %461, %cst_152 {dimension_numbers = #tpu.dot_dimension_numbers<[1], [1], [0], [0], [0, 0, 1, 0], [], []>} : vector<8x8xf32>, vector<8x8xf32>, vector<8x8xf32> -> vector<8x8xf32>
    %464 = vector.extract_strided_slice %435 {offsets = [0, 0], sizes = [8, 8], strides = [1, 1]} : vector<16x8xf32> to vector<8x8xf32>
    %465 = arith.addf %463, %464 : vector<8x8xf32>
    %cst_153 = arith.constant dense<0xFF800000> : vector<8xf32>
    %466 = vector.multi_reduction <maximumf>, %465, %cst_153 [1] : vector<8x8xf32> to vector<8xf32>
    %467 = vector.shape_cast %466 : vector<8xf32> to vector<8x1xf32>
    %468 = vector.broadcast %467 : vector<8x1xf32> to vector<8x8xf32>
    %469 = arith.subf %465, %468 : vector<8x8xf32>
    %470 = math.exp %469 : vector<8x8xf32>
    %cst_154 = arith.constant dense<0.000000e+00> : vector<8xf32>
    %471 = vector.multi_reduction <add>, %470, %cst_154 [1] : vector<8x8xf32> to vector<8xf32>
    %472 = vector.shape_cast %471 : vector<8xf32> to vector<8x1xf32>
    %473 = tpu.reciprocal %472 {approx = true} : vector<8x1xf32> -> vector<8x1xf32>
    %474 = vector.broadcast %473 : vector<8x1xf32> to vector<8x8xf32>
    %475 = arith.mulf %470, %474 : vector<8x8xf32>
    %cst_155 = arith.constant dense<0.000000e+00> : vector<8x8xf32>
    %476 = tpu.matmul %475, %462, %cst_155 {dimension_numbers = #tpu.dot_dimension_numbers<[1], [0], [0], [1], [0, 0, 1, 1], [], []>} : vector<8x8xf32>, vector<8x8xf32>, vector<8x8xf32> -> vector<8x8xf32>
    %477 = vector.extract_strided_slice %438 {offsets = [8, 0], sizes = [8, 32], strides = [1, 1]} : vector<32x32xf32> to vector<8x32xf32>
    %cst_156 = arith.constant dense<0.000000e+00> : vector<8x32xf32>
    %478 = tpu.matmul %476, %477, %cst_156 {dimension_numbers = #tpu.dot_dimension_numbers<[1], [0], [0], [1], [0, 0, 1, 1], [], []>} : vector<8x8xf32>, vector<8x32xf32>, vector<8x32xf32> -> vector<8x32xf32>
    %479 = arith.addf %459, %478 : vector<8x32xf32>
    %480 = vector.extract_strided_slice %432 {offsets = [0, 16], sizes = [8, 8], strides = [1, 1]} : vector<16x32xf32> to vector<8x8xf32>
    %481 = vector.extract_strided_slice %436 {offsets = [0, 16], sizes = [8, 8], strides = [1, 1]} : vector<16x32xf32> to vector<8x8xf32>
    %482 = vector.extract_strided_slice %437 {offsets = [0, 16], sizes = [8, 8], strides = [1, 1]} : vector<16x32xf32> to vector<8x8xf32>
    %cst_157 = arith.constant dense<0.000000e+00> : vector<8x8xf32>
    %483 = tpu.matmul %480, %481, %cst_157 {dimension_numbers = #tpu.dot_dimension_numbers<[1], [1], [0], [0], [0, 0, 1, 0], [], []>} : vector<8x8xf32>, vector<8x8xf32>, vector<8x8xf32> -> vector<8x8xf32>
    %484 = vector.extract_strided_slice %435 {offsets = [0, 0], sizes = [8, 8], strides = [1, 1]} : vector<16x8xf32> to vector<8x8xf32>
    %485 = arith.addf %483, %484 : vector<8x8xf32>
    %cst_158 = arith.constant dense<0xFF800000> : vector<8xf32>
    %486 = vector.multi_reduction <maximumf>, %485, %cst_158 [1] : vector<8x8xf32> to vector<8xf32>
    %487 = vector.shape_cast %486 : vector<8xf32> to vector<8x1xf32>
    %488 = vector.broadcast %487 : vector<8x1xf32> to vector<8x8xf32>
    %489 = arith.subf %485, %488 : vector<8x8xf32>
    %490 = math.exp %489 : vector<8x8xf32>
    %cst_159 = arith.constant dense<0.000000e+00> : vector<8xf32>
    %491 = vector.multi_reduction <add>, %490, %cst_159 [1] : vector<8x8xf32> to vector<8xf32>
    %492 = vector.shape_cast %491 : vector<8xf32> to vector<8x1xf32>
    %493 = tpu.reciprocal %492 {approx = true} : vector<8x1xf32> -> vector<8x1xf32>
    %494 = vector.broadcast %493 : vector<8x1xf32> to vector<8x8xf32>
    %495 = arith.mulf %490, %494 : vector<8x8xf32>
    %cst_160 = arith.constant dense<0.000000e+00> : vector<8x8xf32>
    %496 = tpu.matmul %495, %482, %cst_160 {dimension_numbers = #tpu.dot_dimension_numbers<[1], [0], [0], [1], [0, 0, 1, 1], [], []>} : vector<8x8xf32>, vector<8x8xf32>, vector<8x8xf32> -> vector<8x8xf32>
    %497 = vector.extract_strided_slice %438 {offsets = [16, 0], sizes = [8, 32], strides = [1, 1]} : vector<32x32xf32> to vector<8x32xf32>
    %cst_161 = arith.constant dense<0.000000e+00> : vector<8x32xf32>
    %498 = tpu.matmul %496, %497, %cst_161 {dimension_numbers = #tpu.dot_dimension_numbers<[1], [0], [0], [1], [0, 0, 1, 1], [], []>} : vector<8x8xf32>, vector<8x32xf32>, vector<8x32xf32> -> vector<8x32xf32>
    %499 = arith.addf %479, %498 : vector<8x32xf32>
    %500 = vector.extract_strided_slice %432 {offsets = [0, 24], sizes = [8, 8], strides = [1, 1]} : vector<16x32xf32> to vector<8x8xf32>
    %501 = vector.extract_strided_slice %436 {offsets = [0, 24], sizes = [8, 8], strides = [1, 1]} : vector<16x32xf32> to vector<8x8xf32>
    %502 = vector.extract_strided_slice %437 {offsets = [0, 24], sizes = [8, 8], strides = [1, 1]} : vector<16x32xf32> to vector<8x8xf32>
    %cst_162 = arith.constant dense<0.000000e+00> : vector<8x8xf32>
    %503 = tpu.matmul %500, %501, %cst_162 {dimension_numbers = #tpu.dot_dimension_numbers<[1], [1], [0], [0], [0, 0, 1, 0], [], []>} : vector<8x8xf32>, vector<8x8xf32>, vector<8x8xf32> -> vector<8x8xf32>
    %504 = vector.extract_strided_slice %435 {offsets = [0, 0], sizes = [8, 8], strides = [1, 1]} : vector<16x8xf32> to vector<8x8xf32>
    %505 = arith.addf %503, %504 : vector<8x8xf32>
    %cst_163 = arith.constant dense<0xFF800000> : vector<8xf32>
    %506 = vector.multi_reduction <maximumf>, %505, %cst_163 [1] : vector<8x8xf32> to vector<8xf32>
    %507 = vector.shape_cast %506 : vector<8xf32> to vector<8x1xf32>
    %508 = vector.broadcast %507 : vector<8x1xf32> to vector<8x8xf32>
    %509 = arith.subf %505, %508 : vector<8x8xf32>
    %510 = math.exp %509 : vector<8x8xf32>
    %cst_164 = arith.constant dense<0.000000e+00> : vector<8xf32>
    %511 = vector.multi_reduction <add>, %510, %cst_164 [1] : vector<8x8xf32> to vector<8xf32>
    %512 = vector.shape_cast %511 : vector<8xf32> to vector<8x1xf32>
    %513 = tpu.reciprocal %512 {approx = true} : vector<8x1xf32> -> vector<8x1xf32>
    %514 = vector.broadcast %513 : vector<8x1xf32> to vector<8x8xf32>
    %515 = arith.mulf %510, %514 : vector<8x8xf32>
    %cst_165 = arith.constant dense<0.000000e+00> : vector<8x8xf32>
    %516 = tpu.matmul %515, %502, %cst_165 {dimension_numbers = #tpu.dot_dimension_numbers<[1], [0], [0], [1], [0, 0, 1, 1], [], []>} : vector<8x8xf32>, vector<8x8xf32>, vector<8x8xf32> -> vector<8x8xf32>
    %517 = vector.extract_strided_slice %438 {offsets = [24, 0], sizes = [8, 32], strides = [1, 1]} : vector<32x32xf32> to vector<8x32xf32>
    %cst_166 = arith.constant dense<0.000000e+00> : vector<8x32xf32>
    %518 = tpu.matmul %516, %517, %cst_166 {dimension_numbers = #tpu.dot_dimension_numbers<[1], [0], [0], [1], [0, 0, 1, 1], [], []>} : vector<8x8xf32>, vector<8x32xf32>, vector<8x32xf32> -> vector<8x32xf32>
    %519 = arith.addf %499, %518 : vector<8x32xf32>
    %cst_167 = arith.constant 0.000000e+00 : f32
    %520 = vector.broadcast %cst_167 : f32 to vector<8x32xf32>
    %521 = vector.extract_strided_slice %432 {offsets = [8, 0], sizes = [8, 8], strides = [1, 1]} : vector<16x32xf32> to vector<8x8xf32>
    %522 = vector.extract_strided_slice %436 {offsets = [8, 0], sizes = [8, 8], strides = [1, 1]} : vector<16x32xf32> to vector<8x8xf32>
    %523 = vector.extract_strided_slice %437 {offsets = [8, 0], sizes = [8, 8], strides = [1, 1]} : vector<16x32xf32> to vector<8x8xf32>
    %cst_168 = arith.constant dense<0.000000e+00> : vector<8x8xf32>
    %524 = tpu.matmul %521, %522, %cst_168 {dimension_numbers = #tpu.dot_dimension_numbers<[1], [1], [0], [0], [0, 0, 1, 0], [], []>} : vector<8x8xf32>, vector<8x8xf32>, vector<8x8xf32> -> vector<8x8xf32>
    %525 = vector.extract_strided_slice %435 {offsets = [8, 0], sizes = [8, 8], strides = [1, 1]} : vector<16x8xf32> to vector<8x8xf32>
    %526 = arith.addf %524, %525 : vector<8x8xf32>
    %cst_169 = arith.constant dense<0xFF800000> : vector<8xf32>
    %527 = vector.multi_reduction <maximumf>, %526, %cst_169 [1] : vector<8x8xf32> to vector<8xf32>
    %528 = vector.shape_cast %527 : vector<8xf32> to vector<8x1xf32>
    %529 = vector.broadcast %528 : vector<8x1xf32> to vector<8x8xf32>
    %530 = arith.subf %526, %529 : vector<8x8xf32>
    %531 = math.exp %530 : vector<8x8xf32>
    %cst_170 = arith.constant dense<0.000000e+00> : vector<8xf32>
    %532 = vector.multi_reduction <add>, %531, %cst_170 [1] : vector<8x8xf32> to vector<8xf32>
    %533 = vector.shape_cast %532 : vector<8xf32> to vector<8x1xf32>
    %534 = tpu.reciprocal %533 {approx = true} : vector<8x1xf32> -> vector<8x1xf32>
    %535 = vector.broadcast %534 : vector<8x1xf32> to vector<8x8xf32>
    %536 = arith.mulf %531, %535 : vector<8x8xf32>
    %cst_171 = arith.constant dense<0.000000e+00> : vector<8x8xf32>
    %537 = tpu.matmul %536, %523, %cst_171 {dimension_numbers = #tpu.dot_dimension_numbers<[1], [0], [0], [1], [0, 0, 1, 1], [], []>} : vector<8x8xf32>, vector<8x8xf32>, vector<8x8xf32> -> vector<8x8xf32>
    %538 = vector.extract_strided_slice %438 {offsets = [0, 0], sizes = [8, 32], strides = [1, 1]} : vector<32x32xf32> to vector<8x32xf32>
    %cst_172 = arith.constant dense<0.000000e+00> : vector<8x32xf32>
    %539 = tpu.matmul %537, %538, %cst_172 {dimension_numbers = #tpu.dot_dimension_numbers<[1], [0], [0], [1], [0, 0, 1, 1], [], []>} : vector<8x8xf32>, vector<8x32xf32>, vector<8x32xf32> -> vector<8x32xf32>
    %540 = arith.addf %520, %539 : vector<8x32xf32>
    %541 = vector.extract_strided_slice %432 {offsets = [8, 8], sizes = [8, 8], strides = [1, 1]} : vector<16x32xf32> to vector<8x8xf32>
    %542 = vector.extract_strided_slice %436 {offsets = [8, 8], sizes = [8, 8], strides = [1, 1]} : vector<16x32xf32> to vector<8x8xf32>
    %543 = vector.extract_strided_slice %437 {offsets = [8, 8], sizes = [8, 8], strides = [1, 1]} : vector<16x32xf32> to vector<8x8xf32>
    %cst_173 = arith.constant dense<0.000000e+00> : vector<8x8xf32>
    %544 = tpu.matmul %541, %542, %cst_173 {dimension_numbers = #tpu.dot_dimension_numbers<[1], [1], [0], [0], [0, 0, 1, 0], [], []>} : vector<8x8xf32>, vector<8x8xf32>, vector<8x8xf32> -> vector<8x8xf32>
    %545 = vector.extract_strided_slice %435 {offsets = [8, 0], sizes = [8, 8], strides = [1, 1]} : vector<16x8xf32> to vector<8x8xf32>
    %546 = arith.addf %544, %545 : vector<8x8xf32>
    %cst_174 = arith.constant dense<0xFF800000> : vector<8xf32>
    %547 = vector.multi_reduction <maximumf>, %546, %cst_174 [1] : vector<8x8xf32> to vector<8xf32>
    %548 = vector.shape_cast %547 : vector<8xf32> to vector<8x1xf32>
    %549 = vector.broadcast %548 : vector<8x1xf32> to vector<8x8xf32>
    %550 = arith.subf %546, %549 : vector<8x8xf32>
    %551 = math.exp %550 : vector<8x8xf32>
    %cst_175 = arith.constant dense<0.000000e+00> : vector<8xf32>
    %552 = vector.multi_reduction <add>, %551, %cst_175 [1] : vector<8x8xf32> to vector<8xf32>
    %553 = vector.shape_cast %552 : vector<8xf32> to vector<8x1xf32>
    %554 = tpu.reciprocal %553 {approx = true} : vector<8x1xf32> -> vector<8x1xf32>
    %555 = vector.broadcast %554 : vector<8x1xf32> to vector<8x8xf32>
    %556 = arith.mulf %551, %555 : vector<8x8xf32>
    %cst_176 = arith.constant dense<0.000000e+00> : vector<8x8xf32>
    %557 = tpu.matmul %556, %543, %cst_176 {dimension_numbers = #tpu.dot_dimension_numbers<[1], [0], [0], [1], [0, 0, 1, 1], [], []>} : vector<8x8xf32>, vector<8x8xf32>, vector<8x8xf32> -> vector<8x8xf32>
    %558 = vector.extract_strided_slice %438 {offsets = [8, 0], sizes = [8, 32], strides = [1, 1]} : vector<32x32xf32> to vector<8x32xf32>
    %cst_177 = arith.constant dense<0.000000e+00> : vector<8x32xf32>
    %559 = tpu.matmul %557, %558, %cst_177 {dimension_numbers = #tpu.dot_dimension_numbers<[1], [0], [0], [1], [0, 0, 1, 1], [], []>} : vector<8x8xf32>, vector<8x32xf32>, vector<8x32xf32> -> vector<8x32xf32>
    %560 = arith.addf %540, %559 : vector<8x32xf32>
    %561 = vector.extract_strided_slice %432 {offsets = [8, 16], sizes = [8, 8], strides = [1, 1]} : vector<16x32xf32> to vector<8x8xf32>
    %562 = vector.extract_strided_slice %436 {offsets = [8, 16], sizes = [8, 8], strides = [1, 1]} : vector<16x32xf32> to vector<8x8xf32>
    %563 = vector.extract_strided_slice %437 {offsets = [8, 16], sizes = [8, 8], strides = [1, 1]} : vector<16x32xf32> to vector<8x8xf32>
    %cst_178 = arith.constant dense<0.000000e+00> : vector<8x8xf32>
    %564 = tpu.matmul %561, %562, %cst_178 {dimension_numbers = #tpu.dot_dimension_numbers<[1], [1], [0], [0], [0, 0, 1, 0], [], []>} : vector<8x8xf32>, vector<8x8xf32>, vector<8x8xf32> -> vector<8x8xf32>
    %565 = vector.extract_strided_slice %435 {offsets = [8, 0], sizes = [8, 8], strides = [1, 1]} : vector<16x8xf32> to vector<8x8xf32>
    %566 = arith.addf %564, %565 : vector<8x8xf32>
    %cst_179 = arith.constant dense<0xFF800000> : vector<8xf32>
    %567 = vector.multi_reduction <maximumf>, %566, %cst_179 [1] : vector<8x8xf32> to vector<8xf32>
    %568 = vector.shape_cast %567 : vector<8xf32> to vector<8x1xf32>
    %569 = vector.broadcast %568 : vector<8x1xf32> to vector<8x8xf32>
    %570 = arith.subf %566, %569 : vector<8x8xf32>
    %571 = math.exp %570 : vector<8x8xf32>
    %cst_180 = arith.constant dense<0.000000e+00> : vector<8xf32>
    %572 = vector.multi_reduction <add>, %571, %cst_180 [1] : vector<8x8xf32> to vector<8xf32>
    %573 = vector.shape_cast %572 : vector<8xf32> to vector<8x1xf32>
    %574 = tpu.reciprocal %573 {approx = true} : vector<8x1xf32> -> vector<8x1xf32>
    %575 = vector.broadcast %574 : vector<8x1xf32> to vector<8x8xf32>
    %576 = arith.mulf %571, %575 : vector<8x8xf32>
    %cst_181 = arith.constant dense<0.000000e+00> : vector<8x8xf32>
    %577 = tpu.matmul %576, %563, %cst_181 {dimension_numbers = #tpu.dot_dimension_numbers<[1], [0], [0], [1], [0, 0, 1, 1], [], []>} : vector<8x8xf32>, vector<8x8xf32>, vector<8x8xf32> -> vector<8x8xf32>
    %578 = vector.extract_strided_slice %438 {offsets = [16, 0], sizes = [8, 32], strides = [1, 1]} : vector<32x32xf32> to vector<8x32xf32>
    %cst_182 = arith.constant dense<0.000000e+00> : vector<8x32xf32>
    %579 = tpu.matmul %577, %578, %cst_182 {dimension_numbers = #tpu.dot_dimension_numbers<[1], [0], [0], [1], [0, 0, 1, 1], [], []>} : vector<8x8xf32>, vector<8x32xf32>, vector<8x32xf32> -> vector<8x32xf32>
    %580 = arith.addf %560, %579 : vector<8x32xf32>
    %581 = vector.extract_strided_slice %432 {offsets = [8, 24], sizes = [8, 8], strides = [1, 1]} : vector<16x32xf32> to vector<8x8xf32>
    %582 = vector.extract_strided_slice %436 {offsets = [8, 24], sizes = [8, 8], strides = [1, 1]} : vector<16x32xf32> to vector<8x8xf32>
    %583 = vector.extract_strided_slice %437 {offsets = [8, 24], sizes = [8, 8], strides = [1, 1]} : vector<16x32xf32> to vector<8x8xf32>
    %cst_183 = arith.constant dense<0.000000e+00> : vector<8x8xf32>
    %584 = tpu.matmul %581, %582, %cst_183 {dimension_numbers = #tpu.dot_dimension_numbers<[1], [1], [0], [0], [0, 0, 1, 0], [], []>} : vector<8x8xf32>, vector<8x8xf32>, vector<8x8xf32> -> vector<8x8xf32>
    %585 = vector.extract_strided_slice %435 {offsets = [8, 0], sizes = [8, 8], strides = [1, 1]} : vector<16x8xf32> to vector<8x8xf32>
    %586 = arith.addf %584, %585 : vector<8x8xf32>
    %cst_184 = arith.constant dense<0xFF800000> : vector<8xf32>
    %587 = vector.multi_reduction <maximumf>, %586, %cst_184 [1] : vector<8x8xf32> to vector<8xf32>
    %588 = vector.shape_cast %587 : vector<8xf32> to vector<8x1xf32>
    %589 = vector.broadcast %588 : vector<8x1xf32> to vector<8x8xf32>
    %590 = arith.subf %586, %589 : vector<8x8xf32>
    %591 = math.exp %590 : vector<8x8xf32>
    %cst_185 = arith.constant dense<0.000000e+00> : vector<8xf32>
    %592 = vector.multi_reduction <add>, %591, %cst_185 [1] : vector<8x8xf32> to vector<8xf32>
    %593 = vector.shape_cast %592 : vector<8xf32> to vector<8x1xf32>
    %594 = tpu.reciprocal %593 {approx = true} : vector<8x1xf32> -> vector<8x1xf32>
    %595 = vector.broadcast %594 : vector<8x1xf32> to vector<8x8xf32>
    %596 = arith.mulf %591, %595 : vector<8x8xf32>
    %cst_186 = arith.constant dense<0.000000e+00> : vector<8x8xf32>
    %597 = tpu.matmul %596, %583, %cst_186 {dimension_numbers = #tpu.dot_dimension_numbers<[1], [0], [0], [1], [0, 0, 1, 1], [], []>} : vector<8x8xf32>, vector<8x8xf32>, vector<8x8xf32> -> vector<8x8xf32>
    %598 = vector.extract_strided_slice %438 {offsets = [24, 0], sizes = [8, 32], strides = [1, 1]} : vector<32x32xf32> to vector<8x32xf32>
    %cst_187 = arith.constant dense<0.000000e+00> : vector<8x32xf32>
    %599 = tpu.matmul %597, %598, %cst_187 {dimension_numbers = #tpu.dot_dimension_numbers<[1], [0], [0], [1], [0, 0, 1, 1], [], []>} : vector<8x8xf32>, vector<8x32xf32>, vector<8x32xf32> -> vector<8x32xf32>
    %600 = arith.addf %580, %599 : vector<8x32xf32>
    %601 = tpu.concatenate %519, %600 in 0 : vector<8x32xf32>, vector<8x32xf32> -> vector<16x32xf32>
    %602 = arith.addf %416, %601 : vector<16x32xf32>
    %603 = arith.mulf %602, %602 : vector<16x32xf32>
    %cst_188 = arith.constant dense<0.000000e+00> : vector<16xf32>
    %604 = vector.multi_reduction <add>, %603, %cst_188 [1] : vector<16x32xf32> to vector<16xf32>
    %605 = vector.shape_cast %604 : vector<16xf32> to vector<16x1xf32>
    %cst_189 = arith.constant 3.200000e+01 : f32
    %606 = vector.broadcast %cst_189 : f32 to vector<16x1xf32>
    %607 = arith.divf %605, %606 : vector<16x1xf32>
    %cst_190 = arith.constant 9.99999997E-7 : f32
    %608 = vector.broadcast %cst_190 : f32 to vector<16x1xf32>
    %609 = arith.addf %607, %608 : vector<16x1xf32>
    %610 = math.rsqrt %609 : vector<16x1xf32>
    %611 = vector.broadcast %610 : vector<16x1xf32> to vector<16x32xf32>
    %612 = arith.mulf %602, %611 : vector<16x32xf32>
    %c0_191 = arith.constant 0 : index
    %c0_192 = arith.constant 0 : index
    %613 = vector.load %arg21[%c0_191, %c0_192] : memref<1x32xf32, #tpu.memory_space<vmem>>, vector<1x32xf32>
    %614 = vector.broadcast %613 : vector<1x32xf32> to vector<16x32xf32>
    %615 = arith.mulf %612, %614 : vector<16x32xf32>
    %c0_193 = arith.constant 0 : index
    %c0_194 = arith.constant 0 : index
    %616 = vector.load %arg22[%c0_193, %c0_194] : memref<32x64xf32, #tpu.memory_space<vmem>>, vector<32x64xf32>
    %cst_195 = arith.constant dense<0.000000e+00> : vector<16x64xf32>
    %617 = tpu.matmul %615, %616, %cst_195 {dimension_numbers = #tpu.dot_dimension_numbers<[1], [0], [0], [1], [0, 0, 1, 1], [], []>} : vector<16x32xf32>, vector<32x64xf32>, vector<16x64xf32> -> vector<16x64xf32>
    %cst_196 = arith.constant 0.000000e+00 : f32
    %618 = vector.broadcast %cst_196 : f32 to vector<16x64xf32>
    %619 = arith.maximumf %617, %618 : vector<16x64xf32>
    %c0_197 = arith.constant 0 : index
    %c0_198 = arith.constant 0 : index
    %620 = vector.load %arg23[%c0_197, %c0_198] : memref<64x32xf32, #tpu.memory_space<vmem>>, vector<64x32xf32>
    %cst_199 = arith.constant dense<0.000000e+00> : vector<16x32xf32>
    %621 = tpu.matmul %619, %620, %cst_199 {dimension_numbers = #tpu.dot_dimension_numbers<[1], [0], [0], [1], [0, 0, 1, 1], [], []>} : vector<16x64xf32>, vector<64x32xf32>, vector<16x32xf32> -> vector<16x32xf32>
    %622 = arith.addf %602, %621 : vector<16x32xf32>
    %623 = arith.mulf %622, %622 : vector<16x32xf32>
    %cst_200 = arith.constant dense<0.000000e+00> : vector<16xf32>
    %624 = vector.multi_reduction <add>, %623, %cst_200 [1] : vector<16x32xf32> to vector<16xf32>
    %625 = vector.shape_cast %624 : vector<16xf32> to vector<16x1xf32>
    %cst_201 = arith.constant 3.200000e+01 : f32
    %626 = vector.broadcast %cst_201 : f32 to vector<16x1xf32>
    %627 = arith.divf %625, %626 : vector<16x1xf32>
    %cst_202 = arith.constant 9.99999997E-7 : f32
    %628 = vector.broadcast %cst_202 : f32 to vector<16x1xf32>
    %629 = arith.addf %627, %628 : vector<16x1xf32>
    %630 = math.rsqrt %629 : vector<16x1xf32>
    %631 = vector.broadcast %630 : vector<16x1xf32> to vector<16x32xf32>
    %632 = arith.mulf %622, %631 : vector<16x32xf32>
    %c0_203 = arith.constant 0 : index
    %c0_204 = arith.constant 0 : index
    %633 = vector.load %arg24[%c0_203, %c0_204] : memref<1x32xf32, #tpu.memory_space<vmem>>, vector<1x32xf32>
    %634 = vector.broadcast %633 : vector<1x32xf32> to vector<16x32xf32>
    %635 = arith.mulf %632, %634 : vector<16x32xf32>
    %cst_205 = arith.constant 0.176776692 : f32
    %636 = vector.broadcast %cst_205 : f32 to vector<16x32xf32>
    %637 = arith.mulf %635, %636 : vector<16x32xf32>
    %c0_206 = arith.constant 0 : index
    %c0_207 = arith.constant 0 : index
    %638 = vector.load %arg4[%c0_206, %c0_207] : memref<32x128xf32, #tpu.memory_space<vmem>>, vector<32x128xf32>
    %cst_208 = arith.constant dense<0.000000e+00> : vector<16x128xf32>
    %639 = tpu.matmul %637, %638, %cst_208 {dimension_numbers = #tpu.dot_dimension_numbers<[1], [0], [0], [1], [0, 0, 1, 1], [], []>} : vector<16x32xf32>, vector<32x128xf32>, vector<16x128xf32> -> vector<16x128xf32>
    %c0_209 = arith.constant 0 : index
    %c0_210 = arith.constant 0 : index
    %640 = vector.load %arg25[%c0_209, %c0_210] : memref<16x128xf32, #tpu.memory_space<vmem>>, vector<16x128xf32>
    tpu.vector_store %arg25[%c0_209, %c0_210], %639 {strides = array<i32>} : memref<16x128xf32, #tpu.memory_space<vmem>>, vector<16x128xf32>,
    %c0_211 = arith.constant 0 : index
    %c0_212 = arith.constant 0 : index
    %641 = vector.load %arg2[%c0_211, %c0_212] : memref<16x1xi32, #tpu.memory_space<vmem>>, vector<16x1xi32>
    %642 = tpu.iota {dimensions = array<i32: 1>} : vector<16x128xi32>
    %643 = vector.broadcast %641 : vector<16x1xi32> to vector<16x128xi32>
    %644 = arith.cmpi eq, %642, %643 : vector<16x128xi32>
    %645 = arith.extui %644 : vector<16x128xi1> to vector<16x128xi32>
    %646 = arith.sitofp %645 : vector<16x128xi32> to vector<16x128xf32>
    %cst_213 = arith.constant dense<0xFF800000> : vector<16xf32>
    %647 = vector.multi_reduction <maximumf>, %639, %cst_213 [1] : vector<16x128xf32> to vector<16xf32>
    %648 = vector.shape_cast %647 : vector<16xf32> to vector<16x1xf32>
    %649 = vector.broadcast %648 : vector<16x1xf32> to vector<16x128xf32>
    %650 = arith.subf %639, %649 : vector<16x128xf32>
    %651 = math.exp %650 : vector<16x128xf32>
    %cst_214 = arith.constant dense<0.000000e+00> : vector<16xf32>
    %652 = vector.multi_reduction <add>, %651, %cst_214 [1] : vector<16x128xf32> to vector<16xf32>
    %653 = vector.shape_cast %652 : vector<16xf32> to vector<16x1xf32>
    %654 = math.log %653 : vector<16x1xf32>
    %655 = arith.addf %648, %654 : vector<16x1xf32>
    %656 = arith.mulf %646, %639 : vector<16x128xf32>
    %cst_215 = arith.constant dense<0.000000e+00> : vector<16xf32>
    %657 = vector.multi_reduction <add>, %656, %cst_215 [1] : vector<16x128xf32> to vector<16xf32>
    %658 = vector.shape_cast %657 : vector<16xf32> to vector<16x1xf32>
    %c-100_i32 = arith.constant -100 : i32
    %659 = vector.broadcast %c-100_i32 : i32 to vector<16x1xi32>
    %660 = arith.cmpi ne, %641, %659 : vector<16x1xi32>
    %661 = arith.extui %660 : vector<16x1xi1> to vector<16x1xi32>
    %662 = arith.sitofp %661 : vector<16x1xi32> to vector<16x1xf32>
    %663 = arith.subf %655, %658 : vector<16x1xf32>
    %664 = arith.mulf %663, %662 : vector<16x1xf32>
    %cst_216 = arith.constant dense<0.000000e+00> : vector<1xf32>
    %665 = vector.multi_reduction <add>, %664, %cst_216 [0] : vector<16x1xf32> to vector<1xf32>
    %666 = vector.shape_cast %665 : vector<1xf32> to vector<1x1xf32>
    %cst_217 = arith.constant dense<0.000000e+00> : vector<1xf32>
    %667 = vector.multi_reduction <add>, %662, %cst_217 [0] : vector<16x1xf32> to vector<1xf32>
    %668 = vector.shape_cast %667 : vector<1xf32> to vector<1x1xf32>
    %cst_218 = arith.constant 1.000000e+00 : f32
    %669 = vector.broadcast %cst_218 : f32 to vector<1x1xf32>
    %670 = arith.maximumf %668, %669 : vector<1x1xf32>
    %671 = arith.divf %666, %670 : vector<1x1xf32>
    %c0_219 = arith.constant 0 : index
    %c0_220 = arith.constant 0 : index
    %672 = vector.load %arg26[%c0_219, %c0_220] : memref<1x1xf32, #tpu.memory_space<vmem>>, vector<1x1xf32>
    tpu.vector_store %arg26[%c0_219, %c0_220], %671 {strides = array<i32>} : memref<1x1xf32, #tpu.memory_space<vmem>>, vector<1x1xf32>,
    return
  }
}

</mosaic_0001>

<llo_original>
// kernel: t5_rag_forward.1
$region0: #{t5_rag_forward.1}
  #allocation0 [shape = 'u32[]', space=smem, size = 0x4, offset = 0x4, fixed_abs, tag = 'smem constant byte address 0x4 - core index']
  #allocation1 [shape = 'u32[144,128]{1,0:T(1,128)}', space=vmem, size = 0x12000, scoped, tag = 'internal scratch']
  %s0 = inlined_call_operand.vmem [shape: s32[16,1], index: 0, kind: input, shape index: {}]
  %s1 = inlined_call_operand.vmem [shape: s32[16,1], index: 1, kind: input, shape index: {}]
  %s2 = inlined_call_operand.vmem [shape: s32[16,1], index: 2, kind: input, shape index: {}]
  %s3 = inlined_call_operand.vmem [shape: f32[128,32], index: 3, kind: input, shape index: {}]
  %s4 = inlined_call_operand.vmem [shape: f32[32,128], index: 4, kind: input, shape index: {}]
  %s5 = inlined_call_operand.vmem [shape: f32[1,32], index: 5, kind: input, shape index: {}, may-alias: {5,9,12,13,17,21,24}]
  %s6 = inlined_call_operand.vmem [shape: f32[32,96], index: 6, kind: input, shape index: {}]
  %s7 = inlined_call_operand.vmem [shape: f32[32,32], index: 7, kind: input, shape index: {}]
  %s8 = inlined_call_operand.vmem [shape: f32[64,8], index: 8, kind: input, shape index: {}]
  %s9 = inlined_call_operand.vmem [shape: f32[1,32], index: 9, kind: input, shape index: {}, may-alias: {5,9,12,13,17,21,24}]
  %s10 = inlined_call_operand.vmem [shape: f32[32,64], index: 10, kind: input, shape index: {}]
  %s11 = inlined_call_operand.vmem [shape: f32[64,32], index: 11, kind: input, shape index: {}]
  %s12 = inlined_call_operand.vmem [shape: f32[1,32], index: 12, kind: input, shape index: {}, may-alias: {5,9,12,13,17,21,24}]
  %s13 = inlined_call_operand.vmem [shape: f32[1,32], index: 13, kind: input, shape index: {}, may-alias: {5,9,12,13,17,21,24}]
  %s14 = inlined_call_operand.vmem [shape: f32[32,96], index: 14, kind: input, shape index: {}]
  %s15 = inlined_call_operand.vmem [shape: f32[32,32], index: 15, kind: input, shape index: {}]
  %s16 = inlined_call_operand.vmem [shape: f32[32,8], index: 16, kind: input, shape index: {}]
  %s17 = inlined_call_operand.vmem [shape: f32[1,32], index: 17, kind: input, shape index: {}, may-alias: {5,9,12,13,17,21,24}]
  %s18 = inlined_call_operand.vmem [shape: f32[32,96], index: 18, kind: input, shape index: {}]
  %s19 = inlined_call_operand.vmem [shape: f32[32,32], index: 19, kind: input, shape index: {}]
  %s20 = inlined_call_operand.vmem [shape: f32[16,8], index: 20, kind: input, shape index: {}]
  %s21 = inlined_call_operand.vmem [shape: f32[1,32], index: 21, kind: input, shape index: {}, may-alias: {5,9,12,13,17,21,24}]
  %s22 = inlined_call_operand.vmem [shape: f32[32,64], index: 22, kind: input, shape index: {}]
  %s23 = inlined_call_operand.vmem [shape: f32[64,32], index: 23, kind: input, shape index: {}]
  %s24 = inlined_call_operand.vmem [shape: f32[1,32], index: 24, kind: input, shape index: {}, may-alias: {5,9,12,13,17,21,24}]
  %s25 = inlined_call_operand.hbm [shape: f32[16,128], index: 25, kind: output, shape index: {0}]
  %s26 = inlined_call_operand.hbm [shape: f32[1,1], index: 26, kind: output, shape index: {1}]
  %27 = xla_tuple %s25, %s26
  %s28 = sld [smem:[#allocation0]]
  $region118: #{t5_rag_forward.1} parent=0
    _
  %s30 = ssub.s32 1, %s28
  %s31 = scalar_select 0, %s30, %s28
  $region1: #{t5_rag_forward.1} parent=0
    #allocation2 [shape = 'u8[8192]{0}', space=vmem, size = 0x2000, scoped, tag = 'output window, operand 0, single buffered']
    #allocation3 [shape = 's32[1]{0}', space=sflag, size = 0x4, scoped, tag = 'scoped memory for t5_rag_forward.1']
    #allocation4 [shape = 'u8[512]{0}', space=vmem, size = 0x400, scoped, tag = 'output window, operand 1, single buffered']
    #allocation5 [shape = 's32[1]{0}', space=sflag, size = 0x4, scoped, tag = 'scoped memory for t5_rag_forward.1']
    %32 = vsyncpa [#allocation3], 0
    %33 = vsyncpa [#allocation5], 0
    // Predicated region
    $region2: #{t5_rag_forward.1} parent=1 // pred_check
      _
    $region3: #{t5_rag_forward.1} parent=1 // pred_check_branch
      %35 = sbr.rel (0) target = $region5
    $region4: #{t5_rag_forward.1} parent=1 // pred_region
      _
    $region5: #{t5_rag_forward.1} parent=1 // pred_fallthru
      _
    // Predicated region
    $region6: #{t5_rag_forward.1} parent=1 // pred_check
      _
    $region7: #{t5_rag_forward.1} parent=1 // pred_check_branch
      %37 = sbr.rel (0) target = $region9
    $region8: #{t5_rag_forward.1} parent=1 // pred_region
      _
    $region9: #{t5_rag_forward.1} parent=1 // pred_fallthru
      _
    // Predicated region
    $region10: #{t5_rag_forward.1} parent=1 // pred_check
      _
    $region11: #{t5_rag_forward.1} parent=1 // pred_check_branch
      %39 = sbr.rel (0) target = $region13
    $region12: #{t5_rag_forward.1} parent=1 // pred_region
      _
    $region13: #{t5_rag_forward.1} parent=1 // pred_fallthru
      _
    // Predicated region
    $region14: #{t5_rag_forward.1} parent=1 // pred_check
      _
    $region15: #{t5_rag_forward.1} parent=1 // pred_check_branch
      %41 = sbr.rel (0) target = $region17
    $region16: #{t5_rag_forward.1} parent=1 // pred_region
      _
    $region17: #{t5_rag_forward.1} parent=1 // pred_fallthru
      _
    // Predicated region
    $region18: #{t5_rag_forward.1} parent=1 // pred_check
      _
    $region19: #{t5_rag_forward.1} parent=1 // pred_check_branch
      %43 = sbr.rel (0) target = $region21
    $region20: #{t5_rag_forward.1} parent=1 // pred_region
      _
    $region21: #{t5_rag_forward.1} parent=1 // pred_fallthru
      _
    // Predicated region
    $region22: #{t5_rag_forward.1} parent=1 // pred_check
      _
    $region23: #{t5_rag_forward.1} parent=1 // pred_check_branch
      %45 = sbr.rel (0) target = $region25
    $region24: #{t5_rag_forward.1} parent=1 // pred_region
      _
    $region25: #{t5_rag_forward.1} parent=1 // pred_fallthru
      _
    // Predicated region
    $region26: #{t5_rag_forward.1} parent=1 // pred_check
      _
    $region27: #{t5_rag_forward.1} parent=1 // pred_check_branch
      %47 = sbr.rel (0) target = $region29
    $region28: #{t5_rag_forward.1} parent=1 // pred_region
      _
    $region29: #{t5_rag_forward.1} parent=1 // pred_fallthru
      _
    // Predicated region
    $region30: #{t5_rag_forward.1} parent=1 // pred_check
      _
    $region31: #{t5_rag_forward.1} parent=1 // pred_check_branch
      %49 = sbr.rel (0) target = $region33
    $region32: #{t5_rag_forward.1} parent=1 // pred_region
      _
    $region33: #{t5_rag_forward.1} parent=1 // pred_fallthru
      _
    // Predicated region
    $region34: #{t5_rag_forward.1} parent=1 // pred_check
      _
    $region35: #{t5_rag_forward.1} parent=1 // pred_check_branch
      %51 = sbr.rel (0) target = $region37
    $region36: #{t5_rag_forward.1} parent=1 // pred_region
      _
    $region37: #{t5_rag_forward.1} parent=1 // pred_fallthru
      _
    // Predicated region
    $region38: #{t5_rag_forward.1} parent=1 // pred_check
      _
    $region39: #{t5_rag_forward.1} parent=1 // pred_check_branch
      %53 = sbr.rel (0) target = $region41
    $region40: #{t5_rag_forward.1} parent=1 // pred_region
      _
    $region41: #{t5_rag_forward.1} parent=1 // pred_fallthru
      _
    // Predicated region
    $region42: #{t5_rag_forward.1} parent=1 // pred_check
      _
    $region43: #{t5_rag_forward.1} parent=1 // pred_check_branch
      %55 = sbr.rel (0) target = $region45
    $region44: #{t5_rag_forward.1} parent=1 // pred_region
      _
    $region45: #{t5_rag_forward.1} parent=1 // pred_fallthru
      _
    // Predicated region
    $region46: #{t5_rag_forward.1} parent=1 // pred_check
      _
    $region47: #{t5_rag_forward.1} parent=1 // pred_check_branch
      %57 = sbr.rel (0) target = $region49
    $region48: #{t5_rag_forward.1} parent=1 // pred_region
      _
    $region49: #{t5_rag_forward.1} parent=1 // pred_fallthru
      _
    // Predicated region
    $region50: #{t5_rag_forward.1} parent=1 // pred_check
      _
    $region51: #{t5_rag_forward.1} parent=1 // pred_check_branch
      %59 = sbr.rel (0) target = $region53
    $region52: #{t5_rag_forward.1} parent=1 // pred_region
      _
    $region53: #{t5_rag_forward.1} parent=1 // pred_fallthru
      _
    // Predicated region
    $region54: #{t5_rag_forward.1} parent=1 // pred_check
      _
    $region55: #{t5_rag_forward.1} parent=1 // pred_check_branch
      %61 = sbr.rel (0) target = $region57
    $region56: #{t5_rag_forward.1} parent=1 // pred_region
      _
    $region57: #{t5_rag_forward.1} parent=1 // pred_fallthru
      _
    // Predicated region
    $region58: #{t5_rag_forward.1} parent=1 // pred_check
      _
    $region59: #{t5_rag_forward.1} parent=1 // pred_check_branch
      %63 = sbr.rel (0) target = $region61
    $region60: #{t5_rag_forward.1} parent=1 // pred_region
      _
    $region61: #{t5_rag_forward.1} parent=1 // pred_fallthru
      _
    // Predicated region
    $region62: #{t5_rag_forward.1} parent=1 // pred_check
      _
    $region63: #{t5_rag_forward.1} parent=1 // pred_check_branch
      %65 = sbr.rel (0) target = $region65
    $region64: #{t5_rag_forward.1} parent=1 // pred_region
      _
    $region65: #{t5_rag_forward.1} parent=1 // pred_fallthru
      _
    // Predicated region
    $region66: #{t5_rag_forward.1} parent=1 // pred_check
      _
    $region67: #{t5_rag_forward.1} parent=1 // pred_check_branch
      %67 = sbr.rel (0) target = $region69
    $region68: #{t5_rag_forward.1} parent=1 // pred_region
      _
    $region69: #{t5_rag_forward.1} parent=1 // pred_fallthru
      _
    // Predicated region
    $region70: #{t5_rag_forward.1} parent=1 // pred_check
      _
    $region71: #{t5_rag_forward.1} parent=1 // pred_check_branch
      %69 = sbr.rel (0) target = $region73
    $region72: #{t5_rag_forward.1} parent=1 // pred_region
      _
    $region73: #{t5_rag_forward.1} parent=1 // pred_fallthru
      _
    // Predicated region
    $region74: #{t5_rag_forward.1} parent=1 // pred_check
      _
    $region75: #{t5_rag_forward.1} parent=1 // pred_check_branch
      %71 = sbr.rel (0) target = $region77
    $region76: #{t5_rag_forward.1} parent=1 // pred_region
      _
    $region77: #{t5_rag_forward.1} parent=1 // pred_fallthru
      _
    // Predicated region
    $region78: #{t5_rag_forward.1} parent=1 // pred_check
      _
    $region79: #{t5_rag_forward.1} parent=1 // pred_check_branch
      %73 = sbr.rel (0) target = $region81
    $region80: #{t5_rag_forward.1} parent=1 // pred_region
      _
    $region81: #{t5_rag_forward.1} parent=1 // pred_fallthru
      _
    // Predicated region
    $region82: #{t5_rag_forward.1} parent=1 // pred_check
      _
    $region83: #{t5_rag_forward.1} parent=1 // pred_check_branch
      %75 = sbr.rel (0) target = $region85
    $region84: #{t5_rag_forward.1} parent=1 // pred_region
      _
    $region85: #{t5_rag_forward.1} parent=1 // pred_fallthru
      _
    // Predicated region
    $region86: #{t5_rag_forward.1} parent=1 // pred_check
      _
    $region87: #{t5_rag_forward.1} parent=1 // pred_check_branch
      %77 = sbr.rel (0) target = $region89
    $region88: #{t5_rag_forward.1} parent=1 // pred_region
      _
    $region89: #{t5_rag_forward.1} parent=1 // pred_fallthru
      _
    // Predicated region
    $region90: #{t5_rag_forward.1} parent=1 // pred_check
      _
    $region91: #{t5_rag_forward.1} parent=1 // pred_check_branch
      %79 = sbr.rel (0) target = $region93
    $region92: #{t5_rag_forward.1} parent=1 // pred_region
      _
    $region93: #{t5_rag_forward.1} parent=1 // pred_fallthru
      _
    // Predicated region
    $region94: #{t5_rag_forward.1} parent=1 // pred_check
      _
    $region95: #{t5_rag_forward.1} parent=1 // pred_check_branch
      %81 = sbr.rel (0) target = $region97
    $region96: #{t5_rag_forward.1} parent=1 // pred_region
      _
    $region97: #{t5_rag_forward.1} parent=1 // pred_fallthru
      _
    // Predicated region
    $region98: #{t5_rag_forward.1} parent=1 // pred_check
      _
    $region99: #{t5_rag_forward.1} parent=1 // pred_check_branch
      %83 = sbr.rel (0) target = $region101
    $region100: #{t5_rag_forward.1} parent=1 // pred_region
      _
    $region101: #{t5_rag_forward.1} parent=1 // pred_fallthru
      _
    %v84 = vld [vmem:[%s0] sm:$0xff]
    %v85 = vld [vmem:[%s0 + $0x8] sm:$0xff]
    %v86 = vlaneseq
    %v87 = vand.u32 %v86, 127
    %88 = vset.pattern.permute.xlu0 0
    %89 = vperm.xlu0 %88, %v84
    %v90 = vpop.permute.xlu0 %89
    %91 = vset.pattern.permute.xlu0 0
    %92 = vperm.xlu0 %91, %v85
    %v93 = vpop.permute.xlu0 %92
    %vm94 = vcmp.eq.s32.totalorder %v87, %v90
    %vm95 = vcmp.eq.s32.totalorder %v87, %v93
    %v96 = vsel %vm94, 1, 0
    %v97 = vsel %vm95, 1, 0
    %v98 = vcvt.s32.f32 %v96
    %v99 = vcvt.s32.f32 %v97
    %v100 = vld [vmem:[%s3] sm:$0xff]
    %v101 = vld [vmem:[%s3 + $0x8] sm:$0xff]
    %v102 = vld [vmem:[%s3 + $0x10] sm:$0xff]
    %v103 = vld [vmem:[%s3 + $0x18] sm:$0xff]
    %v104 = vld [vmem:[%s3 + $0x20] sm:$0xff]
    %v105 = vld [vmem:[%s3 + $0x28] sm:$0xff]
    %v106 = vld [vmem:[%s3 + $0x30] sm:$0xff]
    %v107 = vld [vmem:[%s3 + $0x38] sm:$0xff]
    %v108 = vld [vmem:[%s3 + $0x40] sm:$0xff]
    %v109 = vld [vmem:[%s3 + $0x48] sm:$0xff]
    %v110 = vld [vmem:[%s3 + $0x50] sm:$0xff]
    %v111 = vld [vmem:[%s3 + $0x58] sm:$0xff]
    %v112 = vld [vmem:[%s3 + $0x60] sm:$0xff]
    %v113 = vld [vmem:[%s3 + $0x68] sm:$0xff]
    %v114 = vld [vmem:[%s3 + $0x70] sm:$0xff]
    %v115 = vld [vmem:[%s3 + $0x78] sm:$0xff]
    %116 = vmatprep.subr.mxu0 0.0
    %117 = vmatpush1.msra.mxu0 %v100
    %118 = vmatprep.subr.mxu0 0.0
    %119 = vmatpush1.msra.mxu0 %v101
    %120 = vmatprep.subr.mxu0 0.0
    %121 = vmatpush1.msra.mxu0 %v102
    %122 = vmatprep.subr.mxu0 0.0
    %123 = vmatpush1.msra.mxu0 %v103
    %124 = vmatprep.subr.mxu0 0.0
    %125 = vmatpush1.msra.mxu0 %v104
    %126 = vmatprep.subr.mxu0 0.0
    %127 = vmatpush1.msra.mxu0 %v105
    %128 = vmatprep.subr.mxu0 0.0
    %129 = vmatpush1.msra.mxu0 %v106
    %130 = vmatprep.subr.mxu0 0.0
    %131 = vmatpush1.msra.mxu0 %v107
    %132 = vmatprep.subr.mxu0 0.0
    %133 = vmatpush1.msra.mxu0 %v108
    %134 = vmatprep.subr.mxu0 0.0
    %135 = vmatpush1.msra.mxu0 %v109
    %136 = vmatprep.subr.mxu0 0.0
    %137 = vmatpush1.msra.mxu0 %v110
    %138 = vmatprep.subr.mxu0 0.0
    %139 = vmatpush1.msra.mxu0 %v111
    %140 = vmatprep.subr.mxu0 0.0
    %141 = vmatpush1.msra.mxu0 %v112
    %142 = vmatprep.subr.mxu0 0.0
    %143 = vmatpush1.msra.mxu0 %v113
    %144 = vmatprep.subr.mxu0 0.0
    %145 = vmatpush1.msra.mxu0 %v114
    %146 = vmatprep.subr.mxu0 0.0
    %147 = vmatpush1.msra.mxu0 %v115
    %148 = vmatprep.subr.mxu0 0.0
    %149 = vmatpush1.msra.mxu0 0.0
    %150 = vmatprep.subr.mxu0 0.0
    %151 = vmatpush1.msra.mxu0 0.0
    %152 = vmatprep.subr.mxu0 0.0
    %153 = vmatpush1.msra.mxu0 0.0
    %154 = vmatprep.subr.mxu0 0.0
    %155 = vmatpush1.msra.mxu0 0.0
    %156 = vmatprep.subr.mxu0 0.0
    %157 = vmatpush1.msra.mxu0 0.0
    %158 = vmatprep.subr.mxu0 0.0
    %159 = vmatpush1.msra.mxu0 0.0
    %160 = vmatprep.subr.mxu0 0.0
    %161 = vmatpush1.msra.mxu0 0.0
    %162 = vmatprep.subr.mxu0 0.0
    %163 = vmatpush1.msra.mxu0 0.0
    %164 = vmatprep.subr.mxu0 0.0
    %165 = vmatpush1.msra.mxu0 0.0
    %166 = vmatprep.subr.mxu0 0.0
    %167 = vmatpush1.msra.mxu0 0.0
    %168 = vmatprep.subr.mxu0 0.0
    %169 = vmatpush1.msra.mxu0 0.0
    %170 = vmatprep.subr.mxu0 0.0
    %171 = vmatpush1.msra.mxu0 0.0
    %172 = vmatprep.subr.mxu0 0.0
    %173 = vmatpush1.msra.mxu0 0.0
    %174 = vmatprep.subr.mxu0 0.0
    %175 = vmatpush1.msra.mxu0 0.0
    %176 = vmatprep.subr.mxu0 0.0
    %177 = vmatpush1.msra.mxu0 0.0
    %178 = vmatprep.subr.mxu0 0.0
    %179 = vmatpush1.msra.mxu0 0.0
    %180 = vmatprep.mubr.f32.mxu0 0.0
    %181 = vmatmul.mubr.f32.gmra.mrb[0].mxu0 %v98
    %v182 = vpop.f32.mrb[0].mxu0
    %v183 = vadd.f32 0.0, %v182
    %v184 = vpop.f32.mrb[0].mxu0
    %185 = vmatprep.mubr.f32.mxu0 0.0
    %186 = vmatmul.mubr.f32.gmra.mrb[0].mxu0 %v99
    %v187 = vpop.f32.mrb[0].mxu0
    %v188 = vadd.f32 0.0, %v187
    %v189 = vpop.f32.mrb[0].mxu0
    %190 = vdwg.mxu0
    %v191 = vmul.f32 %v183, %v183
    %v192 = vmul.f32 %v188, %v188
    %vm193 = vcmask 261120
    %v194 = vsel %vm193, %v191, 0.0
    %195 = vadd.xlane.f32.xlu0 %v194
    %v196 = vpop.xlane.xlu0 %195
    %v197 = vsel %vm193, %v192, 0.0
    %198 = vadd.xlane.f32.xlu0 %v197
    %v199 = vpop.xlane.xlu0 %198
    %v200 = vrcp.pop 32.0
    %v201 = vmul.f32 %v196, %v200
    %v202 = vmul.f32 %v199, %v200
    %v203 = vadd.f32 %v201, 1e-06
    %v204 = vadd.f32 %v202, 1e-06
    %v205 = vrsqrt.pop %v203
    %v206 = vrsqrt.pop %v204
    %v207 = vmul.f32 %v183, %v205
    %v208 = vmul.f32 %v188, %v206
    %v209 = vld [vmem:[%s5] sm:$0x1]
    %v211 = vlaneseq
    %v212 = vshrl.u32 %v211, 7
    %v213 = vsub.s32 0, %v212
    %v214 = vrot.slane %v209, %v213
    %v216 = vmul.f32 %v207, %v214
    %v217 = vmul.f32 %v208, %v214
    %v218 = vld [vmem:[%s6] sm:$0xff]
    %v219 = vld [vmem:[%s6 + $0x8] sm:$0xff]
    %v220 = vld [vmem:[%s6 + $0x10] sm:$0xff]
    %v221 = vld [vmem:[%s6 + $0x18] sm:$0xff]
    %v223 = vsel %vm193, %v216, 0
    %v226 = vsel %vm193, %v217, 0
    %228 = vmatprep.subr.mxu0 0.0
    %229 = vmatpush1.msra.mxu0 %v218
    %230 = vmatprep.subr.mxu0 0.0
    %231 = vmatpush1.msra.mxu0 %v219
    %232 = vmatprep.subr.mxu0 0.0
    %233 = vmatpush1.msra.mxu0 %v220
    %234 = vmatprep.subr.mxu0 0.0
    %235 = vmatpush1.msra.mxu0 %v221
    %236 = vmatprep.subr.mxu0 0.0
    %237 = vmatpush1.msra.mxu0 0.0
    %238 = vmatprep.subr.mxu0 0.0
    %239 = vmatpush1.msra.mxu0 0.0
    %240 = vmatprep.subr.mxu0 0.0
    %241 = vmatpush1.msra.mxu0 0.0
    %242 = vmatprep.subr.mxu0 0.0
    %243 = vmatpush1.msra.mxu0 0.0
    %244 = vmatprep.subr.mxu0 0.0
    %245 = vmatpush1.msra.mxu0 0.0
    %246 = vmatprep.subr.mxu0 0.0
    %247 = vmatpush1.msra.mxu0 0.0
    %248 = vmatprep.subr.mxu0 0.0
    %249 = vmatpush1.msra.mxu0 0.0
    %250 = vmatprep.subr.mxu0 0.0
    %251 = vmatpush1.msra.mxu0 0.0
    %252 = vmatprep.subr.mxu0 0.0
    %253 = vmatpush1.msra.mxu0 0.0
    %254 = vmatprep.subr.mxu0 0.0
    %255 = vmatpush1.msra.mxu0 0.0
    %256 = vmatprep.subr.mxu0 0.0
    %257 = vmatpush1.msra.mxu0 0.0
    %258 = vmatprep.subr.mxu0 0.0
    %259 = vmatpush1.msra.mxu0 0.0
    %260 = vmatprep.subr.mxu0 0.0
    %261 = vmatpush1.msra.mxu0 0.0
    %262 = vmatprep.subr.mxu0 0.0
    %263 = vmatpush1.msra.mxu0 0.0
    %264 = vmatprep.subr.mxu0 0.0
    %265 = vmatpush1.msra.mxu0 0.0
    %266 = vmatprep.subr.mxu0 0.0
    %267 = vmatpush1.msra.mxu0 0.0
    %268 = vmatprep.subr.mxu0 0.0
    %269 = vmatpush1.msra.mxu0 0.0
    %270 = vmatprep.subr.mxu0 0.0
    %271 = vmatpush1.msra.mxu0 0.0
    %272 = vmatprep.subr.mxu0 0.0
    %273 = vmatpush1.msra.mxu0 0.0
    %274 = vmatprep.subr.mxu0 0.0
    %275 = vmatpush1.msra.mxu0 0.0
    %276 = vmatprep.subr.mxu0 0.0
    %277 = vmatpush1.msra.mxu0 0.0
    %278 = vmatprep.subr.mxu0 0.0
    %279 = vmatpush1.msra.mxu0 0.0
    %280 = vmatprep.subr.mxu0 0.0
    %281 = vmatpush1.msra.mxu0 0.0
    %282 = vmatprep.subr.mxu0 0.0
    %283 = vmatpush1.msra.mxu0 0.0
    %284 = vmatprep.subr.mxu0 0.0
    %285 = vmatpush1.msra.mxu0 0.0
    %286 = vmatprep.subr.mxu0 0.0
    %287 = vmatpush1.msra.mxu0 0.0
    %288 = vmatprep.subr.mxu0 0.0
    %289 = vmatpush1.msra.mxu0 0.0
    %290 = vmatprep.subr.mxu0 0.0
    %291 = vmatpush1.msra.mxu0 0.0
    %292 = vmatprep.mubr.f32.mxu0 0.0
    %293 = vmatmul.mubr.f32.gmra.mrb[0].mxu0 %v223
    %v294 = vpop.f32.mrb[0].mxu0
    %v295 = vadd.f32 0.0, %v294
    %v296 = vpop.f32.mrb[0].mxu0
    %297 = vmatprep.mubr.f32.mxu0 0.0
    %298 = vmatmul.mubr.f32.gmra.mrb[0].mxu0 %v226
    %v299 = vpop.f32.mrb[0].mxu0
    %v300 = vadd.f32 0.0, %v299
    %v301 = vpop.f32.mrb[0].mxu0
    %302 = vdwg.mxu0
    %v303 = vld [vmem:[%s8] sm:$0xff]
    %v304 = vld [vmem:[%s8 + $0x8] sm:$0xff]
    %v305 = vld [vmem:[%s8 + $0x10] sm:$0xff]
    %v306 = vld [vmem:[%s8 + $0x18] sm:$0xff]
    %v307 = vld [vmem:[%s8 + $0x20] sm:$0xff]
    %v308 = vld [vmem:[%s8 + $0x28] sm:$0xff]
    %v309 = vld [vmem:[%s8 + $0x30] sm:$0xff]
    %v310 = vld [vmem:[%s8 + $0x38] sm:$0xff]
    %v311 = vld [vmem:[%s7] sm:$0xff]
    %v312 = vld [vmem:[%s7 + $0x8] sm:$0xff]
    %v313 = vld [vmem:[%s7 + $0x10] sm:$0xff]
    %v314 = vld [vmem:[%s7 + $0x18] sm:$0xff]
    %316 = vrot.lane.b32.xlu0 %v295, 96
    %v317 = vpop.permute.xlu0 %316
    %vm318 = vcmask 64512
    %v319 = vsel %vm318, %v295, 0
    %v321 = vsel %vm318, %v317, 0
    %323 = vmatprep.subr.mxu0 0.0
    %324 = vmatpush1.xpose.msra.mxu0 %v321
    %325 = vmatprep.subr.mxu0 0.0
    %326 = vmatpush1.xpose.msra.mxu0 0.0
    %327 = vmatprep.subr.mxu0 0.0
    %328 = vmatpush1.xpose.msra.mxu0 0.0
    %329 = vmatprep.subr.mxu0 0.0
    %330 = vmatpush1.xpose.msra.mxu0 0.0
    %331 = vmatprep.subr.mxu0 0.0
    %332 = vmatpush1.xpose.msra.mxu0 0.0
    %333 = vmatprep.subr.mxu0 0.0
    %334 = vmatpush1.xpose.msra.mxu0 0.0
    %335 = vmatprep.subr.mxu0 0.0
    %336 = vmatpush1.xpose.msra.mxu0 0.0
    %337 = vmatprep.subr.mxu0 0.0
    %338 = vmatpush1.xpose.msra.mxu0 0.0
    %339 = vmatprep.subr.mxu0 0.0
    %340 = vmatpush1.xpose.msra.mxu0 0.0
    %341 = vmatprep.subr.mxu0 0.0
    %342 = vmatpush1.xpose.msra.mxu0 0.0
    %343 = vmatprep.subr.mxu0 0.0
    %344 = vmatpush1.xpose.msra.mxu0 0.0
    %345 = vmatprep.subr.mxu0 0.0
    %346 = vmatpush1.xpose.msra.mxu0 0.0
    %347 = vmatprep.subr.mxu0 0.0
    %348 = vmatpush1.xpose.msra.mxu0 0.0
    %349 = vmatprep.subr.mxu0 0.0
    %350 = vmatpush1.xpose.msra.mxu0 0.0
    %351 = vmatprep.subr.mxu0 0.0
    %352 = vmatpush1.xpose.msra.mxu0 0.0
    %353 = vmatprep.subr.mxu0 0.0
    %354 = vmatpush1.xpose.msra.mxu0 0.0
    %355 = vmatprep.subr.mxu0 0.0
    %356 = vmatpush1.xpose.msra.mxu0 0.0
    %357 = vmatprep.subr.mxu0 0.0
    %358 = vmatpush1.xpose.msra.mxu0 0.0
    %359 = vmatprep.subr.mxu0 0.0
    %360 = vmatpush1.xpose.msra.mxu0 0.0
    %361 = vmatprep.subr.mxu0 0.0
    %362 = vmatpush1.xpose.msra.mxu0 0.0
    %363 = vmatprep.subr.mxu0 0.0
    %364 = vmatpush1.xpose.msra.mxu0 0.0
    %365 = vmatprep.subr.mxu0 0.0
    %366 = vmatpush1.xpose.msra.mxu0 0.0
    %367 = vmatprep.subr.mxu0 0.0
    %368 = vmatpush1.xpose.msra.mxu0 0.0
    %369 = vmatprep.subr.mxu0 0.0
    %370 = vmatpush1.xpose.msra.mxu0 0.0
    %371 = vmatprep.subr.mxu0 0.0
    %372 = vmatpush1.xpose.msra.mxu0 0.0
    %373 = vmatprep.subr.mxu0 0.0
    %374 = vmatpush1.xpose.msra.mxu0 0.0
    %375 = vmatprep.subr.mxu0 0.0
    %376 = vmatpush1.xpose.msra.mxu0 0.0
    %377 = vmatprep.subr.mxu0 0.0
    %378 = vmatpush1.xpose.msra.mxu0 0.0
    %379 = vmatprep.subr.mxu0 0.0
    %380 = vmatpush1.xpose.msra.mxu0 0.0
    %381 = vmatprep.subr.mxu0 0.0
    %382 = vmatpush1.xpose.msra.mxu0 0.0
    %383 = vmatprep.subr.mxu0 0.0
    %384 = vmatpush1.xpose.msra.mxu0 0.0
    %385 = vmatprep.subr.mxu0 0.0
    %386 = vmatpush1.xpose.msra.mxu0 0.0
    %387 = vmatprep.mubr.f32.mxu0 0.0
    %388 = vmatmul.mubr.f32.gmra.mrb[0].mxu0 %v319
    %v389 = vpop.f32.mrb[0].mxu0
    %v390 = vadd.f32 %v303, %v389
    %v391 = vpop.f32.mrb[0].mxu0
    %392 = vdwg.mxu0
    %v393 = vsel %vm318, %v390, -inf
    %394 = vmax.xlane.f32.xlu0 %v393
    %v395 = vpop.xlane.xlu0 %394
    %v396 = vsub.f32 %v390, %v395
    %v397 = vmul.f32 %v396, 1.442695
    %v398 = vpow.pop %v397
    %v399 = vsel %vm318, %v398, 0.0
    %400 = vadd.xlane.f32.xlu0 %v399
    %v401 = vpop.xlane.xlu0 %400
    %v402 = vrcp.pop %v401
    %v403 = vmul.f32 %v398, %v402
    %404 = vrot.lane.b32.xlu0 %v295, 64
    %v405 = vpop.permute.xlu0 %404
    %v408 = vsel %vm318, %v403, 0
    %410 = vmatprep.subr.mxu0 0.0
    %411 = vmatpush1.msra.mxu0 %v405
    %412 = vmatprep.subr.mxu0 0.0
    %413 = vmatpush1.msra.mxu0 0.0
    %414 = vmatprep.subr.mxu0 0.0
    %415 = vmatpush1.msra.mxu0 0.0
    %416 = vmatprep.subr.mxu0 0.0
    %417 = vmatpush1.msra.mxu0 0.0
    %418 = vmatprep.subr.mxu0 0.0
    %419 = vmatpush1.msra.mxu0 0.0
    %420 = vmatprep.subr.mxu0 0.0
    %421 = vmatpush1.msra.mxu0 0.0
    %422 = vmatprep.subr.mxu0 0.0
    %423 = vmatpush1.msra.mxu0 0.0
    %424 = vmatprep.subr.mxu0 0.0
    %425 = vmatpush1.msra.mxu0 0.0
    %426 = vmatprep.subr.mxu0 0.0
    %427 = vmatpush1.msra.mxu0 0.0
    %428 = vmatprep.subr.mxu0 0.0
    %429 = vmatpush1.msra.mxu0 0.0
    %430 = vmatprep.subr.mxu0 0.0
    %431 = vmatpush1.msra.mxu0 0.0
    %432 = vmatprep.subr.mxu0 0.0
    %433 = vmatpush1.msra.mxu0 0.0
    %434 = vmatprep.subr.mxu0 0.0
    %435 = vmatpush1.msra.mxu0 0.0
    %436 = vmatprep.subr.mxu0 0.0
    %437 = vmatpush1.msra.mxu0 0.0
    %438 = vmatprep.subr.mxu0 0.0
    %439 = vmatpush1.msra.mxu0 0.0
    %440 = vmatprep.subr.mxu0 0.0
    %441 = vmatpush1.msra.mxu0 0.0
    %442 = vmatprep.subr.mxu0 0.0
    %443 = vmatpush1.msra.mxu0 0.0
    %444 = vmatprep.subr.mxu0 0.0
    %445 = vmatpush1.msra.mxu0 0.0
    %446 = vmatprep.subr.mxu0 0.0
    %447 = vmatpush1.msra.mxu0 0.0
    %448 = vmatprep.subr.mxu0 0.0
    %449 = vmatpush1.msra.mxu0 0.0
    %450 = vmatprep.subr.mxu0 0.0
    %451 = vmatpush1.msra.mxu0 0.0
    %452 = vmatprep.subr.mxu0 0.0
    %453 = vmatpush1.msra.mxu0 0.0
    %454 = vmatprep.subr.mxu0 0.0
    %455 = vmatpush1.msra.mxu0 0.0
    %456 = vmatprep.subr.mxu0 0.0
    %457 = vmatpush1.msra.mxu0 0.0
    %458 = vmatprep.subr.mxu0 0.0
    %459 = vmatpush1.msra.mxu0 0.0
    %460 = vmatprep.subr.mxu0 0.0
    %461 = vmatpush1.msra.mxu0 0.0
    %462 = vmatprep.subr.mxu0 0.0
    %463 = vmatpush1.msra.mxu0 0.0
    %464 = vmatprep.subr.mxu0 0.0
    %465 = vmatpush1.msra.mxu0 0.0
    %466 = vmatprep.subr.mxu0 0.0
    %467 = vmatpush1.msra.mxu0 0.0
    %468 = vmatprep.subr.mxu0 0.0
    %469 = vmatpush1.msra.mxu0 0.0
    %470 = vmatprep.subr.mxu0 0.0
    %471 = vmatpush1.msra.mxu0 0.0
    %472 = vmatprep.subr.mxu0 0.0
    %473 = vmatpush1.msra.mxu0 0.0
    %474 = vmatprep.mubr.f32.mxu0 0.0
    %475 = vmatmul.mubr.f32.gmra.mrb[0].mxu0 %v408
    %v476 = vpop.f32.mrb[0].mxu0
    %v477 = vadd.f32 0.0, %v476
    %v478 = vpop.f32.mrb[0].mxu0
    %479 = vdwg.mxu0
    %480 = vrot.lane.b32.xlu0 %v295, 120
    %v481 = vpop.permute.xlu0 %480
    %482 = vrot.lane.b32.xlu0 %v295, 88
    %v483 = vpop.permute.xlu0 %482
    %v484 = vsel %vm318, %v481, 0
    %v486 = vsel %vm318, %v483, 0
    %488 = vmatprep.subr.mxu0 0.0
    %489 = vmatpush1.xpose.msra.mxu0 %v486
    %490 = vmatprep.subr.mxu0 0.0
    %491 = vmatpush1.xpose.msra.mxu0 0.0
    %492 = vmatprep.subr.mxu0 0.0
    %493 = vmatpush1.xpose.msra.mxu0 0.0
    %494 = vmatprep.subr.mxu0 0.0
    %495 = vmatpush1.xpose.msra.mxu0 0.0
    %496 = vmatprep.subr.mxu0 0.0
    %497 = vmatpush1.xpose.msra.mxu0 0.0
    %498 = vmatprep.subr.mxu0 0.0
    %499 = vmatpush1.xpose.msra.mxu0 0.0
    %500 = vmatprep.subr.mxu0 0.0
    %501 = vmatpush1.xpose.msra.mxu0 0.0
    %502 = vmatprep.subr.mxu0 0.0
    %503 = vmatpush1.xpose.msra.mxu0 0.0
    %504 = vmatprep.subr.mxu0 0.0
    %505 = vmatpush1.xpose.msra.mxu0 0.0
    %506 = vmatprep.subr.mxu0 0.0
    %507 = vmatpush1.xpose.msra.mxu0 0.0
    %508 = vmatprep.subr.mxu0 0.0
    %509 = vmatpush1.xpose.msra.mxu0 0.0
    %510 = vmatprep.subr.mxu0 0.0
    %511 = vmatpush1.xpose.msra.mxu0 0.0
    %512 = vmatprep.subr.mxu0 0.0
    %513 = vmatpush1.xpose.msra.mxu0 0.0
    %514 = vmatprep.subr.mxu0 0.0
    %515 = vmatpush1.xpose.msra.mxu0 0.0
    %516 = vmatprep.subr.mxu0 0.0
    %517 = vmatpush1.xpose.msra.mxu0 0.0
    %518 = vmatprep.subr.mxu0 0.0
    %519 = vmatpush1.xpose.msra.mxu0 0.0
    %520 = vmatprep.subr.mxu0 0.0
    %521 = vmatpush1.xpose.msra.mxu0 0.0
    %522 = vmatprep.subr.mxu0 0.0
    %523 = vmatpush1.xpose.msra.mxu0 0.0
    %524 = vmatprep.subr.mxu0 0.0
    %525 = vmatpush1.xpose.msra.mxu0 0.0
    %526 = vmatprep.subr.mxu0 0.0
    %527 = vmatpush1.xpose.msra.mxu0 0.0
    %528 = vmatprep.subr.mxu0 0.0
    %529 = vmatpush1.xpose.msra.mxu0 0.0
    %530 = vmatprep.subr.mxu0 0.0
    %531 = vmatpush1.xpose.msra.mxu0 0.0
    %532 = vmatprep.subr.mxu0 0.0
    %533 = vmatpush1.xpose.msra.mxu0 0.0
    %534 = vmatprep.subr.mxu0 0.0
    %535 = vmatpush1.xpose.msra.mxu0 0.0
    %536 = vmatprep.subr.mxu0 0.0
    %537 = vmatpush1.xpose.msra.mxu0 0.0
    %538 = vmatprep.subr.mxu0 0.0
    %539 = vmatpush1.xpose.msra.mxu0 0.0
    %540 = vmatprep.subr.mxu0 0.0
    %541 = vmatpush1.xpose.msra.mxu0 0.0
    %542 = vmatprep.subr.mxu0 0.0
    %543 = vmatpush1.xpose.msra.mxu0 0.0
    %544 = vmatprep.subr.mxu0 0.0
    %545 = vmatpush1.xpose.msra.mxu0 0.0
    %546 = vmatprep.subr.mxu0 0.0
    %547 = vmatpush1.xpose.msra.mxu0 0.0
    %548 = vmatprep.subr.mxu0 0.0
    %549 = vmatpush1.xpose.msra.mxu0 0.0
    %550 = vmatprep.subr.mxu0 0.0
    %551 = vmatpush1.xpose.msra.mxu0 0.0
    %552 = vmatprep.mubr.f32.mxu0 0.0
    %553 = vmatmul.mubr.f32.gmra.mrb[0].mxu0 %v484
    %v554 = vpop.f32.mrb[0].mxu0
    %v555 = vadd.f32 %v304, %v554
    %v556 = vpop.f32.mrb[0].mxu0
    %557 = vdwg.mxu0
    %v558 = vsel %vm318, %v555, -inf
    %559 = vmax.xlane.f32.xlu0 %v558
    %v560 = vpop.xlane.xlu0 %559
    %v561 = vsub.f32 %v555, %v560
    %v562 = vmul.f32 %v561, 1.442695
    %v563 = vpow.pop %v562
    %v564 = vsel %vm318, %v563, 0.0
    %565 = vadd.xlane.f32.xlu0 %v564
    %v566 = vpop.xlane.xlu0 %565
    %v567 = vrcp.pop %v566
    %v568 = vmul.f32 %v563, %v567
    %569 = vrot.lane.b32.xlu0 %v295, 56
    %v570 = vpop.permute.xlu0 %569
    %v573 = vsel %vm318, %v568, 0
    %575 = vmatprep.subr.mxu0 0.0
    %576 = vmatpush1.msra.mxu0 %v570
    %577 = vmatprep.subr.mxu0 0.0
    %578 = vmatpush1.msra.mxu0 0.0
    %579 = vmatprep.subr.mxu0 0.0
    %580 = vmatpush1.msra.mxu0 0.0
    %581 = vmatprep.subr.mxu0 0.0
    %582 = vmatpush1.msra.mxu0 0.0
    %583 = vmatprep.subr.mxu0 0.0
    %584 = vmatpush1.msra.mxu0 0.0
    %585 = vmatprep.subr.mxu0 0.0
    %586 = vmatpush1.msra.mxu0 0.0
    %587 = vmatprep.subr.mxu0 0.0
    %588 = vmatpush1.msra.mxu0 0.0
    %589 = vmatprep.subr.mxu0 0.0
    %590 = vmatpush1.msra.mxu0 0.0
    %591 = vmatprep.subr.mxu0 0.0
    %592 = vmatpush1.msra.mxu0 0.0
    %593 = vmatprep.subr.mxu0 0.0
    %594 = vmatpush1.msra.mxu0 0.0
    %595 = vmatprep.subr.mxu0 0.0
    %596 = vmatpush1.msra.mxu0 0.0
    %597 = vmatprep.subr.mxu0 0.0
    %598 = vmatpush1.msra.mxu0 0.0
    %599 = vmatprep.subr.mxu0 0.0
    %600 = vmatpush1.msra.mxu0 0.0
    %601 = vmatprep.subr.mxu0 0.0
    %602 = vmatpush1.msra.mxu0 0.0
    %603 = vmatprep.subr.mxu0 0.0
    %604 = vmatpush1.msra.mxu0 0.0
    %605 = vmatprep.subr.mxu0 0.0
    %606 = vmatpush1.msra.mxu0 0.0
    %607 = vmatprep.subr.mxu0 0.0
    %608 = vmatpush1.msra.mxu0 0.0
    %609 = vmatprep.subr.mxu0 0.0
    %610 = vmatpush1.msra.mxu0 0.0
    %611 = vmatprep.subr.mxu0 0.0
    %612 = vmatpush1.msra.mxu0 0.0
    %613 = vmatprep.subr.mxu0 0.0
    %614 = vmatpush1.msra.mxu0 0.0
    %615 = vmatprep.subr.mxu0 0.0
    %616 = vmatpush1.msra.mxu0 0.0
    %617 = vmatprep.subr.mxu0 0.0
    %618 = vmatpush1.msra.mxu0 0.0
    %619 = vmatprep.subr.mxu0 0.0
    %620 = vmatpush1.msra.mxu0 0.0
    %621 = vmatprep.subr.mxu0 0.0
    %622 = vmatpush1.msra.mxu0 0.0
    %623 = vmatprep.subr.mxu0 0.0
    %624 = vmatpush1.msra.mxu0 0.0
    %625 = vmatprep.subr.mxu0 0.0
    %626 = vmatpush1.msra.mxu0 0.0
    %627 = vmatprep.subr.mxu0 0.0
    %628 = vmatpush1.msra.mxu0 0.0
    %629 = vmatprep.subr.mxu0 0.0
    %630 = vmatpush1.msra.mxu0 0.0
    %631 = vmatprep.subr.mxu0 0.0
    %632 = vmatpush1.msra.mxu0 0.0
    %633 = vmatprep.subr.mxu0 0.0
    %634 = vmatpush1.msra.mxu0 0.0
    %635 = vmatprep.subr.mxu0 0.0
    %636 = vmatpush1.msra.mxu0 0.0
    %637 = vmatprep.subr.mxu0 0.0
    %638 = vmatpush1.msra.mxu0 0.0
    %639 = vmatprep.mubr.f32.mxu0 0.0
    %640 = vmatmul.mubr.f32.gmra.mrb[0].mxu0 %v573
    %v641 = vpop.f32.mrb[0].mxu0
    %v642 = vadd.f32 0.0, %v641
    %v643 = vpop.f32.mrb[0].mxu0
    %644 = vdwg.mxu0
    %v646 = vsel %vm318, %v642, 0
    %648 = vmatprep.subr.mxu0 0.0
    %649 = vmatpush1.msra.mxu0 %v312
    %650 = vmatprep.subr.mxu0 0.0
    %651 = vmatpush1.msra.mxu0 0.0
    %652 = vmatprep.subr.mxu0 0.0
    %653 = vmatpush1.msra.mxu0 0.0
    %654 = vmatprep.subr.mxu0 0.0
    %655 = vmatpush1.msra.mxu0 0.0
    %656 = vmatprep.subr.mxu0 0.0
    %657 = vmatpush1.msra.mxu0 0.0
    %658 = vmatprep.subr.mxu0 0.0
    %659 = vmatpush1.msra.mxu0 0.0
    %660 = vmatprep.subr.mxu0 0.0
    %661 = vmatpush1.msra.mxu0 0.0
    %662 = vmatprep.subr.mxu0 0.0
    %663 = vmatpush1.msra.mxu0 0.0
    %664 = vmatprep.subr.mxu0 0.0
    %665 = vmatpush1.msra.mxu0 0.0
    %666 = vmatprep.subr.mxu0 0.0
    %667 = vmatpush1.msra.mxu0 0.0
    %668 = vmatprep.subr.mxu0 0.0
    %669 = vmatpush1.msra.mxu0 0.0
    %670 = vmatprep.subr.mxu0 0.0
    %671 = vmatpush1.msra.mxu0 0.0
    %672 = vmatprep.subr.mxu0 0.0
    %673 = vmatpush1.msra.mxu0 0.0
    %674 = vmatprep.subr.mxu0 0.0
    %675 = vmatpush1.msra.mxu0 0.0
    %676 = vmatprep.subr.mxu0 0.0
    %677 = vmatpush1.msra.mxu0 0.0
    %678 = vmatprep.subr.mxu0 0.0
    %679 = vmatpush1.msra.mxu0 0.0
    %680 = vmatprep.subr.mxu0 0.0
    %681 = vmatpush1.msra.mxu0 0.0
    %682 = vmatprep.subr.mxu0 0.0
    %683 = vmatpush1.msra.mxu0 0.0
    %684 = vmatprep.subr.mxu0 0.0
    %685 = vmatpush1.msra.mxu0 0.0
    %686 = vmatprep.subr.mxu0 0.0
    %687 = vmatpush1.msra.mxu0 0.0
    %688 = vmatprep.subr.mxu0 0.0
    %689 = vmatpush1.msra.mxu0 0.0
    %690 = vmatprep.subr.mxu0 0.0
    %691 = vmatpush1.msra.mxu0 0.0
    %692 = vmatprep.subr.mxu0 0.0
    %693 = vmatpush1.msra.mxu0 0.0
    %694 = vmatprep.subr.mxu0 0.0
    %695 = vmatpush1.msra.mxu0 0.0
    %696 = vmatprep.subr.mxu0 0.0
    %697 = vmatpush1.msra.mxu0 0.0
    %698 = vmatprep.subr.mxu0 0.0
    %699 = vmatpush1.msra.mxu0 0.0
    %700 = vmatprep.subr.mxu0 0.0
    %701 = vmatpush1.msra.mxu0 0.0
    %702 = vmatprep.subr.mxu0 0.0
    %703 = vmatpush1.msra.mxu0 0.0
    %704 = vmatprep.subr.mxu0 0.0
    %705 = vmatpush1.msra.mxu0 0.0
    %706 = vmatprep.subr.mxu0 0.0
    %707 = vmatpush1.msra.mxu0 0.0
    %708 = vmatprep.subr.mxu0 0.0
    %709 = vmatpush1.msra.mxu0 0.0
    %710 = vmatprep.subr.mxu0 0.0
    %711 = vmatpush1.msra.mxu0 0.0
    %712 = vmatprep.mubr.f32.mxu0 0.0
    %713 = vmatmul.mubr.f32.gmra.mrb[0].mxu0 %v646
    %v714 = vpop.f32.mrb[0].mxu0
    %v715 = vadd.f32 0.0, %v714
    %v716 = vpop.f32.mrb[0].mxu0
    %717 = vdwg.mxu0
    %v719 = vsel %vm318, %v477, 0
    %721 = vmatprep.subr.mxu0 0.0
    %722 = vmatpush1.msra.mxu0 %v311
    %723 = vmatprep.subr.mxu0 0.0
    %724 = vmatpush1.msra.mxu0 0.0
    %725 = vmatprep.subr.mxu0 0.0
    %726 = vmatpush1.msra.mxu0 0.0
    %727 = vmatprep.subr.mxu0 0.0
    %728 = vmatpush1.msra.mxu0 0.0
    %729 = vmatprep.subr.mxu0 0.0
    %730 = vmatpush1.msra.mxu0 0.0
    %731 = vmatprep.subr.mxu0 0.0
    %732 = vmatpush1.msra.mxu0 0.0
    %733 = vmatprep.subr.mxu0 0.0
    %734 = vmatpush1.msra.mxu0 0.0
    %735 = vmatprep.subr.mxu0 0.0
    %736 = vmatpush1.msra.mxu0 0.0
    %737 = vmatprep.subr.mxu0 0.0
    %738 = vmatpush1.msra.mxu0 0.0
    %739 = vmatprep.subr.mxu0 0.0
    %740 = vmatpush1.msra.mxu0 0.0
    %741 = vmatprep.subr.mxu0 0.0
    %742 = vmatpush1.msra.mxu0 0.0
    %743 = vmatprep.subr.mxu0 0.0
    %744 = vmatpush1.msra.mxu0 0.0
    %745 = vmatprep.subr.mxu0 0.0
    %746 = vmatpush1.msra.mxu0 0.0
    %747 = vmatprep.subr.mxu0 0.0
    %748 = vmatpush1.msra.mxu0 0.0
    %749 = vmatprep.subr.mxu0 0.0
    %750 = vmatpush1.msra.mxu0 0.0
    %751 = vmatprep.subr.mxu0 0.0
    %752 = vmatpush1.msra.mxu0 0.0
    %753 = vmatprep.subr.mxu0 0.0
    %754 = vmatpush1.msra.mxu0 0.0
    %755 = vmatprep.subr.mxu0 0.0
    %756 = vmatpush1.msra.mxu0 0.0
    %757 = vmatprep.subr.mxu0 0.0
    %758 = vmatpush1.msra.mxu0 0.0
    %759 = vmatprep.subr.mxu0 0.0
    %760 = vmatpush1.msra.mxu0 0.0
    %761 = vmatprep.subr.mxu0 0.0
    %762 = vmatpush1.msra.mxu0 0.0
    %763 = vmatprep.subr.mxu0 0.0
    %764 = vmatpush1.msra.mxu0 0.0
    %765 = vmatprep.subr.mxu0 0.0
    %766 = vmatpush1.msra.mxu0 0.0
    %767 = vmatprep.subr.mxu0 0.0
    %768 = vmatpush1.msra.mxu0 0.0
    %769 = vmatprep.subr.mxu0 0.0
    %770 = vmatpush1.msra.mxu0 0.0
    %771 = vmatprep.subr.mxu0 0.0
    %772 = vmatpush1.msra.mxu0 0.0
    %773 = vmatprep.subr.mxu0 0.0
    %774 = vmatpush1.msra.mxu0 0.0
    %775 = vmatprep.subr.mxu0 0.0
    %776 = vmatpush1.msra.mxu0 0.0
    %777 = vmatprep.subr.mxu0 0.0
    %778 = vmatpush1.msra.mxu0 0.0
    %779 = vmatprep.subr.mxu0 0.0
    %780 = vmatpush1.msra.mxu0 0.0
    %781 = vmatprep.subr.mxu0 0.0
    %782 = vmatpush1.msra.mxu0 0.0
    %783 = vmatprep.subr.mxu0 0.0
    %784 = vmatpush1.msra.mxu0 0.0
    %785 = vmatprep.mubr.f32.mxu0 0.0
    %786 = vmatmul.mubr.f32.gmra.mrb[0].mxu0 %v719
    %v787 = vpop.f32.mrb[0].mxu0
    %v788 = vadd.f32 %v715, %v787
    %v789 = vpop.f32.mrb[0].mxu0
    %790 = vdwg.mxu0
    %791 = vrot.lane.b32.xlu0 %v295, 112
    %v792 = vpop.permute.xlu0 %791
    %793 = vrot.lane.b32.xlu0 %v295, 80
    %v794 = vpop.permute.xlu0 %793
    %v795 = vsel %vm318, %v792, 0
    %v797 = vsel %vm318, %v794, 0
    %799 = vmatprep.subr.mxu0 0.0
    %800 = vmatpush1.xpose.msra.mxu0 %v797
    %801 = vmatprep.subr.mxu0 0.0
    %802 = vmatpush1.xpose.msra.mxu0 0.0
    %803 = vmatprep.subr.mxu0 0.0
    %804 = vmatpush1.xpose.msra.mxu0 0.0
    %805 = vmatprep.subr.mxu0 0.0
    %806 = vmatpush1.xpose.msra.mxu0 0.0
    %807 = vmatprep.subr.mxu0 0.0
    %808 = vmatpush1.xpose.msra.mxu0 0.0
    %809 = vmatprep.subr.mxu0 0.0
    %810 = vmatpush1.xpose.msra.mxu0 0.0
    %811 = vmatprep.subr.mxu0 0.0
    %812 = vmatpush1.xpose.msra.mxu0 0.0
    %813 = vmatprep.subr.mxu0 0.0
    %814 = vmatpush1.xpose.msra.mxu0 0.0
    %815 = vmatprep.subr.mxu0 0.0
    %816 = vmatpush1.xpose.msra.mxu0 0.0
    %817 = vmatprep.subr.mxu0 0.0
    %818 = vmatpush1.xpose.msra.mxu0 0.0
    %819 = vmatprep.subr.mxu0 0.0
    %820 = vmatpush1.xpose.msra.mxu0 0.0
    %821 = vmatprep.subr.mxu0 0.0
    %822 = vmatpush1.xpose.msra.mxu0 0.0
    %823 = vmatprep.subr.mxu0 0.0
    %824 = vmatpush1.xpose.msra.mxu0 0.0
    %825 = vmatprep.subr.mxu0 0.0
    %826 = vmatpush1.xpose.msra.mxu0 0.0
    %827 = vmatprep.subr.mxu0 0.0
    %828 = vmatpush1.xpose.msra.mxu0 0.0
    %829 = vmatprep.subr.mxu0 0.0
    %830 = vmatpush1.xpose.msra.mxu0 0.0
    %831 = vmatprep.subr.mxu0 0.0
    %832 = vmatpush1.xpose.msra.mxu0 0.0
    %833 = vmatprep.subr.mxu0 0.0
    %834 = vmatpush1.xpose.msra.mxu0 0.0
    %835 = vmatprep.subr.mxu0 0.0
    %836 = vmatpush1.xpose.msra.mxu0 0.0
    %837 = vmatprep.subr.mxu0 0.0
    %838 = vmatpush1.xpose.msra.mxu0 0.0
    %839 = vmatprep.subr.mxu0 0.0
    %840 = vmatpush1.xpose.msra.mxu0 0.0
    %841 = vmatprep.subr.mxu0 0.0
    %842 = vmatpush1.xpose.msra.mxu0 0.0
    %843 = vmatprep.subr.mxu0 0.0
    %844 = vmatpush1.xpose.msra.mxu0 0.0
    %845 = vmatprep.subr.mxu0 0.0
    %846 = vmatpush1.xpose.msra.mxu0 0.0
    %847 = vmatprep.subr.mxu0 0.0
    %848 = vmatpush1.xpose.msra.mxu0 0.0
    %849 = vmatprep.subr.mxu0 0.0
    %850 = vmatpush1.xpose.msra.mxu0 0.0
    %851 = vmatprep.subr.mxu0 0.0
    %852 = vmatpush1.xpose.msra.mxu0 0.0
    %853 = vmatprep.subr.mxu0 0.0
    %854 = vmatpush1.xpose.msra.mxu0 0.0
    %855 = vmatprep.subr.mxu0 0.0
    %856 = vmatpush1.xpose.msra.mxu0 0.0
    %857 = vmatprep.subr.mxu0 0.0
    %858 = vmatpush1.xpose.msra.mxu0 0.0
    %859 = vmatprep.subr.mxu0 0.0
    %860 = vmatpush1.xpose.msra.mxu0 0.0
    %861 = vmatprep.subr.mxu0 0.0
    %862 = vmatpush1.xpose.msra.mxu0 0.0
    %863 = vmatprep.mubr.f32.mxu0 0.0
    %864 = vmatmul.mubr.f32.gmra.mrb[0].mxu0 %v795
    %v865 = vpop.f32.mrb[0].mxu0
    %v866 = vadd.f32 %v305, %v865
    %v867 = vpop.f32.mrb[0].mxu0
    %868 = vdwg.mxu0
    %v869 = vsel %vm318, %v866, -inf
    %870 = vmax.xlane.f32.xlu0 %v869
    %v871 = vpop.xlane.xlu0 %870
    %v872 = vsub.f32 %v866, %v871
    %v873 = vmul.f32 %v872, 1.442695
    %v874 = vpow.pop %v873
    %v875 = vsel %vm318, %v874, 0.0
    %876 = vadd.xlane.f32.xlu0 %v875
    %v877 = vpop.xlane.xlu0 %876
    %v878 = vrcp.pop %v877
    %v879 = vmul.f32 %v874, %v878
    %880 = vrot.lane.b32.xlu0 %v295, 48
    %v881 = vpop.permute.xlu0 %880
    %v884 = vsel %vm318, %v879, 0
    %886 = vmatprep.subr.mxu0 0.0
    %887 = vmatpush1.msra.mxu0 %v881
    %888 = vmatprep.subr.mxu0 0.0
    %889 = vmatpush1.msra.mxu0 0.0
    %890 = vmatprep.subr.mxu0 0.0
    %891 = vmatpush1.msra.mxu0 0.0
    %892 = vmatprep.subr.mxu0 0.0
    %893 = vmatpush1.msra.mxu0 0.0
    %894 = vmatprep.subr.mxu0 0.0
    %895 = vmatpush1.msra.mxu0 0.0
    %896 = vmatprep.subr.mxu0 0.0
    %897 = vmatpush1.msra.mxu0 0.0
    %898 = vmatprep.subr.mxu0 0.0
    %899 = vmatpush1.msra.mxu0 0.0
    %900 = vmatprep.subr.mxu0 0.0
    %901 = vmatpush1.msra.mxu0 0.0
    %902 = vmatprep.subr.mxu0 0.0
    %903 = vmatpush1.msra.mxu0 0.0
    %904 = vmatprep.subr.mxu0 0.0
    %905 = vmatpush1.msra.mxu0 0.0
    %906 = vmatprep.subr.mxu0 0.0
    %907 = vmatpush1.msra.mxu0 0.0
    %908 = vmatprep.subr.mxu0 0.0
    %909 = vmatpush1.msra.mxu0 0.0
    %910 = vmatprep.subr.mxu0 0.0
    %911 = vmatpush1.msra.mxu0 0.0
    %912 = vmatprep.subr.mxu0 0.0
    %913 = vmatpush1.msra.mxu0 0.0
    %914 = vmatprep.subr.mxu0 0.0
    %915 = vmatpush1.msra.mxu0 0.0
    %916 = vmatprep.subr.mxu0 0.0
    %917 = vmatpush1.msra.mxu0 0.0
    %918 = vmatprep.subr.mxu0 0.0
    %919 = vmatpush1.msra.mxu0 0.0
    %920 = vmatprep.subr.mxu0 0.0
    %921 = vmatpush1.msra.mxu0 0.0
    %922 = vmatprep.subr.mxu0 0.0
    %923 = vmatpush1.msra.mxu0 0.0
    %924 = vmatprep.subr.mxu0 0.0
    %925 = vmatpush1.msra.mxu0 0.0
    %926 = vmatprep.subr.mxu0 0.0
    %927 = vmatpush1.msra.mxu0 0.0
    %928 = vmatprep.subr.mxu0 0.0
    %929 = vmatpush1.msra.mxu0 0.0
    %930 = vmatprep.subr.mxu0 0.0
    %931 = vmatpush1.msra.mxu0 0.0
    %932 = vmatprep.subr.mxu0 0.0
    %933 = vmatpush1.msra.mxu0 0.0
    %934 = vmatprep.subr.mxu0 0.0
    %935 = vmatpush1.msra.mxu0 0.0
    %936 = vmatprep.subr.mxu0 0.0
    %937 = vmatpush1.msra.mxu0 0.0
    %938 = vmatprep.subr.mxu0 0.0
    %939 = vmatpush1.msra.mxu0 0.0
    %940 = vmatprep.subr.mxu0 0.0
    %941 = vmatpush1.msra.mxu0 0.0
    %942 = vmatprep.subr.mxu0 0.0
    %943 = vmatpush1.msra.mxu0 0.0
    %944 = vmatprep.subr.mxu0 0.0
    %945 = vmatpush1.msra.mxu0 0.0
    %946 = vmatprep.subr.mxu0 0.0
    %947 = vmatpush1.msra.mxu0 0.0
    %948 = vmatprep.subr.mxu0 0.0
    %949 = vmatpush1.msra.mxu0 0.0
    %950 = vmatprep.mubr.f32.mxu0 0.0
    %951 = vmatmul.mubr.f32.gmra.mrb[0].mxu0 %v884
    %v952 = vpop.f32.mrb[0].mxu0
    %v953 = vadd.f32 0.0, %v952
    %v954 = vpop.f32.mrb[0].mxu0
    %955 = vdwg.mxu0
    %v957 = vsel %vm318, %v953, 0
    %959 = vmatprep.subr.mxu0 0.0
    %960 = vmatpush1.msra.mxu0 %v313
    %961 = vmatprep.subr.mxu0 0.0
    %962 = vmatpush1.msra.mxu0 0.0
    %963 = vmatprep.subr.mxu0 0.0
    %964 = vmatpush1.msra.mxu0 0.0
    %965 = vmatprep.subr.mxu0 0.0
    %966 = vmatpush1.msra.mxu0 0.0
    %967 = vmatprep.subr.mxu0 0.0
    %968 = vmatpush1.msra.mxu0 0.0
    %969 = vmatprep.subr.mxu0 0.0
    %970 = vmatpush1.msra.mxu0 0.0
    %971 = vmatprep.subr.mxu0 0.0
    %972 = vmatpush1.msra.mxu0 0.0
    %973 = vmatprep.subr.mxu0 0.0
    %974 = vmatpush1.msra.mxu0 0.0
    %975 = vmatprep.subr.mxu0 0.0
    %976 = vmatpush1.msra.mxu0 0.0
    %977 = vmatprep.subr.mxu0 0.0
    %978 = vmatpush1.msra.mxu0 0.0
    %979 = vmatprep.subr.mxu0 0.0
    %980 = vmatpush1.msra.mxu0 0.0
    %981 = vmatprep.subr.mxu0 0.0
    %982 = vmatpush1.msra.mxu0 0.0
    %983 = vmatprep.subr.mxu0 0.0
    %984 = vmatpush1.msra.mxu0 0.0
    %985 = vmatprep.subr.mxu0 0.0
    %986 = vmatpush1.msra.mxu0 0.0
    %987 = vmatprep.subr.mxu0 0.0
    %988 = vmatpush1.msra.mxu0 0.0
    %989 = vmatprep.subr.mxu0 0.0
    %990 = vmatpush1.msra.mxu0 0.0
    %991 = vmatprep.subr.mxu0 0.0
    %992 = vmatpush1.msra.mxu0 0.0
    %993 = vmatprep.subr.mxu0 0.0
    %994 = vmatpush1.msra.mxu0 0.0
    %995 = vmatprep.subr.mxu0 0.0
    %996 = vmatpush1.msra.mxu0 0.0
    %997 = vmatprep.subr.mxu0 0.0
    %998 = vmatpush1.msra.mxu0 0.0
    %999 = vmatprep.subr.mxu0 0.0
    %1000 = vmatpush1.msra.mxu0 0.0
    %1001 = vmatprep.subr.mxu0 0.0
    %1002 = vmatpush1.msra.mxu0 0.0
    %1003 = vmatprep.subr.mxu0 0.0
    %1004 = vmatpush1.msra.mxu0 0.0
    %1005 = vmatprep.subr.mxu0 0.0
    %1006 = vmatpush1.msra.mxu0 0.0
    %1007 = vmatprep.subr.mxu0 0.0
    %1008 = vmatpush1.msra.mxu0 0.0
    %1009 = vmatprep.subr.mxu0 0.0
    %1010 = vmatpush1.msra.mxu0 0.0
    %1011 = vmatprep.subr.mxu0 0.0
    %1012 = vmatpush1.msra.mxu0 0.0
    %1013 = vmatprep.subr.mxu0 0.0
    %1014 = vmatpush1.msra.mxu0 0.0
    %1015 = vmatprep.subr.mxu0 0.0
    %1016 = vmatpush1.msra.mxu0 0.0
    %1017 = vmatprep.subr.mxu0 0.0
    %1018 = vmatpush1.msra.mxu0 0.0
    %1019 = vmatprep.subr.mxu0 0.0
    %1020 = vmatpush1.msra.mxu0 0.0
    %1021 = vmatprep.subr.mxu0 0.0
    %1022 = vmatpush1.msra.mxu0 0.0
    %1023 = vmatprep.mubr.f32.mxu0 0.0
    %1024 = vmatmul.mubr.f32.gmra.mrb[0].mxu0 %v957
    %v1025 = vpop.f32.mrb[0].mxu0
    %v1026 = vadd.f32 0.0, %v1025
    %v1027 = vpop.f32.mrb[0].mxu0
    %1028 = vdwg.mxu0
    %v1029 = vadd.f32 %v788, %v1026
    %1030 = vrot.lane.b32.xlu0 %v295, 104
    %v1031 = vpop.permute.xlu0 %1030
    %1032 = vrot.lane.b32.xlu0 %v295, 72
    %v1033 = vpop.permute.xlu0 %1032
    %v1034 = vsel %vm318, %v1031, 0
    %v1036 = vsel %vm318, %v1033, 0
    %1038 = vmatprep.subr.mxu0 0.0
    %1039 = vmatpush1.xpose.msra.mxu0 %v1036
    %1040 = vmatprep.subr.mxu0 0.0
    %1041 = vmatpush1.xpose.msra.mxu0 0.0
    %1042 = vmatprep.subr.mxu0 0.0
    %1043 = vmatpush1.xpose.msra.mxu0 0.0
    %1044 = vmatprep.subr.mxu0 0.0
    %1045 = vmatpush1.xpose.msra.mxu0 0.0
    %1046 = vmatprep.subr.mxu0 0.0
    %1047 = vmatpush1.xpose.msra.mxu0 0.0
    %1048 = vmatprep.subr.mxu0 0.0
    %1049 = vmatpush1.xpose.msra.mxu0 0.0
    %1050 = vmatprep.subr.mxu0 0.0
    %1051 = vmatpush1.xpose.msra.mxu0 0.0
    %1052 = vmatprep.subr.mxu0 0.0
    %1053 = vmatpush1.xpose.msra.mxu0 0.0
    %1054 = vmatprep.subr.mxu0 0.0
    %1055 = vmatpush1.xpose.msra.mxu0 0.0
    %1056 = vmatprep.subr.mxu0 0.0
    %1057 = vmatpush1.xpose.msra.mxu0 0.0
    %1058 = vmatprep.subr.mxu0 0.0
    %1059 = vmatpush1.xpose.msra.mxu0 0.0
    %1060 = vmatprep.subr.mxu0 0.0
    %1061 = vmatpush1.xpose.msra.mxu0 0.0
    %1062 = vmatprep.subr.mxu0 0.0
    %1063 = vmatpush1.xpose.msra.mxu0 0.0
    %1064 = vmatprep.subr.mxu0 0.0
    %1065 = vmatpush1.xpose.msra.mxu0 0.0
    %1066 = vmatprep.subr.mxu0 0.0
    %1067 = vmatpush1.xpose.msra.mxu0 0.0
    %1068 = vmatprep.subr.mxu0 0.0
    %1069 = vmatpush1.xpose.msra.mxu0 0.0
    %1070 = vmatprep.subr.mxu0 0.0
    %1071 = vmatpush1.xpose.msra.mxu0 0.0
    %1072 = vmatprep.subr.mxu0 0.0
    %1073 = vmatpush1.xpose.msra.mxu0 0.0
    %1074 = vmatprep.subr.mxu0 0.0
    %1075 = vmatpush1.xpose.msra.mxu0 0.0
    %1076 = vmatprep.subr.mxu0 0.0
    %1077 = vmatpush1.xpose.msra.mxu0 0.0
    %1078 = vmatprep.subr.mxu0 0.0
    %1079 = vmatpush1.xpose.msra.mxu0 0.0
    %1080 = vmatprep.subr.mxu0 0.0
    %1081 = vmatpush1.xpose.msra.mxu0 0.0
    %1082 = vmatprep.subr.mxu0 0.0
    %1083 = vmatpush1.xpose.msra.mxu0 0.0
    %1084 = vmatprep.subr.mxu0 0.0
    %1085 = vmatpush1.xpose.msra.mxu0 0.0
    %1086 = vmatprep.subr.mxu0 0.0
    %1087 = vmatpush1.xpose.msra.mxu0 0.0
    %1088 = vmatprep.subr.mxu0 0.0
    %1089 = vmatpush1.xpose.msra.mxu0 0.0
    %1090 = vmatprep.subr.mxu0 0.0
    %1091 = vmatpush1.xpose.msra.mxu0 0.0
    %1092 = vmatprep.subr.mxu0 0.0
    %1093 = vmatpush1.xpose.msra.mxu0 0.0
    %1094 = vmatprep.subr.mxu0 0.0
    %1095 = vmatpush1.xpose.msra.mxu0 0.0
    %1096 = vmatprep.subr.mxu0 0.0
    %1097 = vmatpush1.xpose.msra.mxu0 0.0
    %1098 = vmatprep.subr.mxu0 0.0
    %1099 = vmatpush1.xpose.msra.mxu0 0.0
    %1100 = vmatprep.subr.mxu0 0.0
    %1101 = vmatpush1.xpose.msra.mxu0 0.0
    %1102 = vmatprep.mubr.f32.mxu0 0.0
    %1103 = vmatmul.mubr.f32.gmra.mrb[0].mxu0 %v1034
    %v1104 = vpop.f32.mrb[0].mxu0
    %v1105 = vadd.f32 %v306, %v1104
    %v1106 = vpop.f32.mrb[0].mxu0
    %1107 = vdwg.mxu0
    %v1108 = vsel %vm318, %v1105, -inf
    %1109 = vmax.xlane.f32.xlu0 %v1108
    %v1110 = vpop.xlane.xlu0 %1109
    %v1111 = vsub.f32 %v1105, %v1110
    %v1112 = vmul.f32 %v1111, 1.442695
    %v1113 = vpow.pop %v1112
    %v1114 = vsel %vm318, %v1113, 0.0
    %1115 = vadd.xlane.f32.xlu0 %v1114
    %v1116 = vpop.xlane.xlu0 %1115
    %v1117 = vrcp.pop %v1116
    %v1118 = vmul.f32 %v1113, %v1117
    %1119 = vrot.lane.b32.xlu0 %v295, 40
    %v1120 = vpop.permute.xlu0 %1119
    %v1123 = vsel %vm318, %v1118, 0
    %1125 = vmatprep.subr.mxu0 0.0
    %1126 = vmatpush1.msra.mxu0 %v1120
    %1127 = vmatprep.subr.mxu0 0.0
    %1128 = vmatpush1.msra.mxu0 0.0
    %1129 = vmatprep.subr.mxu0 0.0
    %1130 = vmatpush1.msra.mxu0 0.0
    %1131 = vmatprep.subr.mxu0 0.0
    %1132 = vmatpush1.msra.mxu0 0.0
    %1133 = vmatprep.subr.mxu0 0.0
    %1134 = vmatpush1.msra.mxu0 0.0
    %1135 = vmatprep.subr.mxu0 0.0
    %1136 = vmatpush1.msra.mxu0 0.0
    %1137 = vmatprep.subr.mxu0 0.0
    %1138 = vmatpush1.msra.mxu0 0.0
    %1139 = vmatprep.subr.mxu0 0.0
    %1140 = vmatpush1.msra.mxu0 0.0
    %1141 = vmatprep.subr.mxu0 0.0
    %1142 = vmatpush1.msra.mxu0 0.0
    %1143 = vmatprep.subr.mxu0 0.0
    %1144 = vmatpush1.msra.mxu0 0.0
    %1145 = vmatprep.subr.mxu0 0.0
    %1146 = vmatpush1.msra.mxu0 0.0
    %1147 = vmatprep.subr.mxu0 0.0
    %1148 = vmatpush1.msra.mxu0 0.0
    %1149 = vmatprep.subr.mxu0 0.0
    %1150 = vmatpush1.msra.mxu0 0.0
    %1151 = vmatprep.subr.mxu0 0.0
    %1152 = vmatpush1.msra.mxu0 0.0
    %1153 = vmatprep.subr.mxu0 0.0
    %1154 = vmatpush1.msra.mxu0 0.0
    %1155 = vmatprep.subr.mxu0 0.0
    %1156 = vmatpush1.msra.mxu0 0.0
    %1157 = vmatprep.subr.mxu0 0.0
    %1158 = vmatpush1.msra.mxu0 0.0
    %1159 = vmatprep.subr.mxu0 0.0
    %1160 = vmatpush1.msra.mxu0 0.0
    %1161 = vmatprep.subr.mxu0 0.0
    %1162 = vmatpush1.msra.mxu0 0.0
    %1163 = vmatprep.subr.mxu0 0.0
    %1164 = vmatpush1.msra.mxu0 0.0
    %1165 = vmatprep.subr.mxu0 0.0
    %1166 = vmatpush1.msra.mxu0 0.0
    %1167 = vmatprep.subr.mxu0 0.0
    %1168 = vmatpush1.msra.mxu0 0.0
    %1169 = vmatprep.subr.mxu0 0.0
    %1170 = vmatpush1.msra.mxu0 0.0
    %1171 = vmatprep.subr.mxu0 0.0
    %1172 = vmatpush1.msra.mxu0 0.0
    %1173 = vmatprep.subr.mxu0 0.0
    %1174 = vmatpush1.msra.mxu0 0.0
    %1175 = vmatprep.subr.mxu0 0.0
    %1176 = vmatpush1.msra.mxu0 0.0
    %1177 = vmatprep.subr.mxu0 0.0
    %1178 = vmatpush1.msra.mxu0 0.0
    %1179 = vmatprep.subr.mxu0 0.0
    %1180 = vmatpush1.msra.mxu0 0.0
    %1181 = vmatprep.subr.mxu0 0.0
    %1182 = vmatpush1.msra.mxu0 0.0
    %1183 = vmatprep.subr.mxu0 0.0
    %1184 = vmatpush1.msra.mxu0 0.0
    %1185 = vmatprep.subr.mxu0 0.0
    %1186 = vmatpush1.msra.mxu0 0.0
    %1187 = vmatprep.subr.mxu0 0.0
    %1188 = vmatpush1.msra.mxu0 0.0
    %1189 = vmatprep.mubr.f32.mxu0 0.0
    %1190 = vmatmul.mubr.f32.gmra.mrb[0].mxu0 %v1123
    %v1191 = vpop.f32.mrb[0].mxu0
    %v1192 = vadd.f32 0.0, %v1191
    %v1193 = vpop.f32.mrb[0].mxu0
    %1194 = vdwg.mxu0
    %v1196 = vsel %vm318, %v1192, 0
    %1198 = vmatprep.subr.mxu0 0.0
    %1199 = vmatpush1.msra.mxu0 %v314
    %1200 = vmatprep.subr.mxu0 0.0
    %1201 = vmatpush1.msra.mxu0 0.0
    %1202 = vmatprep.subr.mxu0 0.0
    %1203 = vmatpush1.msra.mxu0 0.0
    %1204 = vmatprep.subr.mxu0 0.0
    %1205 = vmatpush1.msra.mxu0 0.0
    %1206 = vmatprep.subr.mxu0 0.0
    %1207 = vmatpush1.msra.mxu0 0.0
    %1208 = vmatprep.subr.mxu0 0.0
    %1209 = vmatpush1.msra.mxu0 0.0
    %1210 = vmatprep.subr.mxu0 0.0
    %1211 = vmatpush1.msra.mxu0 0.0
    %1212 = vmatprep.subr.mxu0 0.0
    %1213 = vmatpush1.msra.mxu0 0.0
    %1214 = vmatprep.subr.mxu0 0.0
    %1215 = vmatpush1.msra.mxu0 0.0
    %1216 = vmatprep.subr.mxu0 0.0
    %1217 = vmatpush1.msra.mxu0 0.0
    %1218 = vmatprep.subr.mxu0 0.0
    %1219 = vmatpush1.msra.mxu0 0.0
    %1220 = vmatprep.subr.mxu0 0.0
    %1221 = vmatpush1.msra.mxu0 0.0
    %1222 = vmatprep.subr.mxu0 0.0
    %1223 = vmatpush1.msra.mxu0 0.0
    %1224 = vmatprep.subr.mxu0 0.0
    %1225 = vmatpush1.msra.mxu0 0.0
    %1226 = vmatprep.subr.mxu0 0.0
    %1227 = vmatpush1.msra.mxu0 0.0
    %1228 = vmatprep.subr.mxu0 0.0
    %1229 = vmatpush1.msra.mxu0 0.0
    %1230 = vmatprep.subr.mxu0 0.0
    %1231 = vmatpush1.msra.mxu0 0.0
    %1232 = vmatprep.subr.mxu0 0.0
    %1233 = vmatpush1.msra.mxu0 0.0
    %1234 = vmatprep.subr.mxu0 0.0
    %1235 = vmatpush1.msra.mxu0 0.0
    %1236 = vmatprep.subr.mxu0 0.0
    %1237 = vmatpush1.msra.mxu0 0.0
    %1238 = vmatprep.subr.mxu0 0.0
    %1239 = vmatpush1.msra.mxu0 0.0
    %1240 = vmatprep.subr.mxu0 0.0
    %1241 = vmatpush1.msra.mxu0 0.0
    %1242 = vmatprep.subr.mxu0 0.0
    %1243 = vmatpush1.msra.mxu0 0.0
    %1244 = vmatprep.subr.mxu0 0.0
    %1245 = vmatpush1.msra.mxu0 0.0
    %1246 = vmatprep.subr.mxu0 0.0
    %1247 = vmatpush1.msra.mxu0 0.0
    %1248 = vmatprep.subr.mxu0 0.0
    %1249 = vmatpush1.msra.mxu0 0.0
    %1250 = vmatprep.subr.mxu0 0.0
    %1251 = vmatpush1.msra.mxu0 0.0
    %1252 = vmatprep.subr.mxu0 0.0
    %1253 = vmatpush1.msra.mxu0 0.0
    %1254 = vmatprep.subr.mxu0 0.0
    %1255 = vmatpush1.msra.mxu0 0.0
    %1256 = vmatprep.subr.mxu0 0.0
    %1257 = vmatpush1.msra.mxu0 0.0
    %1258 = vmatprep.subr.mxu0 0.0
    %1259 = vmatpush1.msra.mxu0 0.0
    %1260 = vmatprep.subr.mxu0 0.0
    %1261 = vmatpush1.msra.mxu0 0.0
    %1262 = vmatprep.mubr.f32.mxu0 0.0
    %1263 = vmatmul.mubr.f32.gmra.mrb[0].mxu0 %v1196
    %v1264 = vpop.f32.mrb[0].mxu0
    %v1265 = vadd.f32 0.0, %v1264
    %v1266 = vpop.f32.mrb[0].mxu0
    %1267 = vdwg.mxu0
    %v1268 = vadd.f32 %v1029, %v1265
    %1270 = vrot.lane.b32.xlu0 %v300, 96
    %v1271 = vpop.permute.xlu0 %1270
    %v1272 = vsel %vm318, %v300, 0
    %v1274 = vsel %vm318, %v1271, 0
    %1276 = vmatprep.subr.mxu0 0.0
    %1277 = vmatpush1.xpose.msra.mxu0 %v1274
    %1278 = vmatprep.subr.mxu0 0.0
    %1279 = vmatpush1.xpose.msra.mxu0 0.0
    %1280 = vmatprep.subr.mxu0 0.0
    %1281 = vmatpush1.xpose.msra.mxu0 0.0
    %1282 = vmatprep.subr.mxu0 0.0
    %1283 = vmatpush1.xpose.msra.mxu0 0.0
    %1284 = vmatprep.subr.mxu0 0.0
    %1285 = vmatpush1.xpose.msra.mxu0 0.0
    %1286 = vmatprep.subr.mxu0 0.0
    %1287 = vmatpush1.xpose.msra.mxu0 0.0
    %1288 = vmatprep.subr.mxu0 0.0
    %1289 = vmatpush1.xpose.msra.mxu0 0.0
    %1290 = vmatprep.subr.mxu0 0.0
    %1291 = vmatpush1.xpose.msra.mxu0 0.0
    %1292 = vmatprep.subr.mxu0 0.0
    %1293 = vmatpush1.xpose.msra.mxu0 0.0
    %1294 = vmatprep.subr.mxu0 0.0
    %1295 = vmatpush1.xpose.msra.mxu0 0.0
    %1296 = vmatprep.subr.mxu0 0.0
    %1297 = vmatpush1.xpose.msra.mxu0 0.0
    %1298 = vmatprep.subr.mxu0 0.0
    %1299 = vmatpush1.xpose.msra.mxu0 0.0
    %1300 = vmatprep.subr.mxu0 0.0
    %1301 = vmatpush1.xpose.msra.mxu0 0.0
    %1302 = vmatprep.subr.mxu0 0.0
    %1303 = vmatpush1.xpose.msra.mxu0 0.0
    %1304 = vmatprep.subr.mxu0 0.0
    %1305 = vmatpush1.xpose.msra.mxu0 0.0
    %1306 = vmatprep.subr.mxu0 0.0
    %1307 = vmatpush1.xpose.msra.mxu0 0.0
    %1308 = vmatprep.subr.mxu0 0.0
    %1309 = vmatpush1.xpose.msra.mxu0 0.0
    %1310 = vmatprep.subr.mxu0 0.0
    %1311 = vmatpush1.xpose.msra.mxu0 0.0
    %1312 = vmatprep.subr.mxu0 0.0
    %1313 = vmatpush1.xpose.msra.mxu0 0.0
    %1314 = vmatprep.subr.mxu0 0.0
    %1315 = vmatpush1.xpose.msra.mxu0 0.0
    %1316 = vmatprep.subr.mxu0 0.0
    %1317 = vmatpush1.xpose.msra.mxu0 0.0
    %1318 = vmatprep.subr.mxu0 0.0
    %1319 = vmatpush1.xpose.msra.mxu0 0.0
    %1320 = vmatprep.subr.mxu0 0.0
    %1321 = vmatpush1.xpose.msra.mxu0 0.0
    %1322 = vmatprep.subr.mxu0 0.0
    %1323 = vmatpush1.xpose.msra.mxu0 0.0
    %1324 = vmatprep.subr.mxu0 0.0
    %1325 = vmatpush1.xpose.msra.mxu0 0.0
    %1326 = vmatprep.subr.mxu0 0.0
    %1327 = vmatpush1.xpose.msra.mxu0 0.0
    %1328 = vmatprep.subr.mxu0 0.0
    %1329 = vmatpush1.xpose.msra.mxu0 0.0
    %1330 = vmatprep.subr.mxu0 0.0
    %1331 = vmatpush1.xpose.msra.mxu0 0.0
    %1332 = vmatprep.subr.mxu0 0.0
    %1333 = vmatpush1.xpose.msra.mxu0 0.0
    %1334 = vmatprep.subr.mxu0 0.0
    %1335 = vmatpush1.xpose.msra.mxu0 0.0
    %1336 = vmatprep.subr.mxu0 0.0
    %1337 = vmatpush1.xpose.msra.mxu0 0.0
    %1338 = vmatprep.subr.mxu0 0.0
    %1339 = vmatpush1.xpose.msra.mxu0 0.0
    %1340 = vmatprep.mubr.f32.mxu0 0.0
    %1341 = vmatmul.mubr.f32.gmra.mrb[0].mxu0 %v1272
    %v1342 = vpop.f32.mrb[0].mxu0
    %v1343 = vadd.f32 %v307, %v1342
    %v1344 = vpop.f32.mrb[0].mxu0
    %1345 = vdwg.mxu0
    %v1346 = vsel %vm318, %v1343, -inf
    %1347 = vmax.xlane.f32.xlu0 %v1346
    %v1348 = vpop.xlane.xlu0 %1347
    %v1349 = vsub.f32 %v1343, %v1348
    %v1350 = vmul.f32 %v1349, 1.442695
    %v1351 = vpow.pop %v1350
    %v1352 = vsel %vm318, %v1351, 0.0
    %1353 = vadd.xlane.f32.xlu0 %v1352
    %v1354 = vpop.xlane.xlu0 %1353
    %v1355 = vrcp.pop %v1354
    %v1356 = vmul.f32 %v1351, %v1355
    %1357 = vrot.lane.b32.xlu0 %v300, 64
    %v1358 = vpop.permute.xlu0 %1357
    %v1361 = vsel %vm318, %v1356, 0
    %1363 = vmatprep.subr.mxu0 0.0
    %1364 = vmatpush1.msra.mxu0 %v1358
    %1365 = vmatprep.subr.mxu0 0.0
    %1366 = vmatpush1.msra.mxu0 0.0
    %1367 = vmatprep.subr.mxu0 0.0
    %1368 = vmatpush1.msra.mxu0 0.0
    %1369 = vmatprep.subr.mxu0 0.0
    %1370 = vmatpush1.msra.mxu0 0.0
    %1371 = vmatprep.subr.mxu0 0.0
    %1372 = vmatpush1.msra.mxu0 0.0
    %1373 = vmatprep.subr.mxu0 0.0
    %1374 = vmatpush1.msra.mxu0 0.0
    %1375 = vmatprep.subr.mxu0 0.0
    %1376 = vmatpush1.msra.mxu0 0.0
    %1377 = vmatprep.subr.mxu0 0.0
    %1378 = vmatpush1.msra.mxu0 0.0
    %1379 = vmatprep.subr.mxu0 0.0
    %1380 = vmatpush1.msra.mxu0 0.0
    %1381 = vmatprep.subr.mxu0 0.0
    %1382 = vmatpush1.msra.mxu0 0.0
    %1383 = vmatprep.subr.mxu0 0.0
    %1384 = vmatpush1.msra.mxu0 0.0
    %1385 = vmatprep.subr.mxu0 0.0
    %1386 = vmatpush1.msra.mxu0 0.0
    %1387 = vmatprep.subr.mxu0 0.0
    %1388 = vmatpush1.msra.mxu0 0.0
    %1389 = vmatprep.subr.mxu0 0.0
    %1390 = vmatpush1.msra.mxu0 0.0
    %1391 = vmatprep.subr.mxu0 0.0
    %1392 = vmatpush1.msra.mxu0 0.0
    %1393 = vmatprep.subr.mxu0 0.0
    %1394 = vmatpush1.msra.mxu0 0.0
    %1395 = vmatprep.subr.mxu0 0.0
    %1396 = vmatpush1.msra.mxu0 0.0
    %1397 = vmatprep.subr.mxu0 0.0
    %1398 = vmatpush1.msra.mxu0 0.0
    %1399 = vmatprep.subr.mxu0 0.0
    %1400 = vmatpush1.msra.mxu0 0.0
    %1401 = vmatprep.subr.mxu0 0.0
    %1402 = vmatpush1.msra.mxu0 0.0
    %1403 = vmatprep.subr.mxu0 0.0
    %1404 = vmatpush1.msra.mxu0 0.0
    %1405 = vmatprep.subr.mxu0 0.0
    %1406 = vmatpush1.msra.mxu0 0.0
    %1407 = vmatprep.subr.mxu0 0.0
    %1408 = vmatpush1.msra.mxu0 0.0
    %1409 = vmatprep.subr.mxu0 0.0
    %1410 = vmatpush1.msra.mxu0 0.0
    %1411 = vmatprep.subr.mxu0 0.0
    %1412 = vmatpush1.msra.mxu0 0.0
    %1413 = vmatprep.subr.mxu0 0.0
    %1414 = vmatpush1.msra.mxu0 0.0
    %1415 = vmatprep.subr.mxu0 0.0
    %1416 = vmatpush1.msra.mxu0 0.0
    %1417 = vmatprep.subr.mxu0 0.0
    %1418 = vmatpush1.msra.mxu0 0.0
    %1419 = vmatprep.subr.mxu0 0.0
    %1420 = vmatpush1.msra.mxu0 0.0
    %1421 = vmatprep.subr.mxu0 0.0
    %1422 = vmatpush1.msra.mxu0 0.0
    %1423 = vmatprep.subr.mxu0 0.0
    %1424 = vmatpush1.msra.mxu0 0.0
    %1425 = vmatprep.subr.mxu0 0.0
    %1426 = vmatpush1.msra.mxu0 0.0
    %1427 = vmatprep.mubr.f32.mxu0 0.0
    %1428 = vmatmul.mubr.f32.gmra.mrb[0].mxu0 %v1361
    %v1429 = vpop.f32.mrb[0].mxu0
    %v1430 = vadd.f32 0.0, %v1429
    %v1431 = vpop.f32.mrb[0].mxu0
    %1432 = vdwg.mxu0
    %1433 = vrot.lane.b32.xlu0 %v300, 120
    %v1434 = vpop.permute.xlu0 %1433
    %1435 = vrot.lane.b32.xlu0 %v300, 88
    %v1436 = vpop.permute.xlu0 %1435
    %v1437 = vsel %vm318, %v1434, 0
    %v1439 = vsel %vm318, %v1436, 0
    %1441 = vmatprep.subr.mxu0 0.0
    %1442 = vmatpush1.xpose.msra.mxu0 %v1439
    %1443 = vmatprep.subr.mxu0 0.0
    %1444 = vmatpush1.xpose.msra.mxu0 0.0
    %1445 = vmatprep.subr.mxu0 0.0
    %1446 = vmatpush1.xpose.msra.mxu0 0.0
    %1447 = vmatprep.subr.mxu0 0.0
    %1448 = vmatpush1.xpose.msra.mxu0 0.0
    %1449 = vmatprep.subr.mxu0 0.0
    %1450 = vmatpush1.xpose.msra.mxu0 0.0
    %1451 = vmatprep.subr.mxu0 0.0
    %1452 = vmatpush1.xpose.msra.mxu0 0.0
    %1453 = vmatprep.subr.mxu0 0.0
    %1454 = vmatpush1.xpose.msra.mxu0 0.0
    %1455 = vmatprep.subr.mxu0 0.0
    %1456 = vmatpush1.xpose.msra.mxu0 0.0
    %1457 = vmatprep.subr.mxu0 0.0
    %1458 = vmatpush1.xpose.msra.mxu0 0.0
    %1459 = vmatprep.subr.mxu0 0.0
    %1460 = vmatpush1.xpose.msra.mxu0 0.0
    %1461 = vmatprep.subr.mxu0 0.0
    %1462 = vmatpush1.xpose.msra.mxu0 0.0
    %1463 = vmatprep.subr.mxu0 0.0
    %1464 = vmatpush1.xpose.msra.mxu0 0.0
    %1465 = vmatprep.subr.mxu0 0.0
    %1466 = vmatpush1.xpose.msra.mxu0 0.0
    %1467 = vmatprep.subr.mxu0 0.0
    %1468 = vmatpush1.xpose.msra.mxu0 0.0
    %1469 = vmatprep.subr.mxu0 0.0
    %1470 = vmatpush1.xpose.msra.mxu0 0.0
    %1471 = vmatprep.subr.mxu0 0.0
    %1472 = vmatpush1.xpose.msra.mxu0 0.0
    %1473 = vmatprep.subr.mxu0 0.0
    %1474 = vmatpush1.xpose.msra.mxu0 0.0
    %1475 = vmatprep.subr.mxu0 0.0
    %1476 = vmatpush1.xpose.msra.mxu0 0.0
    %1477 = vmatprep.subr.mxu0 0.0
    %1478 = vmatpush1.xpose.msra.mxu0 0.0
    %1479 = vmatprep.subr.mxu0 0.0
    %1480 = vmatpush1.xpose.msra.mxu0 0.0
    %1481 = vmatprep.subr.mxu0 0.0
    %1482 = vmatpush1.xpose.msra.mxu0 0.0
    %1483 = vmatprep.subr.mxu0 0.0
    %1484 = vmatpush1.xpose.msra.mxu0 0.0
    %1485 = vmatprep.subr.mxu0 0.0
    %1486 = vmatpush1.xpose.msra.mxu0 0.0
    %1487 = vmatprep.subr.mxu0 0.0
    %1488 = vmatpush1.xpose.msra.mxu0 0.0
    %1489 = vmatprep.subr.mxu0 0.0
    %1490 = vmatpush1.xpose.msra.mxu0 0.0
    %1491 = vmatprep.subr.mxu0 0.0
    %1492 = vmatpush1.xpose.msra.mxu0 0.0
    %1493 = vmatprep.subr.mxu0 0.0
    %1494 = vmatpush1.xpose.msra.mxu0 0.0
    %1495 = vmatprep.subr.mxu0 0.0
    %1496 = vmatpush1.xpose.msra.mxu0 0.0
    %1497 = vmatprep.subr.mxu0 0.0
    %1498 = vmatpush1.xpose.msra.mxu0 0.0
    %1499 = vmatprep.subr.mxu0 0.0
    %1500 = vmatpush1.xpose.msra.mxu0 0.0
    %1501 = vmatprep.subr.mxu0 0.0
    %1502 = vmatpush1.xpose.msra.mxu0 0.0
    %1503 = vmatprep.subr.mxu0 0.0
    %1504 = vmatpush1.xpose.msra.mxu0 0.0
    %1505 = vmatprep.mubr.f32.mxu0 0.0
    %1506 = vmatmul.mubr.f32.gmra.mrb[0].mxu0 %v1437
    %v1507 = vpop.f32.mrb[0].mxu0
    %v1508 = vadd.f32 %v308, %v1507
    %v1509 = vpop.f32.mrb[0].mxu0
    %1510 = vdwg.mxu0
    %v1511 = vsel %vm318, %v1508, -inf
    %1512 = vmax.xlane.f32.xlu0 %v1511
    %v1513 = vpop.xlane.xlu0 %1512
    %v1514 = vsub.f32 %v1508, %v1513
    %v1515 = vmul.f32 %v1514, 1.442695
    %v1516 = vpow.pop %v1515
    %v1517 = vsel %vm318, %v1516, 0.0
    %1518 = vadd.xlane.f32.xlu0 %v1517
    %v1519 = vpop.xlane.xlu0 %1518
    %v1520 = vrcp.pop %v1519
    %v1521 = vmul.f32 %v1516, %v1520
    %1522 = vrot.lane.b32.xlu0 %v300, 56
    %v1523 = vpop.permute.xlu0 %1522
    %v1526 = vsel %vm318, %v1521, 0
    %1528 = vmatprep.subr.mxu0 0.0
    %1529 = vmatpush1.msra.mxu0 %v1523
    %1530 = vmatprep.subr.mxu0 0.0
    %1531 = vmatpush1.msra.mxu0 0.0
    %1532 = vmatprep.subr.mxu0 0.0
    %1533 = vmatpush1.msra.mxu0 0.0
    %1534 = vmatprep.subr.mxu0 0.0
    %1535 = vmatpush1.msra.mxu0 0.0
    %1536 = vmatprep.subr.mxu0 0.0
    %1537 = vmatpush1.msra.mxu0 0.0
    %1538 = vmatprep.subr.mxu0 0.0
    %1539 = vmatpush1.msra.mxu0 0.0
    %1540 = vmatprep.subr.mxu0 0.0
    %1541 = vmatpush1.msra.mxu0 0.0
    %1542 = vmatprep.subr.mxu0 0.0
    %1543 = vmatpush1.msra.mxu0 0.0
    %1544 = vmatprep.subr.mxu0 0.0
    %1545 = vmatpush1.msra.mxu0 0.0
    %1546 = vmatprep.subr.mxu0 0.0
    %1547 = vmatpush1.msra.mxu0 0.0
    %1548 = vmatprep.subr.mxu0 0.0
    %1549 = vmatpush1.msra.mxu0 0.0
    %1550 = vmatprep.subr.mxu0 0.0
    %1551 = vmatpush1.msra.mxu0 0.0
    %1552 = vmatprep.subr.mxu0 0.0
    %1553 = vmatpush1.msra.mxu0 0.0
    %1554 = vmatprep.subr.mxu0 0.0
    %1555 = vmatpush1.msra.mxu0 0.0
    %1556 = vmatprep.subr.mxu0 0.0
    %1557 = vmatpush1.msra.mxu0 0.0
    %1558 = vmatprep.subr.mxu0 0.0
    %1559 = vmatpush1.msra.mxu0 0.0
    %1560 = vmatprep.subr.mxu0 0.0
    %1561 = vmatpush1.msra.mxu0 0.0
    %1562 = vmatprep.subr.mxu0 0.0
    %1563 = vmatpush1.msra.mxu0 0.0
    %1564 = vmatprep.subr.mxu0 0.0
    %1565 = vmatpush1.msra.mxu0 0.0
    %1566 = vmatprep.subr.mxu0 0.0
    %1567 = vmatpush1.msra.mxu0 0.0
    %1568 = vmatprep.subr.mxu0 0.0
    %1569 = vmatpush1.msra.mxu0 0.0
    %1570 = vmatprep.subr.mxu0 0.0
    %1571 = vmatpush1.msra.mxu0 0.0
    %1572 = vmatprep.subr.mxu0 0.0
    %1573 = vmatpush1.msra.mxu0 0.0
    %1574 = vmatprep.subr.mxu0 0.0
    %1575 = vmatpush1.msra.mxu0 0.0
    %1576 = vmatprep.subr.mxu0 0.0
    %1577 = vmatpush1.msra.mxu0 0.0
    %1578 = vmatprep.subr.mxu0 0.0
    %1579 = vmatpush1.msra.mxu0 0.0
    %1580 = vmatprep.subr.mxu0 0.0
    %1581 = vmatpush1.msra.mxu0 0.0
    %1582 = vmatprep.subr.mxu0 0.0
    %1583 = vmatpush1.msra.mxu0 0.0
    %1584 = vmatprep.subr.mxu0 0.0
    %1585 = vmatpush1.msra.mxu0 0.0
    %1586 = vmatprep.subr.mxu0 0.0
    %1587 = vmatpush1.msra.mxu0 0.0
    %1588 = vmatprep.subr.mxu0 0.0
    %1589 = vmatpush1.msra.mxu0 0.0
    %1590 = vmatprep.subr.mxu0 0.0
    %1591 = vmatpush1.msra.mxu0 0.0
    %1592 = vmatprep.mubr.f32.mxu0 0.0
    %1593 = vmatmul.mubr.f32.gmra.mrb[0].mxu0 %v1526
    %v1594 = vpop.f32.mrb[0].mxu0
    %v1595 = vadd.f32 0.0, %v1594
    %v1596 = vpop.f32.mrb[0].mxu0
    %1597 = vdwg.mxu0
    %v1599 = vsel %vm318, %v1595, 0
    %1601 = vmatprep.subr.mxu0 0.0
    %1602 = vmatpush1.msra.mxu0 %v312
    %1603 = vmatprep.subr.mxu0 0.0
    %1604 = vmatpush1.msra.mxu0 0.0
    %1605 = vmatprep.subr.mxu0 0.0
    %1606 = vmatpush1.msra.mxu0 0.0
    %1607 = vmatprep.subr.mxu0 0.0
    %1608 = vmatpush1.msra.mxu0 0.0
    %1609 = vmatprep.subr.mxu0 0.0
    %1610 = vmatpush1.msra.mxu0 0.0
    %1611 = vmatprep.subr.mxu0 0.0
    %1612 = vmatpush1.msra.mxu0 0.0
    %1613 = vmatprep.subr.mxu0 0.0
    %1614 = vmatpush1.msra.mxu0 0.0
    %1615 = vmatprep.subr.mxu0 0.0
    %1616 = vmatpush1.msra.mxu0 0.0
    %1617 = vmatprep.subr.mxu0 0.0
    %1618 = vmatpush1.msra.mxu0 0.0
    %1619 = vmatprep.subr.mxu0 0.0
    %1620 = vmatpush1.msra.mxu0 0.0
    %1621 = vmatprep.subr.mxu0 0.0
    %1622 = vmatpush1.msra.mxu0 0.0
    %1623 = vmatprep.subr.mxu0 0.0
    %1624 = vmatpush1.msra.mxu0 0.0
    %1625 = vmatprep.subr.mxu0 0.0
    %1626 = vmatpush1.msra.mxu0 0.0
    %1627 = vmatprep.subr.mxu0 0.0
    %1628 = vmatpush1.msra.mxu0 0.0
    %1629 = vmatprep.subr.mxu0 0.0
    %1630 = vmatpush1.msra.mxu0 0.0
    %1631 = vmatprep.subr.mxu0 0.0
    %1632 = vmatpush1.msra.mxu0 0.0
    %1633 = vmatprep.subr.mxu0 0.0
    %1634 = vmatpush1.msra.mxu0 0.0
    %1635 = vmatprep.subr.mxu0 0.0
    %1636 = vmatpush1.msra.mxu0 0.0
    %1637 = vmatprep.subr.mxu0 0.0
    %1638 = vmatpush1.msra.mxu0 0.0
    %1639 = vmatprep.subr.mxu0 0.0
    %1640 = vmatpush1.msra.mxu0 0.0
    %1641 = vmatprep.subr.mxu0 0.0
    %1642 = vmatpush1.msra.mxu0 0.0
    %1643 = vmatprep.subr.mxu0 0.0
    %1644 = vmatpush1.msra.mxu0 0.0
    %1645 = vmatprep.subr.mxu0 0.0
    %1646 = vmatpush1.msra.mxu0 0.0
    %1647 = vmatprep.subr.mxu0 0.0
    %1648 = vmatpush1.msra.mxu0 0.0
    %1649 = vmatprep.subr.mxu0 0.0
    %1650 = vmatpush1.msra.mxu0 0.0
    %1651 = vmatprep.subr.mxu0 0.0
    %1652 = vmatpush1.msra.mxu0 0.0
    %1653 = vmatprep.subr.mxu0 0.0
    %1654 = vmatpush1.msra.mxu0 0.0
    %1655 = vmatprep.subr.mxu0 0.0
    %1656 = vmatpush1.msra.mxu0 0.0
    %1657 = vmatprep.subr.mxu0 0.0
    %1658 = vmatpush1.msra.mxu0 0.0
    %1659 = vmatprep.subr.mxu0 0.0
    %1660 = vmatpush1.msra.mxu0 0.0
    %1661 = vmatprep.subr.mxu0 0.0
    %1662 = vmatpush1.msra.mxu0 0.0
    %1663 = vmatprep.subr.mxu0 0.0
    %1664 = vmatpush1.msra.mxu0 0.0
    %1665 = vmatprep.mubr.f32.mxu0 0.0
    %1666 = vmatmul.mubr.f32.gmra.mrb[0].mxu0 %v1599
    %v1667 = vpop.f32.mrb[0].mxu0
    %v1668 = vadd.f32 0.0, %v1667
    %v1669 = vpop.f32.mrb[0].mxu0
    %1670 = vdwg.mxu0
    %v1672 = vsel %vm318, %v1430, 0
    %1674 = vmatprep.subr.mxu0 0.0
    %1675 = vmatpush1.msra.mxu0 %v311
    %1676 = vmatprep.subr.mxu0 0.0
    %1677 = vmatpush1.msra.mxu0 0.0
    %1678 = vmatprep.subr.mxu0 0.0
    %1679 = vmatpush1.msra.mxu0 0.0
    %1680 = vmatprep.subr.mxu0 0.0
    %1681 = vmatpush1.msra.mxu0 0.0
    %1682 = vmatprep.subr.mxu0 0.0
    %1683 = vmatpush1.msra.mxu0 0.0
    %1684 = vmatprep.subr.mxu0 0.0
    %1685 = vmatpush1.msra.mxu0 0.0
    %1686 = vmatprep.subr.mxu0 0.0
    %1687 = vmatpush1.msra.mxu0 0.0
    %1688 = vmatprep.subr.mxu0 0.0
    %1689 = vmatpush1.msra.mxu0 0.0
    %1690 = vmatprep.subr.mxu0 0.0
    %1691 = vmatpush1.msra.mxu0 0.0
    %1692 = vmatprep.subr.mxu0 0.0
    %1693 = vmatpush1.msra.mxu0 0.0
    %1694 = vmatprep.subr.mxu0 0.0
    %1695 = vmatpush1.msra.mxu0 0.0
    %1696 = vmatprep.subr.mxu0 0.0
    %1697 = vmatpush1.msra.mxu0 0.0
    %1698 = vmatprep.subr.mxu0 0.0
    %1699 = vmatpush1.msra.mxu0 0.0
    %1700 = vmatprep.subr.mxu0 0.0
    %1701 = vmatpush1.msra.mxu0 0.0
    %1702 = vmatprep.subr.mxu0 0.0
    %1703 = vmatpush1.msra.mxu0 0.0
    %1704 = vmatprep.subr.mxu0 0.0
    %1705 = vmatpush1.msra.mxu0 0.0
    %1706 = vmatprep.subr.mxu0 0.0
    %1707 = vmatpush1.msra.mxu0 0.0
    %1708 = vmatprep.subr.mxu0 0.0
    %1709 = vmatpush1.msra.mxu0 0.0
    %1710 = vmatprep.subr.mxu0 0.0
    %1711 = vmatpush1.msra.mxu0 0.0
    %1712 = vmatprep.subr.mxu0 0.0
    %1713 = vmatpush1.msra.mxu0 0.0
    %1714 = vmatprep.subr.mxu0 0.0
    %1715 = vmatpush1.msra.mxu0 0.0
    %1716 = vmatprep.subr.mxu0 0.0
    %1717 = vmatpush1.msra.mxu0 0.0
    %1718 = vmatprep.subr.mxu0 0.0
    %1719 = vmatpush1.msra.mxu0 0.0
    %1720 = vmatprep.subr.mxu0 0.0
    %1721 = vmatpush1.msra.mxu0 0.0
    %1722 = vmatprep.subr.mxu0 0.0
    %1723 = vmatpush1.msra.mxu0 0.0
    %1724 = vmatprep.subr.mxu0 0.0
    %1725 = vmatpush1.msra.mxu0 0.0
    %1726 = vmatprep.subr.mxu0 0.0
    %1727 = vmatpush1.msra.mxu0 0.0
    %1728 = vmatprep.subr.mxu0 0.0
    %1729 = vmatpush1.msra.mxu0 0.0
    %1730 = vmatprep.subr.mxu0 0.0
    %1731 = vmatpush1.msra.mxu0 0.0
    %1732 = vmatprep.subr.mxu0 0.0
    %1733 = vmatpush1.msra.mxu0 0.0
    %1734 = vmatprep.subr.mxu0 0.0
    %1735 = vmatpush1.msra.mxu0 0.0
    %1736 = vmatprep.subr.mxu0 0.0
    %1737 = vmatpush1.msra.mxu0 0.0
    %1738 = vmatprep.mubr.f32.mxu0 0.0
    %1739 = vmatmul.mubr.f32.gmra.mrb[0].mxu0 %v1672
    %v1740 = vpop.f32.mrb[0].mxu0
    %v1741 = vadd.f32 %v1668, %v1740
    %v1742 = vpop.f32.mrb[0].mxu0
    %1743 = vdwg.mxu0
    %1744 = vrot.lane.b32.xlu0 %v300, 112
    %v1745 = vpop.permute.xlu0 %1744
    %1746 = vrot.lane.b32.xlu0 %v300, 80
    %v1747 = vpop.permute.xlu0 %1746
    %v1748 = vsel %vm318, %v1745, 0
    %v1750 = vsel %vm318, %v1747, 0
    %1752 = vmatprep.subr.mxu0 0.0
    %1753 = vmatpush1.xpose.msra.mxu0 %v1750
    %1754 = vmatprep.subr.mxu0 0.0
    %1755 = vmatpush1.xpose.msra.mxu0 0.0
    %1756 = vmatprep.subr.mxu0 0.0
    %1757 = vmatpush1.xpose.msra.mxu0 0.0
    %1758 = vmatprep.subr.mxu0 0.0
    %1759 = vmatpush1.xpose.msra.mxu0 0.0
    %1760 = vmatprep.subr.mxu0 0.0
    %1761 = vmatpush1.xpose.msra.mxu0 0.0
    %1762 = vmatprep.subr.mxu0 0.0
    %1763 = vmatpush1.xpose.msra.mxu0 0.0
    %1764 = vmatprep.subr.mxu0 0.0
    %1765 = vmatpush1.xpose.msra.mxu0 0.0
    %1766 = vmatprep.subr.mxu0 0.0
    %1767 = vmatpush1.xpose.msra.mxu0 0.0
    %1768 = vmatprep.subr.mxu0 0.0
    %1769 = vmatpush1.xpose.msra.mxu0 0.0
    %1770 = vmatprep.subr.mxu0 0.0
    %1771 = vmatpush1.xpose.msra.mxu0 0.0
    %1772 = vmatprep.subr.mxu0 0.0
    %1773 = vmatpush1.xpose.msra.mxu0 0.0
    %1774 = vmatprep.subr.mxu0 0.0
    %1775 = vmatpush1.xpose.msra.mxu0 0.0
    %1776 = vmatprep.subr.mxu0 0.0
    %1777 = vmatpush1.xpose.msra.mxu0 0.0
    %1778 = vmatprep.subr.mxu0 0.0
    %1779 = vmatpush1.xpose.msra.mxu0 0.0
    %1780 = vmatprep.subr.mxu0 0.0
    %1781 = vmatpush1.xpose.msra.mxu0 0.0
    %1782 = vmatprep.subr.mxu0 0.0
    %1783 = vmatpush1.xpose.msra.mxu0 0.0
    %1784 = vmatprep.subr.mxu0 0.0
    %1785 = vmatpush1.xpose.msra.mxu0 0.0
    %1786 = vmatprep.subr.mxu0 0.0
    %1787 = vmatpush1.xpose.msra.mxu0 0.0
    %1788 = vmatprep.subr.mxu0 0.0
    %1789 = vmatpush1.xpose.msra.mxu0 0.0
    %1790 = vmatprep.subr.mxu0 0.0
    %1791 = vmatpush1.xpose.msra.mxu0 0.0
    %1792 = vmatprep.subr.mxu0 0.0
    %1793 = vmatpush1.xpose.msra.mxu0 0.0
    %1794 = vmatprep.subr.mxu0 0.0
    %1795 = vmatpush1.xpose.msra.mxu0 0.0
    %1796 = vmatprep.subr.mxu0 0.0
    %1797 = vmatpush1.xpose.msra.mxu0 0.0
    %1798 = vmatprep.subr.mxu0 0.0
    %1799 = vmatpush1.xpose.msra.mxu0 0.0
    %1800 = vmatprep.subr.mxu0 0.0
    %1801 = vmatpush1.xpose.msra.mxu0 0.0
    %1802 = vmatprep.subr.mxu0 0.0
    %1803 = vmatpush1.xpose.msra.mxu0 0.0
    %1804 = vmatprep.subr.mxu0 0.0
    %1805 = vmatpush1.xpose.msra.mxu0 0.0
    %1806 = vmatprep.subr.mxu0 0.0
    %1807 = vmatpush1.xpose.msra.mxu0 0.0
    %1808 = vmatprep.subr.mxu0 0.0
    %1809 = vmatpush1.xpose.msra.mxu0 0.0
    %1810 = vmatprep.subr.mxu0 0.0
    %1811 = vmatpush1.xpose.msra.mxu0 0.0
    %1812 = vmatprep.subr.mxu0 0.0
    %1813 = vmatpush1.xpose.msra.mxu0 0.0
    %1814 = vmatprep.subr.mxu0 0.0
    %1815 = vmatpush1.xpose.msra.mxu0 0.0
    %1816 = vmatprep.mubr.f32.mxu0 0.0
    %1817 = vmatmul.mubr.f32.gmra.mrb[0].mxu0 %v1748
    %v1818 = vpop.f32.mrb[0].mxu0
    %v1819 = vadd.f32 %v309, %v1818
    %v1820 = vpop.f32.mrb[0].mxu0
    %1821 = vdwg.mxu0
    %v1822 = vsel %vm318, %v1819, -inf
    %1823 = vmax.xlane.f32.xlu0 %v1822
    %v1824 = vpop.xlane.xlu0 %1823
    %v1825 = vsub.f32 %v1819, %v1824
    %v1826 = vmul.f32 %v1825, 1.442695
    %v1827 = vpow.pop %v1826
    %v1828 = vsel %vm318, %v1827, 0.0
    %1829 = vadd.xlane.f32.xlu0 %v1828
    %v1830 = vpop.xlane.xlu0 %1829
    %v1831 = vrcp.pop %v1830
    %v1832 = vmul.f32 %v1827, %v1831
    %1833 = vrot.lane.b32.xlu0 %v300, 48
    %v1834 = vpop.permute.xlu0 %1833
    %v1837 = vsel %vm318, %v1832, 0
    %1839 = vmatprep.subr.mxu0 0.0
    %1840 = vmatpush1.msra.mxu0 %v1834
    %1841 = vmatprep.subr.mxu0 0.0
    %1842 = vmatpush1.msra.mxu0 0.0
    %1843 = vmatprep.subr.mxu0 0.0
    %1844 = vmatpush1.msra.mxu0 0.0
    %1845 = vmatprep.subr.mxu0 0.0
    %1846 = vmatpush1.msra.mxu0 0.0
    %1847 = vmatprep.subr.mxu0 0.0
    %1848 = vmatpush1.msra.mxu0 0.0
    %1849 = vmatprep.subr.mxu0 0.0
    %1850 = vmatpush1.msra.mxu0 0.0
    %1851 = vmatprep.subr.mxu0 0.0
    %1852 = vmatpush1.msra.mxu0 0.0
    %1853 = vmatprep.subr.mxu0 0.0
    %1854 = vmatpush1.msra.mxu0 0.0
    %1855 = vmatprep.subr.mxu0 0.0
    %1856 = vmatpush1.msra.mxu0 0.0
    %1857 = vmatprep.subr.mxu0 0.0
    %1858 = vmatpush1.msra.mxu0 0.0
    %1859 = vmatprep.subr.mxu0 0.0
    %1860 = vmatpush1.msra.mxu0 0.0
    %1861 = vmatprep.subr.mxu0 0.0
    %1862 = vmatpush1.msra.mxu0 0.0
    %1863 = vmatprep.subr.mxu0 0.0
    %1864 = vmatpush1.msra.mxu0 0.0
    %1865 = vmatprep.subr.mxu0 0.0
    %1866 = vmatpush1.msra.mxu0 0.0
    %1867 = vmatprep.subr.mxu0 0.0
    %1868 = vmatpush1.msra.mxu0 0.0
    %1869 = vmatprep.subr.mxu0 0.0
    %1870 = vmatpush1.msra.mxu0 0.0
    %1871 = vmatprep.subr.mxu0 0.0
    %1872 = vmatpush1.msra.mxu0 0.0
    %1873 = vmatprep.subr.mxu0 0.0
    %1874 = vmatpush1.msra.mxu0 0.0
    %1875 = vmatprep.subr.mxu0 0.0
    %1876 = vmatpush1.msra.mxu0 0.0
    %1877 = vmatprep.subr.mxu0 0.0
    %1878 = vmatpush1.msra.mxu0 0.0
    %1879 = vmatprep.subr.mxu0 0.0
    %1880 = vmatpush1.msra.mxu0 0.0
    %1881 = vmatprep.subr.mxu0 0.0
    %1882 = vmatpush1.msra.mxu0 0.0
    %1883 = vmatprep.subr.mxu0 0.0
    %1884 = vmatpush1.msra.mxu0 0.0
    %1885 = vmatprep.subr.mxu0 0.0
    %1886 = vmatpush1.msra.mxu0 0.0
    %1887 = vmatprep.subr.mxu0 0.0
    %1888 = vmatpush1.msra.mxu0 0.0
    %1889 = vmatprep.subr.mxu0 0.0
    %1890 = vmatpush1.msra.mxu0 0.0
    %1891 = vmatprep.subr.mxu0 0.0
    %1892 = vmatpush1.msra.mxu0 0.0
    %1893 = vmatprep.subr.mxu0 0.0
    %1894 = vmatpush1.msra.mxu0 0.0
    %1895 = vmatprep.subr.mxu0 0.0
    %1896 = vmatpush1.msra.mxu0 0.0
    %1897 = vmatprep.subr.mxu0 0.0
    %1898 = vmatpush1.msra.mxu0 0.0
    %1899 = vmatprep.subr.mxu0 0.0
    %1900 = vmatpush1.msra.mxu0 0.0
    %1901 = vmatprep.subr.mxu0 0.0
    %1902 = vmatpush1.msra.mxu0 0.0
    %1903 = vmatprep.mubr.f32.mxu0 0.0
    %1904 = vmatmul.mubr.f32.gmra.mrb[0].mxu0 %v1837
    %v1905 = vpop.f32.mrb[0].mxu0
    %v1906 = vadd.f32 0.0, %v1905
    %v1907 = vpop.f32.mrb[0].mxu0
    %1908 = vdwg.mxu0
    %v1910 = vsel %vm318, %v1906, 0
    %1912 = vmatprep.subr.mxu0 0.0
    %1913 = vmatpush1.msra.mxu0 %v313
    %1914 = vmatprep.subr.mxu0 0.0
    %1915 = vmatpush1.msra.mxu0 0.0
    %1916 = vmatprep.subr.mxu0 0.0
    %1917 = vmatpush1.msra.mxu0 0.0
    %1918 = vmatprep.subr.mxu0 0.0
    %1919 = vmatpush1.msra.mxu0 0.0
    %1920 = vmatprep.subr.mxu0 0.0
    %1921 = vmatpush1.msra.mxu0 0.0
    %1922 = vmatprep.subr.mxu0 0.0
    %1923 = vmatpush1.msra.mxu0 0.0
    %1924 = vmatprep.subr.mxu0 0.0
    %1925 = vmatpush1.msra.mxu0 0.0
    %1926 = vmatprep.subr.mxu0 0.0
    %1927 = vmatpush1.msra.mxu0 0.0
    %1928 = vmatprep.subr.mxu0 0.0
    %1929 = vmatpush1.msra.mxu0 0.0
    %1930 = vmatprep.subr.mxu0 0.0
    %1931 = vmatpush1.msra.mxu0 0.0
    %1932 = vmatprep.subr.mxu0 0.0
    %1933 = vmatpush1.msra.mxu0 0.0
    %1934 = vmatprep.subr.mxu0 0.0
    %1935 = vmatpush1.msra.mxu0 0.0
    %1936 = vmatprep.subr.mxu0 0.0
    %1937 = vmatpush1.msra.mxu0 0.0
    %1938 = vmatprep.subr.mxu0 0.0
    %1939 = vmatpush1.msra.mxu0 0.0
    %1940 = vmatprep.subr.mxu0 0.0
    %1941 = vmatpush1.msra.mxu0 0.0
    %1942 = vmatprep.subr.mxu0 0.0
    %1943 = vmatpush1.msra.mxu0 0.0
    %1944 = vmatprep.subr.mxu0 0.0
    %1945 = vmatpush1.msra.mxu0 0.0
    %1946 = vmatprep.subr.mxu0 0.0
    %1947 = vmatpush1.msra.mxu0 0.0
    %1948 = vmatprep.subr.mxu0 0.0
    %1949 = vmatpush1.msra.mxu0 0.0
    %1950 = vmatprep.subr.mxu0 0.0
    %1951 = vmatpush1.msra.mxu0 0.0
    %1952 = vmatprep.subr.mxu0 0.0
    %1953 = vmatpush1.msra.mxu0 0.0
    %1954 = vmatprep.subr.mxu0 0.0
    %1955 = vmatpush1.msra.mxu0 0.0
    %1956 = vmatprep.subr.mxu0 0.0
    %1957 = vmatpush1.msra.mxu0 0.0
    %1958 = vmatprep.subr.mxu0 0.0
    %1959 = vmatpush1.msra.mxu0 0.0
    %1960 = vmatprep.subr.mxu0 0.0
    %1961 = vmatpush1.msra.mxu0 0.0
    %1962 = vmatprep.subr.mxu0 0.0
    %1963 = vmatpush1.msra.mxu0 0.0
    %1964 = vmatprep.subr.mxu0 0.0
    %1965 = vmatpush1.msra.mxu0 0.0
    %1966 = vmatprep.subr.mxu0 0.0
    %1967 = vmatpush1.msra.mxu0 0.0
    %1968 = vmatprep.subr.mxu0 0.0
    %1969 = vmatpush1.msra.mxu0 0.0
    %1970 = vmatprep.subr.mxu0 0.0
    %1971 = vmatpush1.msra.mxu0 0.0
    %1972 = vmatprep.subr.mxu0 0.0
    %1973 = vmatpush1.msra.mxu0 0.0
    %1974 = vmatprep.subr.mxu0 0.0
    %1975 = vmatpush1.msra.mxu0 0.0
    %1976 = vmatprep.mubr.f32.mxu0 0.0
    %1977 = vmatmul.mubr.f32.gmra.mrb[0].mxu0 %v1910
    %v1978 = vpop.f32.mrb[0].mxu0
    %v1979 = vadd.f32 0.0, %v1978
    %v1980 = vpop.f32.mrb[0].mxu0
    %1981 = vdwg.mxu0
    %v1982 = vadd.f32 %v1741, %v1979
    %1983 = vrot.lane.b32.xlu0 %v300, 104
    %v1984 = vpop.permute.xlu0 %1983
    %1985 = vrot.lane.b32.xlu0 %v300, 72
    %v1986 = vpop.permute.xlu0 %1985
    %v1987 = vsel %vm318, %v1984, 0
    %v1989 = vsel %vm318, %v1986, 0
    %1991 = vmatprep.subr.mxu0 0.0
    %1992 = vmatpush1.xpose.msra.mxu0 %v1989
    %1993 = vmatprep.subr.mxu0 0.0
    %1994 = vmatpush1.xpose.msra.mxu0 0.0
    %1995 = vmatprep.subr.mxu0 0.0
    %1996 = vmatpush1.xpose.msra.mxu0 0.0
    %1997 = vmatprep.subr.mxu0 0.0
    %1998 = vmatpush1.xpose.msra.mxu0 0.0
    %1999 = vmatprep.subr.mxu0 0.0
    %2000 = vmatpush1.xpose.msra.mxu0 0.0
    %2001 = vmatprep.subr.mxu0 0.0
    %2002 = vmatpush1.xpose.msra.mxu0 0.0
    %2003 = vmatprep.subr.mxu0 0.0
    %2004 = vmatpush1.xpose.msra.mxu0 0.0
    %2005 = vmatprep.subr.mxu0 0.0
    %2006 = vmatpush1.xpose.msra.mxu0 0.0
    %2007 = vmatprep.subr.mxu0 0.0
    %2008 = vmatpush1.xpose.msra.mxu0 0.0
    %2009 = vmatprep.subr.mxu0 0.0
    %2010 = vmatpush1.xpose.msra.mxu0 0.0
    %2011 = vmatprep.subr.mxu0 0.0
    %2012 = vmatpush1.xpose.msra.mxu0 0.0
    %2013 = vmatprep.subr.mxu0 0.0
    %2014 = vmatpush1.xpose.msra.mxu0 0.0
    %2015 = vmatprep.subr.mxu0 0.0
    %2016 = vmatpush1.xpose.msra.mxu0 0.0
    %2017 = vmatprep.subr.mxu0 0.0
    %2018 = vmatpush1.xpose.msra.mxu0 0.0
    %2019 = vmatprep.subr.mxu0 0.0
    %2020 = vmatpush1.xpose.msra.mxu0 0.0
    %2021 = vmatprep.subr.mxu0 0.0
    %2022 = vmatpush1.xpose.msra.mxu0 0.0
    %2023 = vmatprep.subr.mxu0 0.0
    %2024 = vmatpush1.xpose.msra.mxu0 0.0
    %2025 = vmatprep.subr.mxu0 0.0
    %2026 = vmatpush1.xpose.msra.mxu0 0.0
    %2027 = vmatprep.subr.mxu0 0.0
    %2028 = vmatpush1.xpose.msra.mxu0 0.0
    %2029 = vmatprep.subr.mxu0 0.0
    %2030 = vmatpush1.xpose.msra.mxu0 0.0
    %2031 = vmatprep.subr.mxu0 0.0
    %2032 = vmatpush1.xpose.msra.mxu0 0.0
    %2033 = vmatprep.subr.mxu0 0.0
    %2034 = vmatpush1.xpose.msra.mxu0 0.0
    %2035 = vmatprep.subr.mxu0 0.0
    %2036 = vmatpush1.xpose.msra.mxu0 0.0
    %2037 = vmatprep.subr.mxu0 0.0
    %2038 = vmatpush1.xpose.msra.mxu0 0.0
    %2039 = vmatprep.subr.mxu0 0.0
    %2040 = vmatpush1.xpose.msra.mxu0 0.0
    %2041 = vmatprep.subr.mxu0 0.0
    %2042 = vmatpush1.xpose.msra.mxu0 0.0
    %2043 = vmatprep.subr.mxu0 0.0
    %2044 = vmatpush1.xpose.msra.mxu0 0.0
    %2045 = vmatprep.subr.mxu0 0.0
    %2046 = vmatpush1.xpose.msra.mxu0 0.0
    %2047 = vmatprep.subr.mxu0 0.0
    %2048 = vmatpush1.xpose.msra.mxu0 0.0
    %2049 = vmatprep.subr.mxu0 0.0
    %2050 = vmatpush1.xpose.msra.mxu0 0.0
    %2051 = vmatprep.subr.mxu0 0.0
    %2052 = vmatpush1.xpose.msra.mxu0 0.0
    %2053 = vmatprep.subr.mxu0 0.0
    %2054 = vmatpush1.xpose.msra.mxu0 0.0
    %2055 = vmatprep.mubr.f32.mxu0 0.0
    %2056 = vmatmul.mubr.f32.gmra.mrb[0].mxu0 %v1987
    %v2057 = vpop.f32.mrb[0].mxu0
    %v2058 = vadd.f32 %v310, %v2057
    %v2059 = vpop.f32.mrb[0].mxu0
    %2060 = vdwg.mxu0
    %v2061 = vsel %vm318, %v2058, -inf
    %2062 = vmax.xlane.f32.xlu0 %v2061
    %v2063 = vpop.xlane.xlu0 %2062
    %v2064 = vsub.f32 %v2058, %v2063
    %v2065 = vmul.f32 %v2064, 1.442695
    %v2066 = vpow.pop %v2065
    %v2067 = vsel %vm318, %v2066, 0.0
    %2068 = vadd.xlane.f32.xlu0 %v2067
    %v2069 = vpop.xlane.xlu0 %2068
    %v2070 = vrcp.pop %v2069
    %v2071 = vmul.f32 %v2066, %v2070
    %2072 = vrot.lane.b32.xlu0 %v300, 40
    %v2073 = vpop.permute.xlu0 %2072
    %v2076 = vsel %vm318, %v2071, 0
    %2078 = vmatprep.subr.mxu0 0.0
    %2079 = vmatpush1.msra.mxu0 %v2073
    %2080 = vmatprep.subr.mxu0 0.0
    %2081 = vmatpush1.msra.mxu0 0.0
    %2082 = vmatprep.subr.mxu0 0.0
    %2083 = vmatpush1.msra.mxu0 0.0
    %2084 = vmatprep.subr.mxu0 0.0
    %2085 = vmatpush1.msra.mxu0 0.0
    %2086 = vmatprep.subr.mxu0 0.0
    %2087 = vmatpush1.msra.mxu0 0.0
    %2088 = vmatprep.subr.mxu0 0.0
    %2089 = vmatpush1.msra.mxu0 0.0
    %2090 = vmatprep.subr.mxu0 0.0
    %2091 = vmatpush1.msra.mxu0 0.0
    %2092 = vmatprep.subr.mxu0 0.0
    %2093 = vmatpush1.msra.mxu0 0.0
    %2094 = vmatprep.subr.mxu0 0.0
    %2095 = vmatpush1.msra.mxu0 0.0
    %2096 = vmatprep.subr.mxu0 0.0
    %2097 = vmatpush1.msra.mxu0 0.0
    %2098 = vmatprep.subr.mxu0 0.0
    %2099 = vmatpush1.msra.mxu0 0.0
    %2100 = vmatprep.subr.mxu0 0.0
    %2101 = vmatpush1.msra.mxu0 0.0
    %2102 = vmatprep.subr.mxu0 0.0
    %2103 = vmatpush1.msra.mxu0 0.0
    %2104 = vmatprep.subr.mxu0 0.0
    %2105 = vmatpush1.msra.mxu0 0.0
    %2106 = vmatprep.subr.mxu0 0.0
    %2107 = vmatpush1.msra.mxu0 0.0
    %2108 = vmatprep.subr.mxu0 0.0
    %2109 = vmatpush1.msra.mxu0 0.0
    %2110 = vmatprep.subr.mxu0 0.0
    %2111 = vmatpush1.msra.mxu0 0.0
    %2112 = vmatprep.subr.mxu0 0.0
    %2113 = vmatpush1.msra.mxu0 0.0
    %2114 = vmatprep.subr.mxu0 0.0
    %2115 = vmatpush1.msra.mxu0 0.0
    %2116 = vmatprep.subr.mxu0 0.0
    %2117 = vmatpush1.msra.mxu0 0.0
    %2118 = vmatprep.subr.mxu0 0.0
    %2119 = vmatpush1.msra.mxu0 0.0
    %2120 = vmatprep.subr.mxu0 0.0
    %2121 = vmatpush1.msra.mxu0 0.0
    %2122 = vmatprep.subr.mxu0 0.0
    %2123 = vmatpush1.msra.mxu0 0.0
    %2124 = vmatprep.subr.mxu0 0.0
    %2125 = vmatpush1.msra.mxu0 0.0
    %2126 = vmatprep.subr.mxu0 0.0
    %2127 = vmatpush1.msra.mxu0 0.0
    %2128 = vmatprep.subr.mxu0 0.0
    %2129 = vmatpush1.msra.mxu0 0.0
    %2130 = vmatprep.subr.mxu0 0.0
    %2131 = vmatpush1.msra.mxu0 0.0
    %2132 = vmatprep.subr.mxu0 0.0
    %2133 = vmatpush1.msra.mxu0 0.0
    %2134 = vmatprep.subr.mxu0 0.0
    %2135 = vmatpush1.msra.mxu0 0.0
    %2136 = vmatprep.subr.mxu0 0.0
    %2137 = vmatpush1.msra.mxu0 0.0
    %2138 = vmatprep.subr.mxu0 0.0
    %2139 = vmatpush1.msra.mxu0 0.0
    %2140 = vmatprep.subr.mxu0 0.0
    %2141 = vmatpush1.msra.mxu0 0.0
    %2142 = vmatprep.mubr.f32.mxu0 0.0
    %2143 = vmatmul.mubr.f32.gmra.mrb[0].mxu0 %v2076
    %v2144 = vpop.f32.mrb[0].mxu0
    %v2145 = vadd.f32 0.0, %v2144
    %v2146 = vpop.f32.mrb[0].mxu0
    %2147 = vdwg.mxu0
    %v2149 = vsel %vm318, %v2145, 0
    %2151 = vmatprep.subr.mxu0 0.0
    %2152 = vmatpush1.msra.mxu0 %v314
    %2153 = vmatprep.subr.mxu0 0.0
    %2154 = vmatpush1.msra.mxu0 0.0
    %2155 = vmatprep.subr.mxu0 0.0
    %2156 = vmatpush1.msra.mxu0 0.0
    %2157 = vmatprep.subr.mxu0 0.0
    %2158 = vmatpush1.msra.mxu0 0.0
    %2159 = vmatprep.subr.mxu0 0.0
    %2160 = vmatpush1.msra.mxu0 0.0
    %2161 = vmatprep.subr.mxu0 0.0
    %2162 = vmatpush1.msra.mxu0 0.0
    %2163 = vmatprep.subr.mxu0 0.0
    %2164 = vmatpush1.msra.mxu0 0.0
    %2165 = vmatprep.subr.mxu0 0.0
    %2166 = vmatpush1.msra.mxu0 0.0
    %2167 = vmatprep.subr.mxu0 0.0
    %2168 = vmatpush1.msra.mxu0 0.0
    %2169 = vmatprep.subr.mxu0 0.0
    %2170 = vmatpush1.msra.mxu0 0.0
    %2171 = vmatprep.subr.mxu0 0.0
    %2172 = vmatpush1.msra.mxu0 0.0
    %2173 = vmatprep.subr.mxu0 0.0
    %2174 = vmatpush1.msra.mxu0 0.0
    %2175 = vmatprep.subr.mxu0 0.0
    %2176 = vmatpush1.msra.mxu0 0.0
    %2177 = vmatprep.subr.mxu0 0.0
    %2178 = vmatpush1.msra.mxu0 0.0
    %2179 = vmatprep.subr.mxu0 0.0
    %2180 = vmatpush1.msra.mxu0 0.0
    %2181 = vmatprep.subr.mxu0 0.0
    %2182 = vmatpush1.msra.mxu0 0.0
    %2183 = vmatprep.subr.mxu0 0.0
    %2184 = vmatpush1.msra.mxu0 0.0
    %2185 = vmatprep.subr.mxu0 0.0
    %2186 = vmatpush1.msra.mxu0 0.0
    %2187 = vmatprep.subr.mxu0 0.0
    %2188 = vmatpush1.msra.mxu0 0.0
    %2189 = vmatprep.subr.mxu0 0.0
    %2190 = vmatpush1.msra.mxu0 0.0
    %2191 = vmatprep.subr.mxu0 0.0
    %2192 = vmatpush1.msra.mxu0 0.0
    %2193 = vmatprep.subr.mxu0 0.0
    %2194 = vmatpush1.msra.mxu0 0.0
    %2195 = vmatprep.subr.mxu0 0.0
    %2196 = vmatpush1.msra.mxu0 0.0
    %2197 = vmatprep.subr.mxu0 0.0
    %2198 = vmatpush1.msra.mxu0 0.0
    %2199 = vmatprep.subr.mxu0 0.0
    %2200 = vmatpush1.msra.mxu0 0.0
    %2201 = vmatprep.subr.mxu0 0.0
    %2202 = vmatpush1.msra.mxu0 0.0
    %2203 = vmatprep.subr.mxu0 0.0
    %2204 = vmatpush1.msra.mxu0 0.0
    %2205 = vmatprep.subr.mxu0 0.0
    %2206 = vmatpush1.msra.mxu0 0.0
    %2207 = vmatprep.subr.mxu0 0.0
    %2208 = vmatpush1.msra.mxu0 0.0
    %2209 = vmatprep.subr.mxu0 0.0
    %2210 = vmatpush1.msra.mxu0 0.0
    %2211 = vmatprep.subr.mxu0 0.0
    %2212 = vmatpush1.msra.mxu0 0.0
    %2213 = vmatprep.subr.mxu0 0.0
    %2214 = vmatpush1.msra.mxu0 0.0
    %2215 = vmatprep.mubr.f32.mxu0 0.0
    %2216 = vmatmul.mubr.f32.gmra.mrb[0].mxu0 %v2149
    %v2217 = vpop.f32.mrb[0].mxu0
    %v2218 = vadd.f32 0.0, %v2217
    %v2219 = vpop.f32.mrb[0].mxu0
    %2220 = vdwg.mxu0
    %v2221 = vadd.f32 %v1982, %v2218
    %v2222 = vadd.f32 %v183, %v1268
    %v2223 = vadd.f32 %v188, %v2221
    %v2224 = vmul.f32 %v2222, %v2222
    %v2225 = vmul.f32 %v2223, %v2223
    %v2226 = vsel %vm193, %v2224, 0.0
    %2227 = vadd.xlane.f32.xlu0 %v2226
    %v2228 = vpop.xlane.xlu0 %2227
    %v2229 = vsel %vm193, %v2225, 0.0
    %2230 = vadd.xlane.f32.xlu0 %v2229
    %v2231 = vpop.xlane.xlu0 %2230
    %v2232 = vmul.f32 %v2228, %v200
    %v2233 = vmul.f32 %v2231, %v200
    %v2234 = vadd.f32 %v2232, 1e-06
    %v2235 = vadd.f32 %v2233, 1e-06
    %v2236 = vrsqrt.pop %v2234
    %v2237 = vrsqrt.pop %v2235
    %v2238 = vmul.f32 %v2222, %v2236
    %v2239 = vmul.f32 %v2223, %v2237
    %v2240 = vld [vmem:[%s9] sm:$0x1]
    %v2242 = vlaneseq
    %v2243 = vshrl.u32 %v2242, 7
    %v2244 = vsub.s32 0, %v2243
    %v2245 = vrot.slane %v2240, %v2244
    %v2247 = vmul.f32 %v2238, %v2245
    %v2248 = vmul.f32 %v2239, %v2245
    %v2249 = vld [vmem:[%s10] sm:$0xff]
    %v2250 = vld [vmem:[%s10 + $0x8] sm:$0xff]
    %v2251 = vld [vmem:[%s10 + $0x10] sm:$0xff]
    %v2252 = vld [vmem:[%s10 + $0x18] sm:$0xff]
    %v2254 = vsel %vm193, %v2247, 0
    %v2257 = vsel %vm193, %v2248, 0
    %2259 = vmatprep.subr.mxu0 0.0
    %2260 = vmatpush1.msra.mxu0 %v2249
    %2261 = vmatprep.subr.mxu0 0.0
    %2262 = vmatpush1.msra.mxu0 %v2250
    %2263 = vmatprep.subr.mxu0 0.0
    %2264 = vmatpush1.msra.mxu0 %v2251
    %2265 = vmatprep.subr.mxu0 0.0
    %2266 = vmatpush1.msra.mxu0 %v2252
    %2267 = vmatprep.subr.mxu0 0.0
    %2268 = vmatpush1.msra.mxu0 0.0
    %2269 = vmatprep.subr.mxu0 0.0
    %2270 = vmatpush1.msra.mxu0 0.0
    %2271 = vmatprep.subr.mxu0 0.0
    %2272 = vmatpush1.msra.mxu0 0.0
    %2273 = vmatprep.subr.mxu0 0.0
    %2274 = vmatpush1.msra.mxu0 0.0
    %2275 = vmatprep.subr.mxu0 0.0
    %2276 = vmatpush1.msra.mxu0 0.0
    %2277 = vmatprep.subr.mxu0 0.0
    %2278 = vmatpush1.msra.mxu0 0.0
    %2279 = vmatprep.subr.mxu0 0.0
    %2280 = vmatpush1.msra.mxu0 0.0
    %2281 = vmatprep.subr.mxu0 0.0
    %2282 = vmatpush1.msra.mxu0 0.0
    %2283 = vmatprep.subr.mxu0 0.0
    %2284 = vmatpush1.msra.mxu0 0.0
    %2285 = vmatprep.subr.mxu0 0.0
    %2286 = vmatpush1.msra.mxu0 0.0
    %2287 = vmatprep.subr.mxu0 0.0
    %2288 = vmatpush1.msra.mxu0 0.0
    %2289 = vmatprep.subr.mxu0 0.0
    %2290 = vmatpush1.msra.mxu0 0.0
    %2291 = vmatprep.subr.mxu0 0.0
    %2292 = vmatpush1.msra.mxu0 0.0
    %2293 = vmatprep.subr.mxu0 0.0
    %2294 = vmatpush1.msra.mxu0 0.0
    %2295 = vmatprep.subr.mxu0 0.0
    %2296 = vmatpush1.msra.mxu0 0.0
    %2297 = vmatprep.subr.mxu0 0.0
    %2298 = vmatpush1.msra.mxu0 0.0
    %2299 = vmatprep.subr.mxu0 0.0
    %2300 = vmatpush1.msra.mxu0 0.0
    %2301 = vmatprep.subr.mxu0 0.0
    %2302 = vmatpush1.msra.mxu0 0.0
    %2303 = vmatprep.subr.mxu0 0.0
    %2304 = vmatpush1.msra.mxu0 0.0
    %2305 = vmatprep.subr.mxu0 0.0
    %2306 = vmatpush1.msra.mxu0 0.0
    %2307 = vmatprep.subr.mxu0 0.0
    %2308 = vmatpush1.msra.mxu0 0.0
    %2309 = vmatprep.subr.mxu0 0.0
    %2310 = vmatpush1.msra.mxu0 0.0
    %2311 = vmatprep.subr.mxu0 0.0
    %2312 = vmatpush1.msra.mxu0 0.0
    %2313 = vmatprep.subr.mxu0 0.0
    %2314 = vmatpush1.msra.mxu0 0.0
    %2315 = vmatprep.subr.mxu0 0.0
    %2316 = vmatpush1.msra.mxu0 0.0
    %2317 = vmatprep.subr.mxu0 0.0
    %2318 = vmatpush1.msra.mxu0 0.0
    %2319 = vmatprep.subr.mxu0 0.0
    %2320 = vmatpush1.msra.mxu0 0.0
    %2321 = vmatprep.subr.mxu0 0.0
    %2322 = vmatpush1.msra.mxu0 0.0
    %2323 = vmatprep.mubr.f32.mxu0 0.0
    %2324 = vmatmul.mubr.f32.gmra.mrb[0].mxu0 %v2254
    %v2325 = vpop.f32.mrb[0].mxu0
    %v2326 = vadd.f32 0.0, %v2325
    %v2327 = vpop.f32.mrb[0].mxu0
    %2328 = vmatprep.mubr.f32.mxu0 0.0
    %2329 = vmatmul.mubr.f32.gmra.mrb[0].mxu0 %v2257
    %v2330 = vpop.f32.mrb[0].mxu0
    %v2331 = vadd.f32 0.0, %v2330
    %v2332 = vpop.f32.mrb[0].mxu0
    %2333 = vdwg.mxu0
    %v2334 = vmax.f32 %v2326, 0.0
    %v2335 = vmax.f32 %v2331, 0.0
    %v2336 = vld [vmem:[%s11] sm:$0xff]
    %v2337 = vld [vmem:[%s11 + $0x8] sm:$0xff]
    %v2338 = vld [vmem:[%s11 + $0x10] sm:$0xff]
    %v2339 = vld [vmem:[%s11 + $0x18] sm:$0xff]
    %v2340 = vld [vmem:[%s11 + $0x20] sm:$0xff]
    %v2341 = vld [vmem:[%s11 + $0x28] sm:$0xff]
    %v2342 = vld [vmem:[%s11 + $0x30] sm:$0xff]
    %v2343 = vld [vmem:[%s11 + $0x38] sm:$0xff]
    %vm2344 = vcmask 523264
    %v2346 = vsel %vm2344, %v2334, 0
    %v2349 = vsel %vm2344, %v2335, 0
    %2351 = vmatprep.subr.mxu0 0.0
    %2352 = vmatpush1.msra.mxu0 %v2336
    %2353 = vmatprep.subr.mxu0 0.0
    %2354 = vmatpush1.msra.mxu0 %v2337
    %2355 = vmatprep.subr.mxu0 0.0
    %2356 = vmatpush1.msra.mxu0 %v2338
    %2357 = vmatprep.subr.mxu0 0.0
    %2358 = vmatpush1.msra.mxu0 %v2339
    %2359 = vmatprep.subr.mxu0 0.0
    %2360 = vmatpush1.msra.mxu0 %v2340
    %2361 = vmatprep.subr.mxu0 0.0
    %2362 = vmatpush1.msra.mxu0 %v2341
    %2363 = vmatprep.subr.mxu0 0.0
    %2364 = vmatpush1.msra.mxu0 %v2342
    %2365 = vmatprep.subr.mxu0 0.0
    %2366 = vmatpush1.msra.mxu0 %v2343
    %2367 = vmatprep.subr.mxu0 0.0
    %2368 = vmatpush1.msra.mxu0 0.0
    %2369 = vmatprep.subr.mxu0 0.0
    %2370 = vmatpush1.msra.mxu0 0.0
    %2371 = vmatprep.subr.mxu0 0.0
    %2372 = vmatpush1.msra.mxu0 0.0
    %2373 = vmatprep.subr.mxu0 0.0
    %2374 = vmatpush1.msra.mxu0 0.0
    %2375 = vmatprep.subr.mxu0 0.0
    %2376 = vmatpush1.msra.mxu0 0.0
    %2377 = vmatprep.subr.mxu0 0.0
    %2378 = vmatpush1.msra.mxu0 0.0
    %2379 = vmatprep.subr.mxu0 0.0
    %2380 = vmatpush1.msra.mxu0 0.0
    %2381 = vmatprep.subr.mxu0 0.0
    %2382 = vmatpush1.msra.mxu0 0.0
    %2383 = vmatprep.subr.mxu0 0.0
    %2384 = vmatpush1.msra.mxu0 0.0
    %2385 = vmatprep.subr.mxu0 0.0
    %2386 = vmatpush1.msra.mxu0 0.0
    %2387 = vmatprep.subr.mxu0 0.0
    %2388 = vmatpush1.msra.mxu0 0.0
    %2389 = vmatprep.subr.mxu0 0.0
    %2390 = vmatpush1.msra.mxu0 0.0
    %2391 = vmatprep.subr.mxu0 0.0
    %2392 = vmatpush1.msra.mxu0 0.0
    %2393 = vmatprep.subr.mxu0 0.0
    %2394 = vmatpush1.msra.mxu0 0.0
    %2395 = vmatprep.subr.mxu0 0.0
    %2396 = vmatpush1.msra.mxu0 0.0
    %2397 = vmatprep.subr.mxu0 0.0
    %2398 = vmatpush1.msra.mxu0 0.0
    %2399 = vmatprep.subr.mxu0 0.0
    %2400 = vmatpush1.msra.mxu0 0.0
    %2401 = vmatprep.subr.mxu0 0.0
    %2402 = vmatpush1.msra.mxu0 0.0
    %2403 = vmatprep.subr.mxu0 0.0
    %2404 = vmatpush1.msra.mxu0 0.0
    %2405 = vmatprep.subr.mxu0 0.0
    %2406 = vmatpush1.msra.mxu0 0.0
    %2407 = vmatprep.subr.mxu0 0.0
    %2408 = vmatpush1.msra.mxu0 0.0
    %2409 = vmatprep.subr.mxu0 0.0
    %2410 = vmatpush1.msra.mxu0 0.0
    %2411 = vmatprep.subr.mxu0 0.0
    %2412 = vmatpush1.msra.mxu0 0.0
    %2413 = vmatprep.subr.mxu0 0.0
    %2414 = vmatpush1.msra.mxu0 0.0
    %2415 = vmatprep.mubr.f32.mxu0 0.0
    %2416 = vmatmul.mubr.f32.gmra.mrb[0].mxu0 %v2346
    %v2417 = vpop.f32.mrb[0].mxu0
    %v2418 = vadd.f32 0.0, %v2417
    %v2419 = vpop.f32.mrb[0].mxu0
    %2420 = vmatprep.mubr.f32.mxu0 0.0
    %2421 = vmatmul.mubr.f32.gmra.mrb[0].mxu0 %v2349
    %v2422 = vpop.f32.mrb[0].mxu0
    %v2423 = vadd.f32 0.0, %v2422
    %v2424 = vpop.f32.mrb[0].mxu0
    %2425 = vdwg.mxu0
    %v2426 = vadd.f32 %v2222, %v2418
    %v2427 = vadd.f32 %v2223, %v2423
    %v2428 = vmul.f32 %v2426, %v2426
    %v2429 = vmul.f32 %v2427, %v2427
    %v2430 = vsel %vm193, %v2428, 0.0
    %2431 = vadd.xlane.f32.xlu0 %v2430
    %v2432 = vpop.xlane.xlu0 %2431
    %v2433 = vsel %vm193, %v2429, 0.0
    %2434 = vadd.xlane.f32.xlu0 %v2433
    %v2435 = vpop.xlane.xlu0 %2434
    %v2436 = vmul.f32 %v2432, %v200
    %v2437 = vmul.f32 %v2435, %v200
    %v2438 = vadd.f32 %v2436, 1e-06
    %v2439 = vadd.f32 %v2437, 1e-06
    %v2440 = vrsqrt.pop %v2438
    %v2441 = vrsqrt.pop %v2439
    %v2442 = vmul.f32 %v2426, %v2440
    %v2443 = vmul.f32 %v2427, %v2441
    %v2444 = vld [vmem:[%s12] sm:$0x1]
    %v2446 = vlaneseq
    %v2447 = vshrl.u32 %v2446, 7
    %v2448 = vsub.s32 0, %v2447
    %v2449 = vrot.slane %v2444, %v2448
    %v2451 = vmul.f32 %v2442, %v2449
    %v2452 = vmul.f32 %v2443, %v2449
    %v2453 = vld [vmem:[%s1] sm:$0xff]
    %v2454 = vld [vmem:[%s1 + $0x8] sm:$0xff]
    %2455 = vset.pattern.permute.xlu0 0
    %2456 = vperm.xlu0 %2455, %v2453
    %v2457 = vpop.permute.xlu0 %2456
    %2458 = vset.pattern.permute.xlu0 0
    %2459 = vperm.xlu0 %2458, %v2454
    %v2460 = vpop.permute.xlu0 %2459
    %vm2461 = vcmp.eq.s32.totalorder %v87, %v2457
    %vm2462 = vcmp.eq.s32.totalorder %v87, %v2460
    %v2463 = vsel %vm2461, 1, 0
    %v2464 = vsel %vm2462, 1, 0
    %v2465 = vcvt.s32.f32 %v2463
    %v2466 = vcvt.s32.f32 %v2464
    %2467 = vmatprep.subr.mxu0 0.0
    %2468 = vmatpush1.msra.mxu0 %v100
    %2469 = vmatprep.subr.mxu0 0.0
    %2470 = vmatpush1.msra.mxu0 %v101
    %2471 = vmatprep.subr.mxu0 0.0
    %2472 = vmatpush1.msra.mxu0 %v102
    %2473 = vmatprep.subr.mxu0 0.0
    %2474 = vmatpush1.msra.mxu0 %v103
    %2475 = vmatprep.subr.mxu0 0.0
    %2476 = vmatpush1.msra.mxu0 %v104
    %2477 = vmatprep.subr.mxu0 0.0
    %2478 = vmatpush1.msra.mxu0 %v105
    %2479 = vmatprep.subr.mxu0 0.0
    %2480 = vmatpush1.msra.mxu0 %v106
    %2481 = vmatprep.subr.mxu0 0.0
    %2482 = vmatpush1.msra.mxu0 %v107
    %2483 = vmatprep.subr.mxu0 0.0
    %2484 = vmatpush1.msra.mxu0 %v108
    %2485 = vmatprep.subr.mxu0 0.0
    %2486 = vmatpush1.msra.mxu0 %v109
    %2487 = vmatprep.subr.mxu0 0.0
    %2488 = vmatpush1.msra.mxu0 %v110
    %2489 = vmatprep.subr.mxu0 0.0
    %2490 = vmatpush1.msra.mxu0 %v111
    %2491 = vmatprep.subr.mxu0 0.0
    %2492 = vmatpush1.msra.mxu0 %v112
    %2493 = vmatprep.subr.mxu0 0.0
    %2494 = vmatpush1.msra.mxu0 %v113
    %2495 = vmatprep.subr.mxu0 0.0
    %2496 = vmatpush1.msra.mxu0 %v114
    %2497 = vmatprep.subr.mxu0 0.0
    %2498 = vmatpush1.msra.mxu0 %v115
    %2499 = vmatprep.subr.mxu0 0.0
    %2500 = vmatpush1.msra.mxu0 0.0
    %2501 = vmatprep.subr.mxu0 0.0
    %2502 = vmatpush1.msra.mxu0 0.0
    %2503 = vmatprep.subr.mxu0 0.0
    %2504 = vmatpush1.msra.mxu0 0.0
    %2505 = vmatprep.subr.mxu0 0.0
    %2506 = vmatpush1.msra.mxu0 0.0
    %2507 = vmatprep.subr.mxu0 0.0
    %2508 = vmatpush1.msra.mxu0 0.0
    %2509 = vmatprep.subr.mxu0 0.0
    %2510 = vmatpush1.msra.mxu0 0.0
    %2511 = vmatprep.subr.mxu0 0.0
    %2512 = vmatpush1.msra.mxu0 0.0
    %2513 = vmatprep.subr.mxu0 0.0
    %2514 = vmatpush1.msra.mxu0 0.0
    %2515 = vmatprep.subr.mxu0 0.0
    %2516 = vmatpush1.msra.mxu0 0.0
    %2517 = vmatprep.subr.mxu0 0.0
    %2518 = vmatpush1.msra.mxu0 0.0
    %2519 = vmatprep.subr.mxu0 0.0
    %2520 = vmatpush1.msra.mxu0 0.0
    %2521 = vmatprep.subr.mxu0 0.0
    %2522 = vmatpush1.msra.mxu0 0.0
    %2523 = vmatprep.subr.mxu0 0.0
    %2524 = vmatpush1.msra.mxu0 0.0
    %2525 = vmatprep.subr.mxu0 0.0
    %2526 = vmatpush1.msra.mxu0 0.0
    %2527 = vmatprep.subr.mxu0 0.0
    %2528 = vmatpush1.msra.mxu0 0.0
    %2529 = vmatprep.subr.mxu0 0.0
    %2530 = vmatpush1.msra.mxu0 0.0
    %2531 = vmatprep.mubr.f32.mxu0 0.0
    %2532 = vmatmul.mubr.f32.gmra.mrb[0].mxu0 %v2465
    %v2533 = vpop.f32.mrb[0].mxu0
    %v2534 = vadd.f32 0.0, %v2533
    %v2535 = vpop.f32.mrb[0].mxu0
    %2536 = vmatprep.mubr.f32.mxu0 0.0
    %2537 = vmatmul.mubr.f32.gmra.mrb[0].mxu0 %v2466
    %v2538 = vpop.f32.mrb[0].mxu0
    %v2539 = vadd.f32 0.0, %v2538
    %v2540 = vpop.f32.mrb[0].mxu0
    %2541 = vdwg.mxu0
    %v2542 = vmul.f32 %v2534, %v2534
    %v2543 = vmul.f32 %v2539, %v2539
    %v2544 = vsel %vm193, %v2542, 0.0
    %2545 = vadd.xlane.f32.xlu0 %v2544
    %v2546 = vpop.xlane.xlu0 %2545
    %v2547 = vsel %vm193, %v2543, 0.0
    %2548 = vadd.xlane.f32.xlu0 %v2547
    %v2549 = vpop.xlane.xlu0 %2548
    %v2550 = vmul.f32 %v2546, %v200
    %v2551 = vmul.f32 %v2549, %v200
    %v2552 = vadd.f32 %v2550, 1e-06
    %v2553 = vadd.f32 %v2551, 1e-06
    %v2554 = vrsqrt.pop %v2552
    %v2555 = vrsqrt.pop %v2553
    %v2556 = vmul.f32 %v2534, %v2554
    %v2557 = vmul.f32 %v2539, %v2555
    %v2558 = vld [vmem:[%s13] sm:$0x1]
    %v2560 = vlaneseq
    %v2561 = vshrl.u32 %v2560, 7
    %v2562 = vsub.s32 0, %v2561
    %v2563 = vrot.slane %v2558, %v2562
    %v2565 = vmul.f32 %v2556, %v2563
    %v2566 = vmul.f32 %v2557, %v2563
    %v2567 = vld [vmem:[%s14] sm:$0xff]
    %v2568 = vld [vmem:[%s14 + $0x8] sm:$0xff]
    %v2569 = vld [vmem:[%s14 + $0x10] sm:$0xff]
    %v2570 = vld [vmem:[%s14 + $0x18] sm:$0xff]
    %v2572 = vsel %vm193, %v2565, 0
    %v2575 = vsel %vm193, %v2566, 0
    %2577 = vmatprep.subr.mxu0 0.0
    %2578 = vmatpush1.msra.mxu0 %v2567
    %2579 = vmatprep.subr.mxu0 0.0
    %2580 = vmatpush1.msra.mxu0 %v2568
    %2581 = vmatprep.subr.mxu0 0.0
    %2582 = vmatpush1.msra.mxu0 %v2569
    %2583 = vmatprep.subr.mxu0 0.0
    %2584 = vmatpush1.msra.mxu0 %v2570
    %2585 = vmatprep.subr.mxu0 0.0
    %2586 = vmatpush1.msra.mxu0 0.0
    %2587 = vmatprep.subr.mxu0 0.0
    %2588 = vmatpush1.msra.mxu0 0.0
    %2589 = vmatprep.subr.mxu0 0.0
    %2590 = vmatpush1.msra.mxu0 0.0
    %2591 = vmatprep.subr.mxu0 0.0
    %2592 = vmatpush1.msra.mxu0 0.0
    %2593 = vmatprep.subr.mxu0 0.0
    %2594 = vmatpush1.msra.mxu0 0.0
    %2595 = vmatprep.subr.mxu0 0.0
    %2596 = vmatpush1.msra.mxu0 0.0
    %2597 = vmatprep.subr.mxu0 0.0
    %2598 = vmatpush1.msra.mxu0 0.0
    %2599 = vmatprep.subr.mxu0 0.0
    %2600 = vmatpush1.msra.mxu0 0.0
    %2601 = vmatprep.subr.mxu0 0.0
    %2602 = vmatpush1.msra.mxu0 0.0
    %2603 = vmatprep.subr.mxu0 0.0
    %2604 = vmatpush1.msra.mxu0 0.0
    %2605 = vmatprep.subr.mxu0 0.0
    %2606 = vmatpush1.msra.mxu0 0.0
    %2607 = vmatprep.subr.mxu0 0.0
    %2608 = vmatpush1.msra.mxu0 0.0
    %2609 = vmatprep.subr.mxu0 0.0
    %2610 = vmatpush1.msra.mxu0 0.0
    %2611 = vmatprep.subr.mxu0 0.0
    %2612 = vmatpush1.msra.mxu0 0.0
    %2613 = vmatprep.subr.mxu0 0.0
    %2614 = vmatpush1.msra.mxu0 0.0
    %2615 = vmatprep.subr.mxu0 0.0
    %2616 = vmatpush1.msra.mxu0 0.0
    %2617 = vmatprep.subr.mxu0 0.0
    %2618 = vmatpush1.msra.mxu0 0.0
    %2619 = vmatprep.subr.mxu0 0.0
    %2620 = vmatpush1.msra.mxu0 0.0
    %2621 = vmatprep.subr.mxu0 0.0
    %2622 = vmatpush1.msra.mxu0 0.0
    %2623 = vmatprep.subr.mxu0 0.0
    %2624 = vmatpush1.msra.mxu0 0.0
    %2625 = vmatprep.subr.mxu0 0.0
    %2626 = vmatpush1.msra.mxu0 0.0
    %2627 = vmatprep.subr.mxu0 0.0
    %2628 = vmatpush1.msra.mxu0 0.0
    %2629 = vmatprep.subr.mxu0 0.0
    %2630 = vmatpush1.msra.mxu0 0.0
    %2631 = vmatprep.subr.mxu0 0.0
    %2632 = vmatpush1.msra.mxu0 0.0
    %2633 = vmatprep.subr.mxu0 0.0
    %2634 = vmatpush1.msra.mxu0 0.0
    %2635 = vmatprep.subr.mxu0 0.0
    %2636 = vmatpush1.msra.mxu0 0.0
    %2637 = vmatprep.subr.mxu0 0.0
    %2638 = vmatpush1.msra.mxu0 0.0
    %2639 = vmatprep.subr.mxu0 0.0
    %2640 = vmatpush1.msra.mxu0 0.0
    %2641 = vmatprep.mubr.f32.mxu0 0.0
    %2642 = vmatmul.mubr.f32.gmra.mrb[0].mxu0 %v2572
    %v2643 = vpop.f32.mrb[0].mxu0
    %v2644 = vadd.f32 0.0, %v2643
    %v2645 = vpop.f32.mrb[0].mxu0
    %2646 = vmatprep.mubr.f32.mxu0 0.0
    %2647 = vmatmul.mubr.f32.gmra.mrb[0].mxu0 %v2575
    %v2648 = vpop.f32.mrb[0].mxu0
    %v2649 = vadd.f32 0.0, %v2648
    %v2650 = vpop.f32.mrb[0].mxu0
    %2651 = vdwg.mxu0
    %v2652 = vld [vmem:[%s16] sm:$0xff]
    %v2653 = vld [vmem:[%s16 + $0x8] sm:$0xff]
    %v2654 = vld [vmem:[%s16 + $0x10] sm:$0xff]
    %v2655 = vld [vmem:[%s16 + $0x18] sm:$0xff]
    %v2656 = vld [vmem:[%s15] sm:$0xff]
    %v2657 = vld [vmem:[%s15 + $0x8] sm:$0xff]
    %v2658 = vld [vmem:[%s15 + $0x10] sm:$0xff]
    %v2659 = vld [vmem:[%s15 + $0x18] sm:$0xff]
    %2661 = vrot.lane.b32.xlu0 %v2644, 96
    %v2662 = vpop.permute.xlu0 %2661
    %v2663 = vsel %vm318, %v2644, 0
    %v2665 = vsel %vm318, %v2662, 0
    %2667 = vmatprep.subr.mxu0 0.0
    %2668 = vmatpush1.xpose.msra.mxu0 %v2665
    %2669 = vmatprep.subr.mxu0 0.0
    %2670 = vmatpush1.xpose.msra.mxu0 0.0
    %2671 = vmatprep.subr.mxu0 0.0
    %2672 = vmatpush1.xpose.msra.mxu0 0.0
    %2673 = vmatprep.subr.mxu0 0.0
    %2674 = vmatpush1.xpose.msra.mxu0 0.0
    %2675 = vmatprep.subr.mxu0 0.0
    %2676 = vmatpush1.xpose.msra.mxu0 0.0
    %2677 = vmatprep.subr.mxu0 0.0
    %2678 = vmatpush1.xpose.msra.mxu0 0.0
    %2679 = vmatprep.subr.mxu0 0.0
    %2680 = vmatpush1.xpose.msra.mxu0 0.0
    %2681 = vmatprep.subr.mxu0 0.0
    %2682 = vmatpush1.xpose.msra.mxu0 0.0
    %2683 = vmatprep.subr.mxu0 0.0
    %2684 = vmatpush1.xpose.msra.mxu0 0.0
    %2685 = vmatprep.subr.mxu0 0.0
    %2686 = vmatpush1.xpose.msra.mxu0 0.0
    %2687 = vmatprep.subr.mxu0 0.0
    %2688 = vmatpush1.xpose.msra.mxu0 0.0
    %2689 = vmatprep.subr.mxu0 0.0
    %2690 = vmatpush1.xpose.msra.mxu0 0.0
    %2691 = vmatprep.subr.mxu0 0.0
    %2692 = vmatpush1.xpose.msra.mxu0 0.0
    %2693 = vmatprep.subr.mxu0 0.0
    %2694 = vmatpush1.xpose.msra.mxu0 0.0
    %2695 = vmatprep.subr.mxu0 0.0
    %2696 = vmatpush1.xpose.msra.mxu0 0.0
    %2697 = vmatprep.subr.mxu0 0.0
    %2698 = vmatpush1.xpose.msra.mxu0 0.0
    %2699 = vmatprep.subr.mxu0 0.0
    %2700 = vmatpush1.xpose.msra.mxu0 0.0
    %2701 = vmatprep.subr.mxu0 0.0
    %2702 = vmatpush1.xpose.msra.mxu0 0.0
    %2703 = vmatprep.subr.mxu0 0.0
    %2704 = vmatpush1.xpose.msra.mxu0 0.0
    %2705 = vmatprep.subr.mxu0 0.0
    %2706 = vmatpush1.xpose.msra.mxu0 0.0
    %2707 = vmatprep.subr.mxu0 0.0
    %2708 = vmatpush1.xpose.msra.mxu0 0.0
    %2709 = vmatprep.subr.mxu0 0.0
    %2710 = vmatpush1.xpose.msra.mxu0 0.0
    %2711 = vmatprep.subr.mxu0 0.0
    %2712 = vmatpush1.xpose.msra.mxu0 0.0
    %2713 = vmatprep.subr.mxu0 0.0
    %2714 = vmatpush1.xpose.msra.mxu0 0.0
    %2715 = vmatprep.subr.mxu0 0.0
    %2716 = vmatpush1.xpose.msra.mxu0 0.0
    %2717 = vmatprep.subr.mxu0 0.0
    %2718 = vmatpush1.xpose.msra.mxu0 0.0
    %2719 = vmatprep.subr.mxu0 0.0
    %2720 = vmatpush1.xpose.msra.mxu0 0.0
    %2721 = vmatprep.subr.mxu0 0.0
    %2722 = vmatpush1.xpose.msra.mxu0 0.0
    %2723 = vmatprep.subr.mxu0 0.0
    %2724 = vmatpush1.xpose.msra.mxu0 0.0
    %2725 = vmatprep.subr.mxu0 0.0
    %2726 = vmatpush1.xpose.msra.mxu0 0.0
    %2727 = vmatprep.subr.mxu0 0.0
    %2728 = vmatpush1.xpose.msra.mxu0 0.0
    %2729 = vmatprep.subr.mxu0 0.0
    %2730 = vmatpush1.xpose.msra.mxu0 0.0
    %2731 = vmatprep.mubr.f32.mxu0 0.0
    %2732 = vmatmul.mubr.f32.gmra.mrb[0].mxu0 %v2663
    %v2733 = vpop.f32.mrb[0].mxu0
    %v2734 = vadd.f32 %v2652, %v2733
    %v2735 = vpop.f32.mrb[0].mxu0
    %2736 = vdwg.mxu0
    %v2737 = vsel %vm318, %v2734, -inf
    %2738 = vmax.xlane.f32.xlu0 %v2737
    %v2739 = vpop.xlane.xlu0 %2738
    %v2740 = vsub.f32 %v2734, %v2739
    %v2741 = vmul.f32 %v2740, 1.442695
    %v2742 = vpow.pop %v2741
    %v2743 = vsel %vm318, %v2742, 0.0
    %2744 = vadd.xlane.f32.xlu0 %v2743
    %v2745 = vpop.xlane.xlu0 %2744
    %v2746 = vrcp.pop %v2745
    %v2747 = vmul.f32 %v2742, %v2746
    %2748 = vrot.lane.b32.xlu0 %v2644, 64
    %v2749 = vpop.permute.xlu0 %2748
    %v2752 = vsel %vm318, %v2747, 0
    %2754 = vmatprep.subr.mxu0 0.0
    %2755 = vmatpush1.msra.mxu0 %v2749
    %2756 = vmatprep.subr.mxu0 0.0
    %2757 = vmatpush1.msra.mxu0 0.0
    %2758 = vmatprep.subr.mxu0 0.0
    %2759 = vmatpush1.msra.mxu0 0.0
    %2760 = vmatprep.subr.mxu0 0.0
    %2761 = vmatpush1.msra.mxu0 0.0
    %2762 = vmatprep.subr.mxu0 0.0
    %2763 = vmatpush1.msra.mxu0 0.0
    %2764 = vmatprep.subr.mxu0 0.0
    %2765 = vmatpush1.msra.mxu0 0.0
    %2766 = vmatprep.subr.mxu0 0.0
    %2767 = vmatpush1.msra.mxu0 0.0
    %2768 = vmatprep.subr.mxu0 0.0
    %2769 = vmatpush1.msra.mxu0 0.0
    %2770 = vmatprep.subr.mxu0 0.0
    %2771 = vmatpush1.msra.mxu0 0.0
    %2772 = vmatprep.subr.mxu0 0.0
    %2773 = vmatpush1.msra.mxu0 0.0
    %2774 = vmatprep.subr.mxu0 0.0
    %2775 = vmatpush1.msra.mxu0 0.0
    %2776 = vmatprep.subr.mxu0 0.0
    %2777 = vmatpush1.msra.mxu0 0.0
    %2778 = vmatprep.subr.mxu0 0.0
    %2779 = vmatpush1.msra.mxu0 0.0
    %2780 = vmatprep.subr.mxu0 0.0
    %2781 = vmatpush1.msra.mxu0 0.0
    %2782 = vmatprep.subr.mxu0 0.0
    %2783 = vmatpush1.msra.mxu0 0.0
    %2784 = vmatprep.subr.mxu0 0.0
    %2785 = vmatpush1.msra.mxu0 0.0
    %2786 = vmatprep.subr.mxu0 0.0
    %2787 = vmatpush1.msra.mxu0 0.0
    %2788 = vmatprep.subr.mxu0 0.0
    %2789 = vmatpush1.msra.mxu0 0.0
    %2790 = vmatprep.subr.mxu0 0.0
    %2791 = vmatpush1.msra.mxu0 0.0
    %2792 = vmatprep.subr.mxu0 0.0
    %2793 = vmatpush1.msra.mxu0 0.0
    %2794 = vmatprep.subr.mxu0 0.0
    %2795 = vmatpush1.msra.mxu0 0.0
    %2796 = vmatprep.subr.mxu0 0.0
    %2797 = vmatpush1.msra.mxu0 0.0
    %2798 = vmatprep.subr.mxu0 0.0
    %2799 = vmatpush1.msra.mxu0 0.0
    %2800 = vmatprep.subr.mxu0 0.0
    %2801 = vmatpush1.msra.mxu0 0.0
    %2802 = vmatprep.subr.mxu0 0.0
    %2803 = vmatpush1.msra.mxu0 0.0
    %2804 = vmatprep.subr.mxu0 0.0
    %2805 = vmatpush1.msra.mxu0 0.0
    %2806 = vmatprep.subr.mxu0 0.0
    %2807 = vmatpush1.msra.mxu0 0.0
    %2808 = vmatprep.subr.mxu0 0.0
    %2809 = vmatpush1.msra.mxu0 0.0
    %2810 = vmatprep.subr.mxu0 0.0
    %2811 = vmatpush1.msra.mxu0 0.0
    %2812 = vmatprep.subr.mxu0 0.0
    %2813 = vmatpush1.msra.mxu0 0.0
    %2814 = vmatprep.subr.mxu0 0.0
    %2815 = vmatpush1.msra.mxu0 0.0
    %2816 = vmatprep.subr.mxu0 0.0
    %2817 = vmatpush1.msra.mxu0 0.0
    %2818 = vmatprep.mubr.f32.mxu0 0.0
    %2819 = vmatmul.mubr.f32.gmra.mrb[0].mxu0 %v2752
    %v2820 = vpop.f32.mrb[0].mxu0
    %v2821 = vadd.f32 0.0, %v2820
    %v2822 = vpop.f32.mrb[0].mxu0
    %2823 = vdwg.mxu0
    %2824 = vrot.lane.b32.xlu0 %v2644, 120
    %v2825 = vpop.permute.xlu0 %2824
    %2826 = vrot.lane.b32.xlu0 %v2644, 88
    %v2827 = vpop.permute.xlu0 %2826
    %v2828 = vsel %vm318, %v2825, 0
    %v2830 = vsel %vm318, %v2827, 0
    %2832 = vmatprep.subr.mxu0 0.0
    %2833 = vmatpush1.xpose.msra.mxu0 %v2830
    %2834 = vmatprep.subr.mxu0 0.0
    %2835 = vmatpush1.xpose.msra.mxu0 0.0
    %2836 = vmatprep.subr.mxu0 0.0
    %2837 = vmatpush1.xpose.msra.mxu0 0.0
    %2838 = vmatprep.subr.mxu0 0.0
    %2839 = vmatpush1.xpose.msra.mxu0 0.0
    %2840 = vmatprep.subr.mxu0 0.0
    %2841 = vmatpush1.xpose.msra.mxu0 0.0
    %2842 = vmatprep.subr.mxu0 0.0
    %2843 = vmatpush1.xpose.msra.mxu0 0.0
    %2844 = vmatprep.subr.mxu0 0.0
    %2845 = vmatpush1.xpose.msra.mxu0 0.0
    %2846 = vmatprep.subr.mxu0 0.0
    %2847 = vmatpush1.xpose.msra.mxu0 0.0
    %2848 = vmatprep.subr.mxu0 0.0
    %2849 = vmatpush1.xpose.msra.mxu0 0.0
    %2850 = vmatprep.subr.mxu0 0.0
    %2851 = vmatpush1.xpose.msra.mxu0 0.0
    %2852 = vmatprep.subr.mxu0 0.0
    %2853 = vmatpush1.xpose.msra.mxu0 0.0
    %2854 = vmatprep.subr.mxu0 0.0
    %2855 = vmatpush1.xpose.msra.mxu0 0.0
    %2856 = vmatprep.subr.mxu0 0.0
    %2857 = vmatpush1.xpose.msra.mxu0 0.0
    %2858 = vmatprep.subr.mxu0 0.0
    %2859 = vmatpush1.xpose.msra.mxu0 0.0
    %2860 = vmatprep.subr.mxu0 0.0
    %2861 = vmatpush1.xpose.msra.mxu0 0.0
    %2862 = vmatprep.subr.mxu0 0.0
    %2863 = vmatpush1.xpose.msra.mxu0 0.0
    %2864 = vmatprep.subr.mxu0 0.0
    %2865 = vmatpush1.xpose.msra.mxu0 0.0
    %2866 = vmatprep.subr.mxu0 0.0
    %2867 = vmatpush1.xpose.msra.mxu0 0.0
    %2868 = vmatprep.subr.mxu0 0.0
    %2869 = vmatpush1.xpose.msra.mxu0 0.0
    %2870 = vmatprep.subr.mxu0 0.0
    %2871 = vmatpush1.xpose.msra.mxu0 0.0
    %2872 = vmatprep.subr.mxu0 0.0
    %2873 = vmatpush1.xpose.msra.mxu0 0.0
    %2874 = vmatprep.subr.mxu0 0.0
    %2875 = vmatpush1.xpose.msra.mxu0 0.0
    %2876 = vmatprep.subr.mxu0 0.0
    %2877 = vmatpush1.xpose.msra.mxu0 0.0
    %2878 = vmatprep.subr.mxu0 0.0
    %2879 = vmatpush1.xpose.msra.mxu0 0.0
    %2880 = vmatprep.subr.mxu0 0.0
    %2881 = vmatpush1.xpose.msra.mxu0 0.0
    %2882 = vmatprep.subr.mxu0 0.0
    %2883 = vmatpush1.xpose.msra.mxu0 0.0
    %2884 = vmatprep.subr.mxu0 0.0
    %2885 = vmatpush1.xpose.msra.mxu0 0.0
    %2886 = vmatprep.subr.mxu0 0.0
    %2887 = vmatpush1.xpose.msra.mxu0 0.0
    %2888 = vmatprep.subr.mxu0 0.0
    %2889 = vmatpush1.xpose.msra.mxu0 0.0
    %2890 = vmatprep.subr.mxu0 0.0
    %2891 = vmatpush1.xpose.msra.mxu0 0.0
    %2892 = vmatprep.subr.mxu0 0.0
    %2893 = vmatpush1.xpose.msra.mxu0 0.0
    %2894 = vmatprep.subr.mxu0 0.0
    %2895 = vmatpush1.xpose.msra.mxu0 0.0
    %2896 = vmatprep.mubr.f32.mxu0 0.0
    %2897 = vmatmul.mubr.f32.gmra.mrb[0].mxu0 %v2828
    %v2898 = vpop.f32.mrb[0].mxu0
    %v2899 = vadd.f32 %v2653, %v2898
    %v2900 = vpop.f32.mrb[0].mxu0
    %2901 = vdwg.mxu0
    %v2902 = vsel %vm318, %v2899, -inf
    %2903 = vmax.xlane.f32.xlu0 %v2902
    %v2904 = vpop.xlane.xlu0 %2903
    %v2905 = vsub.f32 %v2899, %v2904
    %v2906 = vmul.f32 %v2905, 1.442695
    %v2907 = vpow.pop %v2906
    %v2908 = vsel %vm318, %v2907, 0.0
    %2909 = vadd.xlane.f32.xlu0 %v2908
    %v2910 = vpop.xlane.xlu0 %2909
    %v2911 = vrcp.pop %v2910
    %v2912 = vmul.f32 %v2907, %v2911
    %2913 = vrot.lane.b32.xlu0 %v2644, 56
    %v2914 = vpop.permute.xlu0 %2913
    %v2917 = vsel %vm318, %v2912, 0
    %2919 = vmatprep.subr.mxu0 0.0
    %2920 = vmatpush1.msra.mxu0 %v2914
    %2921 = vmatprep.subr.mxu0 0.0
    %2922 = vmatpush1.msra.mxu0 0.0
    %2923 = vmatprep.subr.mxu0 0.0
    %2924 = vmatpush1.msra.mxu0 0.0
    %2925 = vmatprep.subr.mxu0 0.0
    %2926 = vmatpush1.msra.mxu0 0.0
    %2927 = vmatprep.subr.mxu0 0.0
    %2928 = vmatpush1.msra.mxu0 0.0
    %2929 = vmatprep.subr.mxu0 0.0
    %2930 = vmatpush1.msra.mxu0 0.0
    %2931 = vmatprep.subr.mxu0 0.0
    %2932 = vmatpush1.msra.mxu0 0.0
    %2933 = vmatprep.subr.mxu0 0.0
    %2934 = vmatpush1.msra.mxu0 0.0
    %2935 = vmatprep.subr.mxu0 0.0
    %2936 = vmatpush1.msra.mxu0 0.0
    %2937 = vmatprep.subr.mxu0 0.0
    %2938 = vmatpush1.msra.mxu0 0.0
    %2939 = vmatprep.subr.mxu0 0.0
    %2940 = vmatpush1.msra.mxu0 0.0
    %2941 = vmatprep.subr.mxu0 0.0
    %2942 = vmatpush1.msra.mxu0 0.0
    %2943 = vmatprep.subr.mxu0 0.0
    %2944 = vmatpush1.msra.mxu0 0.0
    %2945 = vmatprep.subr.mxu0 0.0
    %2946 = vmatpush1.msra.mxu0 0.0
    %2947 = vmatprep.subr.mxu0 0.0
    %2948 = vmatpush1.msra.mxu0 0.0
    %2949 = vmatprep.subr.mxu0 0.0
    %2950 = vmatpush1.msra.mxu0 0.0
    %2951 = vmatprep.subr.mxu0 0.0
    %2952 = vmatpush1.msra.mxu0 0.0
    %2953 = vmatprep.subr.mxu0 0.0
    %2954 = vmatpush1.msra.mxu0 0.0
    %2955 = vmatprep.subr.mxu0 0.0
    %2956 = vmatpush1.msra.mxu0 0.0
    %2957 = vmatprep.subr.mxu0 0.0
    %2958 = vmatpush1.msra.mxu0 0.0
    %2959 = vmatprep.subr.mxu0 0.0
    %2960 = vmatpush1.msra.mxu0 0.0
    %2961 = vmatprep.subr.mxu0 0.0
    %2962 = vmatpush1.msra.mxu0 0.0
    %2963 = vmatprep.subr.mxu0 0.0
    %2964 = vmatpush1.msra.mxu0 0.0
    %2965 = vmatprep.subr.mxu0 0.0
    %2966 = vmatpush1.msra.mxu0 0.0
    %2967 = vmatprep.subr.mxu0 0.0
    %2968 = vmatpush1.msra.mxu0 0.0
    %2969 = vmatprep.subr.mxu0 0.0
    %2970 = vmatpush1.msra.mxu0 0.0
    %2971 = vmatprep.subr.mxu0 0.0
    %2972 = vmatpush1.msra.mxu0 0.0
    %2973 = vmatprep.subr.mxu0 0.0
    %2974 = vmatpush1.msra.mxu0 0.0
    %2975 = vmatprep.subr.mxu0 0.0
    %2976 = vmatpush1.msra.mxu0 0.0
    %2977 = vmatprep.subr.mxu0 0.0
    %2978 = vmatpush1.msra.mxu0 0.0
    %2979 = vmatprep.subr.mxu0 0.0
    %2980 = vmatpush1.msra.mxu0 0.0
    %2981 = vmatprep.subr.mxu0 0.0
    %2982 = vmatpush1.msra.mxu0 0.0
    %2983 = vmatprep.mubr.f32.mxu0 0.0
    %2984 = vmatmul.mubr.f32.gmra.mrb[0].mxu0 %v2917
    %v2985 = vpop.f32.mrb[0].mxu0
    %v2986 = vadd.f32 0.0, %v2985
    %v2987 = vpop.f32.mrb[0].mxu0
    %2988 = vdwg.mxu0
    %v2990 = vsel %vm318, %v2986, 0
    %2992 = vmatprep.subr.mxu0 0.0
    %2993 = vmatpush1.msra.mxu0 %v2657
    %2994 = vmatprep.subr.mxu0 0.0
    %2995 = vmatpush1.msra.mxu0 0.0
    %2996 = vmatprep.subr.mxu0 0.0
    %2997 = vmatpush1.msra.mxu0 0.0
    %2998 = vmatprep.subr.mxu0 0.0
    %2999 = vmatpush1.msra.mxu0 0.0
    %3000 = vmatprep.subr.mxu0 0.0
    %3001 = vmatpush1.msra.mxu0 0.0
    %3002 = vmatprep.subr.mxu0 0.0
    %3003 = vmatpush1.msra.mxu0 0.0
    %3004 = vmatprep.subr.mxu0 0.0
    %3005 = vmatpush1.msra.mxu0 0.0
    %3006 = vmatprep.subr.mxu0 0.0
    %3007 = vmatpush1.msra.mxu0 0.0
    %3008 = vmatprep.subr.mxu0 0.0
    %3009 = vmatpush1.msra.mxu0 0.0
    %3010 = vmatprep.subr.mxu0 0.0
    %3011 = vmatpush1.msra.mxu0 0.0
    %3012 = vmatprep.subr.mxu0 0.0
    %3013 = vmatpush1.msra.mxu0 0.0
    %3014 = vmatprep.subr.mxu0 0.0
    %3015 = vmatpush1.msra.mxu0 0.0
    %3016 = vmatprep.subr.mxu0 0.0
    %3017 = vmatpush1.msra.mxu0 0.0
    %3018 = vmatprep.subr.mxu0 0.0
    %3019 = vmatpush1.msra.mxu0 0.0
    %3020 = vmatprep.subr.mxu0 0.0
    %3021 = vmatpush1.msra.mxu0 0.0
    %3022 = vmatprep.subr.mxu0 0.0
    %3023 = vmatpush1.msra.mxu0 0.0
    %3024 = vmatprep.subr.mxu0 0.0
    %3025 = vmatpush1.msra.mxu0 0.0
    %3026 = vmatprep.subr.mxu0 0.0
    %3027 = vmatpush1.msra.mxu0 0.0
    %3028 = vmatprep.subr.mxu0 0.0
    %3029 = vmatpush1.msra.mxu0 0.0
    %3030 = vmatprep.subr.mxu0 0.0
    %3031 = vmatpush1.msra.mxu0 0.0
    %3032 = vmatprep.subr.mxu0 0.0
    %3033 = vmatpush1.msra.mxu0 0.0
    %3034 = vmatprep.subr.mxu0 0.0
    %3035 = vmatpush1.msra.mxu0 0.0
    %3036 = vmatprep.subr.mxu0 0.0
    %3037 = vmatpush1.msra.mxu0 0.0
    %3038 = vmatprep.subr.mxu0 0.0
    %3039 = vmatpush1.msra.mxu0 0.0
    %3040 = vmatprep.subr.mxu0 0.0
    %3041 = vmatpush1.msra.mxu0 0.0
    %3042 = vmatprep.subr.mxu0 0.0
    %3043 = vmatpush1.msra.mxu0 0.0
    %3044 = vmatprep.subr.mxu0 0.0
    %3045 = vmatpush1.msra.mxu0 0.0
    %3046 = vmatprep.subr.mxu0 0.0
    %3047 = vmatpush1.msra.mxu0 0.0
    %3048 = vmatprep.subr.mxu0 0.0
    %3049 = vmatpush1.msra.mxu0 0.0
    %3050 = vmatprep.subr.mxu0 0.0
    %3051 = vmatpush1.msra.mxu0 0.0
    %3052 = vmatprep.subr.mxu0 0.0
    %3053 = vmatpush1.msra.mxu0 0.0
    %3054 = vmatprep.subr.mxu0 0.0
    %3055 = vmatpush1.msra.mxu0 0.0
    %3056 = vmatprep.mubr.f32.mxu0 0.0
    %3057 = vmatmul.mubr.f32.gmra.mrb[0].mxu0 %v2990
    %v3058 = vpop.f32.mrb[0].mxu0
    %v3059 = vadd.f32 0.0, %v3058
    %v3060 = vpop.f32.mrb[0].mxu0
    %3061 = vdwg.mxu0
    %v3063 = vsel %vm318, %v2821, 0
    %3065 = vmatprep.subr.mxu0 0.0
    %3066 = vmatpush1.msra.mxu0 %v2656
    %3067 = vmatprep.subr.mxu0 0.0
    %3068 = vmatpush1.msra.mxu0 0.0
    %3069 = vmatprep.subr.mxu0 0.0
    %3070 = vmatpush1.msra.mxu0 0.0
    %3071 = vmatprep.subr.mxu0 0.0
    %3072 = vmatpush1.msra.mxu0 0.0
    %3073 = vmatprep.subr.mxu0 0.0
    %3074 = vmatpush1.msra.mxu0 0.0
    %3075 = vmatprep.subr.mxu0 0.0
    %3076 = vmatpush1.msra.mxu0 0.0
    %3077 = vmatprep.subr.mxu0 0.0
    %3078 = vmatpush1.msra.mxu0 0.0
    %3079 = vmatprep.subr.mxu0 0.0
    %3080 = vmatpush1.msra.mxu0 0.0
    %3081 = vmatprep.subr.mxu0 0.0
    %3082 = vmatpush1.msra.mxu0 0.0
    %3083 = vmatprep.subr.mxu0 0.0
    %3084 = vmatpush1.msra.mxu0 0.0
    %3085 = vmatprep.subr.mxu0 0.0
    %3086 = vmatpush1.msra.mxu0 0.0
    %3087 = vmatprep.subr.mxu0 0.0
    %3088 = vmatpush1.msra.mxu0 0.0
    %3089 = vmatprep.subr.mxu0 0.0
    %3090 = vmatpush1.msra.mxu0 0.0
    %3091 = vmatprep.subr.mxu0 0.0
    %3092 = vmatpush1.msra.mxu0 0.0
    %3093 = vmatprep.subr.mxu0 0.0
    %3094 = vmatpush1.msra.mxu0 0.0
    %3095 = vmatprep.subr.mxu0 0.0
    %3096 = vmatpush1.msra.mxu0 0.0
    %3097 = vmatprep.subr.mxu0 0.0
    %3098 = vmatpush1.msra.mxu0 0.0
    %3099 = vmatprep.subr.mxu0 0.0
    %3100 = vmatpush1.msra.mxu0 0.0
    %3101 = vmatprep.subr.mxu0 0.0
    %3102 = vmatpush1.msra.mxu0 0.0
    %3103 = vmatprep.subr.mxu0 0.0
    %3104 = vmatpush1.msra.mxu0 0.0
    %3105 = vmatprep.subr.mxu0 0.0
    %3106 = vmatpush1.msra.mxu0 0.0
    %3107 = vmatprep.subr.mxu0 0.0
    %3108 = vmatpush1.msra.mxu0 0.0
    %3109 = vmatprep.subr.mxu0 0.0
    %3110 = vmatpush1.msra.mxu0 0.0
    %3111 = vmatprep.subr.mxu0 0.0
    %3112 = vmatpush1.msra.mxu0 0.0
    %3113 = vmatprep.subr.mxu0 0.0
    %3114 = vmatpush1.msra.mxu0 0.0
    %3115 = vmatprep.subr.mxu0 0.0
    %3116 = vmatpush1.msra.mxu0 0.0
    %3117 = vmatprep.subr.mxu0 0.0
    %3118 = vmatpush1.msra.mxu0 0.0
    %3119 = vmatprep.subr.mxu0 0.0
    %3120 = vmatpush1.msra.mxu0 0.0
    %3121 = vmatprep.subr.mxu0 0.0
    %3122 = vmatpush1.msra.mxu0 0.0
    %3123 = vmatprep.subr.mxu0 0.0
    %3124 = vmatpush1.msra.mxu0 0.0
    %3125 = vmatprep.subr.mxu0 0.0
    %3126 = vmatpush1.msra.mxu0 0.0
    %3127 = vmatprep.subr.mxu0 0.0
    %3128 = vmatpush1.msra.mxu0 0.0
    %3129 = vmatprep.mubr.f32.mxu0 0.0
    %3130 = vmatmul.mubr.f32.gmra.mrb[0].mxu0 %v3063
    %v3131 = vpop.f32.mrb[0].mxu0
    %v3132 = vadd.f32 %v3059, %v3131
    %v3133 = vpop.f32.mrb[0].mxu0
    %3134 = vdwg.mxu0
    %3135 = vrot.lane.b32.xlu0 %v2644, 112
    %v3136 = vpop.permute.xlu0 %3135
    %3137 = vrot.lane.b32.xlu0 %v2644, 80
    %v3138 = vpop.permute.xlu0 %3137
    %v3139 = vsel %vm318, %v3136, 0
    %v3141 = vsel %vm318, %v3138, 0
    %3143 = vmatprep.subr.mxu0 0.0
    %3144 = vmatpush1.xpose.msra.mxu0 %v3141
    %3145 = vmatprep.subr.mxu0 0.0
    %3146 = vmatpush1.xpose.msra.mxu0 0.0
    %3147 = vmatprep.subr.mxu0 0.0
    %3148 = vmatpush1.xpose.msra.mxu0 0.0
    %3149 = vmatprep.subr.mxu0 0.0
    %3150 = vmatpush1.xpose.msra.mxu0 0.0
    %3151 = vmatprep.subr.mxu0 0.0
    %3152 = vmatpush1.xpose.msra.mxu0 0.0
    %3153 = vmatprep.subr.mxu0 0.0
    %3154 = vmatpush1.xpose.msra.mxu0 0.0
    %3155 = vmatprep.subr.mxu0 0.0
    %3156 = vmatpush1.xpose.msra.mxu0 0.0
    %3157 = vmatprep.subr.mxu0 0.0
    %3158 = vmatpush1.xpose.msra.mxu0 0.0
    %3159 = vmatprep.subr.mxu0 0.0
    %3160 = vmatpush1.xpose.msra.mxu0 0.0
    %3161 = vmatprep.subr.mxu0 0.0
    %3162 = vmatpush1.xpose.msra.mxu0 0.0
    %3163 = vmatprep.subr.mxu0 0.0
    %3164 = vmatpush1.xpose.msra.mxu0 0.0
    %3165 = vmatprep.subr.mxu0 0.0
    %3166 = vmatpush1.xpose.msra.mxu0 0.0
    %3167 = vmatprep.subr.mxu0 0.0
    %3168 = vmatpush1.xpose.msra.mxu0 0.0
    %3169 = vmatprep.subr.mxu0 0.0
    %3170 = vmatpush1.xpose.msra.mxu0 0.0
    %3171 = vmatprep.subr.mxu0 0.0
    %3172 = vmatpush1.xpose.msra.mxu0 0.0
    %3173 = vmatprep.subr.mxu0 0.0
    %3174 = vmatpush1.xpose.msra.mxu0 0.0
    %3175 = vmatprep.subr.mxu0 0.0
    %3176 = vmatpush1.xpose.msra.mxu0 0.0
    %3177 = vmatprep.subr.mxu0 0.0
    %3178 = vmatpush1.xpose.msra.mxu0 0.0
    %3179 = vmatprep.subr.mxu0 0.0
    %3180 = vmatpush1.xpose.msra.mxu0 0.0
    %3181 = vmatprep.subr.mxu0 0.0
    %3182 = vmatpush1.xpose.msra.mxu0 0.0
    %3183 = vmatprep.subr.mxu0 0.0
    %3184 = vmatpush1.xpose.msra.mxu0 0.0
    %3185 = vmatprep.subr.mxu0 0.0
    %3186 = vmatpush1.xpose.msra.mxu0 0.0
    %3187 = vmatprep.subr.mxu0 0.0
    %3188 = vmatpush1.xpose.msra.mxu0 0.0
    %3189 = vmatprep.subr.mxu0 0.0
    %3190 = vmatpush1.xpose.msra.mxu0 0.0
    %3191 = vmatprep.subr.mxu0 0.0
    %3192 = vmatpush1.xpose.msra.mxu0 0.0
    %3193 = vmatprep.subr.mxu0 0.0
    %3194 = vmatpush1.xpose.msra.mxu0 0.0
    %3195 = vmatprep.subr.mxu0 0.0
    %3196 = vmatpush1.xpose.msra.mxu0 0.0
    %3197 = vmatprep.subr.mxu0 0.0
    %3198 = vmatpush1.xpose.msra.mxu0 0.0
    %3199 = vmatprep.subr.mxu0 0.0
    %3200 = vmatpush1.xpose.msra.mxu0 0.0
    %3201 = vmatprep.subr.mxu0 0.0
    %3202 = vmatpush1.xpose.msra.mxu0 0.0
    %3203 = vmatprep.subr.mxu0 0.0
    %3204 = vmatpush1.xpose.msra.mxu0 0.0
    %3205 = vmatprep.subr.mxu0 0.0
    %3206 = vmatpush1.xpose.msra.mxu0 0.0
    %3207 = vmatprep.mubr.f32.mxu0 0.0
    %3208 = vmatmul.mubr.f32.gmra.mrb[0].mxu0 %v3139
    %v3209 = vpop.f32.mrb[0].mxu0
    %v3210 = vadd.f32 %v2654, %v3209
    %v3211 = vpop.f32.mrb[0].mxu0
    %3212 = vdwg.mxu0
    %v3213 = vsel %vm318, %v3210, -inf
    %3214 = vmax.xlane.f32.xlu0 %v3213
    %v3215 = vpop.xlane.xlu0 %3214
    %v3216 = vsub.f32 %v3210, %v3215
    %v3217 = vmul.f32 %v3216, 1.442695
    %v3218 = vpow.pop %v3217
    %v3219 = vsel %vm318, %v3218, 0.0
    %3220 = vadd.xlane.f32.xlu0 %v3219
    %v3221 = vpop.xlane.xlu0 %3220
    %v3222 = vrcp.pop %v3221
    %v3223 = vmul.f32 %v3218, %v3222
    %3224 = vrot.lane.b32.xlu0 %v2644, 48
    %v3225 = vpop.permute.xlu0 %3224
    %v3228 = vsel %vm318, %v3223, 0
    %3230 = vmatprep.subr.mxu0 0.0
    %3231 = vmatpush1.msra.mxu0 %v3225
    %3232 = vmatprep.subr.mxu0 0.0
    %3233 = vmatpush1.msra.mxu0 0.0
    %3234 = vmatprep.subr.mxu0 0.0
    %3235 = vmatpush1.msra.mxu0 0.0
    %3236 = vmatprep.subr.mxu0 0.0
    %3237 = vmatpush1.msra.mxu0 0.0
    %3238 = vmatprep.subr.mxu0 0.0
    %3239 = vmatpush1.msra.mxu0 0.0
    %3240 = vmatprep.subr.mxu0 0.0
    %3241 = vmatpush1.msra.mxu0 0.0
    %3242 = vmatprep.subr.mxu0 0.0
    %3243 = vmatpush1.msra.mxu0 0.0
    %3244 = vmatprep.subr.mxu0 0.0
    %3245 = vmatpush1.msra.mxu0 0.0
    %3246 = vmatprep.subr.mxu0 0.0
    %3247 = vmatpush1.msra.mxu0 0.0
    %3248 = vmatprep.subr.mxu0 0.0
    %3249 = vmatpush1.msra.mxu0 0.0
    %3250 = vmatprep.subr.mxu0 0.0
    %3251 = vmatpush1.msra.mxu0 0.0
    %3252 = vmatprep.subr.mxu0 0.0
    %3253 = vmatpush1.msra.mxu0 0.0
    %3254 = vmatprep.subr.mxu0 0.0
    %3255 = vmatpush1.msra.mxu0 0.0
    %3256 = vmatprep.subr.mxu0 0.0
    %3257 = vmatpush1.msra.mxu0 0.0
    %3258 = vmatprep.subr.mxu0 0.0
    %3259 = vmatpush1.msra.mxu0 0.0
    %3260 = vmatprep.subr.mxu0 0.0
    %3261 = vmatpush1.msra.mxu0 0.0
    %3262 = vmatprep.subr.mxu0 0.0
    %3263 = vmatpush1.msra.mxu0 0.0
    %3264 = vmatprep.subr.mxu0 0.0
    %3265 = vmatpush1.msra.mxu0 0.0
    %3266 = vmatprep.subr.mxu0 0.0
    %3267 = vmatpush1.msra.mxu0 0.0
    %3268 = vmatprep.subr.mxu0 0.0
    %3269 = vmatpush1.msra.mxu0 0.0
    %3270 = vmatprep.subr.mxu0 0.0
    %3271 = vmatpush1.msra.mxu0 0.0
    %3272 = vmatprep.subr.mxu0 0.0
    %3273 = vmatpush1.msra.mxu0 0.0
    %3274 = vmatprep.subr.mxu0 0.0
    %3275 = vmatpush1.msra.mxu0 0.0
    %3276 = vmatprep.subr.mxu0 0.0
    %3277 = vmatpush1.msra.mxu0 0.0
    %3278 = vmatprep.subr.mxu0 0.0
    %3279 = vmatpush1.msra.mxu0 0.0
    %3280 = vmatprep.subr.mxu0 0.0
    %3281 = vmatpush1.msra.mxu0 0.0
    %3282 = vmatprep.subr.mxu0 0.0
    %3283 = vmatpush1.msra.mxu0 0.0
    %3284 = vmatprep.subr.mxu0 0.0
    %3285 = vmatpush1.msra.mxu0 0.0
    %3286 = vmatprep.subr.mxu0 0.0
    %3287 = vmatpush1.msra.mxu0 0.0
    %3288 = vmatprep.subr.mxu0 0.0
    %3289 = vmatpush1.msra.mxu0 0.0
    %3290 = vmatprep.subr.mxu0 0.0
    %3291 = vmatpush1.msra.mxu0 0.0
    %3292 = vmatprep.subr.mxu0 0.0
    %3293 = vmatpush1.msra.mxu0 0.0
    %3294 = vmatprep.mubr.f32.mxu0 0.0
    %3295 = vmatmul.mubr.f32.gmra.mrb[0].mxu0 %v3228
    %v3296 = vpop.f32.mrb[0].mxu0
    %v3297 = vadd.f32 0.0, %v3296
    %v3298 = vpop.f32.mrb[0].mxu0
    %3299 = vdwg.mxu0
    %v3301 = vsel %vm318, %v3297, 0
    %3303 = vmatprep.subr.mxu0 0.0
    %3304 = vmatpush1.msra.mxu0 %v2658
    %3305 = vmatprep.subr.mxu0 0.0
    %3306 = vmatpush1.msra.mxu0 0.0
    %3307 = vmatprep.subr.mxu0 0.0
    %3308 = vmatpush1.msra.mxu0 0.0
    %3309 = vmatprep.subr.mxu0 0.0
    %3310 = vmatpush1.msra.mxu0 0.0
    %3311 = vmatprep.subr.mxu0 0.0
    %3312 = vmatpush1.msra.mxu0 0.0
    %3313 = vmatprep.subr.mxu0 0.0
    %3314 = vmatpush1.msra.mxu0 0.0
    %3315 = vmatprep.subr.mxu0 0.0
    %3316 = vmatpush1.msra.mxu0 0.0
    %3317 = vmatprep.subr.mxu0 0.0
    %3318 = vmatpush1.msra.mxu0 0.0
    %3319 = vmatprep.subr.mxu0 0.0
    %3320 = vmatpush1.msra.mxu0 0.0
    %3321 = vmatprep.subr.mxu0 0.0
    %3322 = vmatpush1.msra.mxu0 0.0
    %3323 = vmatprep.subr.mxu0 0.0
    %3324 = vmatpush1.msra.mxu0 0.0
    %3325 = vmatprep.subr.mxu0 0.0
    %3326 = vmatpush1.msra.mxu0 0.0
    %3327 = vmatprep.subr.mxu0 0.0
    %3328 = vmatpush1.msra.mxu0 0.0
    %3329 = vmatprep.subr.mxu0 0.0
    %3330 = vmatpush1.msra.mxu0 0.0
    %3331 = vmatprep.subr.mxu0 0.0
    %3332 = vmatpush1.msra.mxu0 0.0
    %3333 = vmatprep.subr.mxu0 0.0
    %3334 = vmatpush1.msra.mxu0 0.0
    %3335 = vmatprep.subr.mxu0 0.0
    %3336 = vmatpush1.msra.mxu0 0.0
    %3337 = vmatprep.subr.mxu0 0.0
    %3338 = vmatpush1.msra.mxu0 0.0
    %3339 = vmatprep.subr.mxu0 0.0
    %3340 = vmatpush1.msra.mxu0 0.0
    %3341 = vmatprep.subr.mxu0 0.0
    %3342 = vmatpush1.msra.mxu0 0.0
    %3343 = vmatprep.subr.mxu0 0.0
    %3344 = vmatpush1.msra.mxu0 0.0
    %3345 = vmatprep.subr.mxu0 0.0
    %3346 = vmatpush1.msra.mxu0 0.0
    %3347 = vmatprep.subr.mxu0 0.0
    %3348 = vmatpush1.msra.mxu0 0.0
    %3349 = vmatprep.subr.mxu0 0.0
    %3350 = vmatpush1.msra.mxu0 0.0
    %3351 = vmatprep.subr.mxu0 0.0
    %3352 = vmatpush1.msra.mxu0 0.0
    %3353 = vmatprep.subr.mxu0 0.0
    %3354 = vmatpush1.msra.mxu0 0.0
    %3355 = vmatprep.subr.mxu0 0.0
    %3356 = vmatpush1.msra.mxu0 0.0
    %3357 = vmatprep.subr.mxu0 0.0
    %3358 = vmatpush1.msra.mxu0 0.0
    %3359 = vmatprep.subr.mxu0 0.0
    %3360 = vmatpush1.msra.mxu0 0.0
    %3361 = vmatprep.subr.mxu0 0.0
    %3362 = vmatpush1.msra.mxu0 0.0
    %3363 = vmatprep.subr.mxu0 0.0
    %3364 = vmatpush1.msra.mxu0 0.0
    %3365 = vmatprep.subr.mxu0 0.0
    %3366 = vmatpush1.msra.mxu0 0.0
    %3367 = vmatprep.mubr.f32.mxu0 0.0
    %3368 = vmatmul.mubr.f32.gmra.mrb[0].mxu0 %v3301
    %v3369 = vpop.f32.mrb[0].mxu0
    %v3370 = vadd.f32 0.0, %v3369
    %v3371 = vpop.f32.mrb[0].mxu0
    %3372 = vdwg.mxu0
    %v3373 = vadd.f32 %v3132, %v3370
    %3374 = vrot.lane.b32.xlu0 %v2644, 104
    %v3375 = vpop.permute.xlu0 %3374
    %3376 = vrot.lane.b32.xlu0 %v2644, 72
    %v3377 = vpop.permute.xlu0 %3376
    %v3378 = vsel %vm318, %v3375, 0
    %v3380 = vsel %vm318, %v3377, 0
    %3382 = vmatprep.subr.mxu0 0.0
    %3383 = vmatpush1.xpose.msra.mxu0 %v3380
    %3384 = vmatprep.subr.mxu0 0.0
    %3385 = vmatpush1.xpose.msra.mxu0 0.0
    %3386 = vmatprep.subr.mxu0 0.0
    %3387 = vmatpush1.xpose.msra.mxu0 0.0
    %3388 = vmatprep.subr.mxu0 0.0
    %3389 = vmatpush1.xpose.msra.mxu0 0.0
    %3390 = vmatprep.subr.mxu0 0.0
    %3391 = vmatpush1.xpose.msra.mxu0 0.0
    %3392 = vmatprep.subr.mxu0 0.0
    %3393 = vmatpush1.xpose.msra.mxu0 0.0
    %3394 = vmatprep.subr.mxu0 0.0
    %3395 = vmatpush1.xpose.msra.mxu0 0.0
    %3396 = vmatprep.subr.mxu0 0.0
    %3397 = vmatpush1.xpose.msra.mxu0 0.0
    %3398 = vmatprep.subr.mxu0 0.0
    %3399 = vmatpush1.xpose.msra.mxu0 0.0
    %3400 = vmatprep.subr.mxu0 0.0
    %3401 = vmatpush1.xpose.msra.mxu0 0.0
    %3402 = vmatprep.subr.mxu0 0.0
    %3403 = vmatpush1.xpose.msra.mxu0 0.0
    %3404 = vmatprep.subr.mxu0 0.0
    %3405 = vmatpush1.xpose.msra.mxu0 0.0
    %3406 = vmatprep.subr.mxu0 0.0
    %3407 = vmatpush1.xpose.msra.mxu0 0.0
    %3408 = vmatprep.subr.mxu0 0.0
    %3409 = vmatpush1.xpose.msra.mxu0 0.0
    %3410 = vmatprep.subr.mxu0 0.0
    %3411 = vmatpush1.xpose.msra.mxu0 0.0
    %3412 = vmatprep.subr.mxu0 0.0
    %3413 = vmatpush1.xpose.msra.mxu0 0.0
    %3414 = vmatprep.subr.mxu0 0.0
    %3415 = vmatpush1.xpose.msra.mxu0 0.0
    %3416 = vmatprep.subr.mxu0 0.0
    %3417 = vmatpush1.xpose.msra.mxu0 0.0
    %3418 = vmatprep.subr.mxu0 0.0
    %3419 = vmatpush1.xpose.msra.mxu0 0.0
    %3420 = vmatprep.subr.mxu0 0.0
    %3421 = vmatpush1.xpose.msra.mxu0 0.0
    %3422 = vmatprep.subr.mxu0 0.0
    %3423 = vmatpush1.xpose.msra.mxu0 0.0
    %3424 = vmatprep.subr.mxu0 0.0
    %3425 = vmatpush1.xpose.msra.mxu0 0.0
    %3426 = vmatprep.subr.mxu0 0.0
    %3427 = vmatpush1.xpose.msra.mxu0 0.0
    %3428 = vmatprep.subr.mxu0 0.0
    %3429 = vmatpush1.xpose.msra.mxu0 0.0
    %3430 = vmatprep.subr.mxu0 0.0
    %3431 = vmatpush1.xpose.msra.mxu0 0.0
    %3432 = vmatprep.subr.mxu0 0.0
    %3433 = vmatpush1.xpose.msra.mxu0 0.0
    %3434 = vmatprep.subr.mxu0 0.0
    %3435 = vmatpush1.xpose.msra.mxu0 0.0
    %3436 = vmatprep.subr.mxu0 0.0
    %3437 = vmatpush1.xpose.msra.mxu0 0.0
    %3438 = vmatprep.subr.mxu0 0.0
    %3439 = vmatpush1.xpose.msra.mxu0 0.0
    %3440 = vmatprep.subr.mxu0 0.0
    %3441 = vmatpush1.xpose.msra.mxu0 0.0
    %3442 = vmatprep.subr.mxu0 0.0
    %3443 = vmatpush1.xpose.msra.mxu0 0.0
    %3444 = vmatprep.subr.mxu0 0.0
    %3445 = vmatpush1.xpose.msra.mxu0 0.0
    %3446 = vmatprep.mubr.f32.mxu0 0.0
    %3447 = vmatmul.mubr.f32.gmra.mrb[0].mxu0 %v3378
    %v3448 = vpop.f32.mrb[0].mxu0
    %v3449 = vadd.f32 %v2655, %v3448
    %v3450 = vpop.f32.mrb[0].mxu0
    %3451 = vdwg.mxu0
    %v3452 = vsel %vm318, %v3449, -inf
    %3453 = vmax.xlane.f32.xlu0 %v3452
    %v3454 = vpop.xlane.xlu0 %3453
    %v3455 = vsub.f32 %v3449, %v3454
    %v3456 = vmul.f32 %v3455, 1.442695
    %v3457 = vpow.pop %v3456
    %v3458 = vsel %vm318, %v3457, 0.0
    %3459 = vadd.xlane.f32.xlu0 %v3458
    %v3460 = vpop.xlane.xlu0 %3459
    %v3461 = vrcp.pop %v3460
    %v3462 = vmul.f32 %v3457, %v3461
    %3463 = vrot.lane.b32.xlu0 %v2644, 40
    %v3464 = vpop.permute.xlu0 %3463
    %v3467 = vsel %vm318, %v3462, 0
    %3469 = vmatprep.subr.mxu0 0.0
    %3470 = vmatpush1.msra.mxu0 %v3464
    %3471 = vmatprep.subr.mxu0 0.0
    %3472 = vmatpush1.msra.mxu0 0.0
    %3473 = vmatprep.subr.mxu0 0.0
    %3474 = vmatpush1.msra.mxu0 0.0
    %3475 = vmatprep.subr.mxu0 0.0
    %3476 = vmatpush1.msra.mxu0 0.0
    %3477 = vmatprep.subr.mxu0 0.0
    %3478 = vmatpush1.msra.mxu0 0.0
    %3479 = vmatprep.subr.mxu0 0.0
    %3480 = vmatpush1.msra.mxu0 0.0
    %3481 = vmatprep.subr.mxu0 0.0
    %3482 = vmatpush1.msra.mxu0 0.0
    %3483 = vmatprep.subr.mxu0 0.0
    %3484 = vmatpush1.msra.mxu0 0.0
    %3485 = vmatprep.subr.mxu0 0.0
    %3486 = vmatpush1.msra.mxu0 0.0
    %3487 = vmatprep.subr.mxu0 0.0
    %3488 = vmatpush1.msra.mxu0 0.0
    %3489 = vmatprep.subr.mxu0 0.0
    %3490 = vmatpush1.msra.mxu0 0.0
    %3491 = vmatprep.subr.mxu0 0.0
    %3492 = vmatpush1.msra.mxu0 0.0
    %3493 = vmatprep.subr.mxu0 0.0
    %3494 = vmatpush1.msra.mxu0 0.0
    %3495 = vmatprep.subr.mxu0 0.0
    %3496 = vmatpush1.msra.mxu0 0.0
    %3497 = vmatprep.subr.mxu0 0.0
    %3498 = vmatpush1.msra.mxu0 0.0
    %3499 = vmatprep.subr.mxu0 0.0
    %3500 = vmatpush1.msra.mxu0 0.0
    %3501 = vmatprep.subr.mxu0 0.0
    %3502 = vmatpush1.msra.mxu0 0.0
    %3503 = vmatprep.subr.mxu0 0.0
    %3504 = vmatpush1.msra.mxu0 0.0
    %3505 = vmatprep.subr.mxu0 0.0
    %3506 = vmatpush1.msra.mxu0 0.0
    %3507 = vmatprep.subr.mxu0 0.0
    %3508 = vmatpush1.msra.mxu0 0.0
    %3509 = vmatprep.subr.mxu0 0.0
    %3510 = vmatpush1.msra.mxu0 0.0
    %3511 = vmatprep.subr.mxu0 0.0
    %3512 = vmatpush1.msra.mxu0 0.0
    %3513 = vmatprep.subr.mxu0 0.0
    %3514 = vmatpush1.msra.mxu0 0.0
    %3515 = vmatprep.subr.mxu0 0.0
    %3516 = vmatpush1.msra.mxu0 0.0
    %3517 = vmatprep.subr.mxu0 0.0
    %3518 = vmatpush1.msra.mxu0 0.0
    %3519 = vmatprep.subr.mxu0 0.0
    %3520 = vmatpush1.msra.mxu0 0.0
    %3521 = vmatprep.subr.mxu0 0.0
    %3522 = vmatpush1.msra.mxu0 0.0
    %3523 = vmatprep.subr.mxu0 0.0
    %3524 = vmatpush1.msra.mxu0 0.0
    %3525 = vmatprep.subr.mxu0 0.0
    %3526 = vmatpush1.msra.mxu0 0.0
    %3527 = vmatprep.subr.mxu0 0.0
    %3528 = vmatpush1.msra.mxu0 0.0
    %3529 = vmatprep.subr.mxu0 0.0
    %3530 = vmatpush1.msra.mxu0 0.0
    %3531 = vmatprep.subr.mxu0 0.0
    %3532 = vmatpush1.msra.mxu0 0.0
    %3533 = vmatprep.mubr.f32.mxu0 0.0
    %3534 = vmatmul.mubr.f32.gmra.mrb[0].mxu0 %v3467
    %v3535 = vpop.f32.mrb[0].mxu0
    %v3536 = vadd.f32 0.0, %v3535
    %v3537 = vpop.f32.mrb[0].mxu0
    %3538 = vdwg.mxu0
    %v3540 = vsel %vm318, %v3536, 0
    %3542 = vmatprep.subr.mxu0 0.0
    %3543 = vmatpush1.msra.mxu0 %v2659
    %3544 = vmatprep.subr.mxu0 0.0
    %3545 = vmatpush1.msra.mxu0 0.0
    %3546 = vmatprep.subr.mxu0 0.0
    %3547 = vmatpush1.msra.mxu0 0.0
    %3548 = vmatprep.subr.mxu0 0.0
    %3549 = vmatpush1.msra.mxu0 0.0
    %3550 = vmatprep.subr.mxu0 0.0
    %3551 = vmatpush1.msra.mxu0 0.0
    %3552 = vmatprep.subr.mxu0 0.0
    %3553 = vmatpush1.msra.mxu0 0.0
    %3554 = vmatprep.subr.mxu0 0.0
    %3555 = vmatpush1.msra.mxu0 0.0
    %3556 = vmatprep.subr.mxu0 0.0
    %3557 = vmatpush1.msra.mxu0 0.0
    %3558 = vmatprep.subr.mxu0 0.0
    %3559 = vmatpush1.msra.mxu0 0.0
    %3560 = vmatprep.subr.mxu0 0.0
    %3561 = vmatpush1.msra.mxu0 0.0
    %3562 = vmatprep.subr.mxu0 0.0
    %3563 = vmatpush1.msra.mxu0 0.0
    %3564 = vmatprep.subr.mxu0 0.0
    %3565 = vmatpush1.msra.mxu0 0.0
    %3566 = vmatprep.subr.mxu0 0.0
    %3567 = vmatpush1.msra.mxu0 0.0
    %3568 = vmatprep.subr.mxu0 0.0
    %3569 = vmatpush1.msra.mxu0 0.0
    %3570 = vmatprep.subr.mxu0 0.0
    %3571 = vmatpush1.msra.mxu0 0.0
    %3572 = vmatprep.subr.mxu0 0.0
    %3573 = vmatpush1.msra.mxu0 0.0
    %3574 = vmatprep.subr.mxu0 0.0
    %3575 = vmatpush1.msra.mxu0 0.0
    %3576 = vmatprep.subr.mxu0 0.0
    %3577 = vmatpush1.msra.mxu0 0.0
    %3578 = vmatprep.subr.mxu0 0.0
    %3579 = vmatpush1.msra.mxu0 0.0
    %3580 = vmatprep.subr.mxu0 0.0
    %3581 = vmatpush1.msra.mxu0 0.0
    %3582 = vmatprep.subr.mxu0 0.0
    %3583 = vmatpush1.msra.mxu0 0.0
    %3584 = vmatprep.subr.mxu0 0.0
    %3585 = vmatpush1.msra.mxu0 0.0
    %3586 = vmatprep.subr.mxu0 0.0
    %3587 = vmatpush1.msra.mxu0 0.0
    %3588 = vmatprep.subr.mxu0 0.0
    %3589 = vmatpush1.msra.mxu0 0.0
    %3590 = vmatprep.subr.mxu0 0.0
    %3591 = vmatpush1.msra.mxu0 0.0
    %3592 = vmatprep.subr.mxu0 0.0
    %3593 = vmatpush1.msra.mxu0 0.0
    %3594 = vmatprep.subr.mxu0 0.0
    %3595 = vmatpush1.msra.mxu0 0.0
    %3596 = vmatprep.subr.mxu0 0.0
    %3597 = vmatpush1.msra.mxu0 0.0
    %3598 = vmatprep.subr.mxu0 0.0
    %3599 = vmatpush1.msra.mxu0 0.0
    %3600 = vmatprep.subr.mxu0 0.0
    %3601 = vmatpush1.msra.mxu0 0.0
    %3602 = vmatprep.subr.mxu0 0.0
    %3603 = vmatpush1.msra.mxu0 0.0
    %3604 = vmatprep.subr.mxu0 0.0
    %3605 = vmatpush1.msra.mxu0 0.0
    %3606 = vmatprep.mubr.f32.mxu0 0.0
    %3607 = vmatmul.mubr.f32.gmra.mrb[0].mxu0 %v3540
    %v3608 = vpop.f32.mrb[0].mxu0
    %v3609 = vadd.f32 0.0, %v3608
    %v3610 = vpop.f32.mrb[0].mxu0
    %3611 = vdwg.mxu0
    %v3612 = vadd.f32 %v3373, %v3609
    %3614 = vrot.lane.b32.xlu0 %v2649, 96
    %v3615 = vpop.permute.xlu0 %3614
    %v3616 = vsel %vm318, %v2649, 0
    %v3618 = vsel %vm318, %v3615, 0
    %3620 = vmatprep.subr.mxu0 0.0
    %3621 = vmatpush1.xpose.msra.mxu0 %v3618
    %3622 = vmatprep.subr.mxu0 0.0
    %3623 = vmatpush1.xpose.msra.mxu0 0.0
    %3624 = vmatprep.subr.mxu0 0.0
    %3625 = vmatpush1.xpose.msra.mxu0 0.0
    %3626 = vmatprep.subr.mxu0 0.0
    %3627 = vmatpush1.xpose.msra.mxu0 0.0
    %3628 = vmatprep.subr.mxu0 0.0
    %3629 = vmatpush1.xpose.msra.mxu0 0.0
    %3630 = vmatprep.subr.mxu0 0.0
    %3631 = vmatpush1.xpose.msra.mxu0 0.0
    %3632 = vmatprep.subr.mxu0 0.0
    %3633 = vmatpush1.xpose.msra.mxu0 0.0
    %3634 = vmatprep.subr.mxu0 0.0
    %3635 = vmatpush1.xpose.msra.mxu0 0.0
    %3636 = vmatprep.subr.mxu0 0.0
    %3637 = vmatpush1.xpose.msra.mxu0 0.0
    %3638 = vmatprep.subr.mxu0 0.0
    %3639 = vmatpush1.xpose.msra.mxu0 0.0
    %3640 = vmatprep.subr.mxu0 0.0
    %3641 = vmatpush1.xpose.msra.mxu0 0.0
    %3642 = vmatprep.subr.mxu0 0.0
    %3643 = vmatpush1.xpose.msra.mxu0 0.0
    %3644 = vmatprep.subr.mxu0 0.0
    %3645 = vmatpush1.xpose.msra.mxu0 0.0
    %3646 = vmatprep.subr.mxu0 0.0
    %3647 = vmatpush1.xpose.msra.mxu0 0.0
    %3648 = vmatprep.subr.mxu0 0.0
    %3649 = vmatpush1.xpose.msra.mxu0 0.0
    %3650 = vmatprep.subr.mxu0 0.0
    %3651 = vmatpush1.xpose.msra.mxu0 0.0
    %3652 = vmatprep.subr.mxu0 0.0
    %3653 = vmatpush1.xpose.msra.mxu0 0.0
    %3654 = vmatprep.subr.mxu0 0.0
    %3655 = vmatpush1.xpose.msra.mxu0 0.0
    %3656 = vmatprep.subr.mxu0 0.0
    %3657 = vmatpush1.xpose.msra.mxu0 0.0
    %3658 = vmatprep.subr.mxu0 0.0
    %3659 = vmatpush1.xpose.msra.mxu0 0.0
    %3660 = vmatprep.subr.mxu0 0.0
    %3661 = vmatpush1.xpose.msra.mxu0 0.0
    %3662 = vmatprep.subr.mxu0 0.0
    %3663 = vmatpush1.xpose.msra.mxu0 0.0
    %3664 = vmatprep.subr.mxu0 0.0
    %3665 = vmatpush1.xpose.msra.mxu0 0.0
    %3666 = vmatprep.subr.mxu0 0.0
    %3667 = vmatpush1.xpose.msra.mxu0 0.0
    %3668 = vmatprep.subr.mxu0 0.0
    %3669 = vmatpush1.xpose.msra.mxu0 0.0
    %3670 = vmatprep.subr.mxu0 0.0
    %3671 = vmatpush1.xpose.msra.mxu0 0.0
    %3672 = vmatprep.subr.mxu0 0.0
    %3673 = vmatpush1.xpose.msra.mxu0 0.0
    %3674 = vmatprep.subr.mxu0 0.0
    %3675 = vmatpush1.xpose.msra.mxu0 0.0
    %3676 = vmatprep.subr.mxu0 0.0
    %3677 = vmatpush1.xpose.msra.mxu0 0.0
    %3678 = vmatprep.subr.mxu0 0.0
    %3679 = vmatpush1.xpose.msra.mxu0 0.0
    %3680 = vmatprep.subr.mxu0 0.0
    %3681 = vmatpush1.xpose.msra.mxu0 0.0
    %3682 = vmatprep.subr.mxu0 0.0
    %3683 = vmatpush1.xpose.msra.mxu0 0.0
    %3684 = vmatprep.mubr.f32.mxu0 0.0
    %3685 = vmatmul.mubr.f32.gmra.mrb[0].mxu0 %v3616
    %v3686 = vpop.f32.mrb[0].mxu0
    %v3687 = vadd.f32 %v2652, %v3686
    %v3688 = vpop.f32.mrb[0].mxu0
    %3689 = vdwg.mxu0
    %v3690 = vsel %vm318, %v3687, -inf
    %3691 = vmax.xlane.f32.xlu0 %v3690
    %v3692 = vpop.xlane.xlu0 %3691
    %v3693 = vsub.f32 %v3687, %v3692
    %v3694 = vmul.f32 %v3693, 1.442695
    %v3695 = vpow.pop %v3694
    %v3696 = vsel %vm318, %v3695, 0.0
    %3697 = vadd.xlane.f32.xlu0 %v3696
    %v3698 = vpop.xlane.xlu0 %3697
    %v3699 = vrcp.pop %v3698
    %v3700 = vmul.f32 %v3695, %v3699
    %3701 = vrot.lane.b32.xlu0 %v2649, 64
    %v3702 = vpop.permute.xlu0 %3701
    %v3705 = vsel %vm318, %v3700, 0
    %3707 = vmatprep.subr.mxu0 0.0
    %3708 = vmatpush1.msra.mxu0 %v3702
    %3709 = vmatprep.subr.mxu0 0.0
    %3710 = vmatpush1.msra.mxu0 0.0
    %3711 = vmatprep.subr.mxu0 0.0
    %3712 = vmatpush1.msra.mxu0 0.0
    %3713 = vmatprep.subr.mxu0 0.0
    %3714 = vmatpush1.msra.mxu0 0.0
    %3715 = vmatprep.subr.mxu0 0.0
    %3716 = vmatpush1.msra.mxu0 0.0
    %3717 = vmatprep.subr.mxu0 0.0
    %3718 = vmatpush1.msra.mxu0 0.0
    %3719 = vmatprep.subr.mxu0 0.0
    %3720 = vmatpush1.msra.mxu0 0.0
    %3721 = vmatprep.subr.mxu0 0.0
    %3722 = vmatpush1.msra.mxu0 0.0
    %3723 = vmatprep.subr.mxu0 0.0
    %3724 = vmatpush1.msra.mxu0 0.0
    %3725 = vmatprep.subr.mxu0 0.0
    %3726 = vmatpush1.msra.mxu0 0.0
    %3727 = vmatprep.subr.mxu0 0.0
    %3728 = vmatpush1.msra.mxu0 0.0
    %3729 = vmatprep.subr.mxu0 0.0
    %3730 = vmatpush1.msra.mxu0 0.0
    %3731 = vmatprep.subr.mxu0 0.0
    %3732 = vmatpush1.msra.mxu0 0.0
    %3733 = vmatprep.subr.mxu0 0.0
    %3734 = vmatpush1.msra.mxu0 0.0
    %3735 = vmatprep.subr.mxu0 0.0
    %3736 = vmatpush1.msra.mxu0 0.0
    %3737 = vmatprep.subr.mxu0 0.0
    %3738 = vmatpush1.msra.mxu0 0.0
    %3739 = vmatprep.subr.mxu0 0.0
    %3740 = vmatpush1.msra.mxu0 0.0
    %3741 = vmatprep.subr.mxu0 0.0
    %3742 = vmatpush1.msra.mxu0 0.0
    %3743 = vmatprep.subr.mxu0 0.0
    %3744 = vmatpush1.msra.mxu0 0.0
    %3745 = vmatprep.subr.mxu0 0.0
    %3746 = vmatpush1.msra.mxu0 0.0
    %3747 = vmatprep.subr.mxu0 0.0
    %3748 = vmatpush1.msra.mxu0 0.0
    %3749 = vmatprep.subr.mxu0 0.0
    %3750 = vmatpush1.msra.mxu0 0.0
    %3751 = vmatprep.subr.mxu0 0.0
    %3752 = vmatpush1.msra.mxu0 0.0
    %3753 = vmatprep.subr.mxu0 0.0
    %3754 = vmatpush1.msra.mxu0 0.0
    %3755 = vmatprep.subr.mxu0 0.0
    %3756 = vmatpush1.msra.mxu0 0.0
    %3757 = vmatprep.subr.mxu0 0.0
    %3758 = vmatpush1.msra.mxu0 0.0
    %3759 = vmatprep.subr.mxu0 0.0
    %3760 = vmatpush1.msra.mxu0 0.0
    %3761 = vmatprep.subr.mxu0 0.0
    %3762 = vmatpush1.msra.mxu0 0.0
    %3763 = vmatprep.subr.mxu0 0.0
    %3764 = vmatpush1.msra.mxu0 0.0
    %3765 = vmatprep.subr.mxu0 0.0
    %3766 = vmatpush1.msra.mxu0 0.0
    %3767 = vmatprep.subr.mxu0 0.0
    %3768 = vmatpush1.msra.mxu0 0.0
    %3769 = vmatprep.subr.mxu0 0.0
    %3770 = vmatpush1.msra.mxu0 0.0
    %3771 = vmatprep.mubr.f32.mxu0 0.0
    %3772 = vmatmul.mubr.f32.gmra.mrb[0].mxu0 %v3705
    %v3773 = vpop.f32.mrb[0].mxu0
    %v3774 = vadd.f32 0.0, %v3773
    %v3775 = vpop.f32.mrb[0].mxu0
    %3776 = vdwg.mxu0
    %3777 = vrot.lane.b32.xlu0 %v2649, 120
    %v3778 = vpop.permute.xlu0 %3777
    %3779 = vrot.lane.b32.xlu0 %v2649, 88
    %v3780 = vpop.permute.xlu0 %3779
    %v3781 = vsel %vm318, %v3778, 0
    %v3783 = vsel %vm318, %v3780, 0
    %3785 = vmatprep.subr.mxu0 0.0
    %3786 = vmatpush1.xpose.msra.mxu0 %v3783
    %3787 = vmatprep.subr.mxu0 0.0
    %3788 = vmatpush1.xpose.msra.mxu0 0.0
    %3789 = vmatprep.subr.mxu0 0.0
    %3790 = vmatpush1.xpose.msra.mxu0 0.0
    %3791 = vmatprep.subr.mxu0 0.0
    %3792 = vmatpush1.xpose.msra.mxu0 0.0
    %3793 = vmatprep.subr.mxu0 0.0
    %3794 = vmatpush1.xpose.msra.mxu0 0.0
    %3795 = vmatprep.subr.mxu0 0.0
    %3796 = vmatpush1.xpose.msra.mxu0 0.0
    %3797 = vmatprep.subr.mxu0 0.0
    %3798 = vmatpush1.xpose.msra.mxu0 0.0
    %3799 = vmatprep.subr.mxu0 0.0
    %3800 = vmatpush1.xpose.msra.mxu0 0.0
    %3801 = vmatprep.subr.mxu0 0.0
    %3802 = vmatpush1.xpose.msra.mxu0 0.0
    %3803 = vmatprep.subr.mxu0 0.0
    %3804 = vmatpush1.xpose.msra.mxu0 0.0
    %3805 = vmatprep.subr.mxu0 0.0
    %3806 = vmatpush1.xpose.msra.mxu0 0.0
    %3807 = vmatprep.subr.mxu0 0.0
    %3808 = vmatpush1.xpose.msra.mxu0 0.0
    %3809 = vmatprep.subr.mxu0 0.0
    %3810 = vmatpush1.xpose.msra.mxu0 0.0
    %3811 = vmatprep.subr.mxu0 0.0
    %3812 = vmatpush1.xpose.msra.mxu0 0.0
    %3813 = vmatprep.subr.mxu0 0.0
    %3814 = vmatpush1.xpose.msra.mxu0 0.0
    %3815 = vmatprep.subr.mxu0 0.0
    %3816 = vmatpush1.xpose.msra.mxu0 0.0
    %3817 = vmatprep.subr.mxu0 0.0
    %3818 = vmatpush1.xpose.msra.mxu0 0.0
    %3819 = vmatprep.subr.mxu0 0.0
    %3820 = vmatpush1.xpose.msra.mxu0 0.0
    %3821 = vmatprep.subr.mxu0 0.0
    %3822 = vmatpush1.xpose.msra.mxu0 0.0
    %3823 = vmatprep.subr.mxu0 0.0
    %3824 = vmatpush1.xpose.msra.mxu0 0.0
    %3825 = vmatprep.subr.mxu0 0.0
    %3826 = vmatpush1.xpose.msra.mxu0 0.0
    %3827 = vmatprep.subr.mxu0 0.0
    %3828 = vmatpush1.xpose.msra.mxu0 0.0
    %3829 = vmatprep.subr.mxu0 0.0
    %3830 = vmatpush1.xpose.msra.mxu0 0.0
    %3831 = vmatprep.subr.mxu0 0.0
    %3832 = vmatpush1.xpose.msra.mxu0 0.0
    %3833 = vmatprep.subr.mxu0 0.0
    %3834 = vmatpush1.xpose.msra.mxu0 0.0
    %3835 = vmatprep.subr.mxu0 0.0
    %3836 = vmatpush1.xpose.msra.mxu0 0.0
    %3837 = vmatprep.subr.mxu0 0.0
    %3838 = vmatpush1.xpose.msra.mxu0 0.0
    %3839 = vmatprep.subr.mxu0 0.0
    %3840 = vmatpush1.xpose.msra.mxu0 0.0
    %3841 = vmatprep.subr.mxu0 0.0
    %3842 = vmatpush1.xpose.msra.mxu0 0.0
    %3843 = vmatprep.subr.mxu0 0.0
    %3844 = vmatpush1.xpose.msra.mxu0 0.0
    %3845 = vmatprep.subr.mxu0 0.0
    %3846 = vmatpush1.xpose.msra.mxu0 0.0
    %3847 = vmatprep.subr.mxu0 0.0
    %3848 = vmatpush1.xpose.msra.mxu0 0.0
    %3849 = vmatprep.mubr.f32.mxu0 0.0
    %3850 = vmatmul.mubr.f32.gmra.mrb[0].mxu0 %v3781
    %v3851 = vpop.f32.mrb[0].mxu0
    %v3852 = vadd.f32 %v2653, %v3851
    %v3853 = vpop.f32.mrb[0].mxu0
    %3854 = vdwg.mxu0
    %v3855 = vsel %vm318, %v3852, -inf
    %3856 = vmax.xlane.f32.xlu0 %v3855
    %v3857 = vpop.xlane.xlu0 %3856
    %v3858 = vsub.f32 %v3852, %v3857
    %v3859 = vmul.f32 %v3858, 1.442695
    %v3860 = vpow.pop %v3859
    %v3861 = vsel %vm318, %v3860, 0.0
    %3862 = vadd.xlane.f32.xlu0 %v3861
    %v3863 = vpop.xlane.xlu0 %3862
    %v3864 = vrcp.pop %v3863
    %v3865 = vmul.f32 %v3860, %v3864
    %3866 = vrot.lane.b32.xlu0 %v2649, 56
    %v3867 = vpop.permute.xlu0 %3866
    %v3870 = vsel %vm318, %v3865, 0
    %3872 = vmatprep.subr.mxu0 0.0
    %3873 = vmatpush1.msra.mxu0 %v3867
    %3874 = vmatprep.subr.mxu0 0.0
    %3875 = vmatpush1.msra.mxu0 0.0
    %3876 = vmatprep.subr.mxu0 0.0
    %3877 = vmatpush1.msra.mxu0 0.0
    %3878 = vmatprep.subr.mxu0 0.0
    %3879 = vmatpush1.msra.mxu0 0.0
    %3880 = vmatprep.subr.mxu0 0.0
    %3881 = vmatpush1.msra.mxu0 0.0
    %3882 = vmatprep.subr.mxu0 0.0
    %3883 = vmatpush1.msra.mxu0 0.0
    %3884 = vmatprep.subr.mxu0 0.0
    %3885 = vmatpush1.msra.mxu0 0.0
    %3886 = vmatprep.subr.mxu0 0.0
    %3887 = vmatpush1.msra.mxu0 0.0
    %3888 = vmatprep.subr.mxu0 0.0
    %3889 = vmatpush1.msra.mxu0 0.0
    %3890 = vmatprep.subr.mxu0 0.0
    %3891 = vmatpush1.msra.mxu0 0.0
    %3892 = vmatprep.subr.mxu0 0.0
    %3893 = vmatpush1.msra.mxu0 0.0
    %3894 = vmatprep.subr.mxu0 0.0
    %3895 = vmatpush1.msra.mxu0 0.0
    %3896 = vmatprep.subr.mxu0 0.0
    %3897 = vmatpush1.msra.mxu0 0.0
    %3898 = vmatprep.subr.mxu0 0.0
    %3899 = vmatpush1.msra.mxu0 0.0
    %3900 = vmatprep.subr.mxu0 0.0
    %3901 = vmatpush1.msra.mxu0 0.0
    %3902 = vmatprep.subr.mxu0 0.0
    %3903 = vmatpush1.msra.mxu0 0.0
    %3904 = vmatprep.subr.mxu0 0.0
    %3905 = vmatpush1.msra.mxu0 0.0
    %3906 = vmatprep.subr.mxu0 0.0
    %3907 = vmatpush1.msra.mxu0 0.0
    %3908 = vmatprep.subr.mxu0 0.0
    %3909 = vmatpush1.msra.mxu0 0.0
    %3910 = vmatprep.subr.mxu0 0.0
    %3911 = vmatpush1.msra.mxu0 0.0
    %3912 = vmatprep.subr.mxu0 0.0
    %3913 = vmatpush1.msra.mxu0 0.0
    %3914 = vmatprep.subr.mxu0 0.0
    %3915 = vmatpush1.msra.mxu0 0.0
    %3916 = vmatprep.subr.mxu0 0.0
    %3917 = vmatpush1.msra.mxu0 0.0
    %3918 = vmatprep.subr.mxu0 0.0
    %3919 = vmatpush1.msra.mxu0 0.0
    %3920 = vmatprep.subr.mxu0 0.0
    %3921 = vmatpush1.msra.mxu0 0.0
    %3922 = vmatprep.subr.mxu0 0.0
    %3923 = vmatpush1.msra.mxu0 0.0
    %3924 = vmatprep.subr.mxu0 0.0
    %3925 = vmatpush1.msra.mxu0 0.0
    %3926 = vmatprep.subr.mxu0 0.0
    %3927 = vmatpush1.msra.mxu0 0.0
    %3928 = vmatprep.subr.mxu0 0.0
    %3929 = vmatpush1.msra.mxu0 0.0
    %3930 = vmatprep.subr.mxu0 0.0
    %3931 = vmatpush1.msra.mxu0 0.0
    %3932 = vmatprep.subr.mxu0 0.0
    %3933 = vmatpush1.msra.mxu0 0.0
    %3934 = vmatprep.subr.mxu0 0.0
    %3935 = vmatpush1.msra.mxu0 0.0
    %3936 = vmatprep.mubr.f32.mxu0 0.0
    %3937 = vmatmul.mubr.f32.gmra.mrb[0].mxu0 %v3870
    %v3938 = vpop.f32.mrb[0].mxu0
    %v3939 = vadd.f32 0.0, %v3938
    %v3940 = vpop.f32.mrb[0].mxu0
    %3941 = vdwg.mxu0
    %v3943 = vsel %vm318, %v3939, 0
    %3945 = vmatprep.subr.mxu0 0.0
    %3946 = vmatpush1.msra.mxu0 %v2657
    %3947 = vmatprep.subr.mxu0 0.0
    %3948 = vmatpush1.msra.mxu0 0.0
    %3949 = vmatprep.subr.mxu0 0.0
    %3950 = vmatpush1.msra.mxu0 0.0
    %3951 = vmatprep.subr.mxu0 0.0
    %3952 = vmatpush1.msra.mxu0 0.0
    %3953 = vmatprep.subr.mxu0 0.0
    %3954 = vmatpush1.msra.mxu0 0.0
    %3955 = vmatprep.subr.mxu0 0.0
    %3956 = vmatpush1.msra.mxu0 0.0
    %3957 = vmatprep.subr.mxu0 0.0
    %3958 = vmatpush1.msra.mxu0 0.0
    %3959 = vmatprep.subr.mxu0 0.0
    %3960 = vmatpush1.msra.mxu0 0.0
    %3961 = vmatprep.subr.mxu0 0.0
    %3962 = vmatpush1.msra.mxu0 0.0
    %3963 = vmatprep.subr.mxu0 0.0
    %3964 = vmatpush1.msra.mxu0 0.0
    %3965 = vmatprep.subr.mxu0 0.0
    %3966 = vmatpush1.msra.mxu0 0.0
    %3967 = vmatprep.subr.mxu0 0.0
    %3968 = vmatpush1.msra.mxu0 0.0
    %3969 = vmatprep.subr.mxu0 0.0
    %3970 = vmatpush1.msra.mxu0 0.0
    %3971 = vmatprep.subr.mxu0 0.0
    %3972 = vmatpush1.msra.mxu0 0.0
    %3973 = vmatprep.subr.mxu0 0.0
    %3974 = vmatpush1.msra.mxu0 0.0
    %3975 = vmatprep.subr.mxu0 0.0
    %3976 = vmatpush1.msra.mxu0 0.0
    %3977 = vmatprep.subr.mxu0 0.0
    %3978 = vmatpush1.msra.mxu0 0.0
    %3979 = vmatprep.subr.mxu0 0.0
    %3980 = vmatpush1.msra.mxu0 0.0
    %3981 = vmatprep.subr.mxu0 0.0
    %3982 = vmatpush1.msra.mxu0 0.0
    %3983 = vmatprep.subr.mxu0 0.0
    %3984 = vmatpush1.msra.mxu0 0.0
    %3985 = vmatprep.subr.mxu0 0.0
    %3986 = vmatpush1.msra.mxu0 0.0
    %3987 = vmatprep.subr.mxu0 0.0
    %3988 = vmatpush1.msra.mxu0 0.0
    %3989 = vmatprep.subr.mxu0 0.0
    %3990 = vmatpush1.msra.mxu0 0.0
    %3991 = vmatprep.subr.mxu0 0.0
    %3992 = vmatpush1.msra.mxu0 0.0
    %3993 = vmatprep.subr.mxu0 0.0
    %3994 = vmatpush1.msra.mxu0 0.0
    %3995 = vmatprep.subr.mxu0 0.0
    %3996 = vmatpush1.msra.mxu0 0.0
    %3997 = vmatprep.subr.mxu0 0.0
    %3998 = vmatpush1.msra.mxu0 0.0
    %3999 = vmatprep.subr.mxu0 0.0
    %4000 = vmatpush1.msra.mxu0 0.0
    %4001 = vmatprep.subr.mxu0 0.0
    %4002 = vmatpush1.msra.mxu0 0.0
    %4003 = vmatprep.subr.mxu0 0.0
    %4004 = vmatpush1.msra.mxu0 0.0
    %4005 = vmatprep.subr.mxu0 0.0
    %4006 = vmatpush1.msra.mxu0 0.0
    %4007 = vmatprep.subr.mxu0 0.0
    %4008 = vmatpush1.msra.mxu0 0.0
    %4009 = vmatprep.mubr.f32.mxu0 0.0
    %4010 = vmatmul.mubr.f32.gmra.mrb[0].mxu0 %v3943
    %v4011 = vpop.f32.mrb[0].mxu0
    %v4012 = vadd.f32 0.0, %v4011
    %v4013 = vpop.f32.mrb[0].mxu0
    %4014 = vdwg.mxu0
    %v4016 = vsel %vm318, %v3774, 0
    %4018 = vmatprep.subr.mxu0 0.0
    %4019 = vmatpush1.msra.mxu0 %v2656
    %4020 = vmatprep.subr.mxu0 0.0
    %4021 = vmatpush1.msra.mxu0 0.0
    %4022 = vmatprep.subr.mxu0 0.0
    %4023 = vmatpush1.msra.mxu0 0.0
    %4024 = vmatprep.subr.mxu0 0.0
    %4025 = vmatpush1.msra.mxu0 0.0
    %4026 = vmatprep.subr.mxu0 0.0
    %4027 = vmatpush1.msra.mxu0 0.0
    %4028 = vmatprep.subr.mxu0 0.0
    %4029 = vmatpush1.msra.mxu0 0.0
    %4030 = vmatprep.subr.mxu0 0.0
    %4031 = vmatpush1.msra.mxu0 0.0
    %4032 = vmatprep.subr.mxu0 0.0
    %4033 = vmatpush1.msra.mxu0 0.0
    %4034 = vmatprep.subr.mxu0 0.0
    %4035 = vmatpush1.msra.mxu0 0.0
    %4036 = vmatprep.subr.mxu0 0.0
    %4037 = vmatpush1.msra.mxu0 0.0
    %4038 = vmatprep.subr.mxu0 0.0
    %4039 = vmatpush1.msra.mxu0 0.0
    %4040 = vmatprep.subr.mxu0 0.0
    %4041 = vmatpush1.msra.mxu0 0.0
    %4042 = vmatprep.subr.mxu0 0.0
    %4043 = vmatpush1.msra.mxu0 0.0
    %4044 = vmatprep.subr.mxu0 0.0
    %4045 = vmatpush1.msra.mxu0 0.0
    %4046 = vmatprep.subr.mxu0 0.0
    %4047 = vmatpush1.msra.mxu0 0.0
    %4048 = vmatprep.subr.mxu0 0.0
    %4049 = vmatpush1.msra.mxu0 0.0
    %4050 = vmatprep.subr.mxu0 0.0
    %4051 = vmatpush1.msra.mxu0 0.0
    %4052 = vmatprep.subr.mxu0 0.0
    %4053 = vmatpush1.msra.mxu0 0.0
    %4054 = vmatprep.subr.mxu0 0.0
    %4055 = vmatpush1.msra.mxu0 0.0
    %4056 = vmatprep.subr.mxu0 0.0
    %4057 = vmatpush1.msra.mxu0 0.0
    %4058 = vmatprep.subr.mxu0 0.0
    %4059 = vmatpush1.msra.mxu0 0.0
    %4060 = vmatprep.subr.mxu0 0.0
    %4061 = vmatpush1.msra.mxu0 0.0
    %4062 = vmatprep.subr.mxu0 0.0
    %4063 = vmatpush1.msra.mxu0 0.0
    %4064 = vmatprep.subr.mxu0 0.0
    %4065 = vmatpush1.msra.mxu0 0.0
    %4066 = vmatprep.subr.mxu0 0.0
    %4067 = vmatpush1.msra.mxu0 0.0
    %4068 = vmatprep.subr.mxu0 0.0
    %4069 = vmatpush1.msra.mxu0 0.0
    %4070 = vmatprep.subr.mxu0 0.0
    %4071 = vmatpush1.msra.mxu0 0.0
    %4072 = vmatprep.subr.mxu0 0.0
    %4073 = vmatpush1.msra.mxu0 0.0
    %4074 = vmatprep.subr.mxu0 0.0
    %4075 = vmatpush1.msra.mxu0 0.0
    %4076 = vmatprep.subr.mxu0 0.0
    %4077 = vmatpush1.msra.mxu0 0.0
    %4078 = vmatprep.subr.mxu0 0.0
    %4079 = vmatpush1.msra.mxu0 0.0
    %4080 = vmatprep.subr.mxu0 0.0
    %4081 = vmatpush1.msra.mxu0 0.0
    %4082 = vmatprep.mubr.f32.mxu0 0.0
    %4083 = vmatmul.mubr.f32.gmra.mrb[0].mxu0 %v4016
    %v4084 = vpop.f32.mrb[0].mxu0
    %v4085 = vadd.f32 %v4012, %v4084
    %v4086 = vpop.f32.mrb[0].mxu0
    %4087 = vdwg.mxu0
    %4088 = vrot.lane.b32.xlu0 %v2649, 112
    %v4089 = vpop.permute.xlu0 %4088
    %4090 = vrot.lane.b32.xlu0 %v2649, 80
    %v4091 = vpop.permute.xlu0 %4090
    %v4092 = vsel %vm318, %v4089, 0
    %v4094 = vsel %vm318, %v4091, 0
    %4096 = vmatprep.subr.mxu0 0.0
    %4097 = vmatpush1.xpose.msra.mxu0 %v4094
    %4098 = vmatprep.subr.mxu0 0.0
    %4099 = vmatpush1.xpose.msra.mxu0 0.0
    %4100 = vmatprep.subr.mxu0 0.0
    %4101 = vmatpush1.xpose.msra.mxu0 0.0
    %4102 = vmatprep.subr.mxu0 0.0
    %4103 = vmatpush1.xpose.msra.mxu0 0.0
    %4104 = vmatprep.subr.mxu0 0.0
    %4105 = vmatpush1.xpose.msra.mxu0 0.0
    %4106 = vmatprep.subr.mxu0 0.0
    %4107 = vmatpush1.xpose.msra.mxu0 0.0
    %4108 = vmatprep.subr.mxu0 0.0
    %4109 = vmatpush1.xpose.msra.mxu0 0.0
    %4110 = vmatprep.subr.mxu0 0.0
    %4111 = vmatpush1.xpose.msra.mxu0 0.0
    %4112 = vmatprep.subr.mxu0 0.0
    %4113 = vmatpush1.xpose.msra.mxu0 0.0
    %4114 = vmatprep.subr.mxu0 0.0
    %4115 = vmatpush1.xpose.msra.mxu0 0.0
    %4116 = vmatprep.subr.mxu0 0.0
    %4117 = vmatpush1.xpose.msra.mxu0 0.0
    %4118 = vmatprep.subr.mxu0 0.0
    %4119 = vmatpush1.xpose.msra.mxu0 0.0
    %4120 = vmatprep.subr.mxu0 0.0
    %4121 = vmatpush1.xpose.msra.mxu0 0.0
    %4122 = vmatprep.subr.mxu0 0.0
    %4123 = vmatpush1.xpose.msra.mxu0 0.0
    %4124 = vmatprep.subr.mxu0 0.0
    %4125 = vmatpush1.xpose.msra.mxu0 0.0
    %4126 = vmatprep.subr.mxu0 0.0
    %4127 = vmatpush1.xpose.msra.mxu0 0.0
    %4128 = vmatprep.subr.mxu0 0.0
    %4129 = vmatpush1.xpose.msra.mxu0 0.0
    %4130 = vmatprep.subr.mxu0 0.0
    %4131 = vmatpush1.xpose.msra.mxu0 0.0
    %4132 = vmatprep.subr.mxu0 0.0
    %4133 = vmatpush1.xpose.msra.mxu0 0.0
    %4134 = vmatprep.subr.mxu0 0.0
    %4135 = vmatpush1.xpose.msra.mxu0 0.0
    %4136 = vmatprep.subr.mxu0 0.0
    %4137 = vmatpush1.xpose.msra.mxu0 0.0
    %4138 = vmatprep.subr.mxu0 0.0
    %4139 = vmatpush1.xpose.msra.mxu0 0.0
    %4140 = vmatprep.subr.mxu0 0.0
    %4141 = vmatpush1.xpose.msra.mxu0 0.0
    %4142 = vmatprep.subr.mxu0 0.0
    %4143 = vmatpush1.xpose.msra.mxu0 0.0
    %4144 = vmatprep.subr.mxu0 0.0
    %4145 = vmatpush1.xpose.msra.mxu0 0.0
    %4146 = vmatprep.subr.mxu0 0.0
    %4147 = vmatpush1.xpose.msra.mxu0 0.0
    %4148 = vmatprep.subr.mxu0 0.0
    %4149 = vmatpush1.xpose.msra.mxu0 0.0
    %4150 = vmatprep.subr.mxu0 0.0
    %4151 = vmatpush1.xpose.msra.mxu0 0.0
    %4152 = vmatprep.subr.mxu0 0.0
    %4153 = vmatpush1.xpose.msra.mxu0 0.0
    %4154 = vmatprep.subr.mxu0 0.0
    %4155 = vmatpush1.xpose.msra.mxu0 0.0
    %4156 = vmatprep.subr.mxu0 0.0
    %4157 = vmatpush1.xpose.msra.mxu0 0.0
    %4158 = vmatprep.subr.mxu0 0.0
    %4159 = vmatpush1.xpose.msra.mxu0 0.0
    %4160 = vmatprep.mubr.f32.mxu0 0.0
    %4161 = vmatmul.mubr.f32.gmra.mrb[0].mxu0 %v4092
    %v4162 = vpop.f32.mrb[0].mxu0
    %v4163 = vadd.f32 %v2654, %v4162
    %v4164 = vpop.f32.mrb[0].mxu0
    %4165 = vdwg.mxu0
    %v4166 = vsel %vm318, %v4163, -inf
    %4167 = vmax.xlane.f32.xlu0 %v4166
    %v4168 = vpop.xlane.xlu0 %4167
    %v4169 = vsub.f32 %v4163, %v4168
    %v4170 = vmul.f32 %v4169, 1.442695
    %v4171 = vpow.pop %v4170
    %v4172 = vsel %vm318, %v4171, 0.0
    %4173 = vadd.xlane.f32.xlu0 %v4172
    %v4174 = vpop.xlane.xlu0 %4173
    %v4175 = vrcp.pop %v4174
    %v4176 = vmul.f32 %v4171, %v4175
    %4177 = vrot.lane.b32.xlu0 %v2649, 48
    %v4178 = vpop.permute.xlu0 %4177
    %v4181 = vsel %vm318, %v4176, 0
    %4183 = vmatprep.subr.mxu0 0.0
    %4184 = vmatpush1.msra.mxu0 %v4178
    %4185 = vmatprep.subr.mxu0 0.0
    %4186 = vmatpush1.msra.mxu0 0.0
    %4187 = vmatprep.subr.mxu0 0.0
    %4188 = vmatpush1.msra.mxu0 0.0
    %4189 = vmatprep.subr.mxu0 0.0
    %4190 = vmatpush1.msra.mxu0 0.0
    %4191 = vmatprep.subr.mxu0 0.0
    %4192 = vmatpush1.msra.mxu0 0.0
    %4193 = vmatprep.subr.mxu0 0.0
    %4194 = vmatpush1.msra.mxu0 0.0
    %4195 = vmatprep.subr.mxu0 0.0
    %4196 = vmatpush1.msra.mxu0 0.0
    %4197 = vmatprep.subr.mxu0 0.0
    %4198 = vmatpush1.msra.mxu0 0.0
    %4199 = vmatprep.subr.mxu0 0.0
    %4200 = vmatpush1.msra.mxu0 0.0
    %4201 = vmatprep.subr.mxu0 0.0
    %4202 = vmatpush1.msra.mxu0 0.0
    %4203 = vmatprep.subr.mxu0 0.0
    %4204 = vmatpush1.msra.mxu0 0.0
    %4205 = vmatprep.subr.mxu0 0.0
    %4206 = vmatpush1.msra.mxu0 0.0
    %4207 = vmatprep.subr.mxu0 0.0
    %4208 = vmatpush1.msra.mxu0 0.0
    %4209 = vmatprep.subr.mxu0 0.0
    %4210 = vmatpush1.msra.mxu0 0.0
    %4211 = vmatprep.subr.mxu0 0.0
    %4212 = vmatpush1.msra.mxu0 0.0
    %4213 = vmatprep.subr.mxu0 0.0
    %4214 = vmatpush1.msra.mxu0 0.0
    %4215 = vmatprep.subr.mxu0 0.0
    %4216 = vmatpush1.msra.mxu0 0.0
    %4217 = vmatprep.subr.mxu0 0.0
    %4218 = vmatpush1.msra.mxu0 0.0
    %4219 = vmatprep.subr.mxu0 0.0
    %4220 = vmatpush1.msra.mxu0 0.0
    %4221 = vmatprep.subr.mxu0 0.0
    %4222 = vmatpush1.msra.mxu0 0.0
    %4223 = vmatprep.subr.mxu0 0.0
    %4224 = vmatpush1.msra.mxu0 0.0
    %4225 = vmatprep.subr.mxu0 0.0
    %4226 = vmatpush1.msra.mxu0 0.0
    %4227 = vmatprep.subr.mxu0 0.0
    %4228 = vmatpush1.msra.mxu0 0.0
    %4229 = vmatprep.subr.mxu0 0.0
    %4230 = vmatpush1.msra.mxu0 0.0
    %4231 = vmatprep.subr.mxu0 0.0
    %4232 = vmatpush1.msra.mxu0 0.0
    %4233 = vmatprep.subr.mxu0 0.0
    %4234 = vmatpush1.msra.mxu0 0.0
    %4235 = vmatprep.subr.mxu0 0.0
    %4236 = vmatpush1.msra.mxu0 0.0
    %4237 = vmatprep.subr.mxu0 0.0
    %4238 = vmatpush1.msra.mxu0 0.0
    %4239 = vmatprep.subr.mxu0 0.0
    %4240 = vmatpush1.msra.mxu0 0.0
    %4241 = vmatprep.subr.mxu0 0.0
    %4242 = vmatpush1.msra.mxu0 0.0
    %4243 = vmatprep.subr.mxu0 0.0
    %4244 = vmatpush1.msra.mxu0 0.0
    %4245 = vmatprep.subr.mxu0 0.0
    %4246 = vmatpush1.msra.mxu0 0.0
    %4247 = vmatprep.mubr.f32.mxu0 0.0
    %4248 = vmatmul.mubr.f32.gmra.mrb[0].mxu0 %v4181
    %v4249 = vpop.f32.mrb[0].mxu0
    %v4250 = vadd.f32 0.0, %v4249
    %v4251 = vpop.f32.mrb[0].mxu0
    %4252 = vdwg.mxu0
    %v4254 = vsel %vm318, %v4250, 0
    %4256 = vmatprep.subr.mxu0 0.0
    %4257 = vmatpush1.msra.mxu0 %v2658
    %4258 = vmatprep.subr.mxu0 0.0
    %4259 = vmatpush1.msra.mxu0 0.0
    %4260 = vmatprep.subr.mxu0 0.0
    %4261 = vmatpush1.msra.mxu0 0.0
    %4262 = vmatprep.subr.mxu0 0.0
    %4263 = vmatpush1.msra.mxu0 0.0
    %4264 = vmatprep.subr.mxu0 0.0
    %4265 = vmatpush1.msra.mxu0 0.0
    %4266 = vmatprep.subr.mxu0 0.0
    %4267 = vmatpush1.msra.mxu0 0.0
    %4268 = vmatprep.subr.mxu0 0.0
    %4269 = vmatpush1.msra.mxu0 0.0
    %4270 = vmatprep.subr.mxu0 0.0
    %4271 = vmatpush1.msra.mxu0 0.0
    %4272 = vmatprep.subr.mxu0 0.0
    %4273 = vmatpush1.msra.mxu0 0.0
    %4274 = vmatprep.subr.mxu0 0.0
    %4275 = vmatpush1.msra.mxu0 0.0
    %4276 = vmatprep.subr.mxu0 0.0
    %4277 = vmatpush1.msra.mxu0 0.0
    %4278 = vmatprep.subr.mxu0 0.0
    %4279 = vmatpush1.msra.mxu0 0.0
    %4280 = vmatprep.subr.mxu0 0.0
    %4281 = vmatpush1.msra.mxu0 0.0
    %4282 = vmatprep.subr.mxu0 0.0
    %4283 = vmatpush1.msra.mxu0 0.0
    %4284 = vmatprep.subr.mxu0 0.0
    %4285 = vmatpush1.msra.mxu0 0.0
    %4286 = vmatprep.subr.mxu0 0.0
    %4287 = vmatpush1.msra.mxu0 0.0
    %4288 = vmatprep.subr.mxu0 0.0
    %4289 = vmatpush1.msra.mxu0 0.0
    %4290 = vmatprep.subr.mxu0 0.0
    %4291 = vmatpush1.msra.mxu0 0.0
    %4292 = vmatprep.subr.mxu0 0.0
    %4293 = vmatpush1.msra.mxu0 0.0
    %4294 = vmatprep.subr.mxu0 0.0
    %4295 = vmatpush1.msra.mxu0 0.0
    %4296 = vmatprep.subr.mxu0 0.0
    %4297 = vmatpush1.msra.mxu0 0.0
    %4298 = vmatprep.subr.mxu0 0.0
    %4299 = vmatpush1.msra.mxu0 0.0
    %4300 = vmatprep.subr.mxu0 0.0
    %4301 = vmatpush1.msra.mxu0 0.0
    %4302 = vmatprep.subr.mxu0 0.0
    %4303 = vmatpush1.msra.mxu0 0.0
    %4304 = vmatprep.subr.mxu0 0.0
    %4305 = vmatpush1.msra.mxu0 0.0
    %4306 = vmatprep.subr.mxu0 0.0
    %4307 = vmatpush1.msra.mxu0 0.0
    %4308 = vmatprep.subr.mxu0 0.0
    %4309 = vmatpush1.msra.mxu0 0.0
    %4310 = vmatprep.subr.mxu0 0.0
    %4311 = vmatpush1.msra.mxu0 0.0
    %4312 = vmatprep.subr.mxu0 0.0
    %4313 = vmatpush1.msra.mxu0 0.0
    %4314 = vmatprep.subr.mxu0 0.0
    %4315 = vmatpush1.msra.mxu0 0.0
    %4316 = vmatprep.subr.mxu0 0.0
    %4317 = vmatpush1.msra.mxu0 0.0
    %4318 = vmatprep.subr.mxu0 0.0
    %4319 = vmatpush1.msra.mxu0 0.0
    %4320 = vmatprep.mubr.f32.mxu0 0.0
    %4321 = vmatmul.mubr.f32.gmra.mrb[0].mxu0 %v4254
    %v4322 = vpop.f32.mrb[0].mxu0
    %v4323 = vadd.f32 0.0, %v4322
    %v4324 = vpop.f32.mrb[0].mxu0
    %4325 = vdwg.mxu0
    %v4326 = vadd.f32 %v4085, %v4323
    %4327 = vrot.lane.b32.xlu0 %v2649, 104
    %v4328 = vpop.permute.xlu0 %4327
    %4329 = vrot.lane.b32.xlu0 %v2649, 72
    %v4330 = vpop.permute.xlu0 %4329
    %v4331 = vsel %vm318, %v4328, 0
    %v4333 = vsel %vm318, %v4330, 0
    %4335 = vmatprep.subr.mxu0 0.0
    %4336 = vmatpush1.xpose.msra.mxu0 %v4333
    %4337 = vmatprep.subr.mxu0 0.0
    %4338 = vmatpush1.xpose.msra.mxu0 0.0
    %4339 = vmatprep.subr.mxu0 0.0
    %4340 = vmatpush1.xpose.msra.mxu0 0.0
    %4341 = vmatprep.subr.mxu0 0.0
    %4342 = vmatpush1.xpose.msra.mxu0 0.0
    %4343 = vmatprep.subr.mxu0 0.0
    %4344 = vmatpush1.xpose.msra.mxu0 0.0
    %4345 = vmatprep.subr.mxu0 0.0
    %4346 = vmatpush1.xpose.msra.mxu0 0.0
    %4347 = vmatprep.subr.mxu0 0.0
    %4348 = vmatpush1.xpose.msra.mxu0 0.0
    %4349 = vmatprep.subr.mxu0 0.0
    %4350 = vmatpush1.xpose.msra.mxu0 0.0
    %4351 = vmatprep.subr.mxu0 0.0
    %4352 = vmatpush1.xpose.msra.mxu0 0.0
    %4353 = vmatprep.subr.mxu0 0.0
    %4354 = vmatpush1.xpose.msra.mxu0 0.0
    %4355 = vmatprep.subr.mxu0 0.0
    %4356 = vmatpush1.xpose.msra.mxu0 0.0
    %4357 = vmatprep.subr.mxu0 0.0
    %4358 = vmatpush1.xpose.msra.mxu0 0.0
    %4359 = vmatprep.subr.mxu0 0.0
    %4360 = vmatpush1.xpose.msra.mxu0 0.0
    %4361 = vmatprep.subr.mxu0 0.0
    %4362 = vmatpush1.xpose.msra.mxu0 0.0
    %4363 = vmatprep.subr.mxu0 0.0
    %4364 = vmatpush1.xpose.msra.mxu0 0.0
    %4365 = vmatprep.subr.mxu0 0.0
    %4366 = vmatpush1.xpose.msra.mxu0 0.0
    %4367 = vmatprep.subr.mxu0 0.0
    %4368 = vmatpush1.xpose.msra.mxu0 0.0
    %4369 = vmatprep.subr.mxu0 0.0
    %4370 = vmatpush1.xpose.msra.mxu0 0.0
    %4371 = vmatprep.subr.mxu0 0.0
    %4372 = vmatpush1.xpose.msra.mxu0 0.0
    %4373 = vmatprep.subr.mxu0 0.0
    %4374 = vmatpush1.xpose.msra.mxu0 0.0
    %4375 = vmatprep.subr.mxu0 0.0
    %4376 = vmatpush1.xpose.msra.mxu0 0.0
    %4377 = vmatprep.subr.mxu0 0.0
    %4378 = vmatpush1.xpose.msra.mxu0 0.0
    %4379 = vmatprep.subr.mxu0 0.0
    %4380 = vmatpush1.xpose.msra.mxu0 0.0
    %4381 = vmatprep.subr.mxu0 0.0
    %4382 = vmatpush1.xpose.msra.mxu0 0.0
    %4383 = vmatprep.subr.mxu0 0.0
    %4384 = vmatpush1.xpose.msra.mxu0 0.0
    %4385 = vmatprep.subr.mxu0 0.0
    %4386 = vmatpush1.xpose.msra.mxu0 0.0
    %4387 = vmatprep.subr.mxu0 0.0
    %4388 = vmatpush1.xpose.msra.mxu0 0.0
    %4389 = vmatprep.subr.mxu0 0.0
    %4390 = vmatpush1.xpose.msra.mxu0 0.0
    %4391 = vmatprep.subr.mxu0 0.0
    %4392 = vmatpush1.xpose.msra.mxu0 0.0
    %4393 = vmatprep.subr.mxu0 0.0
    %4394 = vmatpush1.xpose.msra.mxu0 0.0
    %4395 = vmatprep.subr.mxu0 0.0
    %4396 = vmatpush1.xpose.msra.mxu0 0.0
    %4397 = vmatprep.subr.mxu0 0.0
    %4398 = vmatpush1.xpose.msra.mxu0 0.0
    %4399 = vmatprep.mubr.f32.mxu0 0.0
    %4400 = vmatmul.mubr.f32.gmra.mrb[0].mxu0 %v4331
    %v4401 = vpop.f32.mrb[0].mxu0
    %v4402 = vadd.f32 %v2655, %v4401
    %v4403 = vpop.f32.mrb[0].mxu0
    %4404 = vdwg.mxu0
    %v4405 = vsel %vm318, %v4402, -inf
    %4406 = vmax.xlane.f32.xlu0 %v4405
    %v4407 = vpop.xlane.xlu0 %4406
    %v4408 = vsub.f32 %v4402, %v4407
    %v4409 = vmul.f32 %v4408, 1.442695
    %v4410 = vpow.pop %v4409
    %v4411 = vsel %vm318, %v4410, 0.0
    %4412 = vadd.xlane.f32.xlu0 %v4411
    %v4413 = vpop.xlane.xlu0 %4412
    %v4414 = vrcp.pop %v4413
    %v4415 = vmul.f32 %v4410, %v4414
    %4416 = vrot.lane.b32.xlu0 %v2649, 40
    %v4417 = vpop.permute.xlu0 %4416
    %v4420 = vsel %vm318, %v4415, 0
    %4422 = vmatprep.subr.mxu0 0.0
    %4423 = vmatpush1.msra.mxu0 %v4417
    %4424 = vmatprep.subr.mxu0 0.0
    %4425 = vmatpush1.msra.mxu0 0.0
    %4426 = vmatprep.subr.mxu0 0.0
    %4427 = vmatpush1.msra.mxu0 0.0
    %4428 = vmatprep.subr.mxu0 0.0
    %4429 = vmatpush1.msra.mxu0 0.0
    %4430 = vmatprep.subr.mxu0 0.0
    %4431 = vmatpush1.msra.mxu0 0.0
    %4432 = vmatprep.subr.mxu0 0.0
    %4433 = vmatpush1.msra.mxu0 0.0
    %4434 = vmatprep.subr.mxu0 0.0
    %4435 = vmatpush1.msra.mxu0 0.0
    %4436 = vmatprep.subr.mxu0 0.0
    %4437 = vmatpush1.msra.mxu0 0.0
    %4438 = vmatprep.subr.mxu0 0.0
    %4439 = vmatpush1.msra.mxu0 0.0
    %4440 = vmatprep.subr.mxu0 0.0
    %4441 = vmatpush1.msra.mxu0 0.0
    %4442 = vmatprep.subr.mxu0 0.0
    %4443 = vmatpush1.msra.mxu0 0.0
    %4444 = vmatprep.subr.mxu0 0.0
    %4445 = vmatpush1.msra.mxu0 0.0
    %4446 = vmatprep.subr.mxu0 0.0
    %4447 = vmatpush1.msra.mxu0 0.0
    %4448 = vmatprep.subr.mxu0 0.0
    %4449 = vmatpush1.msra.mxu0 0.0
    %4450 = vmatprep.subr.mxu0 0.0
    %4451 = vmatpush1.msra.mxu0 0.0
    %4452 = vmatprep.subr.mxu0 0.0
    %4453 = vmatpush1.msra.mxu0 0.0
    %4454 = vmatprep.subr.mxu0 0.0
    %4455 = vmatpush1.msra.mxu0 0.0
    %4456 = vmatprep.subr.mxu0 0.0
    %4457 = vmatpush1.msra.mxu0 0.0
    %4458 = vmatprep.subr.mxu0 0.0
    %4459 = vmatpush1.msra.mxu0 0.0
    %4460 = vmatprep.subr.mxu0 0.0
    %4461 = vmatpush1.msra.mxu0 0.0
    %4462 = vmatprep.subr.mxu0 0.0
    %4463 = vmatpush1.msra.mxu0 0.0
    %4464 = vmatprep.subr.mxu0 0.0
    %4465 = vmatpush1.msra.mxu0 0.0
    %4466 = vmatprep.subr.mxu0 0.0
    %4467 = vmatpush1.msra.mxu0 0.0
    %4468 = vmatprep.subr.mxu0 0.0
    %4469 = vmatpush1.msra.mxu0 0.0
    %4470 = vmatprep.subr.mxu0 0.0
    %4471 = vmatpush1.msra.mxu0 0.0
    %4472 = vmatprep.subr.mxu0 0.0
    %4473 = vmatpush1.msra.mxu0 0.0
    %4474 = vmatprep.subr.mxu0 0.0
    %4475 = vmatpush1.msra.mxu0 0.0
    %4476 = vmatprep.subr.mxu0 0.0
    %4477 = vmatpush1.msra.mxu0 0.0
    %4478 = vmatprep.subr.mxu0 0.0
    %4479 = vmatpush1.msra.mxu0 0.0
    %4480 = vmatprep.subr.mxu0 0.0
    %4481 = vmatpush1.msra.mxu0 0.0
    %4482 = vmatprep.subr.mxu0 0.0
    %4483 = vmatpush1.msra.mxu0 0.0
    %4484 = vmatprep.subr.mxu0 0.0
    %4485 = vmatpush1.msra.mxu0 0.0
    %4486 = vmatprep.mubr.f32.mxu0 0.0
    %4487 = vmatmul.mubr.f32.gmra.mrb[0].mxu0 %v4420
    %v4488 = vpop.f32.mrb[0].mxu0
    %v4489 = vadd.f32 0.0, %v4488
    %v4490 = vpop.f32.mrb[0].mxu0
    %4491 = vdwg.mxu0
    %v4493 = vsel %vm318, %v4489, 0
    %4495 = vmatprep.subr.mxu0 0.0
    %4496 = vmatpush1.msra.mxu0 %v2659
    %4497 = vmatprep.subr.mxu0 0.0
    %4498 = vmatpush1.msra.mxu0 0.0
    %4499 = vmatprep.subr.mxu0 0.0
    %4500 = vmatpush1.msra.mxu0 0.0
    %4501 = vmatprep.subr.mxu0 0.0
    %4502 = vmatpush1.msra.mxu0 0.0
    %4503 = vmatprep.subr.mxu0 0.0
    %4504 = vmatpush1.msra.mxu0 0.0
    %4505 = vmatprep.subr.mxu0 0.0
    %4506 = vmatpush1.msra.mxu0 0.0
    %4507 = vmatprep.subr.mxu0 0.0
    %4508 = vmatpush1.msra.mxu0 0.0
    %4509 = vmatprep.subr.mxu0 0.0
    %4510 = vmatpush1.msra.mxu0 0.0
    %4511 = vmatprep.subr.mxu0 0.0
    %4512 = vmatpush1.msra.mxu0 0.0
    %4513 = vmatprep.subr.mxu0 0.0
    %4514 = vmatpush1.msra.mxu0 0.0
    %4515 = vmatprep.subr.mxu0 0.0
    %4516 = vmatpush1.msra.mxu0 0.0
    %4517 = vmatprep.subr.mxu0 0.0
    %4518 = vmatpush1.msra.mxu0 0.0
    %4519 = vmatprep.subr.mxu0 0.0
    %4520 = vmatpush1.msra.mxu0 0.0
    %4521 = vmatprep.subr.mxu0 0.0
    %4522 = vmatpush1.msra.mxu0 0.0
    %4523 = vmatprep.subr.mxu0 0.0
    %4524 = vmatpush1.msra.mxu0 0.0
    %4525 = vmatprep.subr.mxu0 0.0
    %4526 = vmatpush1.msra.mxu0 0.0
    %4527 = vmatprep.subr.mxu0 0.0
    %4528 = vmatpush1.msra.mxu0 0.0
    %4529 = vmatprep.subr.mxu0 0.0
    %4530 = vmatpush1.msra.mxu0 0.0
    %4531 = vmatprep.subr.mxu0 0.0
    %4532 = vmatpush1.msra.mxu0 0.0
    %4533 = vmatprep.subr.mxu0 0.0
    %4534 = vmatpush1.msra.mxu0 0.0
    %4535 = vmatprep.subr.mxu0 0.0
    %4536 = vmatpush1.msra.mxu0 0.0
    %4537 = vmatprep.subr.mxu0 0.0
    %4538 = vmatpush1.msra.mxu0 0.0
    %4539 = vmatprep.subr.mxu0 0.0
    %4540 = vmatpush1.msra.mxu0 0.0
    %4541 = vmatprep.subr.mxu0 0.0
    %4542 = vmatpush1.msra.mxu0 0.0
    %4543 = vmatprep.subr.mxu0 0.0
    %4544 = vmatpush1.msra.mxu0 0.0
    %4545 = vmatprep.subr.mxu0 0.0
    %4546 = vmatpush1.msra.mxu0 0.0
    %4547 = vmatprep.subr.mxu0 0.0
    %4548 = vmatpush1.msra.mxu0 0.0
    %4549 = vmatprep.subr.mxu0 0.0
    %4550 = vmatpush1.msra.mxu0 0.0
    %4551 = vmatprep.subr.mxu0 0.0
    %4552 = vmatpush1.msra.mxu0 0.0
    %4553 = vmatprep.subr.mxu0 0.0
    %4554 = vmatpush1.msra.mxu0 0.0
    %4555 = vmatprep.subr.mxu0 0.0
    %4556 = vmatpush1.msra.mxu0 0.0
    %4557 = vmatprep.subr.mxu0 0.0
    %4558 = vmatpush1.msra.mxu0 0.0
    %4559 = vmatprep.mubr.f32.mxu0 0.0
    %4560 = vmatmul.mubr.f32.gmra.mrb[0].mxu0 %v4493
    %v4561 = vpop.f32.mrb[0].mxu0
    %v4562 = vadd.f32 0.0, %v4561
    %v4563 = vpop.f32.mrb[0].mxu0
    %4564 = vdwg.mxu0
    %v4565 = vadd.f32 %v4326, %v4562
    %v4566 = vadd.f32 %v2534, %v3612
    %v4567 = vadd.f32 %v2539, %v4565
    %v4568 = vmul.f32 %v4566, %v4566
    %v4569 = vmul.f32 %v4567, %v4567
    %v4570 = vsel %vm193, %v4568, 0.0
    %4571 = vadd.xlane.f32.xlu0 %v4570
    %v4572 = vpop.xlane.xlu0 %4571
    %v4573 = vsel %vm193, %v4569, 0.0
    %4574 = vadd.xlane.f32.xlu0 %v4573
    %v4575 = vpop.xlane.xlu0 %4574
    %v4576 = vmul.f32 %v4572, %v200
    %v4577 = vmul.f32 %v4575, %v200
    %v4578 = vadd.f32 %v4576, 1e-06
    %v4579 = vadd.f32 %v4577, 1e-06
    %v4580 = vrsqrt.pop %v4578
    %v4581 = vrsqrt.pop %v4579
    %v4582 = vmul.f32 %v4566, %v4580
    %v4583 = vmul.f32 %v4567, %v4581
    %v4584 = vld [vmem:[%s17] sm:$0x1]
    %v4586 = vlaneseq
    %v4587 = vshrl.u32 %v4586, 7
    %v4588 = vsub.s32 0, %v4587
    %v4589 = vrot.slane %v4584, %v4588
    %v4591 = vmul.f32 %v4582, %v4589
    %v4592 = vmul.f32 %v4583, %v4589
    %v4593 = vld [vmem:[%s18] sm:$0xff]
    %v4594 = vld [vmem:[%s18 + $0x8] sm:$0xff]
    %v4595 = vld [vmem:[%s18 + $0x10] sm:$0xff]
    %v4596 = vld [vmem:[%s18 + $0x18] sm:$0xff]
    %v4598 = vsel %vm193, %v4591, 0
    %v4601 = vsel %vm193, %v4592, 0
    %4603 = vmatprep.subr.mxu0 0.0
    %4604 = vmatpush1.msra.mxu0 %v4593
    %4605 = vmatprep.subr.mxu0 0.0
    %4606 = vmatpush1.msra.mxu0 %v4594
    %4607 = vmatprep.subr.mxu0 0.0
    %4608 = vmatpush1.msra.mxu0 %v4595
    %4609 = vmatprep.subr.mxu0 0.0
    %4610 = vmatpush1.msra.mxu0 %v4596
    %4611 = vmatprep.subr.mxu0 0.0
    %4612 = vmatpush1.msra.mxu0 0.0
    %4613 = vmatprep.subr.mxu0 0.0
    %4614 = vmatpush1.msra.mxu0 0.0
    %4615 = vmatprep.subr.mxu0 0.0
    %4616 = vmatpush1.msra.mxu0 0.0
    %4617 = vmatprep.subr.mxu0 0.0
    %4618 = vmatpush1.msra.mxu0 0.0
    %4619 = vmatprep.subr.mxu0 0.0
    %4620 = vmatpush1.msra.mxu0 0.0
    %4621 = vmatprep.subr.mxu0 0.0
    %4622 = vmatpush1.msra.mxu0 0.0
    %4623 = vmatprep.subr.mxu0 0.0
    %4624 = vmatpush1.msra.mxu0 0.0
    %4625 = vmatprep.subr.mxu0 0.0
    %4626 = vmatpush1.msra.mxu0 0.0
    %4627 = vmatprep.subr.mxu0 0.0
    %4628 = vmatpush1.msra.mxu0 0.0
    %4629 = vmatprep.subr.mxu0 0.0
    %4630 = vmatpush1.msra.mxu0 0.0
    %4631 = vmatprep.subr.mxu0 0.0
    %4632 = vmatpush1.msra.mxu0 0.0
    %4633 = vmatprep.subr.mxu0 0.0
    %4634 = vmatpush1.msra.mxu0 0.0
    %4635 = vmatprep.subr.mxu0 0.0
    %4636 = vmatpush1.msra.mxu0 0.0
    %4637 = vmatprep.subr.mxu0 0.0
    %4638 = vmatpush1.msra.mxu0 0.0
    %4639 = vmatprep.subr.mxu0 0.0
    %4640 = vmatpush1.msra.mxu0 0.0
    %4641 = vmatprep.subr.mxu0 0.0
    %4642 = vmatpush1.msra.mxu0 0.0
    %4643 = vmatprep.subr.mxu0 0.0
    %4644 = vmatpush1.msra.mxu0 0.0
    %4645 = vmatprep.subr.mxu0 0.0
    %4646 = vmatpush1.msra.mxu0 0.0
    %4647 = vmatprep.subr.mxu0 0.0
    %4648 = vmatpush1.msra.mxu0 0.0
    %4649 = vmatprep.subr.mxu0 0.0
    %4650 = vmatpush1.msra.mxu0 0.0
    %4651 = vmatprep.subr.mxu0 0.0
    %4652 = vmatpush1.msra.mxu0 0.0
    %4653 = vmatprep.subr.mxu0 0.0
    %4654 = vmatpush1.msra.mxu0 0.0
    %4655 = vmatprep.subr.mxu0 0.0
    %4656 = vmatpush1.msra.mxu0 0.0
    %4657 = vmatprep.subr.mxu0 0.0
    %4658 = vmatpush1.msra.mxu0 0.0
    %4659 = vmatprep.subr.mxu0 0.0
    %4660 = vmatpush1.msra.mxu0 0.0
    %4661 = vmatprep.subr.mxu0 0.0
    %4662 = vmatpush1.msra.mxu0 0.0
    %4663 = vmatprep.subr.mxu0 0.0
    %4664 = vmatpush1.msra.mxu0 0.0
    %4665 = vmatprep.subr.mxu0 0.0
    %4666 = vmatpush1.msra.mxu0 0.0
    %4667 = vmatprep.mubr.f32.mxu0 0.0
    %4668 = vmatmul.mubr.f32.gmra.mrb[0].mxu0 %v4598
    %v4669 = vpop.f32.mrb[0].mxu0
    %v4670 = vadd.f32 0.0, %v4669
    %v4671 = vpop.f32.mrb[0].mxu0
    %4672 = vmatprep.mubr.f32.mxu0 0.0
    %4673 = vmatmul.mubr.f32.gmra.mrb[0].mxu0 %v4601
    %v4674 = vpop.f32.mrb[0].mxu0
    %v4675 = vadd.f32 0.0, %v4674
    %v4676 = vpop.f32.mrb[0].mxu0
    %4677 = vdwg.mxu0
    %4682 = vrot.lane.b32.xlu0 %v4593, 96
    %v4683 = vpop.permute.xlu0 %4682
    %4684 = vrot.lane.b32.xlu0 %v4594, 96
    %v4685 = vpop.permute.xlu0 %4684
    %4686 = vrot.lane.b32.xlu0 %v4595, 96
    %v4687 = vpop.permute.xlu0 %4686
    %4688 = vrot.lane.b32.xlu0 %v4596, 96
    %v4689 = vpop.permute.xlu0 %4688
    %v4695 = vsel %vm193, %v2451, 0
    %v4698 = vsel %vm193, %v2452, 0
    %4700 = vmatprep.subr.mxu0 0.0
    %4701 = vmatpush1.msra.mxu0 %v4683
    %4702 = vmatprep.subr.mxu0 0.0
    %4703 = vmatpush1.msra.mxu0 %v4685
    %4704 = vmatprep.subr.mxu0 0.0
    %4705 = vmatpush1.msra.mxu0 %v4687
    %4706 = vmatprep.subr.mxu0 0.0
    %4707 = vmatpush1.msra.mxu0 %v4689
    %4708 = vmatprep.subr.mxu0 0.0
    %4709 = vmatpush1.msra.mxu0 0.0
    %4710 = vmatprep.subr.mxu0 0.0
    %4711 = vmatpush1.msra.mxu0 0.0
    %4712 = vmatprep.subr.mxu0 0.0
    %4713 = vmatpush1.msra.mxu0 0.0
    %4714 = vmatprep.subr.mxu0 0.0
    %4715 = vmatpush1.msra.mxu0 0.0
    %4716 = vmatprep.subr.mxu0 0.0
    %4717 = vmatpush1.msra.mxu0 0.0
    %4718 = vmatprep.subr.mxu0 0.0
    %4719 = vmatpush1.msra.mxu0 0.0
    %4720 = vmatprep.subr.mxu0 0.0
    %4721 = vmatpush1.msra.mxu0 0.0
    %4722 = vmatprep.subr.mxu0 0.0
    %4723 = vmatpush1.msra.mxu0 0.0
    %4724 = vmatprep.subr.mxu0 0.0
    %4725 = vmatpush1.msra.mxu0 0.0
    %4726 = vmatprep.subr.mxu0 0.0
    %4727 = vmatpush1.msra.mxu0 0.0
    %4728 = vmatprep.subr.mxu0 0.0
    %4729 = vmatpush1.msra.mxu0 0.0
    %4730 = vmatprep.subr.mxu0 0.0
    %4731 = vmatpush1.msra.mxu0 0.0
    %4732 = vmatprep.subr.mxu0 0.0
    %4733 = vmatpush1.msra.mxu0 0.0
    %4734 = vmatprep.subr.mxu0 0.0
    %4735 = vmatpush1.msra.mxu0 0.0
    %4736 = vmatprep.subr.mxu0 0.0
    %4737 = vmatpush1.msra.mxu0 0.0
    %4738 = vmatprep.subr.mxu0 0.0
    %4739 = vmatpush1.msra.mxu0 0.0
    %4740 = vmatprep.subr.mxu0 0.0
    %4741 = vmatpush1.msra.mxu0 0.0
    %4742 = vmatprep.subr.mxu0 0.0
    %4743 = vmatpush1.msra.mxu0 0.0
    %4744 = vmatprep.subr.mxu0 0.0
    %4745 = vmatpush1.msra.mxu0 0.0
    %4746 = vmatprep.subr.mxu0 0.0
    %4747 = vmatpush1.msra.mxu0 0.0
    %4748 = vmatprep.subr.mxu0 0.0
    %4749 = vmatpush1.msra.mxu0 0.0
    %4750 = vmatprep.subr.mxu0 0.0
    %4751 = vmatpush1.msra.mxu0 0.0
    %4752 = vmatprep.subr.mxu0 0.0
    %4753 = vmatpush1.msra.mxu0 0.0
    %4754 = vmatprep.subr.mxu0 0.0
    %4755 = vmatpush1.msra.mxu0 0.0
    %4756 = vmatprep.subr.mxu0 0.0
    %4757 = vmatpush1.msra.mxu0 0.0
    %4758 = vmatprep.subr.mxu0 0.0
    %4759 = vmatpush1.msra.mxu0 0.0
    %4760 = vmatprep.subr.mxu0 0.0
    %4761 = vmatpush1.msra.mxu0 0.0
    %4762 = vmatprep.subr.mxu0 0.0
    %4763 = vmatpush1.msra.mxu0 0.0
    %4764 = vmatprep.mubr.f32.mxu0 0.0
    %4765 = vmatmul.mubr.f32.gmra.mrb[0].mxu0 %v4695
    %v4766 = vpop.f32.mrb[0].mxu0
    %v4767 = vadd.f32 0.0, %v4766
    %v4768 = vpop.f32.mrb[0].mxu0
    %4769 = vmatprep.mubr.f32.mxu0 0.0
    %4770 = vmatmul.mubr.f32.gmra.mrb[0].mxu0 %v4698
    %v4771 = vpop.f32.mrb[0].mxu0
    %v4772 = vadd.f32 0.0, %v4771
    %v4773 = vpop.f32.mrb[0].mxu0
    %4774 = vdwg.mxu0
    %v4775 = vld [vmem:[%s20] sm:$0xff]
    %v4776 = vld [vmem:[%s20 + $0x8] sm:$0xff]
    %v4777 = vld [vmem:[%s19] sm:$0xff]
    %v4778 = vld [vmem:[%s19 + $0x8] sm:$0xff]
    %v4779 = vld [vmem:[%s19 + $0x10] sm:$0xff]
    %v4780 = vld [vmem:[%s19 + $0x18] sm:$0xff]
    %v4782 = vsel %vm318, %v4670, 0
    %v4785 = vsel %vm318, %v4767, 0
    %4787 = vmatprep.subr.mxu0 0.0
    %4788 = vmatpush1.xpose.msra.mxu0 %v4785
    %4789 = vmatprep.subr.mxu0 0.0
    %4790 = vmatpush1.xpose.msra.mxu0 0.0
    %4791 = vmatprep.subr.mxu0 0.0
    %4792 = vmatpush1.xpose.msra.mxu0 0.0
    %4793 = vmatprep.subr.mxu0 0.0
    %4794 = vmatpush1.xpose.msra.mxu0 0.0
    %4795 = vmatprep.subr.mxu0 0.0
    %4796 = vmatpush1.xpose.msra.mxu0 0.0
    %4797 = vmatprep.subr.mxu0 0.0
    %4798 = vmatpush1.xpose.msra.mxu0 0.0
    %4799 = vmatprep.subr.mxu0 0.0
    %4800 = vmatpush1.xpose.msra.mxu0 0.0
    %4801 = vmatprep.subr.mxu0 0.0
    %4802 = vmatpush1.xpose.msra.mxu0 0.0
    %4803 = vmatprep.subr.mxu0 0.0
    %4804 = vmatpush1.xpose.msra.mxu0 0.0
    %4805 = vmatprep.subr.mxu0 0.0
    %4806 = vmatpush1.xpose.msra.mxu0 0.0
    %4807 = vmatprep.subr.mxu0 0.0
    %4808 = vmatpush1.xpose.msra.mxu0 0.0
    %4809 = vmatprep.subr.mxu0 0.0
    %4810 = vmatpush1.xpose.msra.mxu0 0.0
    %4811 = vmatprep.subr.mxu0 0.0
    %4812 = vmatpush1.xpose.msra.mxu0 0.0
    %4813 = vmatprep.subr.mxu0 0.0
    %4814 = vmatpush1.xpose.msra.mxu0 0.0
    %4815 = vmatprep.subr.mxu0 0.0
    %4816 = vmatpush1.xpose.msra.mxu0 0.0
    %4817 = vmatprep.subr.mxu0 0.0
    %4818 = vmatpush1.xpose.msra.mxu0 0.0
    %4819 = vmatprep.subr.mxu0 0.0
    %4820 = vmatpush1.xpose.msra.mxu0 0.0
    %4821 = vmatprep.subr.mxu0 0.0
    %4822 = vmatpush1.xpose.msra.mxu0 0.0
    %4823 = vmatprep.subr.mxu0 0.0
    %4824 = vmatpush1.xpose.msra.mxu0 0.0
    %4825 = vmatprep.subr.mxu0 0.0
    %4826 = vmatpush1.xpose.msra.mxu0 0.0
    %4827 = vmatprep.subr.mxu0 0.0
    %4828 = vmatpush1.xpose.msra.mxu0 0.0
    %4829 = vmatprep.subr.mxu0 0.0
    %4830 = vmatpush1.xpose.msra.mxu0 0.0
    %4831 = vmatprep.subr.mxu0 0.0
    %4832 = vmatpush1.xpose.msra.mxu0 0.0
    %4833 = vmatprep.subr.mxu0 0.0
    %4834 = vmatpush1.xpose.msra.mxu0 0.0
    %4835 = vmatprep.subr.mxu0 0.0
    %4836 = vmatpush1.xpose.msra.mxu0 0.0
    %4837 = vmatprep.subr.mxu0 0.0
    %4838 = vmatpush1.xpose.msra.mxu0 0.0
    %4839 = vmatprep.subr.mxu0 0.0
    %4840 = vmatpush1.xpose.msra.mxu0 0.0
    %4841 = vmatprep.subr.mxu0 0.0
    %4842 = vmatpush1.xpose.msra.mxu0 0.0
    %4843 = vmatprep.subr.mxu0 0.0
    %4844 = vmatpush1.xpose.msra.mxu0 0.0
    %4845 = vmatprep.subr.mxu0 0.0
    %4846 = vmatpush1.xpose.msra.mxu0 0.0
    %4847 = vmatprep.subr.mxu0 0.0
    %4848 = vmatpush1.xpose.msra.mxu0 0.0
    %4849 = vmatprep.subr.mxu0 0.0
    %4850 = vmatpush1.xpose.msra.mxu0 0.0
    %4851 = vmatprep.mubr.f32.mxu0 0.0
    %4852 = vmatmul.mubr.f32.gmra.mrb[0].mxu0 %v4782
    %v4853 = vpop.f32.mrb[0].mxu0
    %v4854 = vadd.f32 %v4775, %v4853
    %v4855 = vpop.f32.mrb[0].mxu0
    %4856 = vdwg.mxu0
    %v4857 = vsel %vm318, %v4854, -inf
    %4858 = vmax.xlane.f32.xlu0 %v4857
    %v4859 = vpop.xlane.xlu0 %4858
    %v4860 = vsub.f32 %v4854, %v4859
    %v4861 = vmul.f32 %v4860, 1.442695
    %v4862 = vpow.pop %v4861
    %v4863 = vsel %vm318, %v4862, 0.0
    %4864 = vadd.xlane.f32.xlu0 %v4863
    %v4865 = vpop.xlane.xlu0 %4864
    %v4866 = vrcp.pop %v4865
    %v4867 = vmul.f32 %v4862, %v4866
    %4868 = vrot.lane.b32.xlu0 %v4767, 96
    %v4869 = vpop.permute.xlu0 %4868
    %v4872 = vsel %vm318, %v4867, 0
    %4874 = vmatprep.subr.mxu0 0.0
    %4875 = vmatpush1.msra.mxu0 %v4869
    %4876 = vmatprep.subr.mxu0 0.0
    %4877 = vmatpush1.msra.mxu0 0.0
    %4878 = vmatprep.subr.mxu0 0.0
    %4879 = vmatpush1.msra.mxu0 0.0
    %4880 = vmatprep.subr.mxu0 0.0
    %4881 = vmatpush1.msra.mxu0 0.0
    %4882 = vmatprep.subr.mxu0 0.0
    %4883 = vmatpush1.msra.mxu0 0.0
    %4884 = vmatprep.subr.mxu0 0.0
    %4885 = vmatpush1.msra.mxu0 0.0
    %4886 = vmatprep.subr.mxu0 0.0
    %4887 = vmatpush1.msra.mxu0 0.0
    %4888 = vmatprep.subr.mxu0 0.0
    %4889 = vmatpush1.msra.mxu0 0.0
    %4890 = vmatprep.subr.mxu0 0.0
    %4891 = vmatpush1.msra.mxu0 0.0
    %4892 = vmatprep.subr.mxu0 0.0
    %4893 = vmatpush1.msra.mxu0 0.0
    %4894 = vmatprep.subr.mxu0 0.0
    %4895 = vmatpush1.msra.mxu0 0.0
    %4896 = vmatprep.subr.mxu0 0.0
    %4897 = vmatpush1.msra.mxu0 0.0
    %4898 = vmatprep.subr.mxu0 0.0
    %4899 = vmatpush1.msra.mxu0 0.0
    %4900 = vmatprep.subr.mxu0 0.0
    %4901 = vmatpush1.msra.mxu0 0.0
    %4902 = vmatprep.subr.mxu0 0.0
    %4903 = vmatpush1.msra.mxu0 0.0
    %4904 = vmatprep.subr.mxu0 0.0
    %4905 = vmatpush1.msra.mxu0 0.0
    %4906 = vmatprep.subr.mxu0 0.0
    %4907 = vmatpush1.msra.mxu0 0.0
    %4908 = vmatprep.subr.mxu0 0.0
    %4909 = vmatpush1.msra.mxu0 0.0
    %4910 = vmatprep.subr.mxu0 0.0
    %4911 = vmatpush1.msra.mxu0 0.0
    %4912 = vmatprep.subr.mxu0 0.0
    %4913 = vmatpush1.msra.mxu0 0.0
    %4914 = vmatprep.subr.mxu0 0.0
    %4915 = vmatpush1.msra.mxu0 0.0
    %4916 = vmatprep.subr.mxu0 0.0
    %4917 = vmatpush1.msra.mxu0 0.0
    %4918 = vmatprep.subr.mxu0 0.0
    %4919 = vmatpush1.msra.mxu0 0.0
    %4920 = vmatprep.subr.mxu0 0.0
    %4921 = vmatpush1.msra.mxu0 0.0
    %4922 = vmatprep.subr.mxu0 0.0
    %4923 = vmatpush1.msra.mxu0 0.0
    %4924 = vmatprep.subr.mxu0 0.0
    %4925 = vmatpush1.msra.mxu0 0.0
    %4926 = vmatprep.subr.mxu0 0.0
    %4927 = vmatpush1.msra.mxu0 0.0
    %4928 = vmatprep.subr.mxu0 0.0
    %4929 = vmatpush1.msra.mxu0 0.0
    %4930 = vmatprep.subr.mxu0 0.0
    %4931 = vmatpush1.msra.mxu0 0.0
    %4932 = vmatprep.subr.mxu0 0.0
    %4933 = vmatpush1.msra.mxu0 0.0
    %4934 = vmatprep.subr.mxu0 0.0
    %4935 = vmatpush1.msra.mxu0 0.0
    %4936 = vmatprep.subr.mxu0 0.0
    %4937 = vmatpush1.msra.mxu0 0.0
    %4938 = vmatprep.mubr.f32.mxu0 0.0
    %4939 = vmatmul.mubr.f32.gmra.mrb[0].mxu0 %v4872
    %v4940 = vpop.f32.mrb[0].mxu0
    %v4941 = vadd.f32 0.0, %v4940
    %v4942 = vpop.f32.mrb[0].mxu0
    %4943 = vdwg.mxu0
    %4944 = vrot.lane.b32.xlu0 %v4670, 120
    %v4945 = vpop.permute.xlu0 %4944
    %4946 = vrot.lane.b32.xlu0 %v4767, 120
    %v4947 = vpop.permute.xlu0 %4946
    %v4948 = vsel %vm318, %v4945, 0
    %v4950 = vsel %vm318, %v4947, 0
    %4952 = vmatprep.subr.mxu0 0.0
    %4953 = vmatpush1.xpose.msra.mxu0 %v4950
    %4954 = vmatprep.subr.mxu0 0.0
    %4955 = vmatpush1.xpose.msra.mxu0 0.0
    %4956 = vmatprep.subr.mxu0 0.0
    %4957 = vmatpush1.xpose.msra.mxu0 0.0
    %4958 = vmatprep.subr.mxu0 0.0
    %4959 = vmatpush1.xpose.msra.mxu0 0.0
    %4960 = vmatprep.subr.mxu0 0.0
    %4961 = vmatpush1.xpose.msra.mxu0 0.0
    %4962 = vmatprep.subr.mxu0 0.0
    %4963 = vmatpush1.xpose.msra.mxu0 0.0
    %4964 = vmatprep.subr.mxu0 0.0
    %4965 = vmatpush1.xpose.msra.mxu0 0.0
    %4966 = vmatprep.subr.mxu0 0.0
    %4967 = vmatpush1.xpose.msra.mxu0 0.0
    %4968 = vmatprep.subr.mxu0 0.0
    %4969 = vmatpush1.xpose.msra.mxu0 0.0
    %4970 = vmatprep.subr.mxu0 0.0
    %4971 = vmatpush1.xpose.msra.mxu0 0.0
    %4972 = vmatprep.subr.mxu0 0.0
    %4973 = vmatpush1.xpose.msra.mxu0 0.0
    %4974 = vmatprep.subr.mxu0 0.0
    %4975 = vmatpush1.xpose.msra.mxu0 0.0
    %4976 = vmatprep.subr.mxu0 0.0
    %4977 = vmatpush1.xpose.msra.mxu0 0.0
    %4978 = vmatprep.subr.mxu0 0.0
    %4979 = vmatpush1.xpose.msra.mxu0 0.0
    %4980 = vmatprep.subr.mxu0 0.0
    %4981 = vmatpush1.xpose.msra.mxu0 0.0
    %4982 = vmatprep.subr.mxu0 0.0
    %4983 = vmatpush1.xpose.msra.mxu0 0.0
    %4984 = vmatprep.subr.mxu0 0.0
    %4985 = vmatpush1.xpose.msra.mxu0 0.0
    %4986 = vmatprep.subr.mxu0 0.0
    %4987 = vmatpush1.xpose.msra.mxu0 0.0
    %4988 = vmatprep.subr.mxu0 0.0
    %4989 = vmatpush1.xpose.msra.mxu0 0.0
    %4990 = vmatprep.subr.mxu0 0.0
    %4991 = vmatpush1.xpose.msra.mxu0 0.0
    %4992 = vmatprep.subr.mxu0 0.0
    %4993 = vmatpush1.xpose.msra.mxu0 0.0
    %4994 = vmatprep.subr.mxu0 0.0
    %4995 = vmatpush1.xpose.msra.mxu0 0.0
    %4996 = vmatprep.subr.mxu0 0.0
    %4997 = vmatpush1.xpose.msra.mxu0 0.0
    %4998 = vmatprep.subr.mxu0 0.0
    %4999 = vmatpush1.xpose.msra.mxu0 0.0
    %5000 = vmatprep.subr.mxu0 0.0
    %5001 = vmatpush1.xpose.msra.mxu0 0.0
    %5002 = vmatprep.subr.mxu0 0.0
    %5003 = vmatpush1.xpose.msra.mxu0 0.0
    %5004 = vmatprep.subr.mxu0 0.0
    %5005 = vmatpush1.xpose.msra.mxu0 0.0
    %5006 = vmatprep.subr.mxu0 0.0
    %5007 = vmatpush1.xpose.msra.mxu0 0.0
    %5008 = vmatprep.subr.mxu0 0.0
    %5009 = vmatpush1.xpose.msra.mxu0 0.0
    %5010 = vmatprep.subr.mxu0 0.0
    %5011 = vmatpush1.xpose.msra.mxu0 0.0
    %5012 = vmatprep.subr.mxu0 0.0
    %5013 = vmatpush1.xpose.msra.mxu0 0.0
    %5014 = vmatprep.subr.mxu0 0.0
    %5015 = vmatpush1.xpose.msra.mxu0 0.0
    %5016 = vmatprep.mubr.f32.mxu0 0.0
    %5017 = vmatmul.mubr.f32.gmra.mrb[0].mxu0 %v4948
    %v5018 = vpop.f32.mrb[0].mxu0
    %v5019 = vadd.f32 %v4775, %v5018
    %v5020 = vpop.f32.mrb[0].mxu0
    %5021 = vdwg.mxu0
    %v5022 = vsel %vm318, %v5019, -inf
    %5023 = vmax.xlane.f32.xlu0 %v5022
    %v5024 = vpop.xlane.xlu0 %5023
    %v5025 = vsub.f32 %v5019, %v5024
    %v5026 = vmul.f32 %v5025, 1.442695
    %v5027 = vpow.pop %v5026
    %v5028 = vsel %vm318, %v5027, 0.0
    %5029 = vadd.xlane.f32.xlu0 %v5028
    %v5030 = vpop.xlane.xlu0 %5029
    %v5031 = vrcp.pop %v5030
    %v5032 = vmul.f32 %v5027, %v5031
    %5033 = vrot.lane.b32.xlu0 %v4767, 88
    %v5034 = vpop.permute.xlu0 %5033
    %v5037 = vsel %vm318, %v5032, 0
    %5039 = vmatprep.subr.mxu0 0.0
    %5040 = vmatpush1.msra.mxu0 %v5034
    %5041 = vmatprep.subr.mxu0 0.0
    %5042 = vmatpush1.msra.mxu0 0.0
    %5043 = vmatprep.subr.mxu0 0.0
    %5044 = vmatpush1.msra.mxu0 0.0
    %5045 = vmatprep.subr.mxu0 0.0
    %5046 = vmatpush1.msra.mxu0 0.0
    %5047 = vmatprep.subr.mxu0 0.0
    %5048 = vmatpush1.msra.mxu0 0.0
    %5049 = vmatprep.subr.mxu0 0.0
    %5050 = vmatpush1.msra.mxu0 0.0
    %5051 = vmatprep.subr.mxu0 0.0
    %5052 = vmatpush1.msra.mxu0 0.0
    %5053 = vmatprep.subr.mxu0 0.0
    %5054 = vmatpush1.msra.mxu0 0.0
    %5055 = vmatprep.subr.mxu0 0.0
    %5056 = vmatpush1.msra.mxu0 0.0
    %5057 = vmatprep.subr.mxu0 0.0
    %5058 = vmatpush1.msra.mxu0 0.0
    %5059 = vmatprep.subr.mxu0 0.0
    %5060 = vmatpush1.msra.mxu0 0.0
    %5061 = vmatprep.subr.mxu0 0.0
    %5062 = vmatpush1.msra.mxu0 0.0
    %5063 = vmatprep.subr.mxu0 0.0
    %5064 = vmatpush1.msra.mxu0 0.0
    %5065 = vmatprep.subr.mxu0 0.0
    %5066 = vmatpush1.msra.mxu0 0.0
    %5067 = vmatprep.subr.mxu0 0.0
    %5068 = vmatpush1.msra.mxu0 0.0
    %5069 = vmatprep.subr.mxu0 0.0
    %5070 = vmatpush1.msra.mxu0 0.0
    %5071 = vmatprep.subr.mxu0 0.0
    %5072 = vmatpush1.msra.mxu0 0.0
    %5073 = vmatprep.subr.mxu0 0.0
    %5074 = vmatpush1.msra.mxu0 0.0
    %5075 = vmatprep.subr.mxu0 0.0
    %5076 = vmatpush1.msra.mxu0 0.0
    %5077 = vmatprep.subr.mxu0 0.0
    %5078 = vmatpush1.msra.mxu0 0.0
    %5079 = vmatprep.subr.mxu0 0.0
    %5080 = vmatpush1.msra.mxu0 0.0
    %5081 = vmatprep.subr.mxu0 0.0
    %5082 = vmatpush1.msra.mxu0 0.0
    %5083 = vmatprep.subr.mxu0 0.0
    %5084 = vmatpush1.msra.mxu0 0.0
    %5085 = vmatprep.subr.mxu0 0.0
    %5086 = vmatpush1.msra.mxu0 0.0
    %5087 = vmatprep.subr.mxu0 0.0
    %5088 = vmatpush1.msra.mxu0 0.0
    %5089 = vmatprep.subr.mxu0 0.0
    %5090 = vmatpush1.msra.mxu0 0.0
    %5091 = vmatprep.subr.mxu0 0.0
    %5092 = vmatpush1.msra.mxu0 0.0
    %5093 = vmatprep.subr.mxu0 0.0
    %5094 = vmatpush1.msra.mxu0 0.0
    %5095 = vmatprep.subr.mxu0 0.0
    %5096 = vmatpush1.msra.mxu0 0.0
    %5097 = vmatprep.subr.mxu0 0.0
    %5098 = vmatpush1.msra.mxu0 0.0
    %5099 = vmatprep.subr.mxu0 0.0
    %5100 = vmatpush1.msra.mxu0 0.0
    %5101 = vmatprep.subr.mxu0 0.0
    %5102 = vmatpush1.msra.mxu0 0.0
    %5103 = vmatprep.mubr.f32.mxu0 0.0
    %5104 = vmatmul.mubr.f32.gmra.mrb[0].mxu0 %v5037
    %v5105 = vpop.f32.mrb[0].mxu0
    %v5106 = vadd.f32 0.0, %v5105
    %v5107 = vpop.f32.mrb[0].mxu0
    %5108 = vdwg.mxu0
    %v5110 = vsel %vm318, %v5106, 0
    %5112 = vmatprep.subr.mxu0 0.0
    %5113 = vmatpush1.msra.mxu0 %v4778
    %5114 = vmatprep.subr.mxu0 0.0
    %5115 = vmatpush1.msra.mxu0 0.0
    %5116 = vmatprep.subr.mxu0 0.0
    %5117 = vmatpush1.msra.mxu0 0.0
    %5118 = vmatprep.subr.mxu0 0.0
    %5119 = vmatpush1.msra.mxu0 0.0
    %5120 = vmatprep.subr.mxu0 0.0
    %5121 = vmatpush1.msra.mxu0 0.0
    %5122 = vmatprep.subr.mxu0 0.0
    %5123 = vmatpush1.msra.mxu0 0.0
    %5124 = vmatprep.subr.mxu0 0.0
    %5125 = vmatpush1.msra.mxu0 0.0
    %5126 = vmatprep.subr.mxu0 0.0
    %5127 = vmatpush1.msra.mxu0 0.0
    %5128 = vmatprep.subr.mxu0 0.0
    %5129 = vmatpush1.msra.mxu0 0.0
    %5130 = vmatprep.subr.mxu0 0.0
    %5131 = vmatpush1.msra.mxu0 0.0
    %5132 = vmatprep.subr.mxu0 0.0
    %5133 = vmatpush1.msra.mxu0 0.0
    %5134 = vmatprep.subr.mxu0 0.0
    %5135 = vmatpush1.msra.mxu0 0.0
    %5136 = vmatprep.subr.mxu0 0.0
    %5137 = vmatpush1.msra.mxu0 0.0
    %5138 = vmatprep.subr.mxu0 0.0
    %5139 = vmatpush1.msra.mxu0 0.0
    %5140 = vmatprep.subr.mxu0 0.0
    %5141 = vmatpush1.msra.mxu0 0.0
    %5142 = vmatprep.subr.mxu0 0.0
    %5143 = vmatpush1.msra.mxu0 0.0
    %5144 = vmatprep.subr.mxu0 0.0
    %5145 = vmatpush1.msra.mxu0 0.0
    %5146 = vmatprep.subr.mxu0 0.0
    %5147 = vmatpush1.msra.mxu0 0.0
    %5148 = vmatprep.subr.mxu0 0.0
    %5149 = vmatpush1.msra.mxu0 0.0
    %5150 = vmatprep.subr.mxu0 0.0
    %5151 = vmatpush1.msra.mxu0 0.0
    %5152 = vmatprep.subr.mxu0 0.0
    %5153 = vmatpush1.msra.mxu0 0.0
    %5154 = vmatprep.subr.mxu0 0.0
    %5155 = vmatpush1.msra.mxu0 0.0
    %5156 = vmatprep.subr.mxu0 0.0
    %5157 = vmatpush1.msra.mxu0 0.0
    %5158 = vmatprep.subr.mxu0 0.0
    %5159 = vmatpush1.msra.mxu0 0.0
    %5160 = vmatprep.subr.mxu0 0.0
    %5161 = vmatpush1.msra.mxu0 0.0
    %5162 = vmatprep.subr.mxu0 0.0
    %5163 = vmatpush1.msra.mxu0 0.0
    %5164 = vmatprep.subr.mxu0 0.0
    %5165 = vmatpush1.msra.mxu0 0.0
    %5166 = vmatprep.subr.mxu0 0.0
    %5167 = vmatpush1.msra.mxu0 0.0
    %5168 = vmatprep.subr.mxu0 0.0
    %5169 = vmatpush1.msra.mxu0 0.0
    %5170 = vmatprep.subr.mxu0 0.0
    %5171 = vmatpush1.msra.mxu0 0.0
    %5172 = vmatprep.subr.mxu0 0.0
    %5173 = vmatpush1.msra.mxu0 0.0
    %5174 = vmatprep.subr.mxu0 0.0
    %5175 = vmatpush1.msra.mxu0 0.0
    %5176 = vmatprep.mubr.f32.mxu0 0.0
    %5177 = vmatmul.mubr.f32.gmra.mrb[0].mxu0 %v5110
    %v5178 = vpop.f32.mrb[0].mxu0
    %v5179 = vadd.f32 0.0, %v5178
    %v5180 = vpop.f32.mrb[0].mxu0
    %5181 = vdwg.mxu0
    %v5183 = vsel %vm318, %v4941, 0
    %5185 = vmatprep.subr.mxu0 0.0
    %5186 = vmatpush1.msra.mxu0 %v4777
    %5187 = vmatprep.subr.mxu0 0.0
    %5188 = vmatpush1.msra.mxu0 0.0
    %5189 = vmatprep.subr.mxu0 0.0
    %5190 = vmatpush1.msra.mxu0 0.0
    %5191 = vmatprep.subr.mxu0 0.0
    %5192 = vmatpush1.msra.mxu0 0.0
    %5193 = vmatprep.subr.mxu0 0.0
    %5194 = vmatpush1.msra.mxu0 0.0
    %5195 = vmatprep.subr.mxu0 0.0
    %5196 = vmatpush1.msra.mxu0 0.0
    %5197 = vmatprep.subr.mxu0 0.0
    %5198 = vmatpush1.msra.mxu0 0.0
    %5199 = vmatprep.subr.mxu0 0.0
    %5200 = vmatpush1.msra.mxu0 0.0
    %5201 = vmatprep.subr.mxu0 0.0
    %5202 = vmatpush1.msra.mxu0 0.0
    %5203 = vmatprep.subr.mxu0 0.0
    %5204 = vmatpush1.msra.mxu0 0.0
    %5205 = vmatprep.subr.mxu0 0.0
    %5206 = vmatpush1.msra.mxu0 0.0
    %5207 = vmatprep.subr.mxu0 0.0
    %5208 = vmatpush1.msra.mxu0 0.0
    %5209 = vmatprep.subr.mxu0 0.0
    %5210 = vmatpush1.msra.mxu0 0.0
    %5211 = vmatprep.subr.mxu0 0.0
    %5212 = vmatpush1.msra.mxu0 0.0
    %5213 = vmatprep.subr.mxu0 0.0
    %5214 = vmatpush1.msra.mxu0 0.0
    %5215 = vmatprep.subr.mxu0 0.0
    %5216 = vmatpush1.msra.mxu0 0.0
    %5217 = vmatprep.subr.mxu0 0.0
    %5218 = vmatpush1.msra.mxu0 0.0
    %5219 = vmatprep.subr.mxu0 0.0
    %5220 = vmatpush1.msra.mxu0 0.0
    %5221 = vmatprep.subr.mxu0 0.0
    %5222 = vmatpush1.msra.mxu0 0.0
    %5223 = vmatprep.subr.mxu0 0.0
    %5224 = vmatpush1.msra.mxu0 0.0
    %5225 = vmatprep.subr.mxu0 0.0
    %5226 = vmatpush1.msra.mxu0 0.0
    %5227 = vmatprep.subr.mxu0 0.0
    %5228 = vmatpush1.msra.mxu0 0.0
    %5229 = vmatprep.subr.mxu0 0.0
    %5230 = vmatpush1.msra.mxu0 0.0
    %5231 = vmatprep.subr.mxu0 0.0
    %5232 = vmatpush1.msra.mxu0 0.0
    %5233 = vmatprep.subr.mxu0 0.0
    %5234 = vmatpush1.msra.mxu0 0.0
    %5235 = vmatprep.subr.mxu0 0.0
    %5236 = vmatpush1.msra.mxu0 0.0
    %5237 = vmatprep.subr.mxu0 0.0
    %5238 = vmatpush1.msra.mxu0 0.0
    %5239 = vmatprep.subr.mxu0 0.0
    %5240 = vmatpush1.msra.mxu0 0.0
    %5241 = vmatprep.subr.mxu0 0.0
    %5242 = vmatpush1.msra.mxu0 0.0
    %5243 = vmatprep.subr.mxu0 0.0
    %5244 = vmatpush1.msra.mxu0 0.0
    %5245 = vmatprep.subr.mxu0 0.0
    %5246 = vmatpush1.msra.mxu0 0.0
    %5247 = vmatprep.subr.mxu0 0.0
    %5248 = vmatpush1.msra.mxu0 0.0
    %5249 = vmatprep.mubr.f32.mxu0 0.0
    %5250 = vmatmul.mubr.f32.gmra.mrb[0].mxu0 %v5183
    %v5251 = vpop.f32.mrb[0].mxu0
    %v5252 = vadd.f32 %v5179, %v5251
    %v5253 = vpop.f32.mrb[0].mxu0
    %5254 = vdwg.mxu0
    %5255 = vrot.lane.b32.xlu0 %v4670, 112
    %v5256 = vpop.permute.xlu0 %5255
    %5257 = vrot.lane.b32.xlu0 %v4767, 112
    %v5258 = vpop.permute.xlu0 %5257
    %v5259 = vsel %vm318, %v5256, 0
    %v5261 = vsel %vm318, %v5258, 0
    %5263 = vmatprep.subr.mxu0 0.0
    %5264 = vmatpush1.xpose.msra.mxu0 %v5261
    %5265 = vmatprep.subr.mxu0 0.0
    %5266 = vmatpush1.xpose.msra.mxu0 0.0
    %5267 = vmatprep.subr.mxu0 0.0
    %5268 = vmatpush1.xpose.msra.mxu0 0.0
    %5269 = vmatprep.subr.mxu0 0.0
    %5270 = vmatpush1.xpose.msra.mxu0 0.0
    %5271 = vmatprep.subr.mxu0 0.0
    %5272 = vmatpush1.xpose.msra.mxu0 0.0
    %5273 = vmatprep.subr.mxu0 0.0
    %5274 = vmatpush1.xpose.msra.mxu0 0.0
    %5275 = vmatprep.subr.mxu0 0.0
    %5276 = vmatpush1.xpose.msra.mxu0 0.0
    %5277 = vmatprep.subr.mxu0 0.0
    %5278 = vmatpush1.xpose.msra.mxu0 0.0
    %5279 = vmatprep.subr.mxu0 0.0
    %5280 = vmatpush1.xpose.msra.mxu0 0.0
    %5281 = vmatprep.subr.mxu0 0.0
    %5282 = vmatpush1.xpose.msra.mxu0 0.0
    %5283 = vmatprep.subr.mxu0 0.0
    %5284 = vmatpush1.xpose.msra.mxu0 0.0
    %5285 = vmatprep.subr.mxu0 0.0
    %5286 = vmatpush1.xpose.msra.mxu0 0.0
    %5287 = vmatprep.subr.mxu0 0.0
    %5288 = vmatpush1.xpose.msra.mxu0 0.0
    %5289 = vmatprep.subr.mxu0 0.0
    %5290 = vmatpush1.xpose.msra.mxu0 0.0
    %5291 = vmatprep.subr.mxu0 0.0
    %5292 = vmatpush1.xpose.msra.mxu0 0.0
    %5293 = vmatprep.subr.mxu0 0.0
    %5294 = vmatpush1.xpose.msra.mxu0 0.0
    %5295 = vmatprep.subr.mxu0 0.0
    %5296 = vmatpush1.xpose.msra.mxu0 0.0
    %5297 = vmatprep.subr.mxu0 0.0
    %5298 = vmatpush1.xpose.msra.mxu0 0.0
    %5299 = vmatprep.subr.mxu0 0.0
    %5300 = vmatpush1.xpose.msra.mxu0 0.0
    %5301 = vmatprep.subr.mxu0 0.0
    %5302 = vmatpush1.xpose.msra.mxu0 0.0
    %5303 = vmatprep.subr.mxu0 0.0
    %5304 = vmatpush1.xpose.msra.mxu0 0.0
    %5305 = vmatprep.subr.mxu0 0.0
    %5306 = vmatpush1.xpose.msra.mxu0 0.0
    %5307 = vmatprep.subr.mxu0 0.0
    %5308 = vmatpush1.xpose.msra.mxu0 0.0
    %5309 = vmatprep.subr.mxu0 0.0
    %5310 = vmatpush1.xpose.msra.mxu0 0.0
    %5311 = vmatprep.subr.mxu0 0.0
    %5312 = vmatpush1.xpose.msra.mxu0 0.0
    %5313 = vmatprep.subr.mxu0 0.0
    %5314 = vmatpush1.xpose.msra.mxu0 0.0
    %5315 = vmatprep.subr.mxu0 0.0
    %5316 = vmatpush1.xpose.msra.mxu0 0.0
    %5317 = vmatprep.subr.mxu0 0.0
    %5318 = vmatpush1.xpose.msra.mxu0 0.0
    %5319 = vmatprep.subr.mxu0 0.0
    %5320 = vmatpush1.xpose.msra.mxu0 0.0
    %5321 = vmatprep.subr.mxu0 0.0
    %5322 = vmatpush1.xpose.msra.mxu0 0.0
    %5323 = vmatprep.subr.mxu0 0.0
    %5324 = vmatpush1.xpose.msra.mxu0 0.0
    %5325 = vmatprep.subr.mxu0 0.0
    %5326 = vmatpush1.xpose.msra.mxu0 0.0
    %5327 = vmatprep.mubr.f32.mxu0 0.0
    %5328 = vmatmul.mubr.f32.gmra.mrb[0].mxu0 %v5259
    %v5329 = vpop.f32.mrb[0].mxu0
    %v5330 = vadd.f32 %v4775, %v5329
    %v5331 = vpop.f32.mrb[0].mxu0
    %5332 = vdwg.mxu0
    %v5333 = vsel %vm318, %v5330, -inf
    %5334 = vmax.xlane.f32.xlu0 %v5333
    %v5335 = vpop.xlane.xlu0 %5334
    %v5336 = vsub.f32 %v5330, %v5335
    %v5337 = vmul.f32 %v5336, 1.442695
    %v5338 = vpow.pop %v5337
    %v5339 = vsel %vm318, %v5338, 0.0
    %5340 = vadd.xlane.f32.xlu0 %v5339
    %v5341 = vpop.xlane.xlu0 %5340
    %v5342 = vrcp.pop %v5341
    %v5343 = vmul.f32 %v5338, %v5342
    %5344 = vrot.lane.b32.xlu0 %v4767, 80
    %v5345 = vpop.permute.xlu0 %5344
    %v5348 = vsel %vm318, %v5343, 0
    %5350 = vmatprep.subr.mxu0 0.0
    %5351 = vmatpush1.msra.mxu0 %v5345
    %5352 = vmatprep.subr.mxu0 0.0
    %5353 = vmatpush1.msra.mxu0 0.0
    %5354 = vmatprep.subr.mxu0 0.0
    %5355 = vmatpush1.msra.mxu0 0.0
    %5356 = vmatprep.subr.mxu0 0.0
    %5357 = vmatpush1.msra.mxu0 0.0
    %5358 = vmatprep.subr.mxu0 0.0
    %5359 = vmatpush1.msra.mxu0 0.0
    %5360 = vmatprep.subr.mxu0 0.0
    %5361 = vmatpush1.msra.mxu0 0.0
    %5362 = vmatprep.subr.mxu0 0.0
    %5363 = vmatpush1.msra.mxu0 0.0
    %5364 = vmatprep.subr.mxu0 0.0
    %5365 = vmatpush1.msra.mxu0 0.0
    %5366 = vmatprep.subr.mxu0 0.0
    %5367 = vmatpush1.msra.mxu0 0.0
    %5368 = vmatprep.subr.mxu0 0.0
    %5369 = vmatpush1.msra.mxu0 0.0
    %5370 = vmatprep.subr.mxu0 0.0
    %5371 = vmatpush1.msra.mxu0 0.0
    %5372 = vmatprep.subr.mxu0 0.0
    %5373 = vmatpush1.msra.mxu0 0.0
    %5374 = vmatprep.subr.mxu0 0.0
    %5375 = vmatpush1.msra.mxu0 0.0
    %5376 = vmatprep.subr.mxu0 0.0
    %5377 = vmatpush1.msra.mxu0 0.0
    %5378 = vmatprep.subr.mxu0 0.0
    %5379 = vmatpush1.msra.mxu0 0.0
    %5380 = vmatprep.subr.mxu0 0.0
    %5381 = vmatpush1.msra.mxu0 0.0
    %5382 = vmatprep.subr.mxu0 0.0
    %5383 = vmatpush1.msra.mxu0 0.0
    %5384 = vmatprep.subr.mxu0 0.0
    %5385 = vmatpush1.msra.mxu0 0.0
    %5386 = vmatprep.subr.mxu0 0.0
    %5387 = vmatpush1.msra.mxu0 0.0
    %5388 = vmatprep.subr.mxu0 0.0
    %5389 = vmatpush1.msra.mxu0 0.0
    %5390 = vmatprep.subr.mxu0 0.0
    %5391 = vmatpush1.msra.mxu0 0.0
    %5392 = vmatprep.subr.mxu0 0.0
    %5393 = vmatpush1.msra.mxu0 0.0
    %5394 = vmatprep.subr.mxu0 0.0
    %5395 = vmatpush1.msra.mxu0 0.0
    %5396 = vmatprep.subr.mxu0 0.0
    %5397 = vmatpush1.msra.mxu0 0.0
    %5398 = vmatprep.subr.mxu0 0.0
    %5399 = vmatpush1.msra.mxu0 0.0
    %5400 = vmatprep.subr.mxu0 0.0
    %5401 = vmatpush1.msra.mxu0 0.0
    %5402 = vmatprep.subr.mxu0 0.0
    %5403 = vmatpush1.msra.mxu0 0.0
    %5404 = vmatprep.subr.mxu0 0.0
    %5405 = vmatpush1.msra.mxu0 0.0
    %5406 = vmatprep.subr.mxu0 0.0
    %5407 = vmatpush1.msra.mxu0 0.0
    %5408 = vmatprep.subr.mxu0 0.0
    %5409 = vmatpush1.msra.mxu0 0.0
    %5410 = vmatprep.subr.mxu0 0.0
    %5411 = vmatpush1.msra.mxu0 0.0
    %5412 = vmatprep.subr.mxu0 0.0
    %5413 = vmatpush1.msra.mxu0 0.0
    %5414 = vmatprep.mubr.f32.mxu0 0.0
    %5415 = vmatmul.mubr.f32.gmra.mrb[0].mxu0 %v5348
    %v5416 = vpop.f32.mrb[0].mxu0
    %v5417 = vadd.f32 0.0, %v5416
    %v5418 = vpop.f32.mrb[0].mxu0
    %5419 = vdwg.mxu0
    %v5421 = vsel %vm318, %v5417, 0
    %5423 = vmatprep.subr.mxu0 0.0
    %5424 = vmatpush1.msra.mxu0 %v4779
    %5425 = vmatprep.subr.mxu0 0.0
    %5426 = vmatpush1.msra.mxu0 0.0
    %5427 = vmatprep.subr.mxu0 0.0
    %5428 = vmatpush1.msra.mxu0 0.0
    %5429 = vmatprep.subr.mxu0 0.0
    %5430 = vmatpush1.msra.mxu0 0.0
    %5431 = vmatprep.subr.mxu0 0.0
    %5432 = vmatpush1.msra.mxu0 0.0
    %5433 = vmatprep.subr.mxu0 0.0
    %5434 = vmatpush1.msra.mxu0 0.0
    %5435 = vmatprep.subr.mxu0 0.0
    %5436 = vmatpush1.msra.mxu0 0.0
    %5437 = vmatprep.subr.mxu0 0.0
    %5438 = vmatpush1.msra.mxu0 0.0
    %5439 = vmatprep.subr.mxu0 0.0
    %5440 = vmatpush1.msra.mxu0 0.0
    %5441 = vmatprep.subr.mxu0 0.0
    %5442 = vmatpush1.msra.mxu0 0.0
    %5443 = vmatprep.subr.mxu0 0.0
    %5444 = vmatpush1.msra.mxu0 0.0
    %5445 = vmatprep.subr.mxu0 0.0
    %5446 = vmatpush1.msra.mxu0 0.0
    %5447 = vmatprep.subr.mxu0 0.0
    %5448 = vmatpush1.msra.mxu0 0.0
    %5449 = vmatprep.subr.mxu0 0.0
    %5450 = vmatpush1.msra.mxu0 0.0
    %5451 = vmatprep.subr.mxu0 0.0
    %5452 = vmatpush1.msra.mxu0 0.0
    %5453 = vmatprep.subr.mxu0 0.0
    %5454 = vmatpush1.msra.mxu0 0.0
    %5455 = vmatprep.subr.mxu0 0.0
    %5456 = vmatpush1.msra.mxu0 0.0
    %5457 = vmatprep.subr.mxu0 0.0
    %5458 = vmatpush1.msra.mxu0 0.0
    %5459 = vmatprep.subr.mxu0 0.0
    %5460 = vmatpush1.msra.mxu0 0.0
    %5461 = vmatprep.subr.mxu0 0.0
    %5462 = vmatpush1.msra.mxu0 0.0
    %5463 = vmatprep.subr.mxu0 0.0
    %5464 = vmatpush1.msra.mxu0 0.0
    %5465 = vmatprep.subr.mxu0 0.0
    %5466 = vmatpush1.msra.mxu0 0.0
    %5467 = vmatprep.subr.mxu0 0.0
    %5468 = vmatpush1.msra.mxu0 0.0
    %5469 = vmatprep.subr.mxu0 0.0
    %5470 = vmatpush1.msra.mxu0 0.0
    %5471 = vmatprep.subr.mxu0 0.0
    %5472 = vmatpush1.msra.mxu0 0.0
    %5473 = vmatprep.subr.mxu0 0.0
    %5474 = vmatpush1.msra.mxu0 0.0
    %5475 = vmatprep.subr.mxu0 0.0
    %5476 = vmatpush1.msra.mxu0 0.0
    %5477 = vmatprep.subr.mxu0 0.0
    %5478 = vmatpush1.msra.mxu0 0.0
    %5479 = vmatprep.subr.mxu0 0.0
    %5480 = vmatpush1.msra.mxu0 0.0
    %5481 = vmatprep.subr.mxu0 0.0
    %5482 = vmatpush1.msra.mxu0 0.0
    %5483 = vmatprep.subr.mxu0 0.0
    %5484 = vmatpush1.msra.mxu0 0.0
    %5485 = vmatprep.subr.mxu0 0.0
    %5486 = vmatpush1.msra.mxu0 0.0
    %5487 = vmatprep.mubr.f32.mxu0 0.0
    %5488 = vmatmul.mubr.f32.gmra.mrb[0].mxu0 %v5421
    %v5489 = vpop.f32.mrb[0].mxu0
    %v5490 = vadd.f32 0.0, %v5489
    %v5491 = vpop.f32.mrb[0].mxu0
    %5492 = vdwg.mxu0
    %v5493 = vadd.f32 %v5252, %v5490
    %5494 = vrot.lane.b32.xlu0 %v4670, 104
    %v5495 = vpop.permute.xlu0 %5494
    %5496 = vrot.lane.b32.xlu0 %v4767, 104
    %v5497 = vpop.permute.xlu0 %5496
    %v5498 = vsel %vm318, %v5495, 0
    %v5500 = vsel %vm318, %v5497, 0
    %5502 = vmatprep.subr.mxu0 0.0
    %5503 = vmatpush1.xpose.msra.mxu0 %v5500
    %5504 = vmatprep.subr.mxu0 0.0
    %5505 = vmatpush1.xpose.msra.mxu0 0.0
    %5506 = vmatprep.subr.mxu0 0.0
    %5507 = vmatpush1.xpose.msra.mxu0 0.0
    %5508 = vmatprep.subr.mxu0 0.0
    %5509 = vmatpush1.xpose.msra.mxu0 0.0
    %5510 = vmatprep.subr.mxu0 0.0
    %5511 = vmatpush1.xpose.msra.mxu0 0.0
    %5512 = vmatprep.subr.mxu0 0.0
    %5513 = vmatpush1.xpose.msra.mxu0 0.0
    %5514 = vmatprep.subr.mxu0 0.0
    %5515 = vmatpush1.xpose.msra.mxu0 0.0
    %5516 = vmatprep.subr.mxu0 0.0
    %5517 = vmatpush1.xpose.msra.mxu0 0.0
    %5518 = vmatprep.subr.mxu0 0.0
    %5519 = vmatpush1.xpose.msra.mxu0 0.0
    %5520 = vmatprep.subr.mxu0 0.0
    %5521 = vmatpush1.xpose.msra.mxu0 0.0
    %5522 = vmatprep.subr.mxu0 0.0
    %5523 = vmatpush1.xpose.msra.mxu0 0.0
    %5524 = vmatprep.subr.mxu0 0.0
    %5525 = vmatpush1.xpose.msra.mxu0 0.0
    %5526 = vmatprep.subr.mxu0 0.0
    %5527 = vmatpush1.xpose.msra.mxu0 0.0
    %5528 = vmatprep.subr.mxu0 0.0
    %5529 = vmatpush1.xpose.msra.mxu0 0.0
    %5530 = vmatprep.subr.mxu0 0.0
    %5531 = vmatpush1.xpose.msra.mxu0 0.0
    %5532 = vmatprep.subr.mxu0 0.0
    %5533 = vmatpush1.xpose.msra.mxu0 0.0
    %5534 = vmatprep.subr.mxu0 0.0
    %5535 = vmatpush1.xpose.msra.mxu0 0.0
    %5536 = vmatprep.subr.mxu0 0.0
    %5537 = vmatpush1.xpose.msra.mxu0 0.0
    %5538 = vmatprep.subr.mxu0 0.0
    %5539 = vmatpush1.xpose.msra.mxu0 0.0
    %5540 = vmatprep.subr.mxu0 0.0
    %5541 = vmatpush1.xpose.msra.mxu0 0.0
    %5542 = vmatprep.subr.mxu0 0.0
    %5543 = vmatpush1.xpose.msra.mxu0 0.0
    %5544 = vmatprep.subr.mxu0 0.0
    %5545 = vmatpush1.xpose.msra.mxu0 0.0
    %5546 = vmatprep.subr.mxu0 0.0
    %5547 = vmatpush1.xpose.msra.mxu0 0.0
    %5548 = vmatprep.subr.mxu0 0.0
    %5549 = vmatpush1.xpose.msra.mxu0 0.0
    %5550 = vmatprep.subr.mxu0 0.0
    %5551 = vmatpush1.xpose.msra.mxu0 0.0
    %5552 = vmatprep.subr.mxu0 0.0
    %5553 = vmatpush1.xpose.msra.mxu0 0.0
    %5554 = vmatprep.subr.mxu0 0.0
    %5555 = vmatpush1.xpose.msra.mxu0 0.0
    %5556 = vmatprep.subr.mxu0 0.0
    %5557 = vmatpush1.xpose.msra.mxu0 0.0
    %5558 = vmatprep.subr.mxu0 0.0
    %5559 = vmatpush1.xpose.msra.mxu0 0.0
    %5560 = vmatprep.subr.mxu0 0.0
    %5561 = vmatpush1.xpose.msra.mxu0 0.0
    %5562 = vmatprep.subr.mxu0 0.0
    %5563 = vmatpush1.xpose.msra.mxu0 0.0
    %5564 = vmatprep.subr.mxu0 0.0
    %5565 = vmatpush1.xpose.msra.mxu0 0.0
    %5566 = vmatprep.mubr.f32.mxu0 0.0
    %5567 = vmatmul.mubr.f32.gmra.mrb[0].mxu0 %v5498
    %v5568 = vpop.f32.mrb[0].mxu0
    %v5569 = vadd.f32 %v4775, %v5568
    %v5570 = vpop.f32.mrb[0].mxu0
    %5571 = vdwg.mxu0
    %v5572 = vsel %vm318, %v5569, -inf
    %5573 = vmax.xlane.f32.xlu0 %v5572
    %v5574 = vpop.xlane.xlu0 %5573
    %v5575 = vsub.f32 %v5569, %v5574
    %v5576 = vmul.f32 %v5575, 1.442695
    %v5577 = vpow.pop %v5576
    %v5578 = vsel %vm318, %v5577, 0.0
    %5579 = vadd.xlane.f32.xlu0 %v5578
    %v5580 = vpop.xlane.xlu0 %5579
    %v5581 = vrcp.pop %v5580
    %v5582 = vmul.f32 %v5577, %v5581
    %5583 = vrot.lane.b32.xlu0 %v4767, 72
    %v5584 = vpop.permute.xlu0 %5583
    %v5587 = vsel %vm318, %v5582, 0
    %5589 = vmatprep.subr.mxu0 0.0
    %5590 = vmatpush1.msra.mxu0 %v5584
    %5591 = vmatprep.subr.mxu0 0.0
    %5592 = vmatpush1.msra.mxu0 0.0
    %5593 = vmatprep.subr.mxu0 0.0
    %5594 = vmatpush1.msra.mxu0 0.0
    %5595 = vmatprep.subr.mxu0 0.0
    %5596 = vmatpush1.msra.mxu0 0.0
    %5597 = vmatprep.subr.mxu0 0.0
    %5598 = vmatpush1.msra.mxu0 0.0
    %5599 = vmatprep.subr.mxu0 0.0
    %5600 = vmatpush1.msra.mxu0 0.0
    %5601 = vmatprep.subr.mxu0 0.0
    %5602 = vmatpush1.msra.mxu0 0.0
    %5603 = vmatprep.subr.mxu0 0.0
    %5604 = vmatpush1.msra.mxu0 0.0
    %5605 = vmatprep.subr.mxu0 0.0
    %5606 = vmatpush1.msra.mxu0 0.0
    %5607 = vmatprep.subr.mxu0 0.0
    %5608 = vmatpush1.msra.mxu0 0.0
    %5609 = vmatprep.subr.mxu0 0.0
    %5610 = vmatpush1.msra.mxu0 0.0
    %5611 = vmatprep.subr.mxu0 0.0
    %5612 = vmatpush1.msra.mxu0 0.0
    %5613 = vmatprep.subr.mxu0 0.0
    %5614 = vmatpush1.msra.mxu0 0.0
    %5615 = vmatprep.subr.mxu0 0.0
    %5616 = vmatpush1.msra.mxu0 0.0
    %5617 = vmatprep.subr.mxu0 0.0
    %5618 = vmatpush1.msra.mxu0 0.0
    %5619 = vmatprep.subr.mxu0 0.0
    %5620 = vmatpush1.msra.mxu0 0.0
    %5621 = vmatprep.subr.mxu0 0.0
    %5622 = vmatpush1.msra.mxu0 0.0
    %5623 = vmatprep.subr.mxu0 0.0
    %5624 = vmatpush1.msra.mxu0 0.0
    %5625 = vmatprep.subr.mxu0 0.0
    %5626 = vmatpush1.msra.mxu0 0.0
    %5627 = vmatprep.subr.mxu0 0.0
    %5628 = vmatpush1.msra.mxu0 0.0
    %5629 = vmatprep.subr.mxu0 0.0
    %5630 = vmatpush1.msra.mxu0 0.0
    %5631 = vmatprep.subr.mxu0 0.0
    %5632 = vmatpush1.msra.mxu0 0.0
    %5633 = vmatprep.subr.mxu0 0.0
    %5634 = vmatpush1.msra.mxu0 0.0
    %5635 = vmatprep.subr.mxu0 0.0
    %5636 = vmatpush1.msra.mxu0 0.0
    %5637 = vmatprep.subr.mxu0 0.0
    %5638 = vmatpush1.msra.mxu0 0.0
    %5639 = vmatprep.subr.mxu0 0.0
    %5640 = vmatpush1.msra.mxu0 0.0
    %5641 = vmatprep.subr.mxu0 0.0
    %5642 = vmatpush1.msra.mxu0 0.0
    %5643 = vmatprep.subr.mxu0 0.0
    %5644 = vmatpush1.msra.mxu0 0.0
    %5645 = vmatprep.subr.mxu0 0.0
    %5646 = vmatpush1.msra.mxu0 0.0
    %5647 = vmatprep.subr.mxu0 0.0
    %5648 = vmatpush1.msra.mxu0 0.0
    %5649 = vmatprep.subr.mxu0 0.0
    %5650 = vmatpush1.msra.mxu0 0.0
    %5651 = vmatprep.subr.mxu0 0.0
    %5652 = vmatpush1.msra.mxu0 0.0
    %5653 = vmatprep.mubr.f32.mxu0 0.0
    %5654 = vmatmul.mubr.f32.gmra.mrb[0].mxu0 %v5587
    %v5655 = vpop.f32.mrb[0].mxu0
    %v5656 = vadd.f32 0.0, %v5655
    %v5657 = vpop.f32.mrb[0].mxu0
    %5658 = vdwg.mxu0
    %v5660 = vsel %vm318, %v5656, 0
    %5662 = vmatprep.subr.mxu0 0.0
    %5663 = vmatpush1.msra.mxu0 %v4780
    %5664 = vmatprep.subr.mxu0 0.0
    %5665 = vmatpush1.msra.mxu0 0.0
    %5666 = vmatprep.subr.mxu0 0.0
    %5667 = vmatpush1.msra.mxu0 0.0
    %5668 = vmatprep.subr.mxu0 0.0
    %5669 = vmatpush1.msra.mxu0 0.0
    %5670 = vmatprep.subr.mxu0 0.0
    %5671 = vmatpush1.msra.mxu0 0.0
    %5672 = vmatprep.subr.mxu0 0.0
    %5673 = vmatpush1.msra.mxu0 0.0
    %5674 = vmatprep.subr.mxu0 0.0
    %5675 = vmatpush1.msra.mxu0 0.0
    %5676 = vmatprep.subr.mxu0 0.0
    %5677 = vmatpush1.msra.mxu0 0.0
    %5678 = vmatprep.subr.mxu0 0.0
    %5679 = vmatpush1.msra.mxu0 0.0
    %5680 = vmatprep.subr.mxu0 0.0
    %5681 = vmatpush1.msra.mxu0 0.0
    %5682 = vmatprep.subr.mxu0 0.0
    %5683 = vmatpush1.msra.mxu0 0.0
    %5684 = vmatprep.subr.mxu0 0.0
    %5685 = vmatpush1.msra.mxu0 0.0
    %5686 = vmatprep.subr.mxu0 0.0
    %5687 = vmatpush1.msra.mxu0 0.0
    %5688 = vmatprep.subr.mxu0 0.0
    %5689 = vmatpush1.msra.mxu0 0.0
    %5690 = vmatprep.subr.mxu0 0.0
    %5691 = vmatpush1.msra.mxu0 0.0
    %5692 = vmatprep.subr.mxu0 0.0
    %5693 = vmatpush1.msra.mxu0 0.0
    %5694 = vmatprep.subr.mxu0 0.0
    %5695 = vmatpush1.msra.mxu0 0.0
    %5696 = vmatprep.subr.mxu0 0.0
    %5697 = vmatpush1.msra.mxu0 0.0
    %5698 = vmatprep.subr.mxu0 0.0
    %5699 = vmatpush1.msra.mxu0 0.0
    %5700 = vmatprep.subr.mxu0 0.0
    %5701 = vmatpush1.msra.mxu0 0.0
    %5702 = vmatprep.subr.mxu0 0.0
    %5703 = vmatpush1.msra.mxu0 0.0
    %5704 = vmatprep.subr.mxu0 0.0
    %5705 = vmatpush1.msra.mxu0 0.0
    %5706 = vmatprep.subr.mxu0 0.0
    %5707 = vmatpush1.msra.mxu0 0.0
    %5708 = vmatprep.subr.mxu0 0.0
    %5709 = vmatpush1.msra.mxu0 0.0
    %5710 = vmatprep.subr.mxu0 0.0
    %5711 = vmatpush1.msra.mxu0 0.0
    %5712 = vmatprep.subr.mxu0 0.0
    %5713 = vmatpush1.msra.mxu0 0.0
    %5714 = vmatprep.subr.mxu0 0.0
    %5715 = vmatpush1.msra.mxu0 0.0
    %5716 = vmatprep.subr.mxu0 0.0
    %5717 = vmatpush1.msra.mxu0 0.0
    %5718 = vmatprep.subr.mxu0 0.0
    %5719 = vmatpush1.msra.mxu0 0.0
    %5720 = vmatprep.subr.mxu0 0.0
    %5721 = vmatpush1.msra.mxu0 0.0
    %5722 = vmatprep.subr.mxu0 0.0
    %5723 = vmatpush1.msra.mxu0 0.0
    %5724 = vmatprep.subr.mxu0 0.0
    %5725 = vmatpush1.msra.mxu0 0.0
    %5726 = vmatprep.mubr.f32.mxu0 0.0
    %5727 = vmatmul.mubr.f32.gmra.mrb[0].mxu0 %v5660
    %v5728 = vpop.f32.mrb[0].mxu0
    %v5729 = vadd.f32 0.0, %v5728
    %v5730 = vpop.f32.mrb[0].mxu0
    %5731 = vdwg.mxu0
    %v5732 = vadd.f32 %v5493, %v5729
    %v5734 = vsel %vm318, %v4675, 0
    %v5737 = vsel %vm318, %v4772, 0
    %5739 = vmatprep.subr.mxu0 0.0
    %5740 = vmatpush1.xpose.msra.mxu0 %v5737
    %5741 = vmatprep.subr.mxu0 0.0
    %5742 = vmatpush1.xpose.msra.mxu0 0.0
    %5743 = vmatprep.subr.mxu0 0.0
    %5744 = vmatpush1.xpose.msra.mxu0 0.0
    %5745 = vmatprep.subr.mxu0 0.0
    %5746 = vmatpush1.xpose.msra.mxu0 0.0
    %5747 = vmatprep.subr.mxu0 0.0
    %5748 = vmatpush1.xpose.msra.mxu0 0.0
    %5749 = vmatprep.subr.mxu0 0.0
    %5750 = vmatpush1.xpose.msra.mxu0 0.0
    %5751 = vmatprep.subr.mxu0 0.0
    %5752 = vmatpush1.xpose.msra.mxu0 0.0
    %5753 = vmatprep.subr.mxu0 0.0
    %5754 = vmatpush1.xpose.msra.mxu0 0.0
    %5755 = vmatprep.subr.mxu0 0.0
    %5756 = vmatpush1.xpose.msra.mxu0 0.0
    %5757 = vmatprep.subr.mxu0 0.0
    %5758 = vmatpush1.xpose.msra.mxu0 0.0
    %5759 = vmatprep.subr.mxu0 0.0
    %5760 = vmatpush1.xpose.msra.mxu0 0.0
    %5761 = vmatprep.subr.mxu0 0.0
    %5762 = vmatpush1.xpose.msra.mxu0 0.0
    %5763 = vmatprep.subr.mxu0 0.0
    %5764 = vmatpush1.xpose.msra.mxu0 0.0
    %5765 = vmatprep.subr.mxu0 0.0
    %5766 = vmatpush1.xpose.msra.mxu0 0.0
    %5767 = vmatprep.subr.mxu0 0.0
    %5768 = vmatpush1.xpose.msra.mxu0 0.0
    %5769 = vmatprep.subr.mxu0 0.0
    %5770 = vmatpush1.xpose.msra.mxu0 0.0
    %5771 = vmatprep.subr.mxu0 0.0
    %5772 = vmatpush1.xpose.msra.mxu0 0.0
    %5773 = vmatprep.subr.mxu0 0.0
    %5774 = vmatpush1.xpose.msra.mxu0 0.0
    %5775 = vmatprep.subr.mxu0 0.0
    %5776 = vmatpush1.xpose.msra.mxu0 0.0
    %5777 = vmatprep.subr.mxu0 0.0
    %5778 = vmatpush1.xpose.msra.mxu0 0.0
    %5779 = vmatprep.subr.mxu0 0.0
    %5780 = vmatpush1.xpose.msra.mxu0 0.0
    %5781 = vmatprep.subr.mxu0 0.0
    %5782 = vmatpush1.xpose.msra.mxu0 0.0
    %5783 = vmatprep.subr.mxu0 0.0
    %5784 = vmatpush1.xpose.msra.mxu0 0.0
    %5785 = vmatprep.subr.mxu0 0.0
    %5786 = vmatpush1.xpose.msra.mxu0 0.0
    %5787 = vmatprep.subr.mxu0 0.0
    %5788 = vmatpush1.xpose.msra.mxu0 0.0
    %5789 = vmatprep.subr.mxu0 0.0
    %5790 = vmatpush1.xpose.msra.mxu0 0.0
    %5791 = vmatprep.subr.mxu0 0.0
    %5792 = vmatpush1.xpose.msra.mxu0 0.0
    %5793 = vmatprep.subr.mxu0 0.0
    %5794 = vmatpush1.xpose.msra.mxu0 0.0
    %5795 = vmatprep.subr.mxu0 0.0
    %5796 = vmatpush1.xpose.msra.mxu0 0.0
    %5797 = vmatprep.subr.mxu0 0.0
    %5798 = vmatpush1.xpose.msra.mxu0 0.0
    %5799 = vmatprep.subr.mxu0 0.0
    %5800 = vmatpush1.xpose.msra.mxu0 0.0
    %5801 = vmatprep.subr.mxu0 0.0
    %5802 = vmatpush1.xpose.msra.mxu0 0.0
    %5803 = vmatprep.mubr.f32.mxu0 0.0
    %5804 = vmatmul.mubr.f32.gmra.mrb[0].mxu0 %v5734
    %v5805 = vpop.f32.mrb[0].mxu0
    %v5806 = vadd.f32 %v4776, %v5805
    %v5807 = vpop.f32.mrb[0].mxu0
    %5808 = vdwg.mxu0
    %v5809 = vsel %vm318, %v5806, -inf
    %5810 = vmax.xlane.f32.xlu0 %v5809
    %v5811 = vpop.xlane.xlu0 %5810
    %v5812 = vsub.f32 %v5806, %v5811
    %v5813 = vmul.f32 %v5812, 1.442695
    %v5814 = vpow.pop %v5813
    %v5815 = vsel %vm318, %v5814, 0.0
    %5816 = vadd.xlane.f32.xlu0 %v5815
    %v5817 = vpop.xlane.xlu0 %5816
    %v5818 = vrcp.pop %v5817
    %v5819 = vmul.f32 %v5814, %v5818
    %5820 = vrot.lane.b32.xlu0 %v4772, 96
    %v5821 = vpop.permute.xlu0 %5820
    %v5824 = vsel %vm318, %v5819, 0
    %5826 = vmatprep.subr.mxu0 0.0
    %5827 = vmatpush1.msra.mxu0 %v5821
    %5828 = vmatprep.subr.mxu0 0.0
    %5829 = vmatpush1.msra.mxu0 0.0
    %5830 = vmatprep.subr.mxu0 0.0
    %5831 = vmatpush1.msra.mxu0 0.0
    %5832 = vmatprep.subr.mxu0 0.0
    %5833 = vmatpush1.msra.mxu0 0.0
    %5834 = vmatprep.subr.mxu0 0.0
    %5835 = vmatpush1.msra.mxu0 0.0
    %5836 = vmatprep.subr.mxu0 0.0
    %5837 = vmatpush1.msra.mxu0 0.0
    %5838 = vmatprep.subr.mxu0 0.0
    %5839 = vmatpush1.msra.mxu0 0.0
    %5840 = vmatprep.subr.mxu0 0.0
    %5841 = vmatpush1.msra.mxu0 0.0
    %5842 = vmatprep.subr.mxu0 0.0
    %5843 = vmatpush1.msra.mxu0 0.0
    %5844 = vmatprep.subr.mxu0 0.0
    %5845 = vmatpush1.msra.mxu0 0.0
    %5846 = vmatprep.subr.mxu0 0.0
    %5847 = vmatpush1.msra.mxu0 0.0
    %5848 = vmatprep.subr.mxu0 0.0
    %5849 = vmatpush1.msra.mxu0 0.0
    %5850 = vmatprep.subr.mxu0 0.0
    %5851 = vmatpush1.msra.mxu0 0.0
    %5852 = vmatprep.subr.mxu0 0.0
    %5853 = vmatpush1.msra.mxu0 0.0
    %5854 = vmatprep.subr.mxu0 0.0
    %5855 = vmatpush1.msra.mxu0 0.0
    %5856 = vmatprep.subr.mxu0 0.0
    %5857 = vmatpush1.msra.mxu0 0.0
    %5858 = vmatprep.subr.mxu0 0.0
    %5859 = vmatpush1.msra.mxu0 0.0
    %5860 = vmatprep.subr.mxu0 0.0
    %5861 = vmatpush1.msra.mxu0 0.0
    %5862 = vmatprep.subr.mxu0 0.0
    %5863 = vmatpush1.msra.mxu0 0.0
    %5864 = vmatprep.subr.mxu0 0.0
    %5865 = vmatpush1.msra.mxu0 0.0
    %5866 = vmatprep.subr.mxu0 0.0
    %5867 = vmatpush1.msra.mxu0 0.0
    %5868 = vmatprep.subr.mxu0 0.0
    %5869 = vmatpush1.msra.mxu0 0.0
    %5870 = vmatprep.subr.mxu0 0.0
    %5871 = vmatpush1.msra.mxu0 0.0
    %5872 = vmatprep.subr.mxu0 0.0
    %5873 = vmatpush1.msra.mxu0 0.0
    %5874 = vmatprep.subr.mxu0 0.0
    %5875 = vmatpush1.msra.mxu0 0.0
    %5876 = vmatprep.subr.mxu0 0.0
    %5877 = vmatpush1.msra.mxu0 0.0
    %5878 = vmatprep.subr.mxu0 0.0
    %5879 = vmatpush1.msra.mxu0 0.0
    %5880 = vmatprep.subr.mxu0 0.0
    %5881 = vmatpush1.msra.mxu0 0.0
    %5882 = vmatprep.subr.mxu0 0.0
    %5883 = vmatpush1.msra.mxu0 0.0
    %5884 = vmatprep.subr.mxu0 0.0
    %5885 = vmatpush1.msra.mxu0 0.0
    %5886 = vmatprep.subr.mxu0 0.0
    %5887 = vmatpush1.msra.mxu0 0.0
    %5888 = vmatprep.subr.mxu0 0.0
    %5889 = vmatpush1.msra.mxu0 0.0
    %5890 = vmatprep.mubr.f32.mxu0 0.0
    %5891 = vmatmul.mubr.f32.gmra.mrb[0].mxu0 %v5824
    %v5892 = vpop.f32.mrb[0].mxu0
    %v5893 = vadd.f32 0.0, %v5892
    %v5894 = vpop.f32.mrb[0].mxu0
    %5895 = vdwg.mxu0
    %5896 = vrot.lane.b32.xlu0 %v4675, 120
    %v5897 = vpop.permute.xlu0 %5896
    %5898 = vrot.lane.b32.xlu0 %v4772, 120
    %v5899 = vpop.permute.xlu0 %5898
    %v5900 = vsel %vm318, %v5897, 0
    %v5902 = vsel %vm318, %v5899, 0
    %5904 = vmatprep.subr.mxu0 0.0
    %5905 = vmatpush1.xpose.msra.mxu0 %v5902
    %5906 = vmatprep.subr.mxu0 0.0
    %5907 = vmatpush1.xpose.msra.mxu0 0.0
    %5908 = vmatprep.subr.mxu0 0.0
    %5909 = vmatpush1.xpose.msra.mxu0 0.0
    %5910 = vmatprep.subr.mxu0 0.0
    %5911 = vmatpush1.xpose.msra.mxu0 0.0
    %5912 = vmatprep.subr.mxu0 0.0
    %5913 = vmatpush1.xpose.msra.mxu0 0.0
    %5914 = vmatprep.subr.mxu0 0.0
    %5915 = vmatpush1.xpose.msra.mxu0 0.0
    %5916 = vmatprep.subr.mxu0 0.0
    %5917 = vmatpush1.xpose.msra.mxu0 0.0
    %5918 = vmatprep.subr.mxu0 0.0
    %5919 = vmatpush1.xpose.msra.mxu0 0.0
    %5920 = vmatprep.subr.mxu0 0.0
    %5921 = vmatpush1.xpose.msra.mxu0 0.0
    %5922 = vmatprep.subr.mxu0 0.0
    %5923 = vmatpush1.xpose.msra.mxu0 0.0
    %5924 = vmatprep.subr.mxu0 0.0
    %5925 = vmatpush1.xpose.msra.mxu0 0.0
    %5926 = vmatprep.subr.mxu0 0.0
    %5927 = vmatpush1.xpose.msra.mxu0 0.0
    %5928 = vmatprep.subr.mxu0 0.0
    %5929 = vmatpush1.xpose.msra.mxu0 0.0
    %5930 = vmatprep.subr.mxu0 0.0
    %5931 = vmatpush1.xpose.msra.mxu0 0.0
    %5932 = vmatprep.subr.mxu0 0.0
    %5933 = vmatpush1.xpose.msra.mxu0 0.0
    %5934 = vmatprep.subr.mxu0 0.0
    %5935 = vmatpush1.xpose.msra.mxu0 0.0
    %5936 = vmatprep.subr.mxu0 0.0
    %5937 = vmatpush1.xpose.msra.mxu0 0.0
    %5938 = vmatprep.subr.mxu0 0.0
    %5939 = vmatpush1.xpose.msra.mxu0 0.0
    %5940 = vmatprep.subr.mxu0 0.0
    %5941 = vmatpush1.xpose.msra.mxu0 0.0
    %5942 = vmatprep.subr.mxu0 0.0
    %5943 = vmatpush1.xpose.msra.mxu0 0.0
    %5944 = vmatprep.subr.mxu0 0.0
    %5945 = vmatpush1.xpose.msra.mxu0 0.0
    %5946 = vmatprep.subr.mxu0 0.0
    %5947 = vmatpush1.xpose.msra.mxu0 0.0
    %5948 = vmatprep.subr.mxu0 0.0
    %5949 = vmatpush1.xpose.msra.mxu0 0.0
    %5950 = vmatprep.subr.mxu0 0.0
    %5951 = vmatpush1.xpose.msra.mxu0 0.0
    %5952 = vmatprep.subr.mxu0 0.0
    %5953 = vmatpush1.xpose.msra.mxu0 0.0
    %5954 = vmatprep.subr.mxu0 0.0
    %5955 = vmatpush1.xpose.msra.mxu0 0.0
    %5956 = vmatprep.subr.mxu0 0.0
    %5957 = vmatpush1.xpose.msra.mxu0 0.0
    %5958 = vmatprep.subr.mxu0 0.0
    %5959 = vmatpush1.xpose.msra.mxu0 0.0
    %5960 = vmatprep.subr.mxu0 0.0
    %5961 = vmatpush1.xpose.msra.mxu0 0.0
    %5962 = vmatprep.subr.mxu0 0.0
    %5963 = vmatpush1.xpose.msra.mxu0 0.0
    %5964 = vmatprep.subr.mxu0 0.0
    %5965 = vmatpush1.xpose.msra.mxu0 0.0
    %5966 = vmatprep.subr.mxu0 0.0
    %5967 = vmatpush1.xpose.msra.mxu0 0.0
    %5968 = vmatprep.mubr.f32.mxu0 0.0
    %5969 = vmatmul.mubr.f32.gmra.mrb[0].mxu0 %v5900
    %v5970 = vpop.f32.mrb[0].mxu0
    %v5971 = vadd.f32 %v4776, %v5970
    %v5972 = vpop.f32.mrb[0].mxu0
    %5973 = vdwg.mxu0
    %v5974 = vsel %vm318, %v5971, -inf
    %5975 = vmax.xlane.f32.xlu0 %v5974
    %v5976 = vpop.xlane.xlu0 %5975
    %v5977 = vsub.f32 %v5971, %v5976
    %v5978 = vmul.f32 %v5977, 1.442695
    %v5979 = vpow.pop %v5978
    %v5980 = vsel %vm318, %v5979, 0.0
    %5981 = vadd.xlane.f32.xlu0 %v5980
    %v5982 = vpop.xlane.xlu0 %5981
    %v5983 = vrcp.pop %v5982
    %v5984 = vmul.f32 %v5979, %v5983
    %5985 = vrot.lane.b32.xlu0 %v4772, 88
    %v5986 = vpop.permute.xlu0 %5985
    %v5989 = vsel %vm318, %v5984, 0
    %5991 = vmatprep.subr.mxu0 0.0
    %5992 = vmatpush1.msra.mxu0 %v5986
    %5993 = vmatprep.subr.mxu0 0.0
    %5994 = vmatpush1.msra.mxu0 0.0
    %5995 = vmatprep.subr.mxu0 0.0
    %5996 = vmatpush1.msra.mxu0 0.0
    %5997 = vmatprep.subr.mxu0 0.0
    %5998 = vmatpush1.msra.mxu0 0.0
    %5999 = vmatprep.subr.mxu0 0.0
    %6000 = vmatpush1.msra.mxu0 0.0
    %6001 = vmatprep.subr.mxu0 0.0
    %6002 = vmatpush1.msra.mxu0 0.0
    %6003 = vmatprep.subr.mxu0 0.0
    %6004 = vmatpush1.msra.mxu0 0.0
    %6005 = vmatprep.subr.mxu0 0.0
    %6006 = vmatpush1.msra.mxu0 0.0
    %6007 = vmatprep.subr.mxu0 0.0
    %6008 = vmatpush1.msra.mxu0 0.0
    %6009 = vmatprep.subr.mxu0 0.0
    %6010 = vmatpush1.msra.mxu0 0.0
    %6011 = vmatprep.subr.mxu0 0.0
    %6012 = vmatpush1.msra.mxu0 0.0
    %6013 = vmatprep.subr.mxu0 0.0
    %6014 = vmatpush1.msra.mxu0 0.0
    %6015 = vmatprep.subr.mxu0 0.0
    %6016 = vmatpush1.msra.mxu0 0.0
    %6017 = vmatprep.subr.mxu0 0.0
    %6018 = vmatpush1.msra.mxu0 0.0
    %6019 = vmatprep.subr.mxu0 0.0
    %6020 = vmatpush1.msra.mxu0 0.0
    %6021 = vmatprep.subr.mxu0 0.0
    %6022 = vmatpush1.msra.mxu0 0.0
    %6023 = vmatprep.subr.mxu0 0.0
    %6024 = vmatpush1.msra.mxu0 0.0
    %6025 = vmatprep.subr.mxu0 0.0
    %6026 = vmatpush1.msra.mxu0 0.0
    %6027 = vmatprep.subr.mxu0 0.0
    %6028 = vmatpush1.msra.mxu0 0.0
    %6029 = vmatprep.subr.mxu0 0.0
    %6030 = vmatpush1.msra.mxu0 0.0
    %6031 = vmatprep.subr.mxu0 0.0
    %6032 = vmatpush1.msra.mxu0 0.0
    %6033 = vmatprep.subr.mxu0 0.0
    %6034 = vmatpush1.msra.mxu0 0.0
    %6035 = vmatprep.subr.mxu0 0.0
    %6036 = vmatpush1.msra.mxu0 0.0
    %6037 = vmatprep.subr.mxu0 0.0
    %6038 = vmatpush1.msra.mxu0 0.0
    %6039 = vmatprep.subr.mxu0 0.0
    %6040 = vmatpush1.msra.mxu0 0.0
    %6041 = vmatprep.subr.mxu0 0.0
    %6042 = vmatpush1.msra.mxu0 0.0
    %6043 = vmatprep.subr.mxu0 0.0
    %6044 = vmatpush1.msra.mxu0 0.0
    %6045 = vmatprep.subr.mxu0 0.0
    %6046 = vmatpush1.msra.mxu0 0.0
    %6047 = vmatprep.subr.mxu0 0.0
    %6048 = vmatpush1.msra.mxu0 0.0
    %6049 = vmatprep.subr.mxu0 0.0
    %6050 = vmatpush1.msra.mxu0 0.0
    %6051 = vmatprep.subr.mxu0 0.0
    %6052 = vmatpush1.msra.mxu0 0.0
    %6053 = vmatprep.subr.mxu0 0.0
    %6054 = vmatpush1.msra.mxu0 0.0
    %6055 = vmatprep.mubr.f32.mxu0 0.0
    %6056 = vmatmul.mubr.f32.gmra.mrb[0].mxu0 %v5989
    %v6057 = vpop.f32.mrb[0].mxu0
    %v6058 = vadd.f32 0.0, %v6057
    %v6059 = vpop.f32.mrb[0].mxu0
    %6060 = vdwg.mxu0
    %v6062 = vsel %vm318, %v6058, 0
    %6064 = vmatprep.subr.mxu0 0.0
    %6065 = vmatpush1.msra.mxu0 %v4778
    %6066 = vmatprep.subr.mxu0 0.0
    %6067 = vmatpush1.msra.mxu0 0.0
    %6068 = vmatprep.subr.mxu0 0.0
    %6069 = vmatpush1.msra.mxu0 0.0
    %6070 = vmatprep.subr.mxu0 0.0
    %6071 = vmatpush1.msra.mxu0 0.0
    %6072 = vmatprep.subr.mxu0 0.0
    %6073 = vmatpush1.msra.mxu0 0.0
    %6074 = vmatprep.subr.mxu0 0.0
    %6075 = vmatpush1.msra.mxu0 0.0
    %6076 = vmatprep.subr.mxu0 0.0
    %6077 = vmatpush1.msra.mxu0 0.0
    %6078 = vmatprep.subr.mxu0 0.0
    %6079 = vmatpush1.msra.mxu0 0.0
    %6080 = vmatprep.subr.mxu0 0.0
    %6081 = vmatpush1.msra.mxu0 0.0
    %6082 = vmatprep.subr.mxu0 0.0
    %6083 = vmatpush1.msra.mxu0 0.0
    %6084 = vmatprep.subr.mxu0 0.0
    %6085 = vmatpush1.msra.mxu0 0.0
    %6086 = vmatprep.subr.mxu0 0.0
    %6087 = vmatpush1.msra.mxu0 0.0
    %6088 = vmatprep.subr.mxu0 0.0
    %6089 = vmatpush1.msra.mxu0 0.0
    %6090 = vmatprep.subr.mxu0 0.0
    %6091 = vmatpush1.msra.mxu0 0.0
    %6092 = vmatprep.subr.mxu0 0.0
    %6093 = vmatpush1.msra.mxu0 0.0
    %6094 = vmatprep.subr.mxu0 0.0
    %6095 = vmatpush1.msra.mxu0 0.0
    %6096 = vmatprep.subr.mxu0 0.0
    %6097 = vmatpush1.msra.mxu0 0.0
    %6098 = vmatprep.subr.mxu0 0.0
    %6099 = vmatpush1.msra.mxu0 0.0
    %6100 = vmatprep.subr.mxu0 0.0
    %6101 = vmatpush1.msra.mxu0 0.0
    %6102 = vmatprep.subr.mxu0 0.0
    %6103 = vmatpush1.msra.mxu0 0.0
    %6104 = vmatprep.subr.mxu0 0.0
    %6105 = vmatpush1.msra.mxu0 0.0
    %6106 = vmatprep.subr.mxu0 0.0
    %6107 = vmatpush1.msra.mxu0 0.0
    %6108 = vmatprep.subr.mxu0 0.0
    %6109 = vmatpush1.msra.mxu0 0.0
    %6110 = vmatprep.subr.mxu0 0.0
    %6111 = vmatpush1.msra.mxu0 0.0
    %6112 = vmatprep.subr.mxu0 0.0
    %6113 = vmatpush1.msra.mxu0 0.0
    %6114 = vmatprep.subr.mxu0 0.0
    %6115 = vmatpush1.msra.mxu0 0.0
    %6116 = vmatprep.subr.mxu0 0.0
    %6117 = vmatpush1.msra.mxu0 0.0
    %6118 = vmatprep.subr.mxu0 0.0
    %6119 = vmatpush1.msra.mxu0 0.0
    %6120 = vmatprep.subr.mxu0 0.0
    %6121 = vmatpush1.msra.mxu0 0.0
    %6122 = vmatprep.subr.mxu0 0.0
    %6123 = vmatpush1.msra.mxu0 0.0
    %6124 = vmatprep.subr.mxu0 0.0
    %6125 = vmatpush1.msra.mxu0 0.0
    %6126 = vmatprep.subr.mxu0 0.0
    %6127 = vmatpush1.msra.mxu0 0.0
    %6128 = vmatprep.mubr.f32.mxu0 0.0
    %6129 = vmatmul.mubr.f32.gmra.mrb[0].mxu0 %v6062
    %v6130 = vpop.f32.mrb[0].mxu0
    %v6131 = vadd.f32 0.0, %v6130
    %v6132 = vpop.f32.mrb[0].mxu0
    %6133 = vdwg.mxu0
    %v6135 = vsel %vm318, %v5893, 0
    %6137 = vmatprep.subr.mxu0 0.0
    %6138 = vmatpush1.msra.mxu0 %v4777
    %6139 = vmatprep.subr.mxu0 0.0
    %6140 = vmatpush1.msra.mxu0 0.0
    %6141 = vmatprep.subr.mxu0 0.0
    %6142 = vmatpush1.msra.mxu0 0.0
    %6143 = vmatprep.subr.mxu0 0.0
    %6144 = vmatpush1.msra.mxu0 0.0
    %6145 = vmatprep.subr.mxu0 0.0
    %6146 = vmatpush1.msra.mxu0 0.0
    %6147 = vmatprep.subr.mxu0 0.0
    %6148 = vmatpush1.msra.mxu0 0.0
    %6149 = vmatprep.subr.mxu0 0.0
    %6150 = vmatpush1.msra.mxu0 0.0
    %6151 = vmatprep.subr.mxu0 0.0
    %6152 = vmatpush1.msra.mxu0 0.0
    %6153 = vmatprep.subr.mxu0 0.0
    %6154 = vmatpush1.msra.mxu0 0.0
    %6155 = vmatprep.subr.mxu0 0.0
    %6156 = vmatpush1.msra.mxu0 0.0
    %6157 = vmatprep.subr.mxu0 0.0
    %6158 = vmatpush1.msra.mxu0 0.0
    %6159 = vmatprep.subr.mxu0 0.0
    %6160 = vmatpush1.msra.mxu0 0.0
    %6161 = vmatprep.subr.mxu0 0.0
    %6162 = vmatpush1.msra.mxu0 0.0
    %6163 = vmatprep.subr.mxu0 0.0
    %6164 = vmatpush1.msra.mxu0 0.0
    %6165 = vmatprep.subr.mxu0 0.0
    %6166 = vmatpush1.msra.mxu0 0.0
    %6167 = vmatprep.subr.mxu0 0.0
    %6168 = vmatpush1.msra.mxu0 0.0
    %6169 = vmatprep.subr.mxu0 0.0
    %6170 = vmatpush1.msra.mxu0 0.0
    %6171 = vmatprep.subr.mxu0 0.0
    %6172 = vmatpush1.msra.mxu0 0.0
    %6173 = vmatprep.subr.mxu0 0.0
    %6174 = vmatpush1.msra.mxu0 0.0
    %6175 = vmatprep.subr.mxu0 0.0
    %6176 = vmatpush1.msra.mxu0 0.0
    %6177 = vmatprep.subr.mxu0 0.0
    %6178 = vmatpush1.msra.mxu0 0.0
    %6179 = vmatprep.subr.mxu0 0.0
    %6180 = vmatpush1.msra.mxu0 0.0
    %6181 = vmatprep.subr.mxu0 0.0
    %6182 = vmatpush1.msra.mxu0 0.0
    %6183 = vmatprep.subr.mxu0 0.0
    %6184 = vmatpush1.msra.mxu0 0.0
    %6185 = vmatprep.subr.mxu0 0.0
    %6186 = vmatpush1.msra.mxu0 0.0
    %6187 = vmatprep.subr.mxu0 0.0
    %6188 = vmatpush1.msra.mxu0 0.0
    %6189 = vmatprep.subr.mxu0 0.0
    %6190 = vmatpush1.msra.mxu0 0.0
    %6191 = vmatprep.subr.mxu0 0.0
    %6192 = vmatpush1.msra.mxu0 0.0
    %6193 = vmatprep.subr.mxu0 0.0
    %6194 = vmatpush1.msra.mxu0 0.0
    %6195 = vmatprep.subr.mxu0 0.0
    %6196 = vmatpush1.msra.mxu0 0.0
    %6197 = vmatprep.subr.mxu0 0.0
    %6198 = vmatpush1.msra.mxu0 0.0
    %6199 = vmatprep.subr.mxu0 0.0
    %6200 = vmatpush1.msra.mxu0 0.0
    %6201 = vmatprep.mubr.f32.mxu0 0.0
    %6202 = vmatmul.mubr.f32.gmra.mrb[0].mxu0 %v6135
    %v6203 = vpop.f32.mrb[0].mxu0
    %v6204 = vadd.f32 %v6131, %v6203
    %v6205 = vpop.f32.mrb[0].mxu0
    %6206 = vdwg.mxu0
    %6207 = vrot.lane.b32.xlu0 %v4675, 112
    %v6208 = vpop.permute.xlu0 %6207
    %6209 = vrot.lane.b32.xlu0 %v4772, 112
    %v6210 = vpop.permute.xlu0 %6209
    %v6211 = vsel %vm318, %v6208, 0
    %v6213 = vsel %vm318, %v6210, 0
    %6215 = vmatprep.subr.mxu0 0.0
    %6216 = vmatpush1.xpose.msra.mxu0 %v6213
    %6217 = vmatprep.subr.mxu0 0.0
    %6218 = vmatpush1.xpose.msra.mxu0 0.0
    %6219 = vmatprep.subr.mxu0 0.0
    %6220 = vmatpush1.xpose.msra.mxu0 0.0
    %6221 = vmatprep.subr.mxu0 0.0
    %6222 = vmatpush1.xpose.msra.mxu0 0.0
    %6223 = vmatprep.subr.mxu0 0.0
    %6224 = vmatpush1.xpose.msra.mxu0 0.0
    %6225 = vmatprep.subr.mxu0 0.0
    %6226 = vmatpush1.xpose.msra.mxu0 0.0
    %6227 = vmatprep.subr.mxu0 0.0
    %6228 = vmatpush1.xpose.msra.mxu0 0.0
    %6229 = vmatprep.subr.mxu0 0.0
    %6230 = vmatpush1.xpose.msra.mxu0 0.0
    %6231 = vmatprep.subr.mxu0 0.0
    %6232 = vmatpush1.xpose.msra.mxu0 0.0
    %6233 = vmatprep.subr.mxu0 0.0
    %6234 = vmatpush1.xpose.msra.mxu0 0.0
    %6235 = vmatprep.subr.mxu0 0.0
    %6236 = vmatpush1.xpose.msra.mxu0 0.0
    %6237 = vmatprep.subr.mxu0 0.0
    %6238 = vmatpush1.xpose.msra.mxu0 0.0
    %6239 = vmatprep.subr.mxu0 0.0
    %6240 = vmatpush1.xpose.msra.mxu0 0.0
    %6241 = vmatprep.subr.mxu0 0.0
    %6242 = vmatpush1.xpose.msra.mxu0 0.0
    %6243 = vmatprep.subr.mxu0 0.0
    %6244 = vmatpush1.xpose.msra.mxu0 0.0
    %6245 = vmatprep.subr.mxu0 0.0
    %6246 = vmatpush1.xpose.msra.mxu0 0.0
    %6247 = vmatprep.subr.mxu0 0.0
    %6248 = vmatpush1.xpose.msra.mxu0 0.0
    %6249 = vmatprep.subr.mxu0 0.0
    %6250 = vmatpush1.xpose.msra.mxu0 0.0
    %6251 = vmatprep.subr.mxu0 0.0
    %6252 = vmatpush1.xpose.msra.mxu0 0.0
    %6253 = vmatprep.subr.mxu0 0.0
    %6254 = vmatpush1.xpose.msra.mxu0 0.0
    %6255 = vmatprep.subr.mxu0 0.0
    %6256 = vmatpush1.xpose.msra.mxu0 0.0
    %6257 = vmatprep.subr.mxu0 0.0
    %6258 = vmatpush1.xpose.msra.mxu0 0.0
    %6259 = vmatprep.subr.mxu0 0.0
    %6260 = vmatpush1.xpose.msra.mxu0 0.0
    %6261 = vmatprep.subr.mxu0 0.0
    %6262 = vmatpush1.xpose.msra.mxu0 0.0
    %6263 = vmatprep.subr.mxu0 0.0
    %6264 = vmatpush1.xpose.msra.mxu0 0.0
    %6265 = vmatprep.subr.mxu0 0.0
    %6266 = vmatpush1.xpose.msra.mxu0 0.0
    %6267 = vmatprep.subr.mxu0 0.0
    %6268 = vmatpush1.xpose.msra.mxu0 0.0
    %6269 = vmatprep.subr.mxu0 0.0
    %6270 = vmatpush1.xpose.msra.mxu0 0.0
    %6271 = vmatprep.subr.mxu0 0.0
    %6272 = vmatpush1.xpose.msra.mxu0 0.0
    %6273 = vmatprep.subr.mxu0 0.0
    %6274 = vmatpush1.xpose.msra.mxu0 0.0
    %6275 = vmatprep.subr.mxu0 0.0
    %6276 = vmatpush1.xpose.msra.mxu0 0.0
    %6277 = vmatprep.subr.mxu0 0.0
    %6278 = vmatpush1.xpose.msra.mxu0 0.0
    %6279 = vmatprep.mubr.f32.mxu0 0.0
    %6280 = vmatmul.mubr.f32.gmra.mrb[0].mxu0 %v6211
    %v6281 = vpop.f32.mrb[0].mxu0
    %v6282 = vadd.f32 %v4776, %v6281
    %v6283 = vpop.f32.mrb[0].mxu0
    %6284 = vdwg.mxu0
    %v6285 = vsel %vm318, %v6282, -inf
    %6286 = vmax.xlane.f32.xlu0 %v6285
    %v6287 = vpop.xlane.xlu0 %6286
    %v6288 = vsub.f32 %v6282, %v6287
    %v6289 = vmul.f32 %v6288, 1.442695
    %v6290 = vpow.pop %v6289
    %v6291 = vsel %vm318, %v6290, 0.0
    %6292 = vadd.xlane.f32.xlu0 %v6291
    %v6293 = vpop.xlane.xlu0 %6292
    %v6294 = vrcp.pop %v6293
    %v6295 = vmul.f32 %v6290, %v6294
    %6296 = vrot.lane.b32.xlu0 %v4772, 80
    %v6297 = vpop.permute.xlu0 %6296
    %v6300 = vsel %vm318, %v6295, 0
    %6302 = vmatprep.subr.mxu0 0.0
    %6303 = vmatpush1.msra.mxu0 %v6297
    %6304 = vmatprep.subr.mxu0 0.0
    %6305 = vmatpush1.msra.mxu0 0.0
    %6306 = vmatprep.subr.mxu0 0.0
    %6307 = vmatpush1.msra.mxu0 0.0
    %6308 = vmatprep.subr.mxu0 0.0
    %6309 = vmatpush1.msra.mxu0 0.0
    %6310 = vmatprep.subr.mxu0 0.0
    %6311 = vmatpush1.msra.mxu0 0.0
    %6312 = vmatprep.subr.mxu0 0.0
    %6313 = vmatpush1.msra.mxu0 0.0
    %6314 = vmatprep.subr.mxu0 0.0
    %6315 = vmatpush1.msra.mxu0 0.0
    %6316 = vmatprep.subr.mxu0 0.0
    %6317 = vmatpush1.msra.mxu0 0.0
    %6318 = vmatprep.subr.mxu0 0.0
    %6319 = vmatpush1.msra.mxu0 0.0
    %6320 = vmatprep.subr.mxu0 0.0
    %6321 = vmatpush1.msra.mxu0 0.0
    %6322 = vmatprep.subr.mxu0 0.0
    %6323 = vmatpush1.msra.mxu0 0.0
    %6324 = vmatprep.subr.mxu0 0.0
    %6325 = vmatpush1.msra.mxu0 0.0
    %6326 = vmatprep.subr.mxu0 0.0
    %6327 = vmatpush1.msra.mxu0 0.0
    %6328 = vmatprep.subr.mxu0 0.0
    %6329 = vmatpush1.msra.mxu0 0.0
    %6330 = vmatprep.subr.mxu0 0.0
    %6331 = vmatpush1.msra.mxu0 0.0
    %6332 = vmatprep.subr.mxu0 0.0
    %6333 = vmatpush1.msra.mxu0 0.0
    %6334 = vmatprep.subr.mxu0 0.0
    %6335 = vmatpush1.msra.mxu0 0.0
    %6336 = vmatprep.subr.mxu0 0.0
    %6337 = vmatpush1.msra.mxu0 0.0
    %6338 = vmatprep.subr.mxu0 0.0
    %6339 = vmatpush1.msra.mxu0 0.0
    %6340 = vmatprep.subr.mxu0 0.0
    %6341 = vmatpush1.msra.mxu0 0.0
    %6342 = vmatprep.subr.mxu0 0.0
    %6343 = vmatpush1.msra.mxu0 0.0
    %6344 = vmatprep.subr.mxu0 0.0
    %6345 = vmatpush1.msra.mxu0 0.0
    %6346 = vmatprep.subr.mxu0 0.0
    %6347 = vmatpush1.msra.mxu0 0.0
    %6348 = vmatprep.subr.mxu0 0.0
    %6349 = vmatpush1.msra.mxu0 0.0
    %6350 = vmatprep.subr.mxu0 0.0
    %6351 = vmatpush1.msra.mxu0 0.0
    %6352 = vmatprep.subr.mxu0 0.0
    %6353 = vmatpush1.msra.mxu0 0.0
    %6354 = vmatprep.subr.mxu0 0.0
    %6355 = vmatpush1.msra.mxu0 0.0
    %6356 = vmatprep.subr.mxu0 0.0
    %6357 = vmatpush1.msra.mxu0 0.0
    %6358 = vmatprep.subr.mxu0 0.0
    %6359 = vmatpush1.msra.mxu0 0.0
    %6360 = vmatprep.subr.mxu0 0.0
    %6361 = vmatpush1.msra.mxu0 0.0
    %6362 = vmatprep.subr.mxu0 0.0
    %6363 = vmatpush1.msra.mxu0 0.0
    %6364 = vmatprep.subr.mxu0 0.0
    %6365 = vmatpush1.msra.mxu0 0.0
    %6366 = vmatprep.mubr.f32.mxu0 0.0
    %6367 = vmatmul.mubr.f32.gmra.mrb[0].mxu0 %v6300
    %v6368 = vpop.f32.mrb[0].mxu0
    %v6369 = vadd.f32 0.0, %v6368
    %v6370 = vpop.f32.mrb[0].mxu0
    %6371 = vdwg.mxu0
    %v6373 = vsel %vm318, %v6369, 0
    %6375 = vmatprep.subr.mxu0 0.0
    %6376 = vmatpush1.msra.mxu0 %v4779
    %6377 = vmatprep.subr.mxu0 0.0
    %6378 = vmatpush1.msra.mxu0 0.0
    %6379 = vmatprep.subr.mxu0 0.0
    %6380 = vmatpush1.msra.mxu0 0.0
    %6381 = vmatprep.subr.mxu0 0.0
    %6382 = vmatpush1.msra.mxu0 0.0
    %6383 = vmatprep.subr.mxu0 0.0
    %6384 = vmatpush1.msra.mxu0 0.0
    %6385 = vmatprep.subr.mxu0 0.0
    %6386 = vmatpush1.msra.mxu0 0.0
    %6387 = vmatprep.subr.mxu0 0.0
    %6388 = vmatpush1.msra.mxu0 0.0
    %6389 = vmatprep.subr.mxu0 0.0
    %6390 = vmatpush1.msra.mxu0 0.0
    %6391 = vmatprep.subr.mxu0 0.0
    %6392 = vmatpush1.msra.mxu0 0.0
    %6393 = vmatprep.subr.mxu0 0.0
    %6394 = vmatpush1.msra.mxu0 0.0
    %6395 = vmatprep.subr.mxu0 0.0
    %6396 = vmatpush1.msra.mxu0 0.0
    %6397 = vmatprep.subr.mxu0 0.0
    %6398 = vmatpush1.msra.mxu0 0.0
    %6399 = vmatprep.subr.mxu0 0.0
    %6400 = vmatpush1.msra.mxu0 0.0
    %6401 = vmatprep.subr.mxu0 0.0
    %6402 = vmatpush1.msra.mxu0 0.0
    %6403 = vmatprep.subr.mxu0 0.0
    %6404 = vmatpush1.msra.mxu0 0.0
    %6405 = vmatprep.subr.mxu0 0.0
    %6406 = vmatpush1.msra.mxu0 0.0
    %6407 = vmatprep.subr.mxu0 0.0
    %6408 = vmatpush1.msra.mxu0 0.0
    %6409 = vmatprep.subr.mxu0 0.0
    %6410 = vmatpush1.msra.mxu0 0.0
    %6411 = vmatprep.subr.mxu0 0.0
    %6412 = vmatpush1.msra.mxu0 0.0
    %6413 = vmatprep.subr.mxu0 0.0
    %6414 = vmatpush1.msra.mxu0 0.0
    %6415 = vmatprep.subr.mxu0 0.0
    %6416 = vmatpush1.msra.mxu0 0.0
    %6417 = vmatprep.subr.mxu0 0.0
    %6418 = vmatpush1.msra.mxu0 0.0
    %6419 = vmatprep.subr.mxu0 0.0
    %6420 = vmatpush1.msra.mxu0 0.0
    %6421 = vmatprep.subr.mxu0 0.0
    %6422 = vmatpush1.msra.mxu0 0.0
    %6423 = vmatprep.subr.mxu0 0.0
    %6424 = vmatpush1.msra.mxu0 0.0
    %6425 = vmatprep.subr.mxu0 0.0
    %6426 = vmatpush1.msra.mxu0 0.0
    %6427 = vmatprep.subr.mxu0 0.0
    %6428 = vmatpush1.msra.mxu0 0.0
    %6429 = vmatprep.subr.mxu0 0.0
    %6430 = vmatpush1.msra.mxu0 0.0
    %6431 = vmatprep.subr.mxu0 0.0
    %6432 = vmatpush1.msra.mxu0 0.0
    %6433 = vmatprep.subr.mxu0 0.0
    %6434 = vmatpush1.msra.mxu0 0.0
    %6435 = vmatprep.subr.mxu0 0.0
    %6436 = vmatpush1.msra.mxu0 0.0
    %6437 = vmatprep.subr.mxu0 0.0
    %6438 = vmatpush1.msra.mxu0 0.0
    %6439 = vmatprep.mubr.f32.mxu0 0.0
    %6440 = vmatmul.mubr.f32.gmra.mrb[0].mxu0 %v6373
    %v6441 = vpop.f32.mrb[0].mxu0
    %v6442 = vadd.f32 0.0, %v6441
    %v6443 = vpop.f32.mrb[0].mxu0
    %6444 = vdwg.mxu0
    %v6445 = vadd.f32 %v6204, %v6442
    %6446 = vrot.lane.b32.xlu0 %v4675, 104
    %v6447 = vpop.permute.xlu0 %6446
    %6448 = vrot.lane.b32.xlu0 %v4772, 104
    %v6449 = vpop.permute.xlu0 %6448
    %v6450 = vsel %vm318, %v6447, 0
    %v6452 = vsel %vm318, %v6449, 0
    %6454 = vmatprep.subr.mxu0 0.0
    %6455 = vmatpush1.xpose.msra.mxu0 %v6452
    %6456 = vmatprep.subr.mxu0 0.0
    %6457 = vmatpush1.xpose.msra.mxu0 0.0
    %6458 = vmatprep.subr.mxu0 0.0
    %6459 = vmatpush1.xpose.msra.mxu0 0.0
    %6460 = vmatprep.subr.mxu0 0.0
    %6461 = vmatpush1.xpose.msra.mxu0 0.0
    %6462 = vmatprep.subr.mxu0 0.0
    %6463 = vmatpush1.xpose.msra.mxu0 0.0
    %6464 = vmatprep.subr.mxu0 0.0
    %6465 = vmatpush1.xpose.msra.mxu0 0.0
    %6466 = vmatprep.subr.mxu0 0.0
    %6467 = vmatpush1.xpose.msra.mxu0 0.0
    %6468 = vmatprep.subr.mxu0 0.0
    %6469 = vmatpush1.xpose.msra.mxu0 0.0
    %6470 = vmatprep.subr.mxu0 0.0
    %6471 = vmatpush1.xpose.msra.mxu0 0.0
    %6472 = vmatprep.subr.mxu0 0.0
    %6473 = vmatpush1.xpose.msra.mxu0 0.0
    %6474 = vmatprep.subr.mxu0 0.0
    %6475 = vmatpush1.xpose.msra.mxu0 0.0
    %6476 = vmatprep.subr.mxu0 0.0
    %6477 = vmatpush1.xpose.msra.mxu0 0.0
    %6478 = vmatprep.subr.mxu0 0.0
    %6479 = vmatpush1.xpose.msra.mxu0 0.0
    %6480 = vmatprep.subr.mxu0 0.0
    %6481 = vmatpush1.xpose.msra.mxu0 0.0
    %6482 = vmatprep.subr.mxu0 0.0
    %6483 = vmatpush1.xpose.msra.mxu0 0.0
    %6484 = vmatprep.subr.mxu0 0.0
    %6485 = vmatpush1.xpose.msra.mxu0 0.0
    %6486 = vmatprep.subr.mxu0 0.0
    %6487 = vmatpush1.xpose.msra.mxu0 0.0
    %6488 = vmatprep.subr.mxu0 0.0
    %6489 = vmatpush1.xpose.msra.mxu0 0.0
    %6490 = vmatprep.subr.mxu0 0.0
    %6491 = vmatpush1.xpose.msra.mxu0 0.0
    %6492 = vmatprep.subr.mxu0 0.0
    %6493 = vmatpush1.xpose.msra.mxu0 0.0
    %6494 = vmatprep.subr.mxu0 0.0
    %6495 = vmatpush1.xpose.msra.mxu0 0.0
    %6496 = vmatprep.subr.mxu0 0.0
    %6497 = vmatpush1.xpose.msra.mxu0 0.0
    %6498 = vmatprep.subr.mxu0 0.0
    %6499 = vmatpush1.xpose.msra.mxu0 0.0
    %6500 = vmatprep.subr.mxu0 0.0
    %6501 = vmatpush1.xpose.msra.mxu0 0.0
    %6502 = vmatprep.subr.mxu0 0.0
    %6503 = vmatpush1.xpose.msra.mxu0 0.0
    %6504 = vmatprep.subr.mxu0 0.0
    %6505 = vmatpush1.xpose.msra.mxu0 0.0
    %6506 = vmatprep.subr.mxu0 0.0
    %6507 = vmatpush1.xpose.msra.mxu0 0.0
    %6508 = vmatprep.subr.mxu0 0.0
    %6509 = vmatpush1.xpose.msra.mxu0 0.0
    %6510 = vmatprep.subr.mxu0 0.0
    %6511 = vmatpush1.xpose.msra.mxu0 0.0
    %6512 = vmatprep.subr.mxu0 0.0
    %6513 = vmatpush1.xpose.msra.mxu0 0.0
    %6514 = vmatprep.subr.mxu0 0.0
    %6515 = vmatpush1.xpose.msra.mxu0 0.0
    %6516 = vmatprep.subr.mxu0 0.0
    %6517 = vmatpush1.xpose.msra.mxu0 0.0
    %6518 = vmatprep.mubr.f32.mxu0 0.0
    %6519 = vmatmul.mubr.f32.gmra.mrb[0].mxu0 %v6450
    %v6520 = vpop.f32.mrb[0].mxu0
    %v6521 = vadd.f32 %v4776, %v6520
    %v6522 = vpop.f32.mrb[0].mxu0
    %6523 = vdwg.mxu0
    %v6524 = vsel %vm318, %v6521, -inf
    %6525 = vmax.xlane.f32.xlu0 %v6524
    %v6526 = vpop.xlane.xlu0 %6525
    %v6527 = vsub.f32 %v6521, %v6526
    %v6528 = vmul.f32 %v6527, 1.442695
    %v6529 = vpow.pop %v6528
    %v6530 = vsel %vm318, %v6529, 0.0
    %6531 = vadd.xlane.f32.xlu0 %v6530
    %v6532 = vpop.xlane.xlu0 %6531
    %v6533 = vrcp.pop %v6532
    %v6534 = vmul.f32 %v6529, %v6533
    %6535 = vrot.lane.b32.xlu0 %v4772, 72
    %v6536 = vpop.permute.xlu0 %6535
    %v6539 = vsel %vm318, %v6534, 0
    %6541 = vmatprep.subr.mxu0 0.0
    %6542 = vmatpush1.msra.mxu0 %v6536
    %6543 = vmatprep.subr.mxu0 0.0
    %6544 = vmatpush1.msra.mxu0 0.0
    %6545 = vmatprep.subr.mxu0 0.0
    %6546 = vmatpush1.msra.mxu0 0.0
    %6547 = vmatprep.subr.mxu0 0.0
    %6548 = vmatpush1.msra.mxu0 0.0
    %6549 = vmatprep.subr.mxu0 0.0
    %6550 = vmatpush1.msra.mxu0 0.0
    %6551 = vmatprep.subr.mxu0 0.0
    %6552 = vmatpush1.msra.mxu0 0.0
    %6553 = vmatprep.subr.mxu0 0.0
    %6554 = vmatpush1.msra.mxu0 0.0
    %6555 = vmatprep.subr.mxu0 0.0
    %6556 = vmatpush1.msra.mxu0 0.0
    %6557 = vmatprep.subr.mxu0 0.0
    %6558 = vmatpush1.msra.mxu0 0.0
    %6559 = vmatprep.subr.mxu0 0.0
    %6560 = vmatpush1.msra.mxu0 0.0
    %6561 = vmatprep.subr.mxu0 0.0
    %6562 = vmatpush1.msra.mxu0 0.0
    %6563 = vmatprep.subr.mxu0 0.0
    %6564 = vmatpush1.msra.mxu0 0.0
    %6565 = vmatprep.subr.mxu0 0.0
    %6566 = vmatpush1.msra.mxu0 0.0
    %6567 = vmatprep.subr.mxu0 0.0
    %6568 = vmatpush1.msra.mxu0 0.0
    %6569 = vmatprep.subr.mxu0 0.0
    %6570 = vmatpush1.msra.mxu0 0.0
    %6571 = vmatprep.subr.mxu0 0.0
    %6572 = vmatpush1.msra.mxu0 0.0
    %6573 = vmatprep.subr.mxu0 0.0
    %6574 = vmatpush1.msra.mxu0 0.0
    %6575 = vmatprep.subr.mxu0 0.0
    %6576 = vmatpush1.msra.mxu0 0.0
    %6577 = vmatprep.subr.mxu0 0.0
    %6578 = vmatpush1.msra.mxu0 0.0
    %6579 = vmatprep.subr.mxu0 0.0
    %6580 = vmatpush1.msra.mxu0 0.0
    %6581 = vmatprep.subr.mxu0 0.0
    %6582 = vmatpush1.msra.mxu0 0.0
    %6583 = vmatprep.subr.mxu0 0.0
    %6584 = vmatpush1.msra.mxu0 0.0
    %6585 = vmatprep.subr.mxu0 0.0
    %6586 = vmatpush1.msra.mxu0 0.0
    %6587 = vmatprep.subr.mxu0 0.0
    %6588 = vmatpush1.msra.mxu0 0.0
    %6589 = vmatprep.subr.mxu0 0.0
    %6590 = vmatpush1.msra.mxu0 0.0
    %6591 = vmatprep.subr.mxu0 0.0
    %6592 = vmatpush1.msra.mxu0 0.0
    %6593 = vmatprep.subr.mxu0 0.0
    %6594 = vmatpush1.msra.mxu0 0.0
    %6595 = vmatprep.subr.mxu0 0.0
    %6596 = vmatpush1.msra.mxu0 0.0
    %6597 = vmatprep.subr.mxu0 0.0
    %6598 = vmatpush1.msra.mxu0 0.0
    %6599 = vmatprep.subr.mxu0 0.0
    %6600 = vmatpush1.msra.mxu0 0.0
    %6601 = vmatprep.subr.mxu0 0.0
    %6602 = vmatpush1.msra.mxu0 0.0
    %6603 = vmatprep.subr.mxu0 0.0
    %6604 = vmatpush1.msra.mxu0 0.0
    %6605 = vmatprep.mubr.f32.mxu0 0.0
    %6606 = vmatmul.mubr.f32.gmra.mrb[0].mxu0 %v6539
    %v6607 = vpop.f32.mrb[0].mxu0
    %v6608 = vadd.f32 0.0, %v6607
    %v6609 = vpop.f32.mrb[0].mxu0
    %6610 = vdwg.mxu0
    %v6612 = vsel %vm318, %v6608, 0
    %6614 = vmatprep.subr.mxu0 0.0
    %6615 = vmatpush1.msra.mxu0 %v4780
    %6616 = vmatprep.subr.mxu0 0.0
    %6617 = vmatpush1.msra.mxu0 0.0
    %6618 = vmatprep.subr.mxu0 0.0
    %6619 = vmatpush1.msra.mxu0 0.0
    %6620 = vmatprep.subr.mxu0 0.0
    %6621 = vmatpush1.msra.mxu0 0.0
    %6622 = vmatprep.subr.mxu0 0.0
    %6623 = vmatpush1.msra.mxu0 0.0
    %6624 = vmatprep.subr.mxu0 0.0
    %6625 = vmatpush1.msra.mxu0 0.0
    %6626 = vmatprep.subr.mxu0 0.0
    %6627 = vmatpush1.msra.mxu0 0.0
    %6628 = vmatprep.subr.mxu0 0.0
    %6629 = vmatpush1.msra.mxu0 0.0
    %6630 = vmatprep.subr.mxu0 0.0
    %6631 = vmatpush1.msra.mxu0 0.0
    %6632 = vmatprep.subr.mxu0 0.0
    %6633 = vmatpush1.msra.mxu0 0.0
    %6634 = vmatprep.subr.mxu0 0.0
    %6635 = vmatpush1.msra.mxu0 0.0
    %6636 = vmatprep.subr.mxu0 0.0
    %6637 = vmatpush1.msra.mxu0 0.0
    %6638 = vmatprep.subr.mxu0 0.0
    %6639 = vmatpush1.msra.mxu0 0.0
    %6640 = vmatprep.subr.mxu0 0.0
    %6641 = vmatpush1.msra.mxu0 0.0
    %6642 = vmatprep.subr.mxu0 0.0
    %6643 = vmatpush1.msra.mxu0 0.0
    %6644 = vmatprep.subr.mxu0 0.0
    %6645 = vmatpush1.msra.mxu0 0.0
    %6646 = vmatprep.subr.mxu0 0.0
    %6647 = vmatpush1.msra.mxu0 0.0
    %6648 = vmatprep.subr.mxu0 0.0
    %6649 = vmatpush1.msra.mxu0 0.0
    %6650 = vmatprep.subr.mxu0 0.0
    %6651 = vmatpush1.msra.mxu0 0.0
    %6652 = vmatprep.subr.mxu0 0.0
    %6653 = vmatpush1.msra.mxu0 0.0
    %6654 = vmatprep.subr.mxu0 0.0
    %6655 = vmatpush1.msra.mxu0 0.0
    %6656 = vmatprep.subr.mxu0 0.0
    %6657 = vmatpush1.msra.mxu0 0.0
    %6658 = vmatprep.subr.mxu0 0.0
    %6659 = vmatpush1.msra.mxu0 0.0
    %6660 = vmatprep.subr.mxu0 0.0
    %6661 = vmatpush1.msra.mxu0 0.0
    %6662 = vmatprep.subr.mxu0 0.0
    %6663 = vmatpush1.msra.mxu0 0.0
    %6664 = vmatprep.subr.mxu0 0.0
    %6665 = vmatpush1.msra.mxu0 0.0
    %6666 = vmatprep.subr.mxu0 0.0
    %6667 = vmatpush1.msra.mxu0 0.0
    %6668 = vmatprep.subr.mxu0 0.0
    %6669 = vmatpush1.msra.mxu0 0.0
    %6670 = vmatprep.subr.mxu0 0.0
    %6671 = vmatpush1.msra.mxu0 0.0
    %6672 = vmatprep.subr.mxu0 0.0
    %6673 = vmatpush1.msra.mxu0 0.0
    %6674 = vmatprep.subr.mxu0 0.0
    %6675 = vmatpush1.msra.mxu0 0.0
    %6676 = vmatprep.subr.mxu0 0.0
    %6677 = vmatpush1.msra.mxu0 0.0
    %6678 = vmatprep.mubr.f32.mxu0 0.0
    %6679 = vmatmul.mubr.f32.gmra.mrb[0].mxu0 %v6612
    %v6680 = vpop.f32.mrb[0].mxu0
    %v6681 = vadd.f32 0.0, %v6680
    %v6682 = vpop.f32.mrb[0].mxu0
    %6683 = vdwg.mxu0
    %v6684 = vadd.f32 %v6445, %v6681
    %v6685 = vadd.f32 %v4566, %v5732
    %v6686 = vadd.f32 %v4567, %v6684
    %v6687 = vmul.f32 %v6685, %v6685
    %v6688 = vmul.f32 %v6686, %v6686
    %v6689 = vsel %vm193, %v6687, 0.0
    %6690 = vadd.xlane.f32.xlu0 %v6689
    %v6691 = vpop.xlane.xlu0 %6690
    %v6692 = vsel %vm193, %v6688, 0.0
    %6693 = vadd.xlane.f32.xlu0 %v6692
    %v6694 = vpop.xlane.xlu0 %6693
    %v6695 = vmul.f32 %v6691, %v200
    %v6696 = vmul.f32 %v6694, %v200
    %v6697 = vadd.f32 %v6695, 1e-06
    %v6698 = vadd.f32 %v6696, 1e-06
    %v6699 = vrsqrt.pop %v6697
    %v6700 = vrsqrt.pop %v6698
    %v6701 = vmul.f32 %v6685, %v6699
    %v6702 = vmul.f32 %v6686, %v6700
    %v6703 = vld [vmem:[%s21] sm:$0x1]
    %v6705 = vlaneseq
    %v6706 = vshrl.u32 %v6705, 7
    %v6707 = vsub.s32 0, %v6706
    %v6708 = vrot.slane %v6703, %v6707
    %v6710 = vmul.f32 %v6701, %v6708
    %v6711 = vmul.f32 %v6702, %v6708
    %v6712 = vld [vmem:[%s22] sm:$0xff]
    %v6713 = vld [vmem:[%s22 + $0x8] sm:$0xff]
    %v6714 = vld [vmem:[%s22 + $0x10] sm:$0xff]
    %v6715 = vld [vmem:[%s22 + $0x18] sm:$0xff]
    %v6717 = vsel %vm193, %v6710, 0
    %v6720 = vsel %vm193, %v6711, 0
    %6722 = vmatprep.subr.mxu0 0.0
    %6723 = vmatpush1.msra.mxu0 %v6712
    %6724 = vmatprep.subr.mxu0 0.0
    %6725 = vmatpush1.msra.mxu0 %v6713
    %6726 = vmatprep.subr.mxu0 0.0
    %6727 = vmatpush1.msra.mxu0 %v6714
    %6728 = vmatprep.subr.mxu0 0.0
    %6729 = vmatpush1.msra.mxu0 %v6715
    %6730 = vmatprep.subr.mxu0 0.0
    %6731 = vmatpush1.msra.mxu0 0.0
    %6732 = vmatprep.subr.mxu0 0.0
    %6733 = vmatpush1.msra.mxu0 0.0
    %6734 = vmatprep.subr.mxu0 0.0
    %6735 = vmatpush1.msra.mxu0 0.0
    %6736 = vmatprep.subr.mxu0 0.0
    %6737 = vmatpush1.msra.mxu0 0.0
    %6738 = vmatprep.subr.mxu0 0.0
    %6739 = vmatpush1.msra.mxu0 0.0
    %6740 = vmatprep.subr.mxu0 0.0
    %6741 = vmatpush1.msra.mxu0 0.0
    %6742 = vmatprep.subr.mxu0 0.0
    %6743 = vmatpush1.msra.mxu0 0.0
    %6744 = vmatprep.subr.mxu0 0.0
    %6745 = vmatpush1.msra.mxu0 0.0
    %6746 = vmatprep.subr.mxu0 0.0
    %6747 = vmatpush1.msra.mxu0 0.0
    %6748 = vmatprep.subr.mxu0 0.0
    %6749 = vmatpush1.msra.mxu0 0.0
    %6750 = vmatprep.subr.mxu0 0.0
    %6751 = vmatpush1.msra.mxu0 0.0
    %6752 = vmatprep.subr.mxu0 0.0
    %6753 = vmatpush1.msra.mxu0 0.0
    %6754 = vmatprep.subr.mxu0 0.0
    %6755 = vmatpush1.msra.mxu0 0.0
    %6756 = vmatprep.subr.mxu0 0.0
    %6757 = vmatpush1.msra.mxu0 0.0
    %6758 = vmatprep.subr.mxu0 0.0
    %6759 = vmatpush1.msra.mxu0 0.0
    %6760 = vmatprep.subr.mxu0 0.0
    %6761 = vmatpush1.msra.mxu0 0.0
    %6762 = vmatprep.subr.mxu0 0.0
    %6763 = vmatpush1.msra.mxu0 0.0
    %6764 = vmatprep.subr.mxu0 0.0
    %6765 = vmatpush1.msra.mxu0 0.0
    %6766 = vmatprep.subr.mxu0 0.0
    %6767 = vmatpush1.msra.mxu0 0.0
    %6768 = vmatprep.subr.mxu0 0.0
    %6769 = vmatpush1.msra.mxu0 0.0
    %6770 = vmatprep.subr.mxu0 0.0
    %6771 = vmatpush1.msra.mxu0 0.0
    %6772 = vmatprep.subr.mxu0 0.0
    %6773 = vmatpush1.msra.mxu0 0.0
    %6774 = vmatprep.subr.mxu0 0.0
    %6775 = vmatpush1.msra.mxu0 0.0
    %6776 = vmatprep.subr.mxu0 0.0
    %6777 = vmatpush1.msra.mxu0 0.0
    %6778 = vmatprep.subr.mxu0 0.0
    %6779 = vmatpush1.msra.mxu0 0.0
    %6780 = vmatprep.subr.mxu0 0.0
    %6781 = vmatpush1.msra.mxu0 0.0
    %6782 = vmatprep.subr.mxu0 0.0
    %6783 = vmatpush1.msra.mxu0 0.0
    %6784 = vmatprep.subr.mxu0 0.0
    %6785 = vmatpush1.msra.mxu0 0.0
    %6786 = vmatprep.mubr.f32.mxu0 0.0
    %6787 = vmatmul.mubr.f32.gmra.mrb[0].mxu0 %v6717
    %v6788 = vpop.f32.mrb[0].mxu0
    %v6789 = vadd.f32 0.0, %v6788
    %v6790 = vpop.f32.mrb[0].mxu0
    %6791 = vmatprep.mubr.f32.mxu0 0.0
    %6792 = vmatmul.mubr.f32.gmra.mrb[0].mxu0 %v6720
    %v6793 = vpop.f32.mrb[0].mxu0
    %v6794 = vadd.f32 0.0, %v6793
    %v6795 = vpop.f32.mrb[0].mxu0
    %6796 = vdwg.mxu0
    %v6797 = vmax.f32 %v6789, 0.0
    %v6798 = vmax.f32 %v6794, 0.0
    %v6799 = vld [vmem:[%s23] sm:$0xff]
    %v6800 = vld [vmem:[%s23 + $0x8] sm:$0xff]
    %v6801 = vld [vmem:[%s23 + $0x10] sm:$0xff]
    %v6802 = vld [vmem:[%s23 + $0x18] sm:$0xff]
    %v6803 = vld [vmem:[%s23 + $0x20] sm:$0xff]
    %v6804 = vld [vmem:[%s23 + $0x28] sm:$0xff]
    %v6805 = vld [vmem:[%s23 + $0x30] sm:$0xff]
    %v6806 = vld [vmem:[%s23 + $0x38] sm:$0xff]
    %v6808 = vsel %vm2344, %v6797, 0
    %v6811 = vsel %vm2344, %v6798, 0
    %6813 = vmatprep.subr.mxu0 0.0
    %6814 = vmatpush1.msra.mxu0 %v6799
    %6815 = vmatprep.subr.mxu0 0.0
    %6816 = vmatpush1.msra.mxu0 %v6800
    %6817 = vmatprep.subr.mxu0 0.0
    %6818 = vmatpush1.msra.mxu0 %v6801
    %6819 = vmatprep.subr.mxu0 0.0
    %6820 = vmatpush1.msra.mxu0 %v6802
    %6821 = vmatprep.subr.mxu0 0.0
    %6822 = vmatpush1.msra.mxu0 %v6803
    %6823 = vmatprep.subr.mxu0 0.0
    %6824 = vmatpush1.msra.mxu0 %v6804
    %6825 = vmatprep.subr.mxu0 0.0
    %6826 = vmatpush1.msra.mxu0 %v6805
    %6827 = vmatprep.subr.mxu0 0.0
    %6828 = vmatpush1.msra.mxu0 %v6806
    %6829 = vmatprep.subr.mxu0 0.0
    %6830 = vmatpush1.msra.mxu0 0.0
    %6831 = vmatprep.subr.mxu0 0.0
    %6832 = vmatpush1.msra.mxu0 0.0
    %6833 = vmatprep.subr.mxu0 0.0
    %6834 = vmatpush1.msra.mxu0 0.0
    %6835 = vmatprep.subr.mxu0 0.0
    %6836 = vmatpush1.msra.mxu0 0.0
    %6837 = vmatprep.subr.mxu0 0.0
    %6838 = vmatpush1.msra.mxu0 0.0
    %6839 = vmatprep.subr.mxu0 0.0
    %6840 = vmatpush1.msra.mxu0 0.0
    %6841 = vmatprep.subr.mxu0 0.0
    %6842 = vmatpush1.msra.mxu0 0.0
    %6843 = vmatprep.subr.mxu0 0.0
    %6844 = vmatpush1.msra.mxu0 0.0
    %6845 = vmatprep.subr.mxu0 0.0
    %6846 = vmatpush1.msra.mxu0 0.0
    %6847 = vmatprep.subr.mxu0 0.0
    %6848 = vmatpush1.msra.mxu0 0.0
    %6849 = vmatprep.subr.mxu0 0.0
    %6850 = vmatpush1.msra.mxu0 0.0
    %6851 = vmatprep.subr.mxu0 0.0
    %6852 = vmatpush1.msra.mxu0 0.0
    %6853 = vmatprep.subr.mxu0 0.0
    %6854 = vmatpush1.msra.mxu0 0.0
    %6855 = vmatprep.subr.mxu0 0.0
    %6856 = vmatpush1.msra.mxu0 0.0
    %6857 = vmatprep.subr.mxu0 0.0
    %6858 = vmatpush1.msra.mxu0 0.0
    %6859 = vmatprep.subr.mxu0 0.0
    %6860 = vmatpush1.msra.mxu0 0.0
    %6861 = vmatprep.subr.mxu0 0.0
    %6862 = vmatpush1.msra.mxu0 0.0
    %6863 = vmatprep.subr.mxu0 0.0
    %6864 = vmatpush1.msra.mxu0 0.0
    %6865 = vmatprep.subr.mxu0 0.0
    %6866 = vmatpush1.msra.mxu0 0.0
    %6867 = vmatprep.subr.mxu0 0.0
    %6868 = vmatpush1.msra.mxu0 0.0
    %6869 = vmatprep.subr.mxu0 0.0
    %6870 = vmatpush1.msra.mxu0 0.0
    %6871 = vmatprep.subr.mxu0 0.0
    %6872 = vmatpush1.msra.mxu0 0.0
    %6873 = vmatprep.subr.mxu0 0.0
    %6874 = vmatpush1.msra.mxu0 0.0
    %6875 = vmatprep.subr.mxu0 0.0
    %6876 = vmatpush1.msra.mxu0 0.0
    %6877 = vmatprep.mubr.f32.mxu0 0.0
    %6878 = vmatmul.mubr.f32.gmra.mrb[0].mxu0 %v6808
    %v6879 = vpop.f32.mrb[0].mxu0
    %v6880 = vadd.f32 0.0, %v6879
    %v6881 = vpop.f32.mrb[0].mxu0
    %6882 = vmatprep.mubr.f32.mxu0 0.0
    %6883 = vmatmul.mubr.f32.gmra.mrb[0].mxu0 %v6811
    %v6884 = vpop.f32.mrb[0].mxu0
    %v6885 = vadd.f32 0.0, %v6884
    %v6886 = vpop.f32.mrb[0].mxu0
    %6887 = vdwg.mxu0
    %v6888 = vadd.f32 %v6685, %v6880
    %v6889 = vadd.f32 %v6686, %v6885
    %v6890 = vmul.f32 %v6888, %v6888
    %v6891 = vmul.f32 %v6889, %v6889
    %v6892 = vsel %vm193, %v6890, 0.0
    %6893 = vadd.xlane.f32.xlu0 %v6892
    %v6894 = vpop.xlane.xlu0 %6893
    %v6895 = vsel %vm193, %v6891, 0.0
    %6896 = vadd.xlane.f32.xlu0 %v6895
    %v6897 = vpop.xlane.xlu0 %6896
    %v6898 = vmul.f32 %v6894, %v200
    %v6899 = vmul.f32 %v6897, %v200
    %v6900 = vadd.f32 %v6898, 1e-06
    %v6901 = vadd.f32 %v6899, 1e-06
    %v6902 = vrsqrt.pop %v6900
    %v6903 = vrsqrt.pop %v6901
    %v6904 = vmul.f32 %v6888, %v6902
    %v6905 = vmul.f32 %v6889, %v6903
    %v6906 = vld [vmem:[%s24] sm:$0x1]
    %v6908 = vlaneseq
    %v6909 = vshrl.u32 %v6908, 7
    %v6910 = vsub.s32 0, %v6909
    %v6911 = vrot.slane %v6906, %v6910
    %v6913 = vmul.f32 %v6904, %v6911
    %v6914 = vmul.f32 %v6905, %v6911
    %v6915 = vmul.f32 %v6913, 0.17677669
    %v6916 = vmul.f32 %v6914, 0.17677669
    %v6917 = vld [vmem:[%s4] sm:$0xff]
    %v6918 = vld [vmem:[%s4 + $0x8] sm:$0xff]
    %v6919 = vld [vmem:[%s4 + $0x10] sm:$0xff]
    %v6920 = vld [vmem:[%s4 + $0x18] sm:$0xff]
    %v6922 = vsel %vm193, %v6915, 0
    %v6925 = vsel %vm193, %v6916, 0
    %6927 = vmatprep.subr.mxu0 0.0
    %6928 = vmatpush1.msra.mxu0 %v6917
    %6929 = vmatprep.subr.mxu0 0.0
    %6930 = vmatpush1.msra.mxu0 %v6918
    %6931 = vmatprep.subr.mxu0 0.0
    %6932 = vmatpush1.msra.mxu0 %v6919
    %6933 = vmatprep.subr.mxu0 0.0
    %6934 = vmatpush1.msra.mxu0 %v6920
    %6935 = vmatprep.subr.mxu0 0.0
    %6936 = vmatpush1.msra.mxu0 0.0
    %6937 = vmatprep.subr.mxu0 0.0
    %6938 = vmatpush1.msra.mxu0 0.0
    %6939 = vmatprep.subr.mxu0 0.0
    %6940 = vmatpush1.msra.mxu0 0.0
    %6941 = vmatprep.subr.mxu0 0.0
    %6942 = vmatpush1.msra.mxu0 0.0
    %6943 = vmatprep.subr.mxu0 0.0
    %6944 = vmatpush1.msra.mxu0 0.0
    %6945 = vmatprep.subr.mxu0 0.0
    %6946 = vmatpush1.msra.mxu0 0.0
    %6947 = vmatprep.subr.mxu0 0.0
    %6948 = vmatpush1.msra.mxu0 0.0
    %6949 = vmatprep.subr.mxu0 0.0
    %6950 = vmatpush1.msra.mxu0 0.0
    %6951 = vmatprep.subr.mxu0 0.0
    %6952 = vmatpush1.msra.mxu0 0.0
    %6953 = vmatprep.subr.mxu0 0.0
    %6954 = vmatpush1.msra.mxu0 0.0
    %6955 = vmatprep.subr.mxu0 0.0
    %6956 = vmatpush1.msra.mxu0 0.0
    %6957 = vmatprep.subr.mxu0 0.0
    %6958 = vmatpush1.msra.mxu0 0.0
    %6959 = vmatprep.subr.mxu0 0.0
    %6960 = vmatpush1.msra.mxu0 0.0
    %6961 = vmatprep.subr.mxu0 0.0
    %6962 = vmatpush1.msra.mxu0 0.0
    %6963 = vmatprep.subr.mxu0 0.0
    %6964 = vmatpush1.msra.mxu0 0.0
    %6965 = vmatprep.subr.mxu0 0.0
    %6966 = vmatpush1.msra.mxu0 0.0
    %6967 = vmatprep.subr.mxu0 0.0
    %6968 = vmatpush1.msra.mxu0 0.0
    %6969 = vmatprep.subr.mxu0 0.0
    %6970 = vmatpush1.msra.mxu0 0.0
    %6971 = vmatprep.subr.mxu0 0.0
    %6972 = vmatpush1.msra.mxu0 0.0
    %6973 = vmatprep.subr.mxu0 0.0
    %6974 = vmatpush1.msra.mxu0 0.0
    %6975 = vmatprep.subr.mxu0 0.0
    %6976 = vmatpush1.msra.mxu0 0.0
    %6977 = vmatprep.subr.mxu0 0.0
    %6978 = vmatpush1.msra.mxu0 0.0
    %6979 = vmatprep.subr.mxu0 0.0
    %6980 = vmatpush1.msra.mxu0 0.0
    %6981 = vmatprep.subr.mxu0 0.0
    %6982 = vmatpush1.msra.mxu0 0.0
    %6983 = vmatprep.subr.mxu0 0.0
    %6984 = vmatpush1.msra.mxu0 0.0
    %6985 = vmatprep.subr.mxu0 0.0
    %6986 = vmatpush1.msra.mxu0 0.0
    %6987 = vmatprep.subr.mxu0 0.0
    %6988 = vmatpush1.msra.mxu0 0.0
    %6989 = vmatprep.subr.mxu0 0.0
    %6990 = vmatpush1.msra.mxu0 0.0
    %6991 = vmatprep.mubr.f32.mxu0 0.0
    %6992 = vmatmul.mubr.f32.gmra.mrb[0].mxu0 %v6922
    %v6993 = vpop.f32.mrb[0].mxu0
    %v6994 = vadd.f32 0.0, %v6993
    %v6995 = vpop.f32.mrb[0].mxu0
    %6996 = vmatprep.mubr.f32.mxu0 0.0
    %6997 = vmatmul.mubr.f32.gmra.mrb[0].mxu0 %v6925
    %v6998 = vpop.f32.mrb[0].mxu0
    %v6999 = vadd.f32 0.0, %v6998
    %v7000 = vpop.f32.mrb[0].mxu0
    %7001 = vdwg.mxu0
    %7002 = vst [vmem:[#allocation2] sm:$0xff] %v6994
    %7003 = vst [vmem:[#allocation2 + $0x8] sm:$0xff] %v6999
    %v7004 = vld [vmem:[%s2] sm:$0xff]
    %v7005 = vld [vmem:[%s2 + $0x8] sm:$0xff]
    %7006 = vset.pattern.permute.xlu0 0
    %7007 = vperm.xlu0 %7006, %v7004
    %v7008 = vpop.permute.xlu0 %7007
    %7009 = vset.pattern.permute.xlu0 0
    %7010 = vperm.xlu0 %7009, %v7005
    %v7011 = vpop.permute.xlu0 %7010
    %vm7012 = vcmp.eq.s32.totalorder %v87, %v7008
    %vm7013 = vcmp.eq.s32.totalorder %v87, %v7011
    %v7014 = vsel %vm7012, 1, 0
    %v7015 = vsel %vm7013, 1, 0
    %v7016 = vcvt.s32.f32 %v7014
    %v7017 = vcvt.s32.f32 %v7015
    %7018 = vmax.xlane.f32.xlu0 %v6994
    %v7019 = vpop.xlane.xlu0 %7018
    %7020 = vmax.xlane.f32.xlu0 %v6999
    %v7021 = vpop.xlane.xlu0 %7020
    %v7022 = vsub.f32 %v6994, %v7019
    %v7023 = vsub.f32 %v6999, %v7021
    %v7024 = vmul.f32 %v7022, 1.442695
    %v7025 = vpow.pop %v7024
    %v7026 = vmul.f32 %v7023, 1.442695
    %v7027 = vpow.pop %v7026
    %7028 = vadd.xlane.f32.xlu0 %v7025
    %v7029 = vpop.xlane.xlu0 %7028
    %7030 = vadd.xlane.f32.xlu0 %v7027
    %v7031 = vpop.xlane.xlu0 %7030
    %v7032 = vlog2.pop %v7029
    %v7033 = vmul.f32 %v7032, 0.6931472
    %v7034 = vlog2.pop %v7031
    %v7035 = vmul.f32 %v7034, 0.6931472
    %v7036 = vadd.f32 %v7019, %v7033
    %v7037 = vadd.f32 %v7021, %v7035
    %v7038 = vmul.f32 %v7016, %v6994
    %v7039 = vmul.f32 %v7017, %v6999
    %7040 = vadd.xlane.f32.xlu0 %v7038
    %v7041 = vpop.xlane.xlu0 %7040
    %7042 = vadd.xlane.f32.xlu0 %v7039
    %v7043 = vpop.xlane.xlu0 %7042
    %vm7044 = vcmp.ne.s32.totalorder %v7004, 4294967196
    %vm7045 = vcmp.ne.s32.totalorder %v7005, 4294967196
    %v7046 = vsel %vm7044, 1, 0
    %v7047 = vsel %vm7045, 1, 0
    %v7048 = vcvt.s32.f32 %v7046
    %v7049 = vcvt.s32.f32 %v7047
    %v7050 = vsub.f32 %v7036, %v7041
    %v7051 = vsub.f32 %v7037, %v7043
    %v7052 = vmul.f32 %v7050, %v7048
    %v7053 = vmul.f32 %v7051, %v7049
    %vm7054 = vcmask 7168
    %v7055 = vsel %vm7054, %v7052, 0.0
    %v7056 = vsel %vm7054, %v7053, 0.0
    %v7057 = vadd.f32 %v7055, %v7056
    %v7058 = vrot.slane %v7057, 4
    %v7059 = vadd.f32 %v7057, %v7058
    %v7060 = vrot.slane %v7059, 2
    %v7061 = vadd.f32 %v7059, %v7060
    %v7062 = vrot.slane %v7061, 1
    %v7063 = vadd.f32 %v7061, %v7062
    %v7064 = vsel %vm7054, %v7048, 0.0
    %v7065 = vsel %vm7054, %v7049, 0.0
    %v7066 = vadd.f32 %v7064, %v7065
    %v7067 = vrot.slane %v7066, 4
    %v7068 = vadd.f32 %v7066, %v7067
    %v7069 = vrot.slane %v7068, 2
    %v7070 = vadd.f32 %v7068, %v7069
    %v7071 = vrot.slane %v7070, 1
    %v7072 = vadd.f32 %v7070, %v7071
    %v7073 = vmax.f32 %v7072, 1.0
    %v7074 = vrcp.pop %v7073
    %v7075 = vmul.f32 %v7063, %v7074
    %vm7076 = vcmask 0
    %7077 = vst.msk [vmem:[#allocation4] sm:$0x1] %vm7076, %v7075
    // Predicated region
    $region102: #{t5_rag_forward.1} parent=1 // pred_check
      _
    $region103: #{t5_rag_forward.1} parent=1 // pred_check_branch
      %7079 = sbr.rel (0) target = $region105
    $region104: #{t5_rag_forward.1} parent=1 // pred_region
      %s7081 = ssub.s32 256, 256
      %7082 = vsyncadd [#allocation3], %s7081
      %s7083 = sshll.u32 [#allocation2], 4
      %s7084 = int_to_ptr.vmem [resolvable:$true] %s7083
      %7089 = dma.vmem_to_hbm [thread:$0]  %s7084, 256, %s25, [#allocation3], 128, 128, 8
    $region105: #{t5_rag_forward.1} parent=1 // pred_fallthru
      _
    // Predicated region
    $region106: #{t5_rag_forward.1} parent=1 // pred_check
      _
    $region107: #{t5_rag_forward.1} parent=1 // pred_check_branch
      %7091 = sbr.rel (0) target = $region109
    $region108: #{t5_rag_forward.1} parent=1 // pred_region
      %s7093 = ssub.s32 16, 16
      %7094 = vsyncadd [#allocation5], %s7093
      %s7096 = sshll.u32 [#allocation4], 4
      %s7097 = int_to_ptr.vmem [resolvable:$true] %s7096
      %7099 = dma.vmem_to_hbm [thread:$0]  %s7097, 16, %s26, [#allocation5]
    $region109: #{t5_rag_forward.1} parent=1 // pred_fallthru
      _
    // Predicated region
    $region110: #{t5_rag_forward.1} parent=1 // pred_check
      _
    $region111: #{t5_rag_forward.1} parent=1 // pred_check_branch
      %7101 = sbr.rel (0) target = $region113
    $region112: #{t5_rag_forward.1} parent=1 // pred_region
      %7102 = dma.done [#allocation3], 256
    $region113: #{t5_rag_forward.1} parent=1 // pred_fallthru
      _
    // Predicated region
    $region114: #{t5_rag_forward.1} parent=1 // pred_check
      _
    $region115: #{t5_rag_forward.1} parent=1 // pred_check_branch
      %7104 = sbr.rel (0) target = $region117
    $region116: #{t5_rag_forward.1} parent=1 // pred_region
      %7105 = dma.done [#allocation5], 16
    $region117: #{t5_rag_forward.1} parent=1 // pred_fallthru
      _
    %7106 = vsyncpa [#allocation3], 1
    %7107 = vsyncpa [#allocation5], 1

</llo_original>
